<compile_context>
chip_gen: v7x
topology: tpu7x:2x2x1
jax: 0.10.0
libtpu: 0.0.40
codegen_flags: <defaults>
</compile_context>

<pallas_src>
import functools
import math

import jax
import jax.numpy as jnp
from jax.experimental import pallas as pl
from jax.experimental.pallas import tpu as pltpu


def _round_up(x, m):
    return ((x + m - 1) // m) * m


# ----------------------------------------------------------------------------
# Fused Pallas kernel: whole DDQN forward in one launch, VMEM-resident.
# ----------------------------------------------------------------------------
def _ddqn_fused_kernel(p1_ref, w1_ref, b1_ref, w2_ref, b2_ref, w3_ref, b3_ref,
                       w4_ref, b4_ref, wl1_ref, bl1_ref, wl2_ref, bl2_ref,
                       o_ref,
                       a1_ref, a2_ref, a3_ref, a4_ref,
                       *, s2, s3, off2, off3, c1, c2, m_pad, flat_starts):
    f32 = jnp.float32

    def relu(v):
        return jnp.maximum(v, 0.0)

    # conv1: one GEMM over the pre-extracted patch slab (rows = (y, x, n)).
    a1_ref[...] = relu(
        jnp.dot(p1_ref[...], w1_ref[...], preferred_element_type=f32)
        + b1_ref[...])

    # conv2: k*k accumulated GEMMs over statically shifted row-windows of
    # conv1's slab (shift = (di*grid_w + dj) * batch).
    acc = None
    for t, off in enumerate(off2):
        term = jnp.dot(a1_ref[off:off + s2, :],
                       w2_ref[t * c1:(t + 1) * c1, :],
                       preferred_element_type=f32)
        acc = term if acc is None else acc + term
    a2_ref[...] = relu(acc + b2_ref[...])

    # conv3: same trick, shifts scaled by conv2's stride on the grid.
    acc = None
    for t, off in enumerate(off3):
        term = jnp.dot(a2_ref[off:off + s3, :],
                       w3_ref[t * c2:(t + 1) * c2, :],
                       preferred_element_type=f32)
        acc = term if acc is None else acc + term
    a3_ref[...] = relu(acc + b3_ref[...])

    # conv1x1: pointwise GEMM (Cout lane-padded to 8, pad columns compute 0).
    a4_ref[...] = relu(
        jnp.dot(a3_ref[...], w4_ref[...], preferred_element_type=f32)
        + b4_ref[...])

    # flatten + linear1 folded together: thanks to the batch-minor layout the
    # batch rows for each conv3 output position are contiguous, so linear1 is
    # a sum of per-position GEMMs straight out of the conv1x1 slab (no copies).
    acc = None
    for pos, start in enumerate(flat_starts):
        term = jnp.dot(a4_ref[start:start + m_pad, :], wl1_ref[pos],
                       preferred_element_type=f32)
        acc = term if acc is None else acc + term
    h = relu(acc + bl1_ref[...])

    # linear2  (lane-dense, 128-wide padded output block).
    o_ref[...] = (jnp.dot(h, wl2_ref[...], preferred_element_type=f32)
                  + bl2_ref[...]).astype(o_ref.dtype)


# ----------------------------------------------------------------------------
# Plain-JAX glue: conv1 im2col (fused by XLA under jit), batch-minor rows.
# ----------------------------------------------------------------------------
def _im2col_conv1(x):
    """x: (N, C, H, W) -> patches (OH*OW*N, C*4*4).

    Rows ordered (y, x, n) (batch-minor); columns ordered (c, di, dj).
    """
    n, c, h, w = x.shape
    k = 4
    oh, ow = h - k + 1, w - k + 1
    cols = []
    for di in range(k):
        for dj in range(k):
            cols.append(x[:, :, di:di + oh, dj:dj + ow])
    p = jnp.stack(cols, axis=0)          # (k*k, N, C, OH, OW), idx = di*k+dj
    p = p.transpose(3, 4, 1, 2, 0)       # (OH, OW, N, C, k*k)
    return p.reshape(oh * ow * n, c * k * k)


# ----------------------------------------------------------------------------
# Jitted forward: geometry + one fused pallas_call
# ----------------------------------------------------------------------------
def _ddqn_apply(packed, x, *, out_dim):
    n, _, h, w = x.shape
    # conv geometry (kernel sizes / strides fixed by the module)
    oh1, ow1 = h - 3, w - 3                              # conv1: k=4, s=1
    oh2, ow2 = (oh1 - 4) // 2 + 1, (ow1 - 4) // 2 + 1    # conv2: k=4, s=2
    oh3, ow3 = (oh2 - 4) // 2 + 1, (ow2 - 4) // 2 + 1    # conv3: k=4, s=2
    wg = ow1                                             # conv1 grid width
    grid = oh1 * ow1
    sp3 = 4                                              # grid-stride of conv3 outputs

    c1 = packed["w1"].shape[1]
    c2 = packed["w2"].shape[1]
    c3 = packed["w3"].shape[1]
    c4p = packed["w4"].shape[1]
    outp = packed["wl2"].shape[1]

    # shifted-window row offsets on the batch-minor slab
    off2 = tuple((di * wg + dj) * n for di in range(4) for dj in range(4))
    off3 = tuple(2 * (di * wg + dj) * n for di in range(4) for dj in range(4))
    # starting row (contiguous batch block) of each conv3 output position
    flat_starts = tuple(sp3 * (oy * wg + ox) * n
                        for oy in range(oh3) for ox in range(ow3))

    m_pad = _round_up(max(n, 8), 8)
    # minimal row counts so every read feeding a valid output is in-bounds
    s3 = _round_up(flat_starts[-1] + m_pad, 8)
    s2 = _round_up(s3 + max(off3), 8)
    s1 = _round_up(s2 + max(off2), 8)

    # conv1 im2col patches (rows ordered (y, x, n) on the grid)
    p1 = _im2col_conv1(x)
    if p1.shape[0] >= s1:
        p1 = p1[:s1]
    else:
        p1 = jnp.pad(p1, ((0, s1 - p1.shape[0]), (0, 0)))

    kernel = functools.partial(
        _ddqn_fused_kernel, s2=s2, s3=s3, off2=off2, off3=off3,
        c1=c1, c2=c2, m_pad=m_pad, flat_starts=flat_starts)

    def vmem_spec():
        return pl.BlockSpec(memory_space=pltpu.MemorySpace.VMEM)

    out = pl.pallas_call(
        kernel,
        out_shape=jax.ShapeDtypeStruct((m_pad, outp), jnp.float32),
        in_specs=[vmem_spec() for _ in range(13)],
        out_specs=vmem_spec(),
        scratch_shapes=[
            pltpu.VMEM((s1, c1), jnp.float32),     # conv1 activations
            pltpu.VMEM((s2, c2), jnp.float32),     # conv2 activations
            pltpu.VMEM((s3, c3), jnp.float32),     # conv3 activations
            pltpu.VMEM((s3, c4p), jnp.float32),    # conv1x1 activations
        ],
    )(p1,
      packed["w1"], packed["b1"], packed["w2"], packed["b2"],
      packed["w3"], packed["b3"], packed["w4"], packed["b4"],
      packed["wl1"], packed["bl1"], packed["wl2"], packed["bl2"])

    return out[:n, :out_dim]


# ----------------------------------------------------------------------------
# Parameter init (PyTorch nn.Conv2d / nn.Linear default init) + kernel layout
# ----------------------------------------------------------------------------
def _init_conv(key, o, c, k):
    kw, kb = jax.random.split(key)
    bound = 1.0 / math.sqrt(c * k * k)
    w = jax.random.uniform(kw, (o, c, k, k), jnp.float32, -bound, bound)
    b = jax.random.uniform(kb, (o,), jnp.float32, -bound, bound)
    return w, b


def _init_linear(key, o, i):
    kw, kb = jax.random.split(key)
    bound = 1.0 / math.sqrt(i)
    w = jax.random.uniform(kw, (o, i), jnp.float32, -bound, bound)
    b = jax.random.uniform(kb, (o,), jnp.float32, -bound, bound)
    return w, b


def _conv_out(h, k, s):
    return (h - k) // s + 1


def init_ddqn_params(key, input_dim, output_dim):
    _, h, w = input_dim
    keys = jax.random.split(key, 6)
    p = {}
    p["conv1_w"], p["conv1_b"] = _init_conv(keys[0], 16, 4, 4)
    p["conv2_w"], p["conv2_b"] = _init_conv(keys[1], 32, 16, 4)
    p["conv3_w"], p["conv3_b"] = _init_conv(keys[2], 64, 32, 4)
    p["conv1x1_w"], p["conv1x1_b"] = _init_conv(keys[3], 4, 64, 1)
    oh = _conv_out(_conv_out(_conv_out(h, 4, 1), 4, 2), 4, 2)
    ow = _conv_out(_conv_out(_conv_out(w, 4, 1), 4, 2), 4, 2)
    flat = 4 * oh * ow                       # mirrors self.dummy_output.numel()
    p["lin1_w"], p["lin1_b"] = _init_linear(keys[4], 512, flat)
    p["lin2_w"], p["lin2_b"] = _init_linear(keys[5], output_dim, flat and 512)
    return p


def _pack_params(raw, input_dim, output_dim):
    """Pre-layout all weights for the fused kernel (done once at init)."""
    _, h, w = input_dim
    oh1, ow1 = h - 3, w - 3
    oh2, ow2 = (oh1 - 4) // 2 + 1, (ow1 - 4) // 2 + 1
    oh3, ow3 = (oh2 - 4) // 2 + 1, (ow2 - 4) // 2 + 1
    n_pos = oh3 * ow3
    c4, c4p = 4, 8                                   # conv1x1 out, lane-padded
    outp = _round_up(max(output_dim, 128), 128)

    p = {}
    # conv1 as a GEMM with columns ordered (c, di, dj) (matches _im2col_conv1)
    p["w1"] = raw["conv1_w"].reshape(16, 4 * 4 * 4).T             # (64, 16)
    p["b1"] = raw["conv1_b"].reshape(1, 16)
    # conv2 / conv3 as per-offset (Cin, Cout) blocks, rows ordered (di, dj, c)
    p["w2"] = raw["conv2_w"].transpose(2, 3, 1, 0).reshape(16 * 16, 32)
    p["b2"] = raw["conv2_b"].reshape(1, 32)
    p["w3"] = raw["conv3_w"].transpose(2, 3, 1, 0).reshape(16 * 32, 64)
    p["b3"] = raw["conv3_b"].reshape(1, 64)
    # conv1x1 pointwise GEMM, Cout padded 4 -> 8 (pad columns compute zeros)
    w4 = raw["conv1x1_w"].reshape(4, 64).T                        # (64, 4)
    p["w4"] = jnp.pad(w4, ((0, 0), (0, c4p - c4)))
    p["b4"] = jnp.pad(raw["conv1x1_b"].reshape(1, 4), ((0, 0), (0, c4p - c4)))
    # linear1: per conv3-output-position (c4p, 512) blocks.  Permute columns
    # from PyTorch flatten order (c, oy, ox) to (oy, ox, c) and zero-pad the
    # channel dim to match the padded conv1x1 slab.
    wl1 = raw["lin1_w"].reshape(512, 4, oh3, ow3)
    wl1 = wl1.transpose(2, 3, 1, 0).reshape(n_pos, 4, 512)
    p["wl1"] = jnp.pad(wl1, ((0, 0), (0, c4p - c4), (0, 0)))      # (n_pos, 8, 512)
    p["bl1"] = raw["lin1_b"].reshape(1, 512)
    # linear2: pre-transpose and lane-pad to 128 for a dense output block.
    wl2 = raw["lin2_w"].T                                         # (512, out)
    p["wl2"] = jnp.pad(wl2, ((0, 0), (0, outp - output_dim)))
    p["bl2"] = jnp.pad(raw["lin2_b"].reshape(1, -1),
                       ((0, 0), (0, outp - output_dim)))
    return p


# ----------------------------------------------------------------------------
# Pure-JAX (XLA) reference of the same network, for a numerical sanity check.
# ----------------------------------------------------------------------------
def _reference_forward(raw, x):
    def conv(v, w, b, stride):
        y = jax.lax.conv_general_dilated(
            v, w, window_strides=(stride, stride), padding="VALID",
            dimension_numbers=("NCHW", "OIHW", "NCHW"))
        return jax.nn.relu(y + b.reshape(1, -1, 1, 1))

    y = conv(x, raw["conv1_w"], raw["conv1_b"], 1)
    y = conv(y, raw["conv2_w"], raw["conv2_b"], 2)
    y = conv(y, raw["conv3_w"], raw["conv3_b"], 2)
    y = conv(y, raw["conv1x1_w"], raw["conv1x1_b"], 1)
    y = y.reshape(y.shape[0], -1)
    y = jax.nn.relu(y @ raw["lin1_w"].T + raw["lin1_b"])
    return y @ raw["lin2_w"].T + raw["lin2_b"]


# ----------------------------------------------------------------------------
# DDQN wrapper (online / target)
# ----------------------------------------------------------------------------
class DDQN:
    def __init__(self, input_dim, output_dim, key):
        self.input_dim = input_dim
        self.output_dim = output_dim
        self.raw_online = init_ddqn_params(key, input_dim, output_dim)
        self.raw_target = jax.tree_util.tree_map(jnp.copy, self.raw_online)
        self.params_online = _pack_params(self.raw_online, input_dim, output_dim)
        self.params_target = _pack_params(self.raw_target, input_dim, output_dim)
        self._apply = jax.jit(functools.partial(_ddqn_apply, out_dim=output_dim))

    def forward(self, x, model):
        # Input-shape massaging (matches the PyTorch forward)
        if x.ndim == 5:
            x = x.reshape(-1, *x.shape[2:])
        if x.ndim == 3:
            x = x[:, None, :, :]
        if x.shape[1] == 1:
            x = jnp.repeat(x, 4, axis=1)
        elif x.shape[1] == 4:
            pass
        else:
            # TODO(synk): the original 16-channel branch feeds conv1x1 (which
            # expects 64 in-channels) and would crash in PyTorch too; not modeled.
            raise ValueError(
                f"Expected input to have 4 channels, but got {x.shape[1]} channels.")
        # TODO(synk): try/except returning self.previous_online (stateful error
        # swallowing) has no functional JAX equivalent; normal path only.
        params = self.params_online if model == "online" else self.params_target
        return self._apply(params, x)


if __name__ == "__main__":
    key = jax.random.PRNGKey(0)
    k_param, k_input = jax.random.split(key)

    input_dim = (4, 16, 16)   # (c, h, w)
    output_dim = 6
    batch = 2

    net = DDQN(input_dim, output_dim, k_param)
    x = jax.random.normal(k_input, (batch, *input_dim), jnp.float32)

    q_online = net.forward(x, "online")
    q_target = net.forward(x, "target")
    jax.block_until_ready(q_online)
    jax.block_until_ready(q_target)

    assert q_online.shape == (batch, output_dim)
    assert q_target.shape == (batch, output_dim)

    # Numerical sanity check against the plain-XLA reference of the same net.
    ref = _reference_forward(net.raw_online, x)
    max_diff = float(jnp.max(jnp.abs(q_online - ref)))
    assert jnp.allclose(q_online, ref, rtol=5e-2, atol=5e-2), (
        f"fused kernel mismatch vs reference, max abs diff = {max_diff}")

    print("KERNEL_OK")
</pallas_src>

<mosaic_0001>
module attributes {stable_mosaic.version = 11 : i64} {
  func.func @_ddqn_fused_kernel(%arg0: memref<264x64xf32, #tpu.memory_space<vmem>>, %arg1: memref<64x16xf32, #tpu.memory_space<vmem>>, %arg2: memref<1x16xf32, #tpu.memory_space<vmem>>, %arg3: memref<256x32xf32, #tpu.memory_space<vmem>>, %arg4: memref<1x32xf32, #tpu.memory_space<vmem>>, %arg5: memref<512x64xf32, #tpu.memory_space<vmem>>, %arg6: memref<1x64xf32, #tpu.memory_space<vmem>>, %arg7: memref<64x8xf32, #tpu.memory_space<vmem>>, %arg8: memref<1x8xf32, #tpu.memory_space<vmem>>, %arg9: memref<1x8x512xf32, #tpu.memory_space<vmem>>, %arg10: memref<1x512xf32, #tpu.memory_space<vmem>>, %arg11: memref<512x128xf32, #tpu.memory_space<vmem>>, %arg12: memref<1x128xf32, #tpu.memory_space<vmem>>, %arg13: memref<8x128xf32, #tpu.memory_space<vmem>>, %arg14: memref<264x16xf32, #tpu.memory_space<vmem>>, %arg15: memref<176x32xf32, #tpu.memory_space<vmem>>, %arg16: memref<8x64xf32, #tpu.memory_space<vmem>>, %arg17: memref<8x8xf32, #tpu.memory_space<vmem>>) attributes {dimension_semantics = [], scalar_prefetch = 0 : i64, scratch_operands = 4 : i64, tpu.core_type = #tpu.core_type<tc>} {
    %c0 = arith.constant 0 : index
    %c0_0 = arith.constant 0 : index
    %0 = vector.load %arg0[%c0, %c0_0] : memref<264x64xf32, #tpu.memory_space<vmem>>, vector<264x64xf32>
    %c0_1 = arith.constant 0 : index
    %c0_2 = arith.constant 0 : index
    %1 = vector.load %arg1[%c0_1, %c0_2] : memref<64x16xf32, #tpu.memory_space<vmem>>, vector<64x16xf32>
    %cst = arith.constant dense<0.000000e+00> : vector<264x16xf32>
    %2 = tpu.matmul %0, %1, %cst {dimension_numbers = #tpu.dot_dimension_numbers<[1], [0], [0], [1], [0, 0, 1, 1], [], []>} : vector<264x64xf32>, vector<64x16xf32>, vector<264x16xf32> -> vector<264x16xf32>
    %c0_3 = arith.constant 0 : index
    %c0_4 = arith.constant 0 : index
    %3 = vector.load %arg2[%c0_3, %c0_4] : memref<1x16xf32, #tpu.memory_space<vmem>>, vector<1x16xf32>
    %4 = vector.broadcast %3 : vector<1x16xf32> to vector<264x16xf32>
    %5 = arith.addf %2, %4 : vector<264x16xf32>
    %cst_5 = arith.constant 0.000000e+00 : f32
    %6 = vector.broadcast %cst_5 : f32 to vector<264x16xf32>
    %7 = arith.maximumf %5, %6 : vector<264x16xf32>
    %c0_6 = arith.constant 0 : index
    %c0_7 = arith.constant 0 : index
    %8 = vector.load %arg14[%c0_6, %c0_7] : memref<264x16xf32, #tpu.memory_space<vmem>>, vector<264x16xf32>
    tpu.vector_store %arg14[%c0_6, %c0_7], %7 {strides = array<i32>} : memref<264x16xf32, #tpu.memory_space<vmem>>, vector<264x16xf32>,
    %c0_8 = arith.constant 0 : index
    %c0_9 = arith.constant 0 : index
    %9 = vector.load %arg14[%c0_8, %c0_9] : memref<264x16xf32, #tpu.memory_space<vmem>>, vector<176x16xf32>
    %c0_10 = arith.constant 0 : index
    %c0_11 = arith.constant 0 : index
    %10 = vector.load %arg3[%c0_10, %c0_11] : memref<256x32xf32, #tpu.memory_space<vmem>>, vector<16x32xf32>
    %cst_12 = arith.constant dense<0.000000e+00> : vector<176x32xf32>
    %11 = tpu.matmul %9, %10, %cst_12 {dimension_numbers = #tpu.dot_dimension_numbers<[1], [0], [0], [1], [0, 0, 1, 1], [], []>} : vector<176x16xf32>, vector<16x32xf32>, vector<176x32xf32> -> vector<176x32xf32>
    %c2 = arith.constant 2 : index
    %c0_13 = arith.constant 0 : index
    %12 = vector.load %arg14[%c2, %c0_13] : memref<264x16xf32, #tpu.memory_space<vmem>>, vector<176x16xf32>
    %c16 = arith.constant 16 : index
    %c0_14 = arith.constant 0 : index
    %13 = vector.load %arg3[%c16, %c0_14] : memref<256x32xf32, #tpu.memory_space<vmem>>, vector<16x32xf32>
    %cst_15 = arith.constant dense<0.000000e+00> : vector<176x32xf32>
    %14 = tpu.matmul %12, %13, %cst_15 {dimension_numbers = #tpu.dot_dimension_numbers<[1], [0], [0], [1], [0, 0, 1, 1], [], []>} : vector<176x16xf32>, vector<16x32xf32>, vector<176x32xf32> -> vector<176x32xf32>
    %15 = arith.addf %11, %14 : vector<176x32xf32>
    %c4 = arith.constant 4 : index
    %c0_16 = arith.constant 0 : index
    %16 = vector.load %arg14[%c4, %c0_16] : memref<264x16xf32, #tpu.memory_space<vmem>>, vector<176x16xf32>
    %c32 = arith.constant 32 : index
    %c0_17 = arith.constant 0 : index
    %17 = vector.load %arg3[%c32, %c0_17] : memref<256x32xf32, #tpu.memory_space<vmem>>, vector<16x32xf32>
    %cst_18 = arith.constant dense<0.000000e+00> : vector<176x32xf32>
    %18 = tpu.matmul %16, %17, %cst_18 {dimension_numbers = #tpu.dot_dimension_numbers<[1], [0], [0], [1], [0, 0, 1, 1], [], []>} : vector<176x16xf32>, vector<16x32xf32>, vector<176x32xf32> -> vector<176x32xf32>
    %19 = arith.addf %15, %18 : vector<176x32xf32>
    %c6 = arith.constant 6 : index
    %c0_19 = arith.constant 0 : index
    %20 = vector.load %arg14[%c6, %c0_19] : memref<264x16xf32, #tpu.memory_space<vmem>>, vector<176x16xf32>
    %c48 = arith.constant 48 : index
    %c0_20 = arith.constant 0 : index
    %21 = vector.load %arg3[%c48, %c0_20] : memref<256x32xf32, #tpu.memory_space<vmem>>, vector<16x32xf32>
    %cst_21 = arith.constant dense<0.000000e+00> : vector<176x32xf32>
    %22 = tpu.matmul %20, %21, %cst_21 {dimension_numbers = #tpu.dot_dimension_numbers<[1], [0], [0], [1], [0, 0, 1, 1], [], []>} : vector<176x16xf32>, vector<16x32xf32>, vector<176x32xf32> -> vector<176x32xf32>
    %23 = arith.addf %19, %22 : vector<176x32xf32>
    %c26 = arith.constant 26 : index
    %c0_22 = arith.constant 0 : index
    %24 = vector.load %arg14[%c26, %c0_22] : memref<264x16xf32, #tpu.memory_space<vmem>>, vector<176x16xf32>
    %c64 = arith.constant 64 : index
    %c0_23 = arith.constant 0 : index
    %25 = vector.load %arg3[%c64, %c0_23] : memref<256x32xf32, #tpu.memory_space<vmem>>, vector<16x32xf32>
    %cst_24 = arith.constant dense<0.000000e+00> : vector<176x32xf32>
    %26 = tpu.matmul %24, %25, %cst_24 {dimension_numbers = #tpu.dot_dimension_numbers<[1], [0], [0], [1], [0, 0, 1, 1], [], []>} : vector<176x16xf32>, vector<16x32xf32>, vector<176x32xf32> -> vector<176x32xf32>
    %27 = arith.addf %23, %26 : vector<176x32xf32>
    %c28 = arith.constant 28 : index
    %c0_25 = arith.constant 0 : index
    %28 = vector.load %arg14[%c28, %c0_25] : memref<264x16xf32, #tpu.memory_space<vmem>>, vector<176x16xf32>
    %c80 = arith.constant 80 : index
    %c0_26 = arith.constant 0 : index
    %29 = vector.load %arg3[%c80, %c0_26] : memref<256x32xf32, #tpu.memory_space<vmem>>, vector<16x32xf32>
    %cst_27 = arith.constant dense<0.000000e+00> : vector<176x32xf32>
    %30 = tpu.matmul %28, %29, %cst_27 {dimension_numbers = #tpu.dot_dimension_numbers<[1], [0], [0], [1], [0, 0, 1, 1], [], []>} : vector<176x16xf32>, vector<16x32xf32>, vector<176x32xf32> -> vector<176x32xf32>
    %31 = arith.addf %27, %30 : vector<176x32xf32>
    %c30 = arith.constant 30 : index
    %c0_28 = arith.constant 0 : index
    %32 = vector.load %arg14[%c30, %c0_28] : memref<264x16xf32, #tpu.memory_space<vmem>>, vector<176x16xf32>
    %c96 = arith.constant 96 : index
    %c0_29 = arith.constant 0 : index
    %33 = vector.load %arg3[%c96, %c0_29] : memref<256x32xf32, #tpu.memory_space<vmem>>, vector<16x32xf32>
    %cst_30 = arith.constant dense<0.000000e+00> : vector<176x32xf32>
    %34 = tpu.matmul %32, %33, %cst_30 {dimension_numbers = #tpu.dot_dimension_numbers<[1], [0], [0], [1], [0, 0, 1, 1], [], []>} : vector<176x16xf32>, vector<16x32xf32>, vector<176x32xf32> -> vector<176x32xf32>
    %35 = arith.addf %31, %34 : vector<176x32xf32>
    %c32_31 = arith.constant 32 : index
    %c0_32 = arith.constant 0 : index
    %36 = vector.load %arg14[%c32_31, %c0_32] : memref<264x16xf32, #tpu.memory_space<vmem>>, vector<176x16xf32>
    %c112 = arith.constant 112 : index
    %c0_33 = arith.constant 0 : index
    %37 = vector.load %arg3[%c112, %c0_33] : memref<256x32xf32, #tpu.memory_space<vmem>>, vector<16x32xf32>
    %cst_34 = arith.constant dense<0.000000e+00> : vector<176x32xf32>
    %38 = tpu.matmul %36, %37, %cst_34 {dimension_numbers = #tpu.dot_dimension_numbers<[1], [0], [0], [1], [0, 0, 1, 1], [], []>} : vector<176x16xf32>, vector<16x32xf32>, vector<176x32xf32> -> vector<176x32xf32>
    %39 = arith.addf %35, %38 : vector<176x32xf32>
    %c52 = arith.constant 52 : index
    %c0_35 = arith.constant 0 : index
    %40 = vector.load %arg14[%c52, %c0_35] : memref<264x16xf32, #tpu.memory_space<vmem>>, vector<176x16xf32>
    %c128 = arith.constant 128 : index
    %c0_36 = arith.constant 0 : index
    %41 = vector.load %arg3[%c128, %c0_36] : memref<256x32xf32, #tpu.memory_space<vmem>>, vector<16x32xf32>
    %cst_37 = arith.constant dense<0.000000e+00> : vector<176x32xf32>
    %42 = tpu.matmul %40, %41, %cst_37 {dimension_numbers = #tpu.dot_dimension_numbers<[1], [0], [0], [1], [0, 0, 1, 1], [], []>} : vector<176x16xf32>, vector<16x32xf32>, vector<176x32xf32> -> vector<176x32xf32>
    %43 = arith.addf %39, %42 : vector<176x32xf32>
    %c54 = arith.constant 54 : index
    %c0_38 = arith.constant 0 : index
    %44 = vector.load %arg14[%c54, %c0_38] : memref<264x16xf32, #tpu.memory_space<vmem>>, vector<176x16xf32>
    %c144 = arith.constant 144 : index
    %c0_39 = arith.constant 0 : index
    %45 = vector.load %arg3[%c144, %c0_39] : memref<256x32xf32, #tpu.memory_space<vmem>>, vector<16x32xf32>
    %cst_40 = arith.constant dense<0.000000e+00> : vector<176x32xf32>
    %46 = tpu.matmul %44, %45, %cst_40 {dimension_numbers = #tpu.dot_dimension_numbers<[1], [0], [0], [1], [0, 0, 1, 1], [], []>} : vector<176x16xf32>, vector<16x32xf32>, vector<176x32xf32> -> vector<176x32xf32>
    %47 = arith.addf %43, %46 : vector<176x32xf32>
    %c56 = arith.constant 56 : index
    %c0_41 = arith.constant 0 : index
    %48 = vector.load %arg14[%c56, %c0_41] : memref<264x16xf32, #tpu.memory_space<vmem>>, vector<176x16xf32>
    %c160 = arith.constant 160 : index
    %c0_42 = arith.constant 0 : index
    %49 = vector.load %arg3[%c160, %c0_42] : memref<256x32xf32, #tpu.memory_space<vmem>>, vector<16x32xf32>
    %cst_43 = arith.constant dense<0.000000e+00> : vector<176x32xf32>
    %50 = tpu.matmul %48, %49, %cst_43 {dimension_numbers = #tpu.dot_dimension_numbers<[1], [0], [0], [1], [0, 0, 1, 1], [], []>} : vector<176x16xf32>, vector<16x32xf32>, vector<176x32xf32> -> vector<176x32xf32>
    %51 = arith.addf %47, %50 : vector<176x32xf32>
    %c58 = arith.constant 58 : index
    %c0_44 = arith.constant 0 : index
    %52 = vector.load %arg14[%c58, %c0_44] : memref<264x16xf32, #tpu.memory_space<vmem>>, vector<176x16xf32>
    %c176 = arith.constant 176 : index
    %c0_45 = arith.constant 0 : index
    %53 = vector.load %arg3[%c176, %c0_45] : memref<256x32xf32, #tpu.memory_space<vmem>>, vector<16x32xf32>
    %cst_46 = arith.constant dense<0.000000e+00> : vector<176x32xf32>
    %54 = tpu.matmul %52, %53, %cst_46 {dimension_numbers = #tpu.dot_dimension_numbers<[1], [0], [0], [1], [0, 0, 1, 1], [], []>} : vector<176x16xf32>, vector<16x32xf32>, vector<176x32xf32> -> vector<176x32xf32>
    %55 = arith.addf %51, %54 : vector<176x32xf32>
    %c78 = arith.constant 78 : index
    %c0_47 = arith.constant 0 : index
    %56 = vector.load %arg14[%c78, %c0_47] : memref<264x16xf32, #tpu.memory_space<vmem>>, vector<176x16xf32>
    %c192 = arith.constant 192 : index
    %c0_48 = arith.constant 0 : index
    %57 = vector.load %arg3[%c192, %c0_48] : memref<256x32xf32, #tpu.memory_space<vmem>>, vector<16x32xf32>
    %cst_49 = arith.constant dense<0.000000e+00> : vector<176x32xf32>
    %58 = tpu.matmul %56, %57, %cst_49 {dimension_numbers = #tpu.dot_dimension_numbers<[1], [0], [0], [1], [0, 0, 1, 1], [], []>} : vector<176x16xf32>, vector<16x32xf32>, vector<176x32xf32> -> vector<176x32xf32>
    %59 = arith.addf %55, %58 : vector<176x32xf32>
    %c80_50 = arith.constant 80 : index
    %c0_51 = arith.constant 0 : index
    %60 = vector.load %arg14[%c80_50, %c0_51] : memref<264x16xf32, #tpu.memory_space<vmem>>, vector<176x16xf32>
    %c208 = arith.constant 208 : index
    %c0_52 = arith.constant 0 : index
    %61 = vector.load %arg3[%c208, %c0_52] : memref<256x32xf32, #tpu.memory_space<vmem>>, vector<16x32xf32>
    %cst_53 = arith.constant dense<0.000000e+00> : vector<176x32xf32>
    %62 = tpu.matmul %60, %61, %cst_53 {dimension_numbers = #tpu.dot_dimension_numbers<[1], [0], [0], [1], [0, 0, 1, 1], [], []>} : vector<176x16xf32>, vector<16x32xf32>, vector<176x32xf32> -> vector<176x32xf32>
    %63 = arith.addf %59, %62 : vector<176x32xf32>
    %c82 = arith.constant 82 : index
    %c0_54 = arith.constant 0 : index
    %64 = vector.load %arg14[%c82, %c0_54] : memref<264x16xf32, #tpu.memory_space<vmem>>, vector<176x16xf32>
    %c224 = arith.constant 224 : index
    %c0_55 = arith.constant 0 : index
    %65 = vector.load %arg3[%c224, %c0_55] : memref<256x32xf32, #tpu.memory_space<vmem>>, vector<16x32xf32>
    %cst_56 = arith.constant dense<0.000000e+00> : vector<176x32xf32>
    %66 = tpu.matmul %64, %65, %cst_56 {dimension_numbers = #tpu.dot_dimension_numbers<[1], [0], [0], [1], [0, 0, 1, 1], [], []>} : vector<176x16xf32>, vector<16x32xf32>, vector<176x32xf32> -> vector<176x32xf32>
    %67 = arith.addf %63, %66 : vector<176x32xf32>
    %c84 = arith.constant 84 : index
    %c0_57 = arith.constant 0 : index
    %68 = vector.load %arg14[%c84, %c0_57] : memref<264x16xf32, #tpu.memory_space<vmem>>, vector<176x16xf32>
    %c240 = arith.constant 240 : index
    %c0_58 = arith.constant 0 : index
    %69 = vector.load %arg3[%c240, %c0_58] : memref<256x32xf32, #tpu.memory_space<vmem>>, vector<16x32xf32>
    %cst_59 = arith.constant dense<0.000000e+00> : vector<176x32xf32>
    %70 = tpu.matmul %68, %69, %cst_59 {dimension_numbers = #tpu.dot_dimension_numbers<[1], [0], [0], [1], [0, 0, 1, 1], [], []>} : vector<176x16xf32>, vector<16x32xf32>, vector<176x32xf32> -> vector<176x32xf32>
    %71 = arith.addf %67, %70 : vector<176x32xf32>
    %c0_60 = arith.constant 0 : index
    %c0_61 = arith.constant 0 : index
    %72 = vector.load %arg4[%c0_60, %c0_61] : memref<1x32xf32, #tpu.memory_space<vmem>>, vector<1x32xf32>
    %73 = vector.broadcast %72 : vector<1x32xf32> to vector<176x32xf32>
    %74 = arith.addf %71, %73 : vector<176x32xf32>
    %cst_62 = arith.constant 0.000000e+00 : f32
    %75 = vector.broadcast %cst_62 : f32 to vector<176x32xf32>
    %76 = arith.maximumf %74, %75 : vector<176x32xf32>
    %c0_63 = arith.constant 0 : index
    %c0_64 = arith.constant 0 : index
    %77 = vector.load %arg15[%c0_63, %c0_64] : memref<176x32xf32, #tpu.memory_space<vmem>>, vector<176x32xf32>
    tpu.vector_store %arg15[%c0_63, %c0_64], %76 {strides = array<i32>} : memref<176x32xf32, #tpu.memory_space<vmem>>, vector<176x32xf32>,
    %c0_65 = arith.constant 0 : index
    %c0_66 = arith.constant 0 : index
    %78 = vector.load %arg15[%c0_65, %c0_66] : memref<176x32xf32, #tpu.memory_space<vmem>>, vector<8x32xf32>
    %c0_67 = arith.constant 0 : index
    %c0_68 = arith.constant 0 : index
    %79 = vector.load %arg5[%c0_67, %c0_68] : memref<512x64xf32, #tpu.memory_space<vmem>>, vector<32x64xf32>
    %cst_69 = arith.constant dense<0.000000e+00> : vector<8x64xf32>
    %80 = tpu.matmul %78, %79, %cst_69 {dimension_numbers = #tpu.dot_dimension_numbers<[1], [0], [0], [1], [0, 0, 1, 1], [], []>} : vector<8x32xf32>, vector<32x64xf32>, vector<8x64xf32> -> vector<8x64xf32>
    %c4_70 = arith.constant 4 : index
    %c0_71 = arith.constant 0 : index
    %81 = vector.load %arg15[%c4_70, %c0_71] : memref<176x32xf32, #tpu.memory_space<vmem>>, vector<8x32xf32>
    %c32_72 = arith.constant 32 : index
    %c0_73 = arith.constant 0 : index
    %82 = vector.load %arg5[%c32_72, %c0_73] : memref<512x64xf32, #tpu.memory_space<vmem>>, vector<32x64xf32>
    %cst_74 = arith.constant dense<0.000000e+00> : vector<8x64xf32>
    %83 = tpu.matmul %81, %82, %cst_74 {dimension_numbers = #tpu.dot_dimension_numbers<[1], [0], [0], [1], [0, 0, 1, 1], [], []>} : vector<8x32xf32>, vector<32x64xf32>, vector<8x64xf32> -> vector<8x64xf32>
    %84 = arith.addf %80, %83 : vector<8x64xf32>
    %c8 = arith.constant 8 : index
    %c0_75 = arith.constant 0 : index
    %85 = vector.load %arg15[%c8, %c0_75] : memref<176x32xf32, #tpu.memory_space<vmem>>, vector<8x32xf32>
    %c64_76 = arith.constant 64 : index
    %c0_77 = arith.constant 0 : index
    %86 = vector.load %arg5[%c64_76, %c0_77] : memref<512x64xf32, #tpu.memory_space<vmem>>, vector<32x64xf32>
    %cst_78 = arith.constant dense<0.000000e+00> : vector<8x64xf32>
    %87 = tpu.matmul %85, %86, %cst_78 {dimension_numbers = #tpu.dot_dimension_numbers<[1], [0], [0], [1], [0, 0, 1, 1], [], []>} : vector<8x32xf32>, vector<32x64xf32>, vector<8x64xf32> -> vector<8x64xf32>
    %88 = arith.addf %84, %87 : vector<8x64xf32>
    %c12 = arith.constant 12 : index
    %c0_79 = arith.constant 0 : index
    %89 = vector.load %arg15[%c12, %c0_79] : memref<176x32xf32, #tpu.memory_space<vmem>>, vector<8x32xf32>
    %c96_80 = arith.constant 96 : index
    %c0_81 = arith.constant 0 : index
    %90 = vector.load %arg5[%c96_80, %c0_81] : memref<512x64xf32, #tpu.memory_space<vmem>>, vector<32x64xf32>
    %cst_82 = arith.constant dense<0.000000e+00> : vector<8x64xf32>
    %91 = tpu.matmul %89, %90, %cst_82 {dimension_numbers = #tpu.dot_dimension_numbers<[1], [0], [0], [1], [0, 0, 1, 1], [], []>} : vector<8x32xf32>, vector<32x64xf32>, vector<8x64xf32> -> vector<8x64xf32>
    %92 = arith.addf %88, %91 : vector<8x64xf32>
    %c52_83 = arith.constant 52 : index
    %c0_84 = arith.constant 0 : index
    %93 = vector.load %arg15[%c52_83, %c0_84] : memref<176x32xf32, #tpu.memory_space<vmem>>, vector<8x32xf32>
    %c128_85 = arith.constant 128 : index
    %c0_86 = arith.constant 0 : index
    %94 = vector.load %arg5[%c128_85, %c0_86] : memref<512x64xf32, #tpu.memory_space<vmem>>, vector<32x64xf32>
    %cst_87 = arith.constant dense<0.000000e+00> : vector<8x64xf32>
    %95 = tpu.matmul %93, %94, %cst_87 {dimension_numbers = #tpu.dot_dimension_numbers<[1], [0], [0], [1], [0, 0, 1, 1], [], []>} : vector<8x32xf32>, vector<32x64xf32>, vector<8x64xf32> -> vector<8x64xf32>
    %96 = arith.addf %92, %95 : vector<8x64xf32>
    %c56_88 = arith.constant 56 : index
    %c0_89 = arith.constant 0 : index
    %97 = vector.load %arg15[%c56_88, %c0_89] : memref<176x32xf32, #tpu.memory_space<vmem>>, vector<8x32xf32>
    %c160_90 = arith.constant 160 : index
    %c0_91 = arith.constant 0 : index
    %98 = vector.load %arg5[%c160_90, %c0_91] : memref<512x64xf32, #tpu.memory_space<vmem>>, vector<32x64xf32>
    %cst_92 = arith.constant dense<0.000000e+00> : vector<8x64xf32>
    %99 = tpu.matmul %97, %98, %cst_92 {dimension_numbers = #tpu.dot_dimension_numbers<[1], [0], [0], [1], [0, 0, 1, 1], [], []>} : vector<8x32xf32>, vector<32x64xf32>, vector<8x64xf32> -> vector<8x64xf32>
    %100 = arith.addf %96, %99 : vector<8x64xf32>
    %c60 = arith.constant 60 : index
    %c0_93 = arith.constant 0 : index
    %101 = vector.load %arg15[%c60, %c0_93] : memref<176x32xf32, #tpu.memory_space<vmem>>, vector<8x32xf32>
    %c192_94 = arith.constant 192 : index
    %c0_95 = arith.constant 0 : index
    %102 = vector.load %arg5[%c192_94, %c0_95] : memref<512x64xf32, #tpu.memory_space<vmem>>, vector<32x64xf32>
    %cst_96 = arith.constant dense<0.000000e+00> : vector<8x64xf32>
    %103 = tpu.matmul %101, %102, %cst_96 {dimension_numbers = #tpu.dot_dimension_numbers<[1], [0], [0], [1], [0, 0, 1, 1], [], []>} : vector<8x32xf32>, vector<32x64xf32>, vector<8x64xf32> -> vector<8x64xf32>
    %104 = arith.addf %100, %103 : vector<8x64xf32>
    %c64_97 = arith.constant 64 : index
    %c0_98 = arith.constant 0 : index
    %105 = vector.load %arg15[%c64_97, %c0_98] : memref<176x32xf32, #tpu.memory_space<vmem>>, vector<8x32xf32>
    %c224_99 = arith.constant 224 : index
    %c0_100 = arith.constant 0 : index
    %106 = vector.load %arg5[%c224_99, %c0_100] : memref<512x64xf32, #tpu.memory_space<vmem>>, vector<32x64xf32>
    %cst_101 = arith.constant dense<0.000000e+00> : vector<8x64xf32>
    %107 = tpu.matmul %105, %106, %cst_101 {dimension_numbers = #tpu.dot_dimension_numbers<[1], [0], [0], [1], [0, 0, 1, 1], [], []>} : vector<8x32xf32>, vector<32x64xf32>, vector<8x64xf32> -> vector<8x64xf32>
    %108 = arith.addf %104, %107 : vector<8x64xf32>
    %c104 = arith.constant 104 : index
    %c0_102 = arith.constant 0 : index
    %109 = vector.load %arg15[%c104, %c0_102] : memref<176x32xf32, #tpu.memory_space<vmem>>, vector<8x32xf32>
    %c256 = arith.constant 256 : index
    %c0_103 = arith.constant 0 : index
    %110 = vector.load %arg5[%c256, %c0_103] : memref<512x64xf32, #tpu.memory_space<vmem>>, vector<32x64xf32>
    %cst_104 = arith.constant dense<0.000000e+00> : vector<8x64xf32>
    %111 = tpu.matmul %109, %110, %cst_104 {dimension_numbers = #tpu.dot_dimension_numbers<[1], [0], [0], [1], [0, 0, 1, 1], [], []>} : vector<8x32xf32>, vector<32x64xf32>, vector<8x64xf32> -> vector<8x64xf32>
    %112 = arith.addf %108, %111 : vector<8x64xf32>
    %c108 = arith.constant 108 : index
    %c0_105 = arith.constant 0 : index
    %113 = vector.load %arg15[%c108, %c0_105] : memref<176x32xf32, #tpu.memory_space<vmem>>, vector<8x32xf32>
    %c288 = arith.constant 288 : index
    %c0_106 = arith.constant 0 : index
    %114 = vector.load %arg5[%c288, %c0_106] : memref<512x64xf32, #tpu.memory_space<vmem>>, vector<32x64xf32>
    %cst_107 = arith.constant dense<0.000000e+00> : vector<8x64xf32>
    %115 = tpu.matmul %113, %114, %cst_107 {dimension_numbers = #tpu.dot_dimension_numbers<[1], [0], [0], [1], [0, 0, 1, 1], [], []>} : vector<8x32xf32>, vector<32x64xf32>, vector<8x64xf32> -> vector<8x64xf32>
    %116 = arith.addf %112, %115 : vector<8x64xf32>
    %c112_108 = arith.constant 112 : index
    %c0_109 = arith.constant 0 : index
    %117 = vector.load %arg15[%c112_108, %c0_109] : memref<176x32xf32, #tpu.memory_space<vmem>>, vector<8x32xf32>
    %c320 = arith.constant 320 : index
    %c0_110 = arith.constant 0 : index
    %118 = vector.load %arg5[%c320, %c0_110] : memref<512x64xf32, #tpu.memory_space<vmem>>, vector<32x64xf32>
    %cst_111 = arith.constant dense<0.000000e+00> : vector<8x64xf32>
    %119 = tpu.matmul %117, %118, %cst_111 {dimension_numbers = #tpu.dot_dimension_numbers<[1], [0], [0], [1], [0, 0, 1, 1], [], []>} : vector<8x32xf32>, vector<32x64xf32>, vector<8x64xf32> -> vector<8x64xf32>
    %120 = arith.addf %116, %119 : vector<8x64xf32>
    %c116 = arith.constant 116 : index
    %c0_112 = arith.constant 0 : index
    %121 = vector.load %arg15[%c116, %c0_112] : memref<176x32xf32, #tpu.memory_space<vmem>>, vector<8x32xf32>
    %c352 = arith.constant 352 : index
    %c0_113 = arith.constant 0 : index
    %122 = vector.load %arg5[%c352, %c0_113] : memref<512x64xf32, #tpu.memory_space<vmem>>, vector<32x64xf32>
    %cst_114 = arith.constant dense<0.000000e+00> : vector<8x64xf32>
    %123 = tpu.matmul %121, %122, %cst_114 {dimension_numbers = #tpu.dot_dimension_numbers<[1], [0], [0], [1], [0, 0, 1, 1], [], []>} : vector<8x32xf32>, vector<32x64xf32>, vector<8x64xf32> -> vector<8x64xf32>
    %124 = arith.addf %120, %123 : vector<8x64xf32>
    %c156 = arith.constant 156 : index
    %c0_115 = arith.constant 0 : index
    %125 = vector.load %arg15[%c156, %c0_115] : memref<176x32xf32, #tpu.memory_space<vmem>>, vector<8x32xf32>
    %c384 = arith.constant 384 : index
    %c0_116 = arith.constant 0 : index
    %126 = vector.load %arg5[%c384, %c0_116] : memref<512x64xf32, #tpu.memory_space<vmem>>, vector<32x64xf32>
    %cst_117 = arith.constant dense<0.000000e+00> : vector<8x64xf32>
    %127 = tpu.matmul %125, %126, %cst_117 {dimension_numbers = #tpu.dot_dimension_numbers<[1], [0], [0], [1], [0, 0, 1, 1], [], []>} : vector<8x32xf32>, vector<32x64xf32>, vector<8x64xf32> -> vector<8x64xf32>
    %128 = arith.addf %124, %127 : vector<8x64xf32>
    %c160_118 = arith.constant 160 : index
    %c0_119 = arith.constant 0 : index
    %129 = vector.load %arg15[%c160_118, %c0_119] : memref<176x32xf32, #tpu.memory_space<vmem>>, vector<8x32xf32>
    %c416 = arith.constant 416 : index
    %c0_120 = arith.constant 0 : index
    %130 = vector.load %arg5[%c416, %c0_120] : memref<512x64xf32, #tpu.memory_space<vmem>>, vector<32x64xf32>
    %cst_121 = arith.constant dense<0.000000e+00> : vector<8x64xf32>
    %131 = tpu.matmul %129, %130, %cst_121 {dimension_numbers = #tpu.dot_dimension_numbers<[1], [0], [0], [1], [0, 0, 1, 1], [], []>} : vector<8x32xf32>, vector<32x64xf32>, vector<8x64xf32> -> vector<8x64xf32>
    %132 = arith.addf %128, %131 : vector<8x64xf32>
    %c164 = arith.constant 164 : index
    %c0_122 = arith.constant 0 : index
    %133 = vector.load %arg15[%c164, %c0_122] : memref<176x32xf32, #tpu.memory_space<vmem>>, vector<8x32xf32>
    %c448 = arith.constant 448 : index
    %c0_123 = arith.constant 0 : index
    %134 = vector.load %arg5[%c448, %c0_123] : memref<512x64xf32, #tpu.memory_space<vmem>>, vector<32x64xf32>
    %cst_124 = arith.constant dense<0.000000e+00> : vector<8x64xf32>
    %135 = tpu.matmul %133, %134, %cst_124 {dimension_numbers = #tpu.dot_dimension_numbers<[1], [0], [0], [1], [0, 0, 1, 1], [], []>} : vector<8x32xf32>, vector<32x64xf32>, vector<8x64xf32> -> vector<8x64xf32>
    %136 = arith.addf %132, %135 : vector<8x64xf32>
    %c168 = arith.constant 168 : index
    %c0_125 = arith.constant 0 : index
    %137 = vector.load %arg15[%c168, %c0_125] : memref<176x32xf32, #tpu.memory_space<vmem>>, vector<8x32xf32>
    %c480 = arith.constant 480 : index
    %c0_126 = arith.constant 0 : index
    %138 = vector.load %arg5[%c480, %c0_126] : memref<512x64xf32, #tpu.memory_space<vmem>>, vector<32x64xf32>
    %cst_127 = arith.constant dense<0.000000e+00> : vector<8x64xf32>
    %139 = tpu.matmul %137, %138, %cst_127 {dimension_numbers = #tpu.dot_dimension_numbers<[1], [0], [0], [1], [0, 0, 1, 1], [], []>} : vector<8x32xf32>, vector<32x64xf32>, vector<8x64xf32> -> vector<8x64xf32>
    %140 = arith.addf %136, %139 : vector<8x64xf32>
    %c0_128 = arith.constant 0 : index
    %c0_129 = arith.constant 0 : index
    %141 = vector.load %arg6[%c0_128, %c0_129] : memref<1x64xf32, #tpu.memory_space<vmem>>, vector<1x64xf32>
    %142 = vector.broadcast %141 : vector<1x64xf32> to vector<8x64xf32>
    %143 = arith.addf %140, %142 : vector<8x64xf32>
    %cst_130 = arith.constant 0.000000e+00 : f32
    %144 = vector.broadcast %cst_130 : f32 to vector<8x64xf32>
    %145 = arith.maximumf %143, %144 : vector<8x64xf32>
    %c0_131 = arith.constant 0 : index
    %c0_132 = arith.constant 0 : index
    %146 = vector.load %arg16[%c0_131, %c0_132] : memref<8x64xf32, #tpu.memory_space<vmem>>, vector<8x64xf32>
    tpu.vector_store %arg16[%c0_131, %c0_132], %145 {strides = array<i32>} : memref<8x64xf32, #tpu.memory_space<vmem>>, vector<8x64xf32>,
    %c0_133 = arith.constant 0 : index
    %c0_134 = arith.constant 0 : index
    %147 = vector.load %arg16[%c0_133, %c0_134] : memref<8x64xf32, #tpu.memory_space<vmem>>, vector<8x64xf32>
    %c0_135 = arith.constant 0 : index
    %c0_136 = arith.constant 0 : index
    %148 = vector.load %arg7[%c0_135, %c0_136] : memref<64x8xf32, #tpu.memory_space<vmem>>, vector<64x8xf32>
    %cst_137 = arith.constant dense<0.000000e+00> : vector<8x8xf32>
    %149 = tpu.matmul %147, %148, %cst_137 {dimension_numbers = #tpu.dot_dimension_numbers<[1], [0], [0], [1], [0, 0, 1, 1], [], []>} : vector<8x64xf32>, vector<64x8xf32>, vector<8x8xf32> -> vector<8x8xf32>
    %c0_138 = arith.constant 0 : index
    %c0_139 = arith.constant 0 : index
    %150 = vector.load %arg8[%c0_138, %c0_139] : memref<1x8xf32, #tpu.memory_space<vmem>>, vector<1x8xf32>
    %151 = vector.broadcast %150 : vector<1x8xf32> to vector<8x8xf32>
    %152 = arith.addf %149, %151 : vector<8x8xf32>
    %cst_140 = arith.constant 0.000000e+00 : f32
    %153 = vector.broadcast %cst_140 : f32 to vector<8x8xf32>
    %154 = arith.maximumf %152, %153 : vector<8x8xf32>
    %c0_141 = arith.constant 0 : index
    %c0_142 = arith.constant 0 : index
    %155 = vector.load %arg17[%c0_141, %c0_142] : memref<8x8xf32, #tpu.memory_space<vmem>>, vector<8x8xf32>
    tpu.vector_store %arg17[%c0_141, %c0_142], %154 {strides = array<i32>} : memref<8x8xf32, #tpu.memory_space<vmem>>, vector<8x8xf32>,
    %c0_143 = arith.constant 0 : index
    %c0_144 = arith.constant 0 : index
    %156 = vector.load %arg17[%c0_143, %c0_144] : memref<8x8xf32, #tpu.memory_space<vmem>>, vector<8x8xf32>
    %c0_145 = arith.constant 0 : index
    %c0_146 = arith.constant 0 : index
    %c0_147 = arith.constant 0 : index
    %157 = vector.load %arg9[%c0_145, %c0_146, %c0_147] : memref<1x8x512xf32, #tpu.memory_space<vmem>>, vector<1x8x512xf32>
    %158 = vector.shape_cast %157 : vector<1x8x512xf32> to vector<8x512xf32>
    %cst_148 = arith.constant dense<0.000000e+00> : vector<8x512xf32>
    %159 = tpu.matmul %156, %158, %cst_148 {dimension_numbers = #tpu.dot_dimension_numbers<[1], [0], [0], [1], [0, 0, 1, 1], [], []>} : vector<8x8xf32>, vector<8x512xf32>, vector<8x512xf32> -> vector<8x512xf32>
    %c0_149 = arith.constant 0 : index
    %c0_150 = arith.constant 0 : index
    %160 = vector.load %arg10[%c0_149, %c0_150] : memref<1x512xf32, #tpu.memory_space<vmem>>, vector<1x512xf32>
    %161 = vector.broadcast %160 : vector<1x512xf32> to vector<8x512xf32>
    %162 = arith.addf %159, %161 : vector<8x512xf32>
    %cst_151 = arith.constant 0.000000e+00 : f32
    %163 = vector.broadcast %cst_151 : f32 to vector<8x512xf32>
    %164 = arith.maximumf %162, %163 : vector<8x512xf32>
    %c0_152 = arith.constant 0 : index
    %c0_153 = arith.constant 0 : index
    %165 = vector.load %arg11[%c0_152, %c0_153] : memref<512x128xf32, #tpu.memory_space<vmem>>, vector<512x128xf32>
    %cst_154 = arith.constant dense<0.000000e+00> : vector<8x128xf32>
    %166 = tpu.matmul %164, %165, %cst_154 {dimension_numbers = #tpu.dot_dimension_numbers<[1], [0], [0], [1], [0, 0, 1, 1], [], []>} : vector<8x512xf32>, vector<512x128xf32>, vector<8x128xf32> -> vector<8x128xf32>
    %c0_155 = arith.constant 0 : index
    %c0_156 = arith.constant 0 : index
    %167 = vector.load %arg12[%c0_155, %c0_156] : memref<1x128xf32, #tpu.memory_space<vmem>>, vector<1x128xf32>
    %168 = vector.broadcast %167 : vector<1x128xf32> to vector<8x128xf32>
    %169 = arith.addf %166, %168 : vector<8x128xf32>
    %c0_157 = arith.constant 0 : index
    %c0_158 = arith.constant 0 : index
    %170 = vector.load %arg13[%c0_157, %c0_158] : memref<8x128xf32, #tpu.memory_space<vmem>>, vector<8x128xf32>
    tpu.vector_store %arg13[%c0_157, %c0_158], %169 {strides = array<i32>} : memref<8x128xf32, #tpu.memory_space<vmem>>, vector<8x128xf32>,
    return
  }
}

</mosaic_0001>

<llo_original>
// kernel: _ddqn_apply.1
$region0: #{_ddqn_apply.1}
  #allocation0 [shape = 'u32[]', space=smem, size = 0x4, offset = 0x4, fixed_abs, tag = 'smem constant byte address 0x4 - core index']
  #allocation1 [shape = 'u32[144,128]{1,0:T(1,128)}', space=vmem, size = 0x12000, scoped, tag = 'internal scratch']
  #allocation2 [shape = 'f32[264,16]{1,0:T(8,128)}', space=vmem, size = 0x21000, scoped, tag = 'scratch operand']
  #allocation3 [shape = 'f32[176,32]{1,0:T(8,128)}', space=vmem, size = 0x16000, scoped, tag = 'scratch operand']
  #allocation4 [shape = 'f32[8,64]{1,0:T(8,128)}', space=vmem, size = 0x1000, scoped, tag = 'scratch operand']
  #allocation5 [shape = 'f32[8,8]{1,0:T(8,128)}', space=vmem, size = 0x1000, scoped, tag = 'scratch operand']
  %s0 = inlined_call_operand.vmem [shape: f32[264,64], index: 0, kind: input, shape index: {}]
  %s1 = inlined_call_operand.vmem [shape: f32[64,16], index: 1, kind: input, shape index: {}]
  %s2 = inlined_call_operand.vmem [shape: f32[1,16], index: 2, kind: input, shape index: {}]
  %s3 = inlined_call_operand.vmem [shape: f32[256,32], index: 3, kind: input, shape index: {}]
  %s4 = inlined_call_operand.vmem [shape: f32[1,32], index: 4, kind: input, shape index: {}]
  %s5 = inlined_call_operand.vmem [shape: f32[512,64], index: 5, kind: input, shape index: {}]
  %s6 = inlined_call_operand.vmem [shape: f32[1,64], index: 6, kind: input, shape index: {}]
  %s7 = inlined_call_operand.vmem [shape: f32[64,8], index: 7, kind: input, shape index: {}]
  %s8 = inlined_call_operand.vmem [shape: f32[1,8], index: 8, kind: input, shape index: {}]
  %s9 = inlined_call_operand.vmem [shape: f32[1,8,512], index: 9, kind: input, shape index: {}]
  %s10 = inlined_call_operand.vmem [shape: f32[1,512], index: 10, kind: input, shape index: {}]
  %s11 = inlined_call_operand.vmem [shape: f32[512,128], index: 11, kind: input, shape index: {}]
  %s12 = inlined_call_operand.vmem [shape: f32[1,128], index: 12, kind: input, shape index: {}]
  %s13 = inlined_call_operand.vmem [shape: f32[8,128], index: 13, kind: output, shape index: {}]
  %s14 = sld [smem:[#allocation0]]
  $region62: #{_ddqn_apply.1} parent=0
    _
  %s16 = ssub.s32 1, %s14
  %s17 = scalar_select 0, %s16, %s14
  // Predicated region
  $region2: #{_ddqn_apply.1} parent=0 // pred_check
    _
  $region3: #{_ddqn_apply.1} parent=0 // pred_check_branch
    %19 = sbr.rel (0) target = $region5
  $region4: #{_ddqn_apply.1} parent=0 // pred_region
    _
  $region5: #{_ddqn_apply.1} parent=0 // pred_fallthru
    _
  // Predicated region
  $region6: #{_ddqn_apply.1} parent=0 // pred_check
    _
  $region7: #{_ddqn_apply.1} parent=0 // pred_check_branch
    %21 = sbr.rel (0) target = $region9
  $region8: #{_ddqn_apply.1} parent=0 // pred_region
    _
  $region9: #{_ddqn_apply.1} parent=0 // pred_fallthru
    _
  // Predicated region
  $region10: #{_ddqn_apply.1} parent=0 // pred_check
    _
  $region11: #{_ddqn_apply.1} parent=0 // pred_check_branch
    %23 = sbr.rel (0) target = $region13
  $region12: #{_ddqn_apply.1} parent=0 // pred_region
    _
  $region13: #{_ddqn_apply.1} parent=0 // pred_fallthru
    _
  // Predicated region
  $region14: #{_ddqn_apply.1} parent=0 // pred_check
    _
  $region15: #{_ddqn_apply.1} parent=0 // pred_check_branch
    %25 = sbr.rel (0) target = $region17
  $region16: #{_ddqn_apply.1} parent=0 // pred_region
    _
  $region17: #{_ddqn_apply.1} parent=0 // pred_fallthru
    _
  // Predicated region
  $region18: #{_ddqn_apply.1} parent=0 // pred_check
    _
  $region19: #{_ddqn_apply.1} parent=0 // pred_check_branch
    %27 = sbr.rel (0) target = $region21
  $region20: #{_ddqn_apply.1} parent=0 // pred_region
    _
  $region21: #{_ddqn_apply.1} parent=0 // pred_fallthru
    _
  // Predicated region
  $region22: #{_ddqn_apply.1} parent=0 // pred_check
    _
  $region23: #{_ddqn_apply.1} parent=0 // pred_check_branch
    %29 = sbr.rel (0) target = $region25
  $region24: #{_ddqn_apply.1} parent=0 // pred_region
    _
  $region25: #{_ddqn_apply.1} parent=0 // pred_fallthru
    _
  // Predicated region
  $region26: #{_ddqn_apply.1} parent=0 // pred_check
    _
  $region27: #{_ddqn_apply.1} parent=0 // pred_check_branch
    %31 = sbr.rel (0) target = $region29
  $region28: #{_ddqn_apply.1} parent=0 // pred_region
    _
  $region29: #{_ddqn_apply.1} parent=0 // pred_fallthru
    _
  // Predicated region
  $region30: #{_ddqn_apply.1} parent=0 // pred_check
    _
  $region31: #{_ddqn_apply.1} parent=0 // pred_check_branch
    %33 = sbr.rel (0) target = $region33
  $region32: #{_ddqn_apply.1} parent=0 // pred_region
    _
  $region33: #{_ddqn_apply.1} parent=0 // pred_fallthru
    _
  // Predicated region
  $region34: #{_ddqn_apply.1} parent=0 // pred_check
    _
  $region35: #{_ddqn_apply.1} parent=0 // pred_check_branch
    %35 = sbr.rel (0) target = $region37
  $region36: #{_ddqn_apply.1} parent=0 // pred_region
    _
  $region37: #{_ddqn_apply.1} parent=0 // pred_fallthru
    _
  // Predicated region
  $region38: #{_ddqn_apply.1} parent=0 // pred_check
    _
  $region39: #{_ddqn_apply.1} parent=0 // pred_check_branch
    %37 = sbr.rel (0) target = $region41
  $region40: #{_ddqn_apply.1} parent=0 // pred_region
    _
  $region41: #{_ddqn_apply.1} parent=0 // pred_fallthru
    _
  // Predicated region
  $region42: #{_ddqn_apply.1} parent=0 // pred_check
    _
  $region43: #{_ddqn_apply.1} parent=0 // pred_check_branch
    %39 = sbr.rel (0) target = $region45
  $region44: #{_ddqn_apply.1} parent=0 // pred_region
    _
  $region45: #{_ddqn_apply.1} parent=0 // pred_fallthru
    _
  // Predicated region
  $region46: #{_ddqn_apply.1} parent=0 // pred_check
    _
  $region47: #{_ddqn_apply.1} parent=0 // pred_check_branch
    %41 = sbr.rel (0) target = $region49
  $region48: #{_ddqn_apply.1} parent=0 // pred_region
    _
  $region49: #{_ddqn_apply.1} parent=0 // pred_fallthru
    _
  // Predicated region
  $region50: #{_ddqn_apply.1} parent=0 // pred_check
    _
  $region51: #{_ddqn_apply.1} parent=0 // pred_check_branch
    %43 = sbr.rel (0) target = $region53
  $region52: #{_ddqn_apply.1} parent=0 // pred_region
    _
  $region53: #{_ddqn_apply.1} parent=0 // pred_fallthru
    _
  %v44 = vld [vmem:[%s0] sm:$0xff]
  %v45 = vld [vmem:[%s0 + $0x8] sm:$0xff]
  %v46 = vld [vmem:[%s0 + $0x10] sm:$0xff]
  %v47 = vld [vmem:[%s0 + $0x18] sm:$0xff]
  %v48 = vld [vmem:[%s0 + $0x20] sm:$0xff]
  %v49 = vld [vmem:[%s0 + $0x28] sm:$0xff]
  %v50 = vld [vmem:[%s0 + $0x30] sm:$0xff]
  %v51 = vld [vmem:[%s0 + $0x38] sm:$0xff]
  %v52 = vld [vmem:[%s0 + $0x40] sm:$0xff]
  %v53 = vld [vmem:[%s0 + $0x48] sm:$0xff]
  %v54 = vld [vmem:[%s0 + $0x50] sm:$0xff]
  %v55 = vld [vmem:[%s0 + $0x58] sm:$0xff]
  %v56 = vld [vmem:[%s0 + $0x60] sm:$0xff]
  %v57 = vld [vmem:[%s0 + $0x68] sm:$0xff]
  %v58 = vld [vmem:[%s0 + $0x70] sm:$0xff]
  %v59 = vld [vmem:[%s0 + $0x78] sm:$0xff]
  %v60 = vld [vmem:[%s0 + $0x80] sm:$0xff]
  %v61 = vld [vmem:[%s0 + $0x88] sm:$0xff]
  %v62 = vld [vmem:[%s0 + $0x90] sm:$0xff]
  %v63 = vld [vmem:[%s0 + $0x98] sm:$0xff]
  %v64 = vld [vmem:[%s0 + $0xa0] sm:$0xff]
  %v65 = vld [vmem:[%s0 + $0xa8] sm:$0xff]
  %v66 = vld [vmem:[%s0 + $0xb0] sm:$0xff]
  %v67 = vld [vmem:[%s0 + $0xb8] sm:$0xff]
  %v68 = vld [vmem:[%s0 + $0xc0] sm:$0xff]
  %v69 = vld [vmem:[%s0 + $0xc8] sm:$0xff]
  %v70 = vld [vmem:[%s0 + $0xd0] sm:$0xff]
  %v71 = vld [vmem:[%s0 + $0xd8] sm:$0xff]
  %v72 = vld [vmem:[%s0 + $0xe0] sm:$0xff]
  %v73 = vld [vmem:[%s0 + $0xe8] sm:$0xff]
  %v74 = vld [vmem:[%s0 + $0xf0] sm:$0xff]
  %v75 = vld [vmem:[%s0 + $0xf8] sm:$0xff]
  %v76 = vld [vmem:[%s0 + $0x100] sm:$0xff]
  %v77 = vld [vmem:[%s1] sm:$0xff]
  %v78 = vld [vmem:[%s1 + $0x8] sm:$0xff]
  %v79 = vld [vmem:[%s1 + $0x10] sm:$0xff]
  %v80 = vld [vmem:[%s1 + $0x18] sm:$0xff]
  %v81 = vld [vmem:[%s1 + $0x20] sm:$0xff]
  %v82 = vld [vmem:[%s1 + $0x28] sm:$0xff]
  %v83 = vld [vmem:[%s1 + $0x30] sm:$0xff]
  %v84 = vld [vmem:[%s1 + $0x38] sm:$0xff]
  %v85 = vld [vmem:[%s2] sm:$0x1]
  %v87 = vlaneseq
  %v88 = vshrl.u32 %v87, 7
  %v89 = vsub.s32 0, %v88
  %v90 = vrot.slane %v85, %v89
  %vm92 = vcmask 523264
  %v94 = vsel %vm92, %v44, 0
  %v97 = vsel %vm92, %v45, 0
  %v100 = vsel %vm92, %v46, 0
  %v103 = vsel %vm92, %v47, 0
  %v106 = vsel %vm92, %v48, 0
  %v109 = vsel %vm92, %v49, 0
  %v112 = vsel %vm92, %v50, 0
  %v115 = vsel %vm92, %v51, 0
  %v118 = vsel %vm92, %v52, 0
  %v121 = vsel %vm92, %v53, 0
  %v124 = vsel %vm92, %v54, 0
  %v127 = vsel %vm92, %v55, 0
  %v130 = vsel %vm92, %v56, 0
  %v133 = vsel %vm92, %v57, 0
  %v136 = vsel %vm92, %v58, 0
  %v139 = vsel %vm92, %v59, 0
  %v142 = vsel %vm92, %v60, 0
  %v145 = vsel %vm92, %v61, 0
  %v148 = vsel %vm92, %v62, 0
  %v151 = vsel %vm92, %v63, 0
  %v154 = vsel %vm92, %v64, 0
  %v157 = vsel %vm92, %v65, 0
  %v160 = vsel %vm92, %v66, 0
  %v163 = vsel %vm92, %v67, 0
  %v166 = vsel %vm92, %v68, 0
  %v169 = vsel %vm92, %v69, 0
  %v172 = vsel %vm92, %v70, 0
  %v175 = vsel %vm92, %v71, 0
  %v178 = vsel %vm92, %v72, 0
  %v181 = vsel %vm92, %v73, 0
  %v184 = vsel %vm92, %v74, 0
  %v187 = vsel %vm92, %v75, 0
  %v190 = vsel %vm92, %v76, 0
  %192 = vmatprep.subr.mxu0 0.0
  %193 = vmatpush1.msra.mxu0 %v77
  %194 = vmatprep.subr.mxu0 0.0
  %195 = vmatpush1.msra.mxu0 %v78
  %196 = vmatprep.subr.mxu0 0.0
  %197 = vmatpush1.msra.mxu0 %v79
  %198 = vmatprep.subr.mxu0 0.0
  %199 = vmatpush1.msra.mxu0 %v80
  %200 = vmatprep.subr.mxu0 0.0
  %201 = vmatpush1.msra.mxu0 %v81
  %202 = vmatprep.subr.mxu0 0.0
  %203 = vmatpush1.msra.mxu0 %v82
  %204 = vmatprep.subr.mxu0 0.0
  %205 = vmatpush1.msra.mxu0 %v83
  %206 = vmatprep.subr.mxu0 0.0
  %207 = vmatpush1.msra.mxu0 %v84
  %208 = vmatprep.subr.mxu0 0.0
  %209 = vmatpush1.msra.mxu0 0.0
  %210 = vmatprep.subr.mxu0 0.0
  %211 = vmatpush1.msra.mxu0 0.0
  %212 = vmatprep.subr.mxu0 0.0
  %213 = vmatpush1.msra.mxu0 0.0
  %214 = vmatprep.subr.mxu0 0.0
  %215 = vmatpush1.msra.mxu0 0.0
  %216 = vmatprep.subr.mxu0 0.0
  %217 = vmatpush1.msra.mxu0 0.0
  %218 = vmatprep.subr.mxu0 0.0
  %219 = vmatpush1.msra.mxu0 0.0
  %220 = vmatprep.subr.mxu0 0.0
  %221 = vmatpush1.msra.mxu0 0.0
  %222 = vmatprep.subr.mxu0 0.0
  %223 = vmatpush1.msra.mxu0 0.0
  %224 = vmatprep.subr.mxu0 0.0
  %225 = vmatpush1.msra.mxu0 0.0
  %226 = vmatprep.subr.mxu0 0.0
  %227 = vmatpush1.msra.mxu0 0.0
  %228 = vmatprep.subr.mxu0 0.0
  %229 = vmatpush1.msra.mxu0 0.0
  %230 = vmatprep.subr.mxu0 0.0
  %231 = vmatpush1.msra.mxu0 0.0
  %232 = vmatprep.subr.mxu0 0.0
  %233 = vmatpush1.msra.mxu0 0.0
  %234 = vmatprep.subr.mxu0 0.0
  %235 = vmatpush1.msra.mxu0 0.0
  %236 = vmatprep.subr.mxu0 0.0
  %237 = vmatpush1.msra.mxu0 0.0
  %238 = vmatprep.subr.mxu0 0.0
  %239 = vmatpush1.msra.mxu0 0.0
  %240 = vmatprep.subr.mxu0 0.0
  %241 = vmatpush1.msra.mxu0 0.0
  %242 = vmatprep.subr.mxu0 0.0
  %243 = vmatpush1.msra.mxu0 0.0
  %244 = vmatprep.subr.mxu0 0.0
  %245 = vmatpush1.msra.mxu0 0.0
  %246 = vmatprep.subr.mxu0 0.0
  %247 = vmatpush1.msra.mxu0 0.0
  %248 = vmatprep.subr.mxu0 0.0
  %249 = vmatpush1.msra.mxu0 0.0
  %250 = vmatprep.subr.mxu0 0.0
  %251 = vmatpush1.msra.mxu0 0.0
  %252 = vmatprep.subr.mxu0 0.0
  %253 = vmatpush1.msra.mxu0 0.0
  %254 = vmatprep.subr.mxu0 0.0
  %255 = vmatpush1.msra.mxu0 0.0
  %256 = vmatprep.mubr.f32.mxu0 0.0
  %257 = vmatmul.mubr.f32.gmra.mrb[0].mxu0 %v94
  %v258 = vpop.f32.mrb[0].mxu0
  %v259 = vadd.f32 %v90, %v258
  %v260 = vpop.f32.mrb[0].mxu0
  %261 = vmatprep.mubr.f32.mxu0 0.0
  %262 = vmatmul.mubr.f32.gmra.mrb[0].mxu0 %v97
  %v263 = vpop.f32.mrb[0].mxu0
  %v264 = vadd.f32 %v90, %v263
  %v265 = vpop.f32.mrb[0].mxu0
  %266 = vmatprep.mubr.f32.mxu0 0.0
  %267 = vmatmul.mubr.f32.gmra.mrb[0].mxu0 %v100
  %v268 = vpop.f32.mrb[0].mxu0
  %v269 = vadd.f32 %v90, %v268
  %v270 = vpop.f32.mrb[0].mxu0
  %271 = vmatprep.mubr.f32.mxu0 0.0
  %272 = vmatmul.mubr.f32.gmra.mrb[0].mxu0 %v103
  %v273 = vpop.f32.mrb[0].mxu0
  %v274 = vadd.f32 %v90, %v273
  %v275 = vpop.f32.mrb[0].mxu0
  %276 = vmatprep.mubr.f32.mxu0 0.0
  %277 = vmatmul.mubr.f32.gmra.mrb[0].mxu0 %v106
  %v278 = vpop.f32.mrb[0].mxu0
  %v279 = vadd.f32 %v90, %v278
  %v280 = vpop.f32.mrb[0].mxu0
  %281 = vmatprep.mubr.f32.mxu0 0.0
  %282 = vmatmul.mubr.f32.gmra.mrb[0].mxu0 %v109
  %v283 = vpop.f32.mrb[0].mxu0
  %v284 = vadd.f32 %v90, %v283
  %v285 = vpop.f32.mrb[0].mxu0
  %286 = vmatprep.mubr.f32.mxu0 0.0
  %287 = vmatmul.mubr.f32.gmra.mrb[0].mxu0 %v112
  %v288 = vpop.f32.mrb[0].mxu0
  %v289 = vadd.f32 %v90, %v288
  %v290 = vpop.f32.mrb[0].mxu0
  %291 = vmatprep.mubr.f32.mxu0 0.0
  %292 = vmatmul.mubr.f32.gmra.mrb[0].mxu0 %v115
  %v293 = vpop.f32.mrb[0].mxu0
  %v294 = vadd.f32 %v90, %v293
  %v295 = vpop.f32.mrb[0].mxu0
  %296 = vmatprep.mubr.f32.mxu0 0.0
  %297 = vmatmul.mubr.f32.gmra.mrb[0].mxu0 %v118
  %v298 = vpop.f32.mrb[0].mxu0
  %v299 = vadd.f32 %v90, %v298
  %v300 = vpop.f32.mrb[0].mxu0
  %301 = vmatprep.mubr.f32.mxu0 0.0
  %302 = vmatmul.mubr.f32.gmra.mrb[0].mxu0 %v121
  %v303 = vpop.f32.mrb[0].mxu0
  %v304 = vadd.f32 %v90, %v303
  %v305 = vpop.f32.mrb[0].mxu0
  %306 = vmatprep.mubr.f32.mxu0 0.0
  %307 = vmatmul.mubr.f32.gmra.mrb[0].mxu0 %v124
  %v308 = vpop.f32.mrb[0].mxu0
  %v309 = vadd.f32 %v90, %v308
  %v310 = vpop.f32.mrb[0].mxu0
  %311 = vmatprep.mubr.f32.mxu0 0.0
  %312 = vmatmul.mubr.f32.gmra.mrb[0].mxu0 %v127
  %v313 = vpop.f32.mrb[0].mxu0
  %v314 = vadd.f32 %v90, %v313
  %v315 = vpop.f32.mrb[0].mxu0
  %316 = vmatprep.mubr.f32.mxu0 0.0
  %317 = vmatmul.mubr.f32.gmra.mrb[0].mxu0 %v130
  %v318 = vpop.f32.mrb[0].mxu0
  %v319 = vadd.f32 %v90, %v318
  %v320 = vpop.f32.mrb[0].mxu0
  %321 = vmatprep.mubr.f32.mxu0 0.0
  %322 = vmatmul.mubr.f32.gmra.mrb[0].mxu0 %v133
  %v323 = vpop.f32.mrb[0].mxu0
  %v324 = vadd.f32 %v90, %v323
  %v325 = vpop.f32.mrb[0].mxu0
  %326 = vmatprep.mubr.f32.mxu0 0.0
  %327 = vmatmul.mubr.f32.gmra.mrb[0].mxu0 %v136
  %v328 = vpop.f32.mrb[0].mxu0
  %v329 = vadd.f32 %v90, %v328
  %v330 = vpop.f32.mrb[0].mxu0
  %331 = vmatprep.mubr.f32.mxu0 0.0
  %332 = vmatmul.mubr.f32.gmra.mrb[0].mxu0 %v139
  %v333 = vpop.f32.mrb[0].mxu0
  %v334 = vadd.f32 %v90, %v333
  %v335 = vpop.f32.mrb[0].mxu0
  %336 = vmatprep.mubr.f32.mxu0 0.0
  %337 = vmatmul.mubr.f32.gmra.mrb[0].mxu0 %v142
  %v338 = vpop.f32.mrb[0].mxu0
  %v339 = vadd.f32 %v90, %v338
  %v340 = vpop.f32.mrb[0].mxu0
  %341 = vmatprep.mubr.f32.mxu0 0.0
  %342 = vmatmul.mubr.f32.gmra.mrb[0].mxu0 %v145
  %v343 = vpop.f32.mrb[0].mxu0
  %v344 = vadd.f32 %v90, %v343
  %v345 = vpop.f32.mrb[0].mxu0
  %346 = vmatprep.mubr.f32.mxu0 0.0
  %347 = vmatmul.mubr.f32.gmra.mrb[0].mxu0 %v148
  %v348 = vpop.f32.mrb[0].mxu0
  %v349 = vadd.f32 %v90, %v348
  %v350 = vpop.f32.mrb[0].mxu0
  %351 = vmatprep.mubr.f32.mxu0 0.0
  %352 = vmatmul.mubr.f32.gmra.mrb[0].mxu0 %v151
  %v353 = vpop.f32.mrb[0].mxu0
  %v354 = vadd.f32 %v90, %v353
  %v355 = vpop.f32.mrb[0].mxu0
  %356 = vmatprep.mubr.f32.mxu0 0.0
  %357 = vmatmul.mubr.f32.gmra.mrb[0].mxu0 %v154
  %v358 = vpop.f32.mrb[0].mxu0
  %v359 = vadd.f32 %v90, %v358
  %v360 = vpop.f32.mrb[0].mxu0
  %361 = vmatprep.mubr.f32.mxu0 0.0
  %362 = vmatmul.mubr.f32.gmra.mrb[0].mxu0 %v157
  %v363 = vpop.f32.mrb[0].mxu0
  %v364 = vadd.f32 %v90, %v363
  %v365 = vpop.f32.mrb[0].mxu0
  %366 = vmatprep.mubr.f32.mxu0 0.0
  %367 = vmatmul.mubr.f32.gmra.mrb[0].mxu0 %v160
  %v368 = vpop.f32.mrb[0].mxu0
  %v369 = vadd.f32 %v90, %v368
  %v370 = vpop.f32.mrb[0].mxu0
  %371 = vmatprep.mubr.f32.mxu0 0.0
  %372 = vmatmul.mubr.f32.gmra.mrb[0].mxu0 %v163
  %v373 = vpop.f32.mrb[0].mxu0
  %v374 = vadd.f32 %v90, %v373
  %v375 = vpop.f32.mrb[0].mxu0
  %376 = vmatprep.mubr.f32.mxu0 0.0
  %377 = vmatmul.mubr.f32.gmra.mrb[0].mxu0 %v166
  %v378 = vpop.f32.mrb[0].mxu0
  %v379 = vadd.f32 %v90, %v378
  %v380 = vpop.f32.mrb[0].mxu0
  %381 = vmatprep.mubr.f32.mxu0 0.0
  %382 = vmatmul.mubr.f32.gmra.mrb[0].mxu0 %v169
  %v383 = vpop.f32.mrb[0].mxu0
  %v384 = vadd.f32 %v90, %v383
  %v385 = vpop.f32.mrb[0].mxu0
  %386 = vmatprep.mubr.f32.mxu0 0.0
  %387 = vmatmul.mubr.f32.gmra.mrb[0].mxu0 %v172
  %v388 = vpop.f32.mrb[0].mxu0
  %v389 = vadd.f32 %v90, %v388
  %v390 = vpop.f32.mrb[0].mxu0
  %391 = vmatprep.mubr.f32.mxu0 0.0
  %392 = vmatmul.mubr.f32.gmra.mrb[0].mxu0 %v175
  %v393 = vpop.f32.mrb[0].mxu0
  %v394 = vadd.f32 %v90, %v393
  %v395 = vpop.f32.mrb[0].mxu0
  %396 = vmatprep.mubr.f32.mxu0 0.0
  %397 = vmatmul.mubr.f32.gmra.mrb[0].mxu0 %v178
  %v398 = vpop.f32.mrb[0].mxu0
  %v399 = vadd.f32 %v90, %v398
  %v400 = vpop.f32.mrb[0].mxu0
  %401 = vmatprep.mubr.f32.mxu0 0.0
  %402 = vmatmul.mubr.f32.gmra.mrb[0].mxu0 %v181
  %v403 = vpop.f32.mrb[0].mxu0
  %v404 = vadd.f32 %v90, %v403
  %v405 = vpop.f32.mrb[0].mxu0
  %406 = vmatprep.mubr.f32.mxu0 0.0
  %407 = vmatmul.mubr.f32.gmra.mrb[0].mxu0 %v184
  %v408 = vpop.f32.mrb[0].mxu0
  %v409 = vadd.f32 %v90, %v408
  %v410 = vpop.f32.mrb[0].mxu0
  %411 = vmatprep.mubr.f32.mxu0 0.0
  %412 = vmatmul.mubr.f32.gmra.mrb[0].mxu0 %v187
  %v413 = vpop.f32.mrb[0].mxu0
  %v414 = vadd.f32 %v90, %v413
  %v415 = vpop.f32.mrb[0].mxu0
  %416 = vmatprep.mubr.f32.mxu0 0.0
  %417 = vmatmul.mubr.f32.gmra.mrb[0].mxu0 %v190
  %v418 = vpop.f32.mrb[0].mxu0
  %v419 = vadd.f32 %v90, %v418
  %v420 = vpop.f32.mrb[0].mxu0
  %421 = vdwg.mxu0
  %v422 = vmax.f32 %v259, 0.0
  %v423 = vmax.f32 %v264, 0.0
  %v424 = vmax.f32 %v269, 0.0
  %v425 = vmax.f32 %v274, 0.0
  %v426 = vmax.f32 %v279, 0.0
  %v427 = vmax.f32 %v284, 0.0
  %v428 = vmax.f32 %v289, 0.0
  %v429 = vmax.f32 %v294, 0.0
  %v430 = vmax.f32 %v299, 0.0
  %v431 = vmax.f32 %v304, 0.0
  %v432 = vmax.f32 %v309, 0.0
  %v433 = vmax.f32 %v314, 0.0
  %v434 = vmax.f32 %v319, 0.0
  %v435 = vmax.f32 %v324, 0.0
  %v436 = vmax.f32 %v329, 0.0
  %v437 = vmax.f32 %v334, 0.0
  %v438 = vmax.f32 %v339, 0.0
  %v439 = vmax.f32 %v344, 0.0
  %v440 = vmax.f32 %v349, 0.0
  %v441 = vmax.f32 %v354, 0.0
  %v442 = vmax.f32 %v359, 0.0
  %v443 = vmax.f32 %v364, 0.0
  %v444 = vmax.f32 %v369, 0.0
  %v445 = vmax.f32 %v374, 0.0
  %v446 = vmax.f32 %v379, 0.0
  %v447 = vmax.f32 %v384, 0.0
  %v448 = vmax.f32 %v389, 0.0
  %v449 = vmax.f32 %v394, 0.0
  %v450 = vmax.f32 %v399, 0.0
  %v451 = vmax.f32 %v404, 0.0
  %v452 = vmax.f32 %v409, 0.0
  %v453 = vmax.f32 %v414, 0.0
  %v454 = vmax.f32 %v419, 0.0
  %vm455 = vcmask 130048
  %456 = vst.msk [vmem:[#allocation2] sm:$0xff] %vm455, %v422
  %457 = vst.msk [vmem:[#allocation2 + $0x8] sm:$0xff] %vm455, %v423
  %458 = vst.msk [vmem:[#allocation2 + $0x10] sm:$0xff] %vm455, %v424
  %459 = vst.msk [vmem:[#allocation2 + $0x18] sm:$0xff] %vm455, %v425
  %460 = vst.msk [vmem:[#allocation2 + $0x20] sm:$0xff] %vm455, %v426
  %461 = vst.msk [vmem:[#allocation2 + $0x28] sm:$0xff] %vm455, %v427
  %462 = vst.msk [vmem:[#allocation2 + $0x30] sm:$0xff] %vm455, %v428
  %463 = vst.msk [vmem:[#allocation2 + $0x38] sm:$0xff] %vm455, %v429
  %464 = vst.msk [vmem:[#allocation2 + $0x40] sm:$0xff] %vm455, %v430
  %465 = vst.msk [vmem:[#allocation2 + $0x48] sm:$0xff] %vm455, %v431
  %466 = vst.msk [vmem:[#allocation2 + $0x50] sm:$0xff] %vm455, %v432
  %467 = vst.msk [vmem:[#allocation2 + $0x58] sm:$0xff] %vm455, %v433
  %468 = vst.msk [vmem:[#allocation2 + $0x60] sm:$0xff] %vm455, %v434
  %469 = vst.msk [vmem:[#allocation2 + $0x68] sm:$0xff] %vm455, %v435
  %470 = vst.msk [vmem:[#allocation2 + $0x70] sm:$0xff] %vm455, %v436
  %471 = vst.msk [vmem:[#allocation2 + $0x78] sm:$0xff] %vm455, %v437
  %472 = vst.msk [vmem:[#allocation2 + $0x80] sm:$0xff] %vm455, %v438
  %473 = vst.msk [vmem:[#allocation2 + $0x88] sm:$0xff] %vm455, %v439
  %474 = vst.msk [vmem:[#allocation2 + $0x90] sm:$0xff] %vm455, %v440
  %475 = vst.msk [vmem:[#allocation2 + $0x98] sm:$0xff] %vm455, %v441
  %476 = vst.msk [vmem:[#allocation2 + $0xa0] sm:$0xff] %vm455, %v442
  %477 = vst.msk [vmem:[#allocation2 + $0xa8] sm:$0xff] %vm455, %v443
  %478 = vst.msk [vmem:[#allocation2 + $0xb0] sm:$0xff] %vm455, %v444
  %479 = vst.msk [vmem:[#allocation2 + $0xb8] sm:$0xff] %vm455, %v445
  %480 = vst.msk [vmem:[#allocation2 + $0xc0] sm:$0xff] %vm455, %v446
  %481 = vst.msk [vmem:[#allocation2 + $0xc8] sm:$0xff] %vm455, %v447
  %482 = vst.msk [vmem:[#allocation2 + $0xd0] sm:$0xff] %vm455, %v448
  %483 = vst.msk [vmem:[#allocation2 + $0xd8] sm:$0xff] %vm455, %v449
  %484 = vst.msk [vmem:[#allocation2 + $0xe0] sm:$0xff] %vm455, %v450
  %485 = vst.msk [vmem:[#allocation2 + $0xe8] sm:$0xff] %vm455, %v451
  %486 = vst.msk [vmem:[#allocation2 + $0xf0] sm:$0xff] %vm455, %v452
  %487 = vst.msk [vmem:[#allocation2 + $0xf8] sm:$0xff] %vm455, %v453
  %488 = vst.msk [vmem:[#allocation2 + $0x100] sm:$0xff] %vm455, %v454
  %v489 = vld [vmem:[#allocation2] sm:$0xff]
  %v490 = vld [vmem:[#allocation2 + $0x8] sm:$0xff]
  %v491 = vld [vmem:[#allocation2 + $0x10] sm:$0xff]
  %v492 = vld [vmem:[#allocation2 + $0x18] sm:$0xff]
  %v493 = vld [vmem:[#allocation2 + $0x20] sm:$0xff]
  %v494 = vld [vmem:[#allocation2 + $0x28] sm:$0xff]
  %v495 = vld [vmem:[#allocation2 + $0x30] sm:$0xff]
  %v496 = vld [vmem:[#allocation2 + $0x38] sm:$0xff]
  %v497 = vld [vmem:[#allocation2 + $0x40] sm:$0xff]
  %v498 = vld [vmem:[#allocation2 + $0x48] sm:$0xff]
  %v499 = vld [vmem:[#allocation2 + $0x50] sm:$0xff]
  %v500 = vld [vmem:[#allocation2 + $0x58] sm:$0xff]
  %v501 = vld [vmem:[#allocation2 + $0x60] sm:$0xff]
  %v502 = vld [vmem:[#allocation2 + $0x68] sm:$0xff]
  %v503 = vld [vmem:[#allocation2 + $0x70] sm:$0xff]
  %v504 = vld [vmem:[#allocation2 + $0x78] sm:$0xff]
  %v505 = vld [vmem:[#allocation2 + $0x80] sm:$0xff]
  %v506 = vld [vmem:[#allocation2 + $0x88] sm:$0xff]
  %v507 = vld [vmem:[#allocation2 + $0x90] sm:$0xff]
  %v508 = vld [vmem:[#allocation2 + $0x98] sm:$0xff]
  %v509 = vld [vmem:[#allocation2 + $0xa0] sm:$0xff]
  %v510 = vld [vmem:[#allocation2 + $0xa8] sm:$0xff]
  %v511 = vld [vmem:[%s3] sm:$0xff]
  %v512 = vld [vmem:[%s3 + $0x8] sm:$0xff]
  %v513 = vld [vmem:[#allocation2 + $0x2] sm:$0xff]
  %v514 = vld [vmem:[#allocation2 + $0xa] sm:$0xff]
  %v515 = vld [vmem:[#allocation2 + $0x12] sm:$0xff]
  %v516 = vld [vmem:[#allocation2 + $0x1a] sm:$0xff]
  %v517 = vld [vmem:[#allocation2 + $0x22] sm:$0xff]
  %v518 = vld [vmem:[#allocation2 + $0x2a] sm:$0xff]
  %v519 = vld [vmem:[#allocation2 + $0x32] sm:$0xff]
  %v520 = vld [vmem:[#allocation2 + $0x3a] sm:$0xff]
  %v521 = vld [vmem:[#allocation2 + $0x42] sm:$0xff]
  %v522 = vld [vmem:[#allocation2 + $0x4a] sm:$0xff]
  %v523 = vld [vmem:[#allocation2 + $0x52] sm:$0xff]
  %v524 = vld [vmem:[#allocation2 + $0x5a] sm:$0xff]
  %v525 = vld [vmem:[#allocation2 + $0x62] sm:$0xff]
  %v526 = vld [vmem:[#allocation2 + $0x6a] sm:$0xff]
  %v527 = vld [vmem:[#allocation2 + $0x72] sm:$0xff]
  %v528 = vld [vmem:[#allocation2 + $0x7a] sm:$0xff]
  %v529 = vld [vmem:[#allocation2 + $0x82] sm:$0xff]
  %v530 = vld [vmem:[#allocation2 + $0x8a] sm:$0xff]
  %v531 = vld [vmem:[#allocation2 + $0x92] sm:$0xff]
  %v532 = vld [vmem:[#allocation2 + $0x9a] sm:$0xff]
  %v533 = vld [vmem:[#allocation2 + $0xa2] sm:$0xff]
  %v534 = vld [vmem:[#allocation2 + $0xaa] sm:$0xff]
  %v535 = vld [vmem:[%s3 + $0x10] sm:$0xff]
  %v536 = vld [vmem:[%s3 + $0x18] sm:$0xff]
  %v538 = vsel %vm455, %v513, 0
  %v541 = vsel %vm455, %v514, 0
  %v544 = vsel %vm455, %v515, 0
  %v547 = vsel %vm455, %v516, 0
  %v550 = vsel %vm455, %v517, 0
  %v553 = vsel %vm455, %v518, 0
  %v556 = vsel %vm455, %v519, 0
  %v559 = vsel %vm455, %v520, 0
  %v562 = vsel %vm455, %v521, 0
  %v565 = vsel %vm455, %v522, 0
  %v568 = vsel %vm455, %v523, 0
  %v571 = vsel %vm455, %v524, 0
  %v574 = vsel %vm455, %v525, 0
  %v577 = vsel %vm455, %v526, 0
  %v580 = vsel %vm455, %v527, 0
  %v583 = vsel %vm455, %v528, 0
  %v586 = vsel %vm455, %v529, 0
  %v589 = vsel %vm455, %v530, 0
  %v592 = vsel %vm455, %v531, 0
  %v595 = vsel %vm455, %v532, 0
  %v598 = vsel %vm455, %v533, 0
  %v601 = vsel %vm455, %v534, 0
  %603 = vmatprep.subr.mxu0 0.0
  %604 = vmatpush1.msra.mxu0 %v535
  %605 = vmatprep.subr.mxu0 0.0
  %606 = vmatpush1.msra.mxu0 %v536
  %607 = vmatprep.subr.mxu0 0.0
  %608 = vmatpush1.msra.mxu0 0.0
  %609 = vmatprep.subr.mxu0 0.0
  %610 = vmatpush1.msra.mxu0 0.0
  %611 = vmatprep.subr.mxu0 0.0
  %612 = vmatpush1.msra.mxu0 0.0
  %613 = vmatprep.subr.mxu0 0.0
  %614 = vmatpush1.msra.mxu0 0.0
  %615 = vmatprep.subr.mxu0 0.0
  %616 = vmatpush1.msra.mxu0 0.0
  %617 = vmatprep.subr.mxu0 0.0
  %618 = vmatpush1.msra.mxu0 0.0
  %619 = vmatprep.subr.mxu0 0.0
  %620 = vmatpush1.msra.mxu0 0.0
  %621 = vmatprep.subr.mxu0 0.0
  %622 = vmatpush1.msra.mxu0 0.0
  %623 = vmatprep.subr.mxu0 0.0
  %624 = vmatpush1.msra.mxu0 0.0
  %625 = vmatprep.subr.mxu0 0.0
  %626 = vmatpush1.msra.mxu0 0.0
  %627 = vmatprep.subr.mxu0 0.0
  %628 = vmatpush1.msra.mxu0 0.0
  %629 = vmatprep.subr.mxu0 0.0
  %630 = vmatpush1.msra.mxu0 0.0
  %631 = vmatprep.subr.mxu0 0.0
  %632 = vmatpush1.msra.mxu0 0.0
  %633 = vmatprep.subr.mxu0 0.0
  %634 = vmatpush1.msra.mxu0 0.0
  %635 = vmatprep.subr.mxu0 0.0
  %636 = vmatpush1.msra.mxu0 0.0
  %637 = vmatprep.subr.mxu0 0.0
  %638 = vmatpush1.msra.mxu0 0.0
  %639 = vmatprep.subr.mxu0 0.0
  %640 = vmatpush1.msra.mxu0 0.0
  %641 = vmatprep.subr.mxu0 0.0
  %642 = vmatpush1.msra.mxu0 0.0
  %643 = vmatprep.subr.mxu0 0.0
  %644 = vmatpush1.msra.mxu0 0.0
  %645 = vmatprep.subr.mxu0 0.0
  %646 = vmatpush1.msra.mxu0 0.0
  %647 = vmatprep.subr.mxu0 0.0
  %648 = vmatpush1.msra.mxu0 0.0
  %649 = vmatprep.subr.mxu0 0.0
  %650 = vmatpush1.msra.mxu0 0.0
  %651 = vmatprep.subr.mxu0 0.0
  %652 = vmatpush1.msra.mxu0 0.0
  %653 = vmatprep.subr.mxu0 0.0
  %654 = vmatpush1.msra.mxu0 0.0
  %655 = vmatprep.subr.mxu0 0.0
  %656 = vmatpush1.msra.mxu0 0.0
  %657 = vmatprep.subr.mxu0 0.0
  %658 = vmatpush1.msra.mxu0 0.0
  %659 = vmatprep.subr.mxu0 0.0
  %660 = vmatpush1.msra.mxu0 0.0
  %661 = vmatprep.subr.mxu0 0.0
  %662 = vmatpush1.msra.mxu0 0.0
  %663 = vmatprep.subr.mxu0 0.0
  %664 = vmatpush1.msra.mxu0 0.0
  %665 = vmatprep.subr.mxu0 0.0
  %666 = vmatpush1.msra.mxu0 0.0
  %667 = vmatprep.mubr.f32.mxu0 0.0
  %668 = vmatmul.mubr.f32.gmra.mrb[0].mxu0 %v538
  %v669 = vpop.f32.mrb[0].mxu0
  %v670 = vadd.f32 0.0, %v669
  %v671 = vpop.f32.mrb[0].mxu0
  %672 = vmatprep.mubr.f32.mxu0 0.0
  %673 = vmatmul.mubr.f32.gmra.mrb[0].mxu0 %v541
  %v674 = vpop.f32.mrb[0].mxu0
  %v675 = vadd.f32 0.0, %v674
  %v676 = vpop.f32.mrb[0].mxu0
  %677 = vmatprep.mubr.f32.mxu0 0.0
  %678 = vmatmul.mubr.f32.gmra.mrb[0].mxu0 %v544
  %v679 = vpop.f32.mrb[0].mxu0
  %v680 = vadd.f32 0.0, %v679
  %v681 = vpop.f32.mrb[0].mxu0
  %682 = vmatprep.mubr.f32.mxu0 0.0
  %683 = vmatmul.mubr.f32.gmra.mrb[0].mxu0 %v547
  %v684 = vpop.f32.mrb[0].mxu0
  %v685 = vadd.f32 0.0, %v684
  %v686 = vpop.f32.mrb[0].mxu0
  %687 = vmatprep.mubr.f32.mxu0 0.0
  %688 = vmatmul.mubr.f32.gmra.mrb[0].mxu0 %v550
  %v689 = vpop.f32.mrb[0].mxu0
  %v690 = vadd.f32 0.0, %v689
  %v691 = vpop.f32.mrb[0].mxu0
  %692 = vmatprep.mubr.f32.mxu0 0.0
  %693 = vmatmul.mubr.f32.gmra.mrb[0].mxu0 %v553
  %v694 = vpop.f32.mrb[0].mxu0
  %v695 = vadd.f32 0.0, %v694
  %v696 = vpop.f32.mrb[0].mxu0
  %697 = vmatprep.mubr.f32.mxu0 0.0
  %698 = vmatmul.mubr.f32.gmra.mrb[0].mxu0 %v556
  %v699 = vpop.f32.mrb[0].mxu0
  %v700 = vadd.f32 0.0, %v699
  %v701 = vpop.f32.mrb[0].mxu0
  %702 = vmatprep.mubr.f32.mxu0 0.0
  %703 = vmatmul.mubr.f32.gmra.mrb[0].mxu0 %v559
  %v704 = vpop.f32.mrb[0].mxu0
  %v705 = vadd.f32 0.0, %v704
  %v706 = vpop.f32.mrb[0].mxu0
  %707 = vmatprep.mubr.f32.mxu0 0.0
  %708 = vmatmul.mubr.f32.gmra.mrb[0].mxu0 %v562
  %v709 = vpop.f32.mrb[0].mxu0
  %v710 = vadd.f32 0.0, %v709
  %v711 = vpop.f32.mrb[0].mxu0
  %712 = vmatprep.mubr.f32.mxu0 0.0
  %713 = vmatmul.mubr.f32.gmra.mrb[0].mxu0 %v565
  %v714 = vpop.f32.mrb[0].mxu0
  %v715 = vadd.f32 0.0, %v714
  %v716 = vpop.f32.mrb[0].mxu0
  %717 = vmatprep.mubr.f32.mxu0 0.0
  %718 = vmatmul.mubr.f32.gmra.mrb[0].mxu0 %v568
  %v719 = vpop.f32.mrb[0].mxu0
  %v720 = vadd.f32 0.0, %v719
  %v721 = vpop.f32.mrb[0].mxu0
  %722 = vmatprep.mubr.f32.mxu0 0.0
  %723 = vmatmul.mubr.f32.gmra.mrb[0].mxu0 %v571
  %v724 = vpop.f32.mrb[0].mxu0
  %v725 = vadd.f32 0.0, %v724
  %v726 = vpop.f32.mrb[0].mxu0
  %727 = vmatprep.mubr.f32.mxu0 0.0
  %728 = vmatmul.mubr.f32.gmra.mrb[0].mxu0 %v574
  %v729 = vpop.f32.mrb[0].mxu0
  %v730 = vadd.f32 0.0, %v729
  %v731 = vpop.f32.mrb[0].mxu0
  %732 = vmatprep.mubr.f32.mxu0 0.0
  %733 = vmatmul.mubr.f32.gmra.mrb[0].mxu0 %v577
  %v734 = vpop.f32.mrb[0].mxu0
  %v735 = vadd.f32 0.0, %v734
  %v736 = vpop.f32.mrb[0].mxu0
  %737 = vmatprep.mubr.f32.mxu0 0.0
  %738 = vmatmul.mubr.f32.gmra.mrb[0].mxu0 %v580
  %v739 = vpop.f32.mrb[0].mxu0
  %v740 = vadd.f32 0.0, %v739
  %v741 = vpop.f32.mrb[0].mxu0
  %742 = vmatprep.mubr.f32.mxu0 0.0
  %743 = vmatmul.mubr.f32.gmra.mrb[0].mxu0 %v583
  %v744 = vpop.f32.mrb[0].mxu0
  %v745 = vadd.f32 0.0, %v744
  %v746 = vpop.f32.mrb[0].mxu0
  %747 = vmatprep.mubr.f32.mxu0 0.0
  %748 = vmatmul.mubr.f32.gmra.mrb[0].mxu0 %v586
  %v749 = vpop.f32.mrb[0].mxu0
  %v750 = vadd.f32 0.0, %v749
  %v751 = vpop.f32.mrb[0].mxu0
  %752 = vmatprep.mubr.f32.mxu0 0.0
  %753 = vmatmul.mubr.f32.gmra.mrb[0].mxu0 %v589
  %v754 = vpop.f32.mrb[0].mxu0
  %v755 = vadd.f32 0.0, %v754
  %v756 = vpop.f32.mrb[0].mxu0
  %757 = vmatprep.mubr.f32.mxu0 0.0
  %758 = vmatmul.mubr.f32.gmra.mrb[0].mxu0 %v592
  %v759 = vpop.f32.mrb[0].mxu0
  %v760 = vadd.f32 0.0, %v759
  %v761 = vpop.f32.mrb[0].mxu0
  %762 = vmatprep.mubr.f32.mxu0 0.0
  %763 = vmatmul.mubr.f32.gmra.mrb[0].mxu0 %v595
  %v764 = vpop.f32.mrb[0].mxu0
  %v765 = vadd.f32 0.0, %v764
  %v766 = vpop.f32.mrb[0].mxu0
  %767 = vmatprep.mubr.f32.mxu0 0.0
  %768 = vmatmul.mubr.f32.gmra.mrb[0].mxu0 %v598
  %v769 = vpop.f32.mrb[0].mxu0
  %v770 = vadd.f32 0.0, %v769
  %v771 = vpop.f32.mrb[0].mxu0
  %772 = vmatprep.mubr.f32.mxu0 0.0
  %773 = vmatmul.mubr.f32.gmra.mrb[0].mxu0 %v601
  %v774 = vpop.f32.mrb[0].mxu0
  %v775 = vadd.f32 0.0, %v774
  %v776 = vpop.f32.mrb[0].mxu0
  %777 = vdwg.mxu0
  %v779 = vsel %vm455, %v489, 0
  %v782 = vsel %vm455, %v490, 0
  %v785 = vsel %vm455, %v491, 0
  %v788 = vsel %vm455, %v492, 0
  %v791 = vsel %vm455, %v493, 0
  %v794 = vsel %vm455, %v494, 0
  %v797 = vsel %vm455, %v495, 0
  %v800 = vsel %vm455, %v496, 0
  %v803 = vsel %vm455, %v497, 0
  %v806 = vsel %vm455, %v498, 0
  %v809 = vsel %vm455, %v499, 0
  %v812 = vsel %vm455, %v500, 0
  %v815 = vsel %vm455, %v501, 0
  %v818 = vsel %vm455, %v502, 0
  %v821 = vsel %vm455, %v503, 0
  %v824 = vsel %vm455, %v504, 0
  %v827 = vsel %vm455, %v505, 0
  %v830 = vsel %vm455, %v506, 0
  %v833 = vsel %vm455, %v507, 0
  %v836 = vsel %vm455, %v508, 0
  %v839 = vsel %vm455, %v509, 0
  %v842 = vsel %vm455, %v510, 0
  %844 = vmatprep.subr.mxu0 0.0
  %845 = vmatpush1.msra.mxu0 %v511
  %846 = vmatprep.subr.mxu0 0.0
  %847 = vmatpush1.msra.mxu0 %v512
  %848 = vmatprep.subr.mxu0 0.0
  %849 = vmatpush1.msra.mxu0 0.0
  %850 = vmatprep.subr.mxu0 0.0
  %851 = vmatpush1.msra.mxu0 0.0
  %852 = vmatprep.subr.mxu0 0.0
  %853 = vmatpush1.msra.mxu0 0.0
  %854 = vmatprep.subr.mxu0 0.0
  %855 = vmatpush1.msra.mxu0 0.0
  %856 = vmatprep.subr.mxu0 0.0
  %857 = vmatpush1.msra.mxu0 0.0
  %858 = vmatprep.subr.mxu0 0.0
  %859 = vmatpush1.msra.mxu0 0.0
  %860 = vmatprep.subr.mxu0 0.0
  %861 = vmatpush1.msra.mxu0 0.0
  %862 = vmatprep.subr.mxu0 0.0
  %863 = vmatpush1.msra.mxu0 0.0
  %864 = vmatprep.subr.mxu0 0.0
  %865 = vmatpush1.msra.mxu0 0.0
  %866 = vmatprep.subr.mxu0 0.0
  %867 = vmatpush1.msra.mxu0 0.0
  %868 = vmatprep.subr.mxu0 0.0
  %869 = vmatpush1.msra.mxu0 0.0
  %870 = vmatprep.subr.mxu0 0.0
  %871 = vmatpush1.msra.mxu0 0.0
  %872 = vmatprep.subr.mxu0 0.0
  %873 = vmatpush1.msra.mxu0 0.0
  %874 = vmatprep.subr.mxu0 0.0
  %875 = vmatpush1.msra.mxu0 0.0
  %876 = vmatprep.subr.mxu0 0.0
  %877 = vmatpush1.msra.mxu0 0.0
  %878 = vmatprep.subr.mxu0 0.0
  %879 = vmatpush1.msra.mxu0 0.0
  %880 = vmatprep.subr.mxu0 0.0
  %881 = vmatpush1.msra.mxu0 0.0
  %882 = vmatprep.subr.mxu0 0.0
  %883 = vmatpush1.msra.mxu0 0.0
  %884 = vmatprep.subr.mxu0 0.0
  %885 = vmatpush1.msra.mxu0 0.0
  %886 = vmatprep.subr.mxu0 0.0
  %887 = vmatpush1.msra.mxu0 0.0
  %888 = vmatprep.subr.mxu0 0.0
  %889 = vmatpush1.msra.mxu0 0.0
  %890 = vmatprep.subr.mxu0 0.0
  %891 = vmatpush1.msra.mxu0 0.0
  %892 = vmatprep.subr.mxu0 0.0
  %893 = vmatpush1.msra.mxu0 0.0
  %894 = vmatprep.subr.mxu0 0.0
  %895 = vmatpush1.msra.mxu0 0.0
  %896 = vmatprep.subr.mxu0 0.0
  %897 = vmatpush1.msra.mxu0 0.0
  %898 = vmatprep.subr.mxu0 0.0
  %899 = vmatpush1.msra.mxu0 0.0
  %900 = vmatprep.subr.mxu0 0.0
  %901 = vmatpush1.msra.mxu0 0.0
  %902 = vmatprep.subr.mxu0 0.0
  %903 = vmatpush1.msra.mxu0 0.0
  %904 = vmatprep.subr.mxu0 0.0
  %905 = vmatpush1.msra.mxu0 0.0
  %906 = vmatprep.subr.mxu0 0.0
  %907 = vmatpush1.msra.mxu0 0.0
  %908 = vmatprep.mubr.f32.mxu0 0.0
  %909 = vmatmul.mubr.f32.gmra.mrb[0].mxu0 %v779
  %v910 = vpop.f32.mrb[0].mxu0
  %v911 = vadd.f32 %v670, %v910
  %v912 = vpop.f32.mrb[0].mxu0
  %913 = vmatprep.mubr.f32.mxu0 0.0
  %914 = vmatmul.mubr.f32.gmra.mrb[0].mxu0 %v782
  %v915 = vpop.f32.mrb[0].mxu0
  %v916 = vadd.f32 %v675, %v915
  %v917 = vpop.f32.mrb[0].mxu0
  %918 = vmatprep.mubr.f32.mxu0 0.0
  %919 = vmatmul.mubr.f32.gmra.mrb[0].mxu0 %v785
  %v920 = vpop.f32.mrb[0].mxu0
  %v921 = vadd.f32 %v680, %v920
  %v922 = vpop.f32.mrb[0].mxu0
  %923 = vmatprep.mubr.f32.mxu0 0.0
  %924 = vmatmul.mubr.f32.gmra.mrb[0].mxu0 %v788
  %v925 = vpop.f32.mrb[0].mxu0
  %v926 = vadd.f32 %v685, %v925
  %v927 = vpop.f32.mrb[0].mxu0
  %928 = vmatprep.mubr.f32.mxu0 0.0
  %929 = vmatmul.mubr.f32.gmra.mrb[0].mxu0 %v791
  %v930 = vpop.f32.mrb[0].mxu0
  %v931 = vadd.f32 %v690, %v930
  %v932 = vpop.f32.mrb[0].mxu0
  %933 = vmatprep.mubr.f32.mxu0 0.0
  %934 = vmatmul.mubr.f32.gmra.mrb[0].mxu0 %v794
  %v935 = vpop.f32.mrb[0].mxu0
  %v936 = vadd.f32 %v695, %v935
  %v937 = vpop.f32.mrb[0].mxu0
  %938 = vmatprep.mubr.f32.mxu0 0.0
  %939 = vmatmul.mubr.f32.gmra.mrb[0].mxu0 %v797
  %v940 = vpop.f32.mrb[0].mxu0
  %v941 = vadd.f32 %v700, %v940
  %v942 = vpop.f32.mrb[0].mxu0
  %943 = vmatprep.mubr.f32.mxu0 0.0
  %944 = vmatmul.mubr.f32.gmra.mrb[0].mxu0 %v800
  %v945 = vpop.f32.mrb[0].mxu0
  %v946 = vadd.f32 %v705, %v945
  %v947 = vpop.f32.mrb[0].mxu0
  %948 = vmatprep.mubr.f32.mxu0 0.0
  %949 = vmatmul.mubr.f32.gmra.mrb[0].mxu0 %v803
  %v950 = vpop.f32.mrb[0].mxu0
  %v951 = vadd.f32 %v710, %v950
  %v952 = vpop.f32.mrb[0].mxu0
  %953 = vmatprep.mubr.f32.mxu0 0.0
  %954 = vmatmul.mubr.f32.gmra.mrb[0].mxu0 %v806
  %v955 = vpop.f32.mrb[0].mxu0
  %v956 = vadd.f32 %v715, %v955
  %v957 = vpop.f32.mrb[0].mxu0
  %958 = vmatprep.mubr.f32.mxu0 0.0
  %959 = vmatmul.mubr.f32.gmra.mrb[0].mxu0 %v809
  %v960 = vpop.f32.mrb[0].mxu0
  %v961 = vadd.f32 %v720, %v960
  %v962 = vpop.f32.mrb[0].mxu0
  %963 = vmatprep.mubr.f32.mxu0 0.0
  %964 = vmatmul.mubr.f32.gmra.mrb[0].mxu0 %v812
  %v965 = vpop.f32.mrb[0].mxu0
  %v966 = vadd.f32 %v725, %v965
  %v967 = vpop.f32.mrb[0].mxu0
  %968 = vmatprep.mubr.f32.mxu0 0.0
  %969 = vmatmul.mubr.f32.gmra.mrb[0].mxu0 %v815
  %v970 = vpop.f32.mrb[0].mxu0
  %v971 = vadd.f32 %v730, %v970
  %v972 = vpop.f32.mrb[0].mxu0
  %973 = vmatprep.mubr.f32.mxu0 0.0
  %974 = vmatmul.mubr.f32.gmra.mrb[0].mxu0 %v818
  %v975 = vpop.f32.mrb[0].mxu0
  %v976 = vadd.f32 %v735, %v975
  %v977 = vpop.f32.mrb[0].mxu0
  %978 = vmatprep.mubr.f32.mxu0 0.0
  %979 = vmatmul.mubr.f32.gmra.mrb[0].mxu0 %v821
  %v980 = vpop.f32.mrb[0].mxu0
  %v981 = vadd.f32 %v740, %v980
  %v982 = vpop.f32.mrb[0].mxu0
  %983 = vmatprep.mubr.f32.mxu0 0.0
  %984 = vmatmul.mubr.f32.gmra.mrb[0].mxu0 %v824
  %v985 = vpop.f32.mrb[0].mxu0
  %v986 = vadd.f32 %v745, %v985
  %v987 = vpop.f32.mrb[0].mxu0
  %988 = vmatprep.mubr.f32.mxu0 0.0
  %989 = vmatmul.mubr.f32.gmra.mrb[0].mxu0 %v827
  %v990 = vpop.f32.mrb[0].mxu0
  %v991 = vadd.f32 %v750, %v990
  %v992 = vpop.f32.mrb[0].mxu0
  %993 = vmatprep.mubr.f32.mxu0 0.0
  %994 = vmatmul.mubr.f32.gmra.mrb[0].mxu0 %v830
  %v995 = vpop.f32.mrb[0].mxu0
  %v996 = vadd.f32 %v755, %v995
  %v997 = vpop.f32.mrb[0].mxu0
  %998 = vmatprep.mubr.f32.mxu0 0.0
  %999 = vmatmul.mubr.f32.gmra.mrb[0].mxu0 %v833
  %v1000 = vpop.f32.mrb[0].mxu0
  %v1001 = vadd.f32 %v760, %v1000
  %v1002 = vpop.f32.mrb[0].mxu0
  %1003 = vmatprep.mubr.f32.mxu0 0.0
  %1004 = vmatmul.mubr.f32.gmra.mrb[0].mxu0 %v836
  %v1005 = vpop.f32.mrb[0].mxu0
  %v1006 = vadd.f32 %v765, %v1005
  %v1007 = vpop.f32.mrb[0].mxu0
  %1008 = vmatprep.mubr.f32.mxu0 0.0
  %1009 = vmatmul.mubr.f32.gmra.mrb[0].mxu0 %v839
  %v1010 = vpop.f32.mrb[0].mxu0
  %v1011 = vadd.f32 %v770, %v1010
  %v1012 = vpop.f32.mrb[0].mxu0
  %1013 = vmatprep.mubr.f32.mxu0 0.0
  %1014 = vmatmul.mubr.f32.gmra.mrb[0].mxu0 %v842
  %v1015 = vpop.f32.mrb[0].mxu0
  %v1016 = vadd.f32 %v775, %v1015
  %v1017 = vpop.f32.mrb[0].mxu0
  %1018 = vdwg.mxu0
  %v1019 = vld [vmem:[#allocation2 + $0x4] sm:$0xff]
  %v1020 = vld [vmem:[#allocation2 + $0xc] sm:$0xff]
  %v1021 = vld [vmem:[#allocation2 + $0x14] sm:$0xff]
  %v1022 = vld [vmem:[#allocation2 + $0x1c] sm:$0xff]
  %v1023 = vld [vmem:[#allocation2 + $0x24] sm:$0xff]
  %v1024 = vld [vmem:[#allocation2 + $0x2c] sm:$0xff]
  %v1025 = vld [vmem:[#allocation2 + $0x34] sm:$0xff]
  %v1026 = vld [vmem:[#allocation2 + $0x3c] sm:$0xff]
  %v1027 = vld [vmem:[#allocation2 + $0x44] sm:$0xff]
  %v1028 = vld [vmem:[#allocation2 + $0x4c] sm:$0xff]
  %v1029 = vld [vmem:[#allocation2 + $0x54] sm:$0xff]
  %v1030 = vld [vmem:[#allocation2 + $0x5c] sm:$0xff]
  %v1031 = vld [vmem:[#allocation2 + $0x64] sm:$0xff]
  %v1032 = vld [vmem:[#allocation2 + $0x6c] sm:$0xff]
  %v1033 = vld [vmem:[#allocation2 + $0x74] sm:$0xff]
  %v1034 = vld [vmem:[#allocation2 + $0x7c] sm:$0xff]
  %v1035 = vld [vmem:[#allocation2 + $0x84] sm:$0xff]
  %v1036 = vld [vmem:[#allocation2 + $0x8c] sm:$0xff]
  %v1037 = vld [vmem:[#allocation2 + $0x94] sm:$0xff]
  %v1038 = vld [vmem:[#allocation2 + $0x9c] sm:$0xff]
  %v1039 = vld [vmem:[#allocation2 + $0xa4] sm:$0xff]
  %v1040 = vld [vmem:[#allocation2 + $0xac] sm:$0xff]
  %v1041 = vld [vmem:[%s3 + $0x20] sm:$0xff]
  %v1042 = vld [vmem:[%s3 + $0x28] sm:$0xff]
  %v1044 = vsel %vm455, %v1019, 0
  %v1047 = vsel %vm455, %v1020, 0
  %v1050 = vsel %vm455, %v1021, 0
  %v1053 = vsel %vm455, %v1022, 0
  %v1056 = vsel %vm455, %v1023, 0
  %v1059 = vsel %vm455, %v1024, 0
  %v1062 = vsel %vm455, %v1025, 0
  %v1065 = vsel %vm455, %v1026, 0
  %v1068 = vsel %vm455, %v1027, 0
  %v1071 = vsel %vm455, %v1028, 0
  %v1074 = vsel %vm455, %v1029, 0
  %v1077 = vsel %vm455, %v1030, 0
  %v1080 = vsel %vm455, %v1031, 0
  %v1083 = vsel %vm455, %v1032, 0
  %v1086 = vsel %vm455, %v1033, 0
  %v1089 = vsel %vm455, %v1034, 0
  %v1092 = vsel %vm455, %v1035, 0
  %v1095 = vsel %vm455, %v1036, 0
  %v1098 = vsel %vm455, %v1037, 0
  %v1101 = vsel %vm455, %v1038, 0
  %v1104 = vsel %vm455, %v1039, 0
  %v1107 = vsel %vm455, %v1040, 0
  %1109 = vmatprep.subr.mxu0 0.0
  %1110 = vmatpush1.msra.mxu0 %v1041
  %1111 = vmatprep.subr.mxu0 0.0
  %1112 = vmatpush1.msra.mxu0 %v1042
  %1113 = vmatprep.subr.mxu0 0.0
  %1114 = vmatpush1.msra.mxu0 0.0
  %1115 = vmatprep.subr.mxu0 0.0
  %1116 = vmatpush1.msra.mxu0 0.0
  %1117 = vmatprep.subr.mxu0 0.0
  %1118 = vmatpush1.msra.mxu0 0.0
  %1119 = vmatprep.subr.mxu0 0.0
  %1120 = vmatpush1.msra.mxu0 0.0
  %1121 = vmatprep.subr.mxu0 0.0
  %1122 = vmatpush1.msra.mxu0 0.0
  %1123 = vmatprep.subr.mxu0 0.0
  %1124 = vmatpush1.msra.mxu0 0.0
  %1125 = vmatprep.subr.mxu0 0.0
  %1126 = vmatpush1.msra.mxu0 0.0
  %1127 = vmatprep.subr.mxu0 0.0
  %1128 = vmatpush1.msra.mxu0 0.0
  %1129 = vmatprep.subr.mxu0 0.0
  %1130 = vmatpush1.msra.mxu0 0.0
  %1131 = vmatprep.subr.mxu0 0.0
  %1132 = vmatpush1.msra.mxu0 0.0
  %1133 = vmatprep.subr.mxu0 0.0
  %1134 = vmatpush1.msra.mxu0 0.0
  %1135 = vmatprep.subr.mxu0 0.0
  %1136 = vmatpush1.msra.mxu0 0.0
  %1137 = vmatprep.subr.mxu0 0.0
  %1138 = vmatpush1.msra.mxu0 0.0
  %1139 = vmatprep.subr.mxu0 0.0
  %1140 = vmatpush1.msra.mxu0 0.0
  %1141 = vmatprep.subr.mxu0 0.0
  %1142 = vmatpush1.msra.mxu0 0.0
  %1143 = vmatprep.subr.mxu0 0.0
  %1144 = vmatpush1.msra.mxu0 0.0
  %1145 = vmatprep.subr.mxu0 0.0
  %1146 = vmatpush1.msra.mxu0 0.0
  %1147 = vmatprep.subr.mxu0 0.0
  %1148 = vmatpush1.msra.mxu0 0.0
  %1149 = vmatprep.subr.mxu0 0.0
  %1150 = vmatpush1.msra.mxu0 0.0
  %1151 = vmatprep.subr.mxu0 0.0
  %1152 = vmatpush1.msra.mxu0 0.0
  %1153 = vmatprep.subr.mxu0 0.0
  %1154 = vmatpush1.msra.mxu0 0.0
  %1155 = vmatprep.subr.mxu0 0.0
  %1156 = vmatpush1.msra.mxu0 0.0
  %1157 = vmatprep.subr.mxu0 0.0
  %1158 = vmatpush1.msra.mxu0 0.0
  %1159 = vmatprep.subr.mxu0 0.0
  %1160 = vmatpush1.msra.mxu0 0.0
  %1161 = vmatprep.subr.mxu0 0.0
  %1162 = vmatpush1.msra.mxu0 0.0
  %1163 = vmatprep.subr.mxu0 0.0
  %1164 = vmatpush1.msra.mxu0 0.0
  %1165 = vmatprep.subr.mxu0 0.0
  %1166 = vmatpush1.msra.mxu0 0.0
  %1167 = vmatprep.subr.mxu0 0.0
  %1168 = vmatpush1.msra.mxu0 0.0
  %1169 = vmatprep.subr.mxu0 0.0
  %1170 = vmatpush1.msra.mxu0 0.0
  %1171 = vmatprep.subr.mxu0 0.0
  %1172 = vmatpush1.msra.mxu0 0.0
  %1173 = vmatprep.mubr.f32.mxu0 0.0
  %1174 = vmatmul.mubr.f32.gmra.mrb[0].mxu0 %v1044
  %v1175 = vpop.f32.mrb[0].mxu0
  %v1176 = vadd.f32 0.0, %v1175
  %v1177 = vpop.f32.mrb[0].mxu0
  %1178 = vmatprep.mubr.f32.mxu0 0.0
  %1179 = vmatmul.mubr.f32.gmra.mrb[0].mxu0 %v1047
  %v1180 = vpop.f32.mrb[0].mxu0
  %v1181 = vadd.f32 0.0, %v1180
  %v1182 = vpop.f32.mrb[0].mxu0
  %1183 = vmatprep.mubr.f32.mxu0 0.0
  %1184 = vmatmul.mubr.f32.gmra.mrb[0].mxu0 %v1050
  %v1185 = vpop.f32.mrb[0].mxu0
  %v1186 = vadd.f32 0.0, %v1185
  %v1187 = vpop.f32.mrb[0].mxu0
  %1188 = vmatprep.mubr.f32.mxu0 0.0
  %1189 = vmatmul.mubr.f32.gmra.mrb[0].mxu0 %v1053
  %v1190 = vpop.f32.mrb[0].mxu0
  %v1191 = vadd.f32 0.0, %v1190
  %v1192 = vpop.f32.mrb[0].mxu0
  %1193 = vmatprep.mubr.f32.mxu0 0.0
  %1194 = vmatmul.mubr.f32.gmra.mrb[0].mxu0 %v1056
  %v1195 = vpop.f32.mrb[0].mxu0
  %v1196 = vadd.f32 0.0, %v1195
  %v1197 = vpop.f32.mrb[0].mxu0
  %1198 = vmatprep.mubr.f32.mxu0 0.0
  %1199 = vmatmul.mubr.f32.gmra.mrb[0].mxu0 %v1059
  %v1200 = vpop.f32.mrb[0].mxu0
  %v1201 = vadd.f32 0.0, %v1200
  %v1202 = vpop.f32.mrb[0].mxu0
  %1203 = vmatprep.mubr.f32.mxu0 0.0
  %1204 = vmatmul.mubr.f32.gmra.mrb[0].mxu0 %v1062
  %v1205 = vpop.f32.mrb[0].mxu0
  %v1206 = vadd.f32 0.0, %v1205
  %v1207 = vpop.f32.mrb[0].mxu0
  %1208 = vmatprep.mubr.f32.mxu0 0.0
  %1209 = vmatmul.mubr.f32.gmra.mrb[0].mxu0 %v1065
  %v1210 = vpop.f32.mrb[0].mxu0
  %v1211 = vadd.f32 0.0, %v1210
  %v1212 = vpop.f32.mrb[0].mxu0
  %1213 = vmatprep.mubr.f32.mxu0 0.0
  %1214 = vmatmul.mubr.f32.gmra.mrb[0].mxu0 %v1068
  %v1215 = vpop.f32.mrb[0].mxu0
  %v1216 = vadd.f32 0.0, %v1215
  %v1217 = vpop.f32.mrb[0].mxu0
  %1218 = vmatprep.mubr.f32.mxu0 0.0
  %1219 = vmatmul.mubr.f32.gmra.mrb[0].mxu0 %v1071
  %v1220 = vpop.f32.mrb[0].mxu0
  %v1221 = vadd.f32 0.0, %v1220
  %v1222 = vpop.f32.mrb[0].mxu0
  %1223 = vmatprep.mubr.f32.mxu0 0.0
  %1224 = vmatmul.mubr.f32.gmra.mrb[0].mxu0 %v1074
  %v1225 = vpop.f32.mrb[0].mxu0
  %v1226 = vadd.f32 0.0, %v1225
  %v1227 = vpop.f32.mrb[0].mxu0
  %1228 = vmatprep.mubr.f32.mxu0 0.0
  %1229 = vmatmul.mubr.f32.gmra.mrb[0].mxu0 %v1077
  %v1230 = vpop.f32.mrb[0].mxu0
  %v1231 = vadd.f32 0.0, %v1230
  %v1232 = vpop.f32.mrb[0].mxu0
  %1233 = vmatprep.mubr.f32.mxu0 0.0
  %1234 = vmatmul.mubr.f32.gmra.mrb[0].mxu0 %v1080
  %v1235 = vpop.f32.mrb[0].mxu0
  %v1236 = vadd.f32 0.0, %v1235
  %v1237 = vpop.f32.mrb[0].mxu0
  %1238 = vmatprep.mubr.f32.mxu0 0.0
  %1239 = vmatmul.mubr.f32.gmra.mrb[0].mxu0 %v1083
  %v1240 = vpop.f32.mrb[0].mxu0
  %v1241 = vadd.f32 0.0, %v1240
  %v1242 = vpop.f32.mrb[0].mxu0
  %1243 = vmatprep.mubr.f32.mxu0 0.0
  %1244 = vmatmul.mubr.f32.gmra.mrb[0].mxu0 %v1086
  %v1245 = vpop.f32.mrb[0].mxu0
  %v1246 = vadd.f32 0.0, %v1245
  %v1247 = vpop.f32.mrb[0].mxu0
  %1248 = vmatprep.mubr.f32.mxu0 0.0
  %1249 = vmatmul.mubr.f32.gmra.mrb[0].mxu0 %v1089
  %v1250 = vpop.f32.mrb[0].mxu0
  %v1251 = vadd.f32 0.0, %v1250
  %v1252 = vpop.f32.mrb[0].mxu0
  %1253 = vmatprep.mubr.f32.mxu0 0.0
  %1254 = vmatmul.mubr.f32.gmra.mrb[0].mxu0 %v1092
  %v1255 = vpop.f32.mrb[0].mxu0
  %v1256 = vadd.f32 0.0, %v1255
  %v1257 = vpop.f32.mrb[0].mxu0
  %1258 = vmatprep.mubr.f32.mxu0 0.0
  %1259 = vmatmul.mubr.f32.gmra.mrb[0].mxu0 %v1095
  %v1260 = vpop.f32.mrb[0].mxu0
  %v1261 = vadd.f32 0.0, %v1260
  %v1262 = vpop.f32.mrb[0].mxu0
  %1263 = vmatprep.mubr.f32.mxu0 0.0
  %1264 = vmatmul.mubr.f32.gmra.mrb[0].mxu0 %v1098
  %v1265 = vpop.f32.mrb[0].mxu0
  %v1266 = vadd.f32 0.0, %v1265
  %v1267 = vpop.f32.mrb[0].mxu0
  %1268 = vmatprep.mubr.f32.mxu0 0.0
  %1269 = vmatmul.mubr.f32.gmra.mrb[0].mxu0 %v1101
  %v1270 = vpop.f32.mrb[0].mxu0
  %v1271 = vadd.f32 0.0, %v1270
  %v1272 = vpop.f32.mrb[0].mxu0
  %1273 = vmatprep.mubr.f32.mxu0 0.0
  %1274 = vmatmul.mubr.f32.gmra.mrb[0].mxu0 %v1104
  %v1275 = vpop.f32.mrb[0].mxu0
  %v1276 = vadd.f32 0.0, %v1275
  %v1277 = vpop.f32.mrb[0].mxu0
  %1278 = vmatprep.mubr.f32.mxu0 0.0
  %1279 = vmatmul.mubr.f32.gmra.mrb[0].mxu0 %v1107
  %v1280 = vpop.f32.mrb[0].mxu0
  %v1281 = vadd.f32 0.0, %v1280
  %v1282 = vpop.f32.mrb[0].mxu0
  %1283 = vdwg.mxu0
  %v1284 = vadd.f32 %v911, %v1176
  %v1285 = vadd.f32 %v916, %v1181
  %v1286 = vadd.f32 %v921, %v1186
  %v1287 = vadd.f32 %v926, %v1191
  %v1288 = vadd.f32 %v931, %v1196
  %v1289 = vadd.f32 %v936, %v1201
  %v1290 = vadd.f32 %v941, %v1206
  %v1291 = vadd.f32 %v946, %v1211
  %v1292 = vadd.f32 %v951, %v1216
  %v1293 = vadd.f32 %v956, %v1221
  %v1294 = vadd.f32 %v961, %v1226
  %v1295 = vadd.f32 %v966, %v1231
  %v1296 = vadd.f32 %v971, %v1236
  %v1297 = vadd.f32 %v976, %v1241
  %v1298 = vadd.f32 %v981, %v1246
  %v1299 = vadd.f32 %v986, %v1251
  %v1300 = vadd.f32 %v991, %v1256
  %v1301 = vadd.f32 %v996, %v1261
  %v1302 = vadd.f32 %v1001, %v1266
  %v1303 = vadd.f32 %v1006, %v1271
  %v1304 = vadd.f32 %v1011, %v1276
  %v1305 = vadd.f32 %v1016, %v1281
  %v1306 = vld [vmem:[#allocation2 + $0x6] sm:$0xff]
  %v1307 = vld [vmem:[#allocation2 + $0xe] sm:$0xff]
  %v1308 = vld [vmem:[#allocation2 + $0x16] sm:$0xff]
  %v1309 = vld [vmem:[#allocation2 + $0x1e] sm:$0xff]
  %v1310 = vld [vmem:[#allocation2 + $0x26] sm:$0xff]
  %v1311 = vld [vmem:[#allocation2 + $0x2e] sm:$0xff]
  %v1312 = vld [vmem:[#allocation2 + $0x36] sm:$0xff]
  %v1313 = vld [vmem:[#allocation2 + $0x3e] sm:$0xff]
  %v1314 = vld [vmem:[#allocation2 + $0x46] sm:$0xff]
  %v1315 = vld [vmem:[#allocation2 + $0x4e] sm:$0xff]
  %v1316 = vld [vmem:[#allocation2 + $0x56] sm:$0xff]
  %v1317 = vld [vmem:[#allocation2 + $0x5e] sm:$0xff]
  %v1318 = vld [vmem:[#allocation2 + $0x66] sm:$0xff]
  %v1319 = vld [vmem:[#allocation2 + $0x6e] sm:$0xff]
  %v1320 = vld [vmem:[#allocation2 + $0x76] sm:$0xff]
  %v1321 = vld [vmem:[#allocation2 + $0x7e] sm:$0xff]
  %v1322 = vld [vmem:[#allocation2 + $0x86] sm:$0xff]
  %v1323 = vld [vmem:[#allocation2 + $0x8e] sm:$0xff]
  %v1324 = vld [vmem:[#allocation2 + $0x96] sm:$0xff]
  %v1325 = vld [vmem:[#allocation2 + $0x9e] sm:$0xff]
  %v1326 = vld [vmem:[#allocation2 + $0xa6] sm:$0xff]
  %v1327 = vld [vmem:[#allocation2 + $0xae] sm:$0xff]
  %v1328 = vld [vmem:[%s3 + $0x30] sm:$0xff]
  %v1329 = vld [vmem:[%s3 + $0x38] sm:$0xff]
  %v1331 = vsel %vm455, %v1306, 0
  %v1334 = vsel %vm455, %v1307, 0
  %v1337 = vsel %vm455, %v1308, 0
  %v1340 = vsel %vm455, %v1309, 0
  %v1343 = vsel %vm455, %v1310, 0
  %v1346 = vsel %vm455, %v1311, 0
  %v1349 = vsel %vm455, %v1312, 0
  %v1352 = vsel %vm455, %v1313, 0
  %v1355 = vsel %vm455, %v1314, 0
  %v1358 = vsel %vm455, %v1315, 0
  %v1361 = vsel %vm455, %v1316, 0
  %v1364 = vsel %vm455, %v1317, 0
  %v1367 = vsel %vm455, %v1318, 0
  %v1370 = vsel %vm455, %v1319, 0
  %v1373 = vsel %vm455, %v1320, 0
  %v1376 = vsel %vm455, %v1321, 0
  %v1379 = vsel %vm455, %v1322, 0
  %v1382 = vsel %vm455, %v1323, 0
  %v1385 = vsel %vm455, %v1324, 0
  %v1388 = vsel %vm455, %v1325, 0
  %v1391 = vsel %vm455, %v1326, 0
  %v1394 = vsel %vm455, %v1327, 0
  %1396 = vmatprep.subr.mxu0 0.0
  %1397 = vmatpush1.msra.mxu0 %v1328
  %1398 = vmatprep.subr.mxu0 0.0
  %1399 = vmatpush1.msra.mxu0 %v1329
  %1400 = vmatprep.subr.mxu0 0.0
  %1401 = vmatpush1.msra.mxu0 0.0
  %1402 = vmatprep.subr.mxu0 0.0
  %1403 = vmatpush1.msra.mxu0 0.0
  %1404 = vmatprep.subr.mxu0 0.0
  %1405 = vmatpush1.msra.mxu0 0.0
  %1406 = vmatprep.subr.mxu0 0.0
  %1407 = vmatpush1.msra.mxu0 0.0
  %1408 = vmatprep.subr.mxu0 0.0
  %1409 = vmatpush1.msra.mxu0 0.0
  %1410 = vmatprep.subr.mxu0 0.0
  %1411 = vmatpush1.msra.mxu0 0.0
  %1412 = vmatprep.subr.mxu0 0.0
  %1413 = vmatpush1.msra.mxu0 0.0
  %1414 = vmatprep.subr.mxu0 0.0
  %1415 = vmatpush1.msra.mxu0 0.0
  %1416 = vmatprep.subr.mxu0 0.0
  %1417 = vmatpush1.msra.mxu0 0.0
  %1418 = vmatprep.subr.mxu0 0.0
  %1419 = vmatpush1.msra.mxu0 0.0
  %1420 = vmatprep.subr.mxu0 0.0
  %1421 = vmatpush1.msra.mxu0 0.0
  %1422 = vmatprep.subr.mxu0 0.0
  %1423 = vmatpush1.msra.mxu0 0.0
  %1424 = vmatprep.subr.mxu0 0.0
  %1425 = vmatpush1.msra.mxu0 0.0
  %1426 = vmatprep.subr.mxu0 0.0
  %1427 = vmatpush1.msra.mxu0 0.0
  %1428 = vmatprep.subr.mxu0 0.0
  %1429 = vmatpush1.msra.mxu0 0.0
  %1430 = vmatprep.subr.mxu0 0.0
  %1431 = vmatpush1.msra.mxu0 0.0
  %1432 = vmatprep.subr.mxu0 0.0
  %1433 = vmatpush1.msra.mxu0 0.0
  %1434 = vmatprep.subr.mxu0 0.0
  %1435 = vmatpush1.msra.mxu0 0.0
  %1436 = vmatprep.subr.mxu0 0.0
  %1437 = vmatpush1.msra.mxu0 0.0
  %1438 = vmatprep.subr.mxu0 0.0
  %1439 = vmatpush1.msra.mxu0 0.0
  %1440 = vmatprep.subr.mxu0 0.0
  %1441 = vmatpush1.msra.mxu0 0.0
  %1442 = vmatprep.subr.mxu0 0.0
  %1443 = vmatpush1.msra.mxu0 0.0
  %1444 = vmatprep.subr.mxu0 0.0
  %1445 = vmatpush1.msra.mxu0 0.0
  %1446 = vmatprep.subr.mxu0 0.0
  %1447 = vmatpush1.msra.mxu0 0.0
  %1448 = vmatprep.subr.mxu0 0.0
  %1449 = vmatpush1.msra.mxu0 0.0
  %1450 = vmatprep.subr.mxu0 0.0
  %1451 = vmatpush1.msra.mxu0 0.0
  %1452 = vmatprep.subr.mxu0 0.0
  %1453 = vmatpush1.msra.mxu0 0.0
  %1454 = vmatprep.subr.mxu0 0.0
  %1455 = vmatpush1.msra.mxu0 0.0
  %1456 = vmatprep.subr.mxu0 0.0
  %1457 = vmatpush1.msra.mxu0 0.0
  %1458 = vmatprep.subr.mxu0 0.0
  %1459 = vmatpush1.msra.mxu0 0.0
  %1460 = vmatprep.mubr.f32.mxu0 0.0
  %1461 = vmatmul.mubr.f32.gmra.mrb[0].mxu0 %v1331
  %v1462 = vpop.f32.mrb[0].mxu0
  %v1463 = vadd.f32 0.0, %v1462
  %v1464 = vpop.f32.mrb[0].mxu0
  %1465 = vmatprep.mubr.f32.mxu0 0.0
  %1466 = vmatmul.mubr.f32.gmra.mrb[0].mxu0 %v1334
  %v1467 = vpop.f32.mrb[0].mxu0
  %v1468 = vadd.f32 0.0, %v1467
  %v1469 = vpop.f32.mrb[0].mxu0
  %1470 = vmatprep.mubr.f32.mxu0 0.0
  %1471 = vmatmul.mubr.f32.gmra.mrb[0].mxu0 %v1337
  %v1472 = vpop.f32.mrb[0].mxu0
  %v1473 = vadd.f32 0.0, %v1472
  %v1474 = vpop.f32.mrb[0].mxu0
  %1475 = vmatprep.mubr.f32.mxu0 0.0
  %1476 = vmatmul.mubr.f32.gmra.mrb[0].mxu0 %v1340
  %v1477 = vpop.f32.mrb[0].mxu0
  %v1478 = vadd.f32 0.0, %v1477
  %v1479 = vpop.f32.mrb[0].mxu0
  %1480 = vmatprep.mubr.f32.mxu0 0.0
  %1481 = vmatmul.mubr.f32.gmra.mrb[0].mxu0 %v1343
  %v1482 = vpop.f32.mrb[0].mxu0
  %v1483 = vadd.f32 0.0, %v1482
  %v1484 = vpop.f32.mrb[0].mxu0
  %1485 = vmatprep.mubr.f32.mxu0 0.0
  %1486 = vmatmul.mubr.f32.gmra.mrb[0].mxu0 %v1346
  %v1487 = vpop.f32.mrb[0].mxu0
  %v1488 = vadd.f32 0.0, %v1487
  %v1489 = vpop.f32.mrb[0].mxu0
  %1490 = vmatprep.mubr.f32.mxu0 0.0
  %1491 = vmatmul.mubr.f32.gmra.mrb[0].mxu0 %v1349
  %v1492 = vpop.f32.mrb[0].mxu0
  %v1493 = vadd.f32 0.0, %v1492
  %v1494 = vpop.f32.mrb[0].mxu0
  %1495 = vmatprep.mubr.f32.mxu0 0.0
  %1496 = vmatmul.mubr.f32.gmra.mrb[0].mxu0 %v1352
  %v1497 = vpop.f32.mrb[0].mxu0
  %v1498 = vadd.f32 0.0, %v1497
  %v1499 = vpop.f32.mrb[0].mxu0
  %1500 = vmatprep.mubr.f32.mxu0 0.0
  %1501 = vmatmul.mubr.f32.gmra.mrb[0].mxu0 %v1355
  %v1502 = vpop.f32.mrb[0].mxu0
  %v1503 = vadd.f32 0.0, %v1502
  %v1504 = vpop.f32.mrb[0].mxu0
  %1505 = vmatprep.mubr.f32.mxu0 0.0
  %1506 = vmatmul.mubr.f32.gmra.mrb[0].mxu0 %v1358
  %v1507 = vpop.f32.mrb[0].mxu0
  %v1508 = vadd.f32 0.0, %v1507
  %v1509 = vpop.f32.mrb[0].mxu0
  %1510 = vmatprep.mubr.f32.mxu0 0.0
  %1511 = vmatmul.mubr.f32.gmra.mrb[0].mxu0 %v1361
  %v1512 = vpop.f32.mrb[0].mxu0
  %v1513 = vadd.f32 0.0, %v1512
  %v1514 = vpop.f32.mrb[0].mxu0
  %1515 = vmatprep.mubr.f32.mxu0 0.0
  %1516 = vmatmul.mubr.f32.gmra.mrb[0].mxu0 %v1364
  %v1517 = vpop.f32.mrb[0].mxu0
  %v1518 = vadd.f32 0.0, %v1517
  %v1519 = vpop.f32.mrb[0].mxu0
  %1520 = vmatprep.mubr.f32.mxu0 0.0
  %1521 = vmatmul.mubr.f32.gmra.mrb[0].mxu0 %v1367
  %v1522 = vpop.f32.mrb[0].mxu0
  %v1523 = vadd.f32 0.0, %v1522
  %v1524 = vpop.f32.mrb[0].mxu0
  %1525 = vmatprep.mubr.f32.mxu0 0.0
  %1526 = vmatmul.mubr.f32.gmra.mrb[0].mxu0 %v1370
  %v1527 = vpop.f32.mrb[0].mxu0
  %v1528 = vadd.f32 0.0, %v1527
  %v1529 = vpop.f32.mrb[0].mxu0
  %1530 = vmatprep.mubr.f32.mxu0 0.0
  %1531 = vmatmul.mubr.f32.gmra.mrb[0].mxu0 %v1373
  %v1532 = vpop.f32.mrb[0].mxu0
  %v1533 = vadd.f32 0.0, %v1532
  %v1534 = vpop.f32.mrb[0].mxu0
  %1535 = vmatprep.mubr.f32.mxu0 0.0
  %1536 = vmatmul.mubr.f32.gmra.mrb[0].mxu0 %v1376
  %v1537 = vpop.f32.mrb[0].mxu0
  %v1538 = vadd.f32 0.0, %v1537
  %v1539 = vpop.f32.mrb[0].mxu0
  %1540 = vmatprep.mubr.f32.mxu0 0.0
  %1541 = vmatmul.mubr.f32.gmra.mrb[0].mxu0 %v1379
  %v1542 = vpop.f32.mrb[0].mxu0
  %v1543 = vadd.f32 0.0, %v1542
  %v1544 = vpop.f32.mrb[0].mxu0
  %1545 = vmatprep.mubr.f32.mxu0 0.0
  %1546 = vmatmul.mubr.f32.gmra.mrb[0].mxu0 %v1382
  %v1547 = vpop.f32.mrb[0].mxu0
  %v1548 = vadd.f32 0.0, %v1547
  %v1549 = vpop.f32.mrb[0].mxu0
  %1550 = vmatprep.mubr.f32.mxu0 0.0
  %1551 = vmatmul.mubr.f32.gmra.mrb[0].mxu0 %v1385
  %v1552 = vpop.f32.mrb[0].mxu0
  %v1553 = vadd.f32 0.0, %v1552
  %v1554 = vpop.f32.mrb[0].mxu0
  %1555 = vmatprep.mubr.f32.mxu0 0.0
  %1556 = vmatmul.mubr.f32.gmra.mrb[0].mxu0 %v1388
  %v1557 = vpop.f32.mrb[0].mxu0
  %v1558 = vadd.f32 0.0, %v1557
  %v1559 = vpop.f32.mrb[0].mxu0
  %1560 = vmatprep.mubr.f32.mxu0 0.0
  %1561 = vmatmul.mubr.f32.gmra.mrb[0].mxu0 %v1391
  %v1562 = vpop.f32.mrb[0].mxu0
  %v1563 = vadd.f32 0.0, %v1562
  %v1564 = vpop.f32.mrb[0].mxu0
  %1565 = vmatprep.mubr.f32.mxu0 0.0
  %1566 = vmatmul.mubr.f32.gmra.mrb[0].mxu0 %v1394
  %v1567 = vpop.f32.mrb[0].mxu0
  %v1568 = vadd.f32 0.0, %v1567
  %v1569 = vpop.f32.mrb[0].mxu0
  %1570 = vdwg.mxu0
  %v1571 = vadd.f32 %v1284, %v1463
  %v1572 = vadd.f32 %v1285, %v1468
  %v1573 = vadd.f32 %v1286, %v1473
  %v1574 = vadd.f32 %v1287, %v1478
  %v1575 = vadd.f32 %v1288, %v1483
  %v1576 = vadd.f32 %v1289, %v1488
  %v1577 = vadd.f32 %v1290, %v1493
  %v1578 = vadd.f32 %v1291, %v1498
  %v1579 = vadd.f32 %v1292, %v1503
  %v1580 = vadd.f32 %v1293, %v1508
  %v1581 = vadd.f32 %v1294, %v1513
  %v1582 = vadd.f32 %v1295, %v1518
  %v1583 = vadd.f32 %v1296, %v1523
  %v1584 = vadd.f32 %v1297, %v1528
  %v1585 = vadd.f32 %v1298, %v1533
  %v1586 = vadd.f32 %v1299, %v1538
  %v1587 = vadd.f32 %v1300, %v1543
  %v1588 = vadd.f32 %v1301, %v1548
  %v1589 = vadd.f32 %v1302, %v1553
  %v1590 = vadd.f32 %v1303, %v1558
  %v1591 = vadd.f32 %v1304, %v1563
  %v1592 = vadd.f32 %v1305, %v1568
  %v1593 = vld [vmem:[#allocation2 + $0x1a] sm:$0xff]
  %v1594 = vld [vmem:[#allocation2 + $0x22] sm:$0xff]
  %v1595 = vld [vmem:[#allocation2 + $0x2a] sm:$0xff]
  %v1596 = vld [vmem:[#allocation2 + $0x32] sm:$0xff]
  %v1597 = vld [vmem:[#allocation2 + $0x3a] sm:$0xff]
  %v1598 = vld [vmem:[#allocation2 + $0x42] sm:$0xff]
  %v1599 = vld [vmem:[#allocation2 + $0x4a] sm:$0xff]
  %v1600 = vld [vmem:[#allocation2 + $0x52] sm:$0xff]
  %v1601 = vld [vmem:[#allocation2 + $0x5a] sm:$0xff]
  %v1602 = vld [vmem:[#allocation2 + $0x62] sm:$0xff]
  %v1603 = vld [vmem:[#allocation2 + $0x6a] sm:$0xff]
  %v1604 = vld [vmem:[#allocation2 + $0x72] sm:$0xff]
  %v1605 = vld [vmem:[#allocation2 + $0x7a] sm:$0xff]
  %v1606 = vld [vmem:[#allocation2 + $0x82] sm:$0xff]
  %v1607 = vld [vmem:[#allocation2 + $0x8a] sm:$0xff]
  %v1608 = vld [vmem:[#allocation2 + $0x92] sm:$0xff]
  %v1609 = vld [vmem:[#allocation2 + $0x9a] sm:$0xff]
  %v1610 = vld [vmem:[#allocation2 + $0xa2] sm:$0xff]
  %v1611 = vld [vmem:[#allocation2 + $0xaa] sm:$0xff]
  %v1612 = vld [vmem:[#allocation2 + $0xb2] sm:$0xff]
  %v1613 = vld [vmem:[#allocation2 + $0xba] sm:$0xff]
  %v1614 = vld [vmem:[#allocation2 + $0xc2] sm:$0xff]
  %v1615 = vld [vmem:[%s3 + $0x40] sm:$0xff]
  %v1616 = vld [vmem:[%s3 + $0x48] sm:$0xff]
  %v1618 = vsel %vm455, %v1593, 0
  %v1621 = vsel %vm455, %v1594, 0
  %v1624 = vsel %vm455, %v1595, 0
  %v1627 = vsel %vm455, %v1596, 0
  %v1630 = vsel %vm455, %v1597, 0
  %v1633 = vsel %vm455, %v1598, 0
  %v1636 = vsel %vm455, %v1599, 0
  %v1639 = vsel %vm455, %v1600, 0
  %v1642 = vsel %vm455, %v1601, 0
  %v1645 = vsel %vm455, %v1602, 0
  %v1648 = vsel %vm455, %v1603, 0
  %v1651 = vsel %vm455, %v1604, 0
  %v1654 = vsel %vm455, %v1605, 0
  %v1657 = vsel %vm455, %v1606, 0
  %v1660 = vsel %vm455, %v1607, 0
  %v1663 = vsel %vm455, %v1608, 0
  %v1666 = vsel %vm455, %v1609, 0
  %v1669 = vsel %vm455, %v1610, 0
  %v1672 = vsel %vm455, %v1611, 0
  %v1675 = vsel %vm455, %v1612, 0
  %v1678 = vsel %vm455, %v1613, 0
  %v1681 = vsel %vm455, %v1614, 0
  %1683 = vmatprep.subr.mxu0 0.0
  %1684 = vmatpush1.msra.mxu0 %v1615
  %1685 = vmatprep.subr.mxu0 0.0
  %1686 = vmatpush1.msra.mxu0 %v1616
  %1687 = vmatprep.subr.mxu0 0.0
  %1688 = vmatpush1.msra.mxu0 0.0
  %1689 = vmatprep.subr.mxu0 0.0
  %1690 = vmatpush1.msra.mxu0 0.0
  %1691 = vmatprep.subr.mxu0 0.0
  %1692 = vmatpush1.msra.mxu0 0.0
  %1693 = vmatprep.subr.mxu0 0.0
  %1694 = vmatpush1.msra.mxu0 0.0
  %1695 = vmatprep.subr.mxu0 0.0
  %1696 = vmatpush1.msra.mxu0 0.0
  %1697 = vmatprep.subr.mxu0 0.0
  %1698 = vmatpush1.msra.mxu0 0.0
  %1699 = vmatprep.subr.mxu0 0.0
  %1700 = vmatpush1.msra.mxu0 0.0
  %1701 = vmatprep.subr.mxu0 0.0
  %1702 = vmatpush1.msra.mxu0 0.0
  %1703 = vmatprep.subr.mxu0 0.0
  %1704 = vmatpush1.msra.mxu0 0.0
  %1705 = vmatprep.subr.mxu0 0.0
  %1706 = vmatpush1.msra.mxu0 0.0
  %1707 = vmatprep.subr.mxu0 0.0
  %1708 = vmatpush1.msra.mxu0 0.0
  %1709 = vmatprep.subr.mxu0 0.0
  %1710 = vmatpush1.msra.mxu0 0.0
  %1711 = vmatprep.subr.mxu0 0.0
  %1712 = vmatpush1.msra.mxu0 0.0
  %1713 = vmatprep.subr.mxu0 0.0
  %1714 = vmatpush1.msra.mxu0 0.0
  %1715 = vmatprep.subr.mxu0 0.0
  %1716 = vmatpush1.msra.mxu0 0.0
  %1717 = vmatprep.subr.mxu0 0.0
  %1718 = vmatpush1.msra.mxu0 0.0
  %1719 = vmatprep.subr.mxu0 0.0
  %1720 = vmatpush1.msra.mxu0 0.0
  %1721 = vmatprep.subr.mxu0 0.0
  %1722 = vmatpush1.msra.mxu0 0.0
  %1723 = vmatprep.subr.mxu0 0.0
  %1724 = vmatpush1.msra.mxu0 0.0
  %1725 = vmatprep.subr.mxu0 0.0
  %1726 = vmatpush1.msra.mxu0 0.0
  %1727 = vmatprep.subr.mxu0 0.0
  %1728 = vmatpush1.msra.mxu0 0.0
  %1729 = vmatprep.subr.mxu0 0.0
  %1730 = vmatpush1.msra.mxu0 0.0
  %1731 = vmatprep.subr.mxu0 0.0
  %1732 = vmatpush1.msra.mxu0 0.0
  %1733 = vmatprep.subr.mxu0 0.0
  %1734 = vmatpush1.msra.mxu0 0.0
  %1735 = vmatprep.subr.mxu0 0.0
  %1736 = vmatpush1.msra.mxu0 0.0
  %1737 = vmatprep.subr.mxu0 0.0
  %1738 = vmatpush1.msra.mxu0 0.0
  %1739 = vmatprep.subr.mxu0 0.0
  %1740 = vmatpush1.msra.mxu0 0.0
  %1741 = vmatprep.subr.mxu0 0.0
  %1742 = vmatpush1.msra.mxu0 0.0
  %1743 = vmatprep.subr.mxu0 0.0
  %1744 = vmatpush1.msra.mxu0 0.0
  %1745 = vmatprep.subr.mxu0 0.0
  %1746 = vmatpush1.msra.mxu0 0.0
  %1747 = vmatprep.mubr.f32.mxu0 0.0
  %1748 = vmatmul.mubr.f32.gmra.mrb[0].mxu0 %v1618
  %v1749 = vpop.f32.mrb[0].mxu0
  %v1750 = vadd.f32 0.0, %v1749
  %v1751 = vpop.f32.mrb[0].mxu0
  %1752 = vmatprep.mubr.f32.mxu0 0.0
  %1753 = vmatmul.mubr.f32.gmra.mrb[0].mxu0 %v1621
  %v1754 = vpop.f32.mrb[0].mxu0
  %v1755 = vadd.f32 0.0, %v1754
  %v1756 = vpop.f32.mrb[0].mxu0
  %1757 = vmatprep.mubr.f32.mxu0 0.0
  %1758 = vmatmul.mubr.f32.gmra.mrb[0].mxu0 %v1624
  %v1759 = vpop.f32.mrb[0].mxu0
  %v1760 = vadd.f32 0.0, %v1759
  %v1761 = vpop.f32.mrb[0].mxu0
  %1762 = vmatprep.mubr.f32.mxu0 0.0
  %1763 = vmatmul.mubr.f32.gmra.mrb[0].mxu0 %v1627
  %v1764 = vpop.f32.mrb[0].mxu0
  %v1765 = vadd.f32 0.0, %v1764
  %v1766 = vpop.f32.mrb[0].mxu0
  %1767 = vmatprep.mubr.f32.mxu0 0.0
  %1768 = vmatmul.mubr.f32.gmra.mrb[0].mxu0 %v1630
  %v1769 = vpop.f32.mrb[0].mxu0
  %v1770 = vadd.f32 0.0, %v1769
  %v1771 = vpop.f32.mrb[0].mxu0
  %1772 = vmatprep.mubr.f32.mxu0 0.0
  %1773 = vmatmul.mubr.f32.gmra.mrb[0].mxu0 %v1633
  %v1774 = vpop.f32.mrb[0].mxu0
  %v1775 = vadd.f32 0.0, %v1774
  %v1776 = vpop.f32.mrb[0].mxu0
  %1777 = vmatprep.mubr.f32.mxu0 0.0
  %1778 = vmatmul.mubr.f32.gmra.mrb[0].mxu0 %v1636
  %v1779 = vpop.f32.mrb[0].mxu0
  %v1780 = vadd.f32 0.0, %v1779
  %v1781 = vpop.f32.mrb[0].mxu0
  %1782 = vmatprep.mubr.f32.mxu0 0.0
  %1783 = vmatmul.mubr.f32.gmra.mrb[0].mxu0 %v1639
  %v1784 = vpop.f32.mrb[0].mxu0
  %v1785 = vadd.f32 0.0, %v1784
  %v1786 = vpop.f32.mrb[0].mxu0
  %1787 = vmatprep.mubr.f32.mxu0 0.0
  %1788 = vmatmul.mubr.f32.gmra.mrb[0].mxu0 %v1642
  %v1789 = vpop.f32.mrb[0].mxu0
  %v1790 = vadd.f32 0.0, %v1789
  %v1791 = vpop.f32.mrb[0].mxu0
  %1792 = vmatprep.mubr.f32.mxu0 0.0
  %1793 = vmatmul.mubr.f32.gmra.mrb[0].mxu0 %v1645
  %v1794 = vpop.f32.mrb[0].mxu0
  %v1795 = vadd.f32 0.0, %v1794
  %v1796 = vpop.f32.mrb[0].mxu0
  %1797 = vmatprep.mubr.f32.mxu0 0.0
  %1798 = vmatmul.mubr.f32.gmra.mrb[0].mxu0 %v1648
  %v1799 = vpop.f32.mrb[0].mxu0
  %v1800 = vadd.f32 0.0, %v1799
  %v1801 = vpop.f32.mrb[0].mxu0
  %1802 = vmatprep.mubr.f32.mxu0 0.0
  %1803 = vmatmul.mubr.f32.gmra.mrb[0].mxu0 %v1651
  %v1804 = vpop.f32.mrb[0].mxu0
  %v1805 = vadd.f32 0.0, %v1804
  %v1806 = vpop.f32.mrb[0].mxu0
  %1807 = vmatprep.mubr.f32.mxu0 0.0
  %1808 = vmatmul.mubr.f32.gmra.mrb[0].mxu0 %v1654
  %v1809 = vpop.f32.mrb[0].mxu0
  %v1810 = vadd.f32 0.0, %v1809
  %v1811 = vpop.f32.mrb[0].mxu0
  %1812 = vmatprep.mubr.f32.mxu0 0.0
  %1813 = vmatmul.mubr.f32.gmra.mrb[0].mxu0 %v1657
  %v1814 = vpop.f32.mrb[0].mxu0
  %v1815 = vadd.f32 0.0, %v1814
  %v1816 = vpop.f32.mrb[0].mxu0
  %1817 = vmatprep.mubr.f32.mxu0 0.0
  %1818 = vmatmul.mubr.f32.gmra.mrb[0].mxu0 %v1660
  %v1819 = vpop.f32.mrb[0].mxu0
  %v1820 = vadd.f32 0.0, %v1819
  %v1821 = vpop.f32.mrb[0].mxu0
  %1822 = vmatprep.mubr.f32.mxu0 0.0
  %1823 = vmatmul.mubr.f32.gmra.mrb[0].mxu0 %v1663
  %v1824 = vpop.f32.mrb[0].mxu0
  %v1825 = vadd.f32 0.0, %v1824
  %v1826 = vpop.f32.mrb[0].mxu0
  %1827 = vmatprep.mubr.f32.mxu0 0.0
  %1828 = vmatmul.mubr.f32.gmra.mrb[0].mxu0 %v1666
  %v1829 = vpop.f32.mrb[0].mxu0
  %v1830 = vadd.f32 0.0, %v1829
  %v1831 = vpop.f32.mrb[0].mxu0
  %1832 = vmatprep.mubr.f32.mxu0 0.0
  %1833 = vmatmul.mubr.f32.gmra.mrb[0].mxu0 %v1669
  %v1834 = vpop.f32.mrb[0].mxu0
  %v1835 = vadd.f32 0.0, %v1834
  %v1836 = vpop.f32.mrb[0].mxu0
  %1837 = vmatprep.mubr.f32.mxu0 0.0
  %1838 = vmatmul.mubr.f32.gmra.mrb[0].mxu0 %v1672
  %v1839 = vpop.f32.mrb[0].mxu0
  %v1840 = vadd.f32 0.0, %v1839
  %v1841 = vpop.f32.mrb[0].mxu0
  %1842 = vmatprep.mubr.f32.mxu0 0.0
  %1843 = vmatmul.mubr.f32.gmra.mrb[0].mxu0 %v1675
  %v1844 = vpop.f32.mrb[0].mxu0
  %v1845 = vadd.f32 0.0, %v1844
  %v1846 = vpop.f32.mrb[0].mxu0
  %1847 = vmatprep.mubr.f32.mxu0 0.0
  %1848 = vmatmul.mubr.f32.gmra.mrb[0].mxu0 %v1678
  %v1849 = vpop.f32.mrb[0].mxu0
  %v1850 = vadd.f32 0.0, %v1849
  %v1851 = vpop.f32.mrb[0].mxu0
  %1852 = vmatprep.mubr.f32.mxu0 0.0
  %1853 = vmatmul.mubr.f32.gmra.mrb[0].mxu0 %v1681
  %v1854 = vpop.f32.mrb[0].mxu0
  %v1855 = vadd.f32 0.0, %v1854
  %v1856 = vpop.f32.mrb[0].mxu0
  %1857 = vdwg.mxu0
  %v1858 = vadd.f32 %v1571, %v1750
  %v1859 = vadd.f32 %v1572, %v1755
  %v1860 = vadd.f32 %v1573, %v1760
  %v1861 = vadd.f32 %v1574, %v1765
  %v1862 = vadd.f32 %v1575, %v1770
  %v1863 = vadd.f32 %v1576, %v1775
  %v1864 = vadd.f32 %v1577, %v1780
  %v1865 = vadd.f32 %v1578, %v1785
  %v1866 = vadd.f32 %v1579, %v1790
  %v1867 = vadd.f32 %v1580, %v1795
  %v1868 = vadd.f32 %v1581, %v1800
  %v1869 = vadd.f32 %v1582, %v1805
  %v1870 = vadd.f32 %v1583, %v1810
  %v1871 = vadd.f32 %v1584, %v1815
  %v1872 = vadd.f32 %v1585, %v1820
  %v1873 = vadd.f32 %v1586, %v1825
  %v1874 = vadd.f32 %v1587, %v1830
  %v1875 = vadd.f32 %v1588, %v1835
  %v1876 = vadd.f32 %v1589, %v1840
  %v1877 = vadd.f32 %v1590, %v1845
  %v1878 = vadd.f32 %v1591, %v1850
  %v1879 = vadd.f32 %v1592, %v1855
  %v1880 = vld [vmem:[#allocation2 + $0x1c] sm:$0xff]
  %v1881 = vld [vmem:[#allocation2 + $0x24] sm:$0xff]
  %v1882 = vld [vmem:[#allocation2 + $0x2c] sm:$0xff]
  %v1883 = vld [vmem:[#allocation2 + $0x34] sm:$0xff]
  %v1884 = vld [vmem:[#allocation2 + $0x3c] sm:$0xff]
  %v1885 = vld [vmem:[#allocation2 + $0x44] sm:$0xff]
  %v1886 = vld [vmem:[#allocation2 + $0x4c] sm:$0xff]
  %v1887 = vld [vmem:[#allocation2 + $0x54] sm:$0xff]
  %v1888 = vld [vmem:[#allocation2 + $0x5c] sm:$0xff]
  %v1889 = vld [vmem:[#allocation2 + $0x64] sm:$0xff]
  %v1890 = vld [vmem:[#allocation2 + $0x6c] sm:$0xff]
  %v1891 = vld [vmem:[#allocation2 + $0x74] sm:$0xff]
  %v1892 = vld [vmem:[#allocation2 + $0x7c] sm:$0xff]
  %v1893 = vld [vmem:[#allocation2 + $0x84] sm:$0xff]
  %v1894 = vld [vmem:[#allocation2 + $0x8c] sm:$0xff]
  %v1895 = vld [vmem:[#allocation2 + $0x94] sm:$0xff]
  %v1896 = vld [vmem:[#allocation2 + $0x9c] sm:$0xff]
  %v1897 = vld [vmem:[#allocation2 + $0xa4] sm:$0xff]
  %v1898 = vld [vmem:[#allocation2 + $0xac] sm:$0xff]
  %v1899 = vld [vmem:[#allocation2 + $0xb4] sm:$0xff]
  %v1900 = vld [vmem:[#allocation2 + $0xbc] sm:$0xff]
  %v1901 = vld [vmem:[#allocation2 + $0xc4] sm:$0xff]
  %v1902 = vld [vmem:[%s3 + $0x50] sm:$0xff]
  %v1903 = vld [vmem:[%s3 + $0x58] sm:$0xff]
  %v1905 = vsel %vm455, %v1880, 0
  %v1908 = vsel %vm455, %v1881, 0
  %v1911 = vsel %vm455, %v1882, 0
  %v1914 = vsel %vm455, %v1883, 0
  %v1917 = vsel %vm455, %v1884, 0
  %v1920 = vsel %vm455, %v1885, 0
  %v1923 = vsel %vm455, %v1886, 0
  %v1926 = vsel %vm455, %v1887, 0
  %v1929 = vsel %vm455, %v1888, 0
  %v1932 = vsel %vm455, %v1889, 0
  %v1935 = vsel %vm455, %v1890, 0
  %v1938 = vsel %vm455, %v1891, 0
  %v1941 = vsel %vm455, %v1892, 0
  %v1944 = vsel %vm455, %v1893, 0
  %v1947 = vsel %vm455, %v1894, 0
  %v1950 = vsel %vm455, %v1895, 0
  %v1953 = vsel %vm455, %v1896, 0
  %v1956 = vsel %vm455, %v1897, 0
  %v1959 = vsel %vm455, %v1898, 0
  %v1962 = vsel %vm455, %v1899, 0
  %v1965 = vsel %vm455, %v1900, 0
  %v1968 = vsel %vm455, %v1901, 0
  %1970 = vmatprep.subr.mxu0 0.0
  %1971 = vmatpush1.msra.mxu0 %v1902
  %1972 = vmatprep.subr.mxu0 0.0
  %1973 = vmatpush1.msra.mxu0 %v1903
  %1974 = vmatprep.subr.mxu0 0.0
  %1975 = vmatpush1.msra.mxu0 0.0
  %1976 = vmatprep.subr.mxu0 0.0
  %1977 = vmatpush1.msra.mxu0 0.0
  %1978 = vmatprep.subr.mxu0 0.0
  %1979 = vmatpush1.msra.mxu0 0.0
  %1980 = vmatprep.subr.mxu0 0.0
  %1981 = vmatpush1.msra.mxu0 0.0
  %1982 = vmatprep.subr.mxu0 0.0
  %1983 = vmatpush1.msra.mxu0 0.0
  %1984 = vmatprep.subr.mxu0 0.0
  %1985 = vmatpush1.msra.mxu0 0.0
  %1986 = vmatprep.subr.mxu0 0.0
  %1987 = vmatpush1.msra.mxu0 0.0
  %1988 = vmatprep.subr.mxu0 0.0
  %1989 = vmatpush1.msra.mxu0 0.0
  %1990 = vmatprep.subr.mxu0 0.0
  %1991 = vmatpush1.msra.mxu0 0.0
  %1992 = vmatprep.subr.mxu0 0.0
  %1993 = vmatpush1.msra.mxu0 0.0
  %1994 = vmatprep.subr.mxu0 0.0
  %1995 = vmatpush1.msra.mxu0 0.0
  %1996 = vmatprep.subr.mxu0 0.0
  %1997 = vmatpush1.msra.mxu0 0.0
  %1998 = vmatprep.subr.mxu0 0.0
  %1999 = vmatpush1.msra.mxu0 0.0
  %2000 = vmatprep.subr.mxu0 0.0
  %2001 = vmatpush1.msra.mxu0 0.0
  %2002 = vmatprep.subr.mxu0 0.0
  %2003 = vmatpush1.msra.mxu0 0.0
  %2004 = vmatprep.subr.mxu0 0.0
  %2005 = vmatpush1.msra.mxu0 0.0
  %2006 = vmatprep.subr.mxu0 0.0
  %2007 = vmatpush1.msra.mxu0 0.0
  %2008 = vmatprep.subr.mxu0 0.0
  %2009 = vmatpush1.msra.mxu0 0.0
  %2010 = vmatprep.subr.mxu0 0.0
  %2011 = vmatpush1.msra.mxu0 0.0
  %2012 = vmatprep.subr.mxu0 0.0
  %2013 = vmatpush1.msra.mxu0 0.0
  %2014 = vmatprep.subr.mxu0 0.0
  %2015 = vmatpush1.msra.mxu0 0.0
  %2016 = vmatprep.subr.mxu0 0.0
  %2017 = vmatpush1.msra.mxu0 0.0
  %2018 = vmatprep.subr.mxu0 0.0
  %2019 = vmatpush1.msra.mxu0 0.0
  %2020 = vmatprep.subr.mxu0 0.0
  %2021 = vmatpush1.msra.mxu0 0.0
  %2022 = vmatprep.subr.mxu0 0.0
  %2023 = vmatpush1.msra.mxu0 0.0
  %2024 = vmatprep.subr.mxu0 0.0
  %2025 = vmatpush1.msra.mxu0 0.0
  %2026 = vmatprep.subr.mxu0 0.0
  %2027 = vmatpush1.msra.mxu0 0.0
  %2028 = vmatprep.subr.mxu0 0.0
  %2029 = vmatpush1.msra.mxu0 0.0
  %2030 = vmatprep.subr.mxu0 0.0
  %2031 = vmatpush1.msra.mxu0 0.0
  %2032 = vmatprep.subr.mxu0 0.0
  %2033 = vmatpush1.msra.mxu0 0.0
  %2034 = vmatprep.mubr.f32.mxu0 0.0
  %2035 = vmatmul.mubr.f32.gmra.mrb[0].mxu0 %v1905
  %v2036 = vpop.f32.mrb[0].mxu0
  %v2037 = vadd.f32 0.0, %v2036
  %v2038 = vpop.f32.mrb[0].mxu0
  %2039 = vmatprep.mubr.f32.mxu0 0.0
  %2040 = vmatmul.mubr.f32.gmra.mrb[0].mxu0 %v1908
  %v2041 = vpop.f32.mrb[0].mxu0
  %v2042 = vadd.f32 0.0, %v2041
  %v2043 = vpop.f32.mrb[0].mxu0
  %2044 = vmatprep.mubr.f32.mxu0 0.0
  %2045 = vmatmul.mubr.f32.gmra.mrb[0].mxu0 %v1911
  %v2046 = vpop.f32.mrb[0].mxu0
  %v2047 = vadd.f32 0.0, %v2046
  %v2048 = vpop.f32.mrb[0].mxu0
  %2049 = vmatprep.mubr.f32.mxu0 0.0
  %2050 = vmatmul.mubr.f32.gmra.mrb[0].mxu0 %v1914
  %v2051 = vpop.f32.mrb[0].mxu0
  %v2052 = vadd.f32 0.0, %v2051
  %v2053 = vpop.f32.mrb[0].mxu0
  %2054 = vmatprep.mubr.f32.mxu0 0.0
  %2055 = vmatmul.mubr.f32.gmra.mrb[0].mxu0 %v1917
  %v2056 = vpop.f32.mrb[0].mxu0
  %v2057 = vadd.f32 0.0, %v2056
  %v2058 = vpop.f32.mrb[0].mxu0
  %2059 = vmatprep.mubr.f32.mxu0 0.0
  %2060 = vmatmul.mubr.f32.gmra.mrb[0].mxu0 %v1920
  %v2061 = vpop.f32.mrb[0].mxu0
  %v2062 = vadd.f32 0.0, %v2061
  %v2063 = vpop.f32.mrb[0].mxu0
  %2064 = vmatprep.mubr.f32.mxu0 0.0
  %2065 = vmatmul.mubr.f32.gmra.mrb[0].mxu0 %v1923
  %v2066 = vpop.f32.mrb[0].mxu0
  %v2067 = vadd.f32 0.0, %v2066
  %v2068 = vpop.f32.mrb[0].mxu0
  %2069 = vmatprep.mubr.f32.mxu0 0.0
  %2070 = vmatmul.mubr.f32.gmra.mrb[0].mxu0 %v1926
  %v2071 = vpop.f32.mrb[0].mxu0
  %v2072 = vadd.f32 0.0, %v2071
  %v2073 = vpop.f32.mrb[0].mxu0
  %2074 = vmatprep.mubr.f32.mxu0 0.0
  %2075 = vmatmul.mubr.f32.gmra.mrb[0].mxu0 %v1929
  %v2076 = vpop.f32.mrb[0].mxu0
  %v2077 = vadd.f32 0.0, %v2076
  %v2078 = vpop.f32.mrb[0].mxu0
  %2079 = vmatprep.mubr.f32.mxu0 0.0
  %2080 = vmatmul.mubr.f32.gmra.mrb[0].mxu0 %v1932
  %v2081 = vpop.f32.mrb[0].mxu0
  %v2082 = vadd.f32 0.0, %v2081
  %v2083 = vpop.f32.mrb[0].mxu0
  %2084 = vmatprep.mubr.f32.mxu0 0.0
  %2085 = vmatmul.mubr.f32.gmra.mrb[0].mxu0 %v1935
  %v2086 = vpop.f32.mrb[0].mxu0
  %v2087 = vadd.f32 0.0, %v2086
  %v2088 = vpop.f32.mrb[0].mxu0
  %2089 = vmatprep.mubr.f32.mxu0 0.0
  %2090 = vmatmul.mubr.f32.gmra.mrb[0].mxu0 %v1938
  %v2091 = vpop.f32.mrb[0].mxu0
  %v2092 = vadd.f32 0.0, %v2091
  %v2093 = vpop.f32.mrb[0].mxu0
  %2094 = vmatprep.mubr.f32.mxu0 0.0
  %2095 = vmatmul.mubr.f32.gmra.mrb[0].mxu0 %v1941
  %v2096 = vpop.f32.mrb[0].mxu0
  %v2097 = vadd.f32 0.0, %v2096
  %v2098 = vpop.f32.mrb[0].mxu0
  %2099 = vmatprep.mubr.f32.mxu0 0.0
  %2100 = vmatmul.mubr.f32.gmra.mrb[0].mxu0 %v1944
  %v2101 = vpop.f32.mrb[0].mxu0
  %v2102 = vadd.f32 0.0, %v2101
  %v2103 = vpop.f32.mrb[0].mxu0
  %2104 = vmatprep.mubr.f32.mxu0 0.0
  %2105 = vmatmul.mubr.f32.gmra.mrb[0].mxu0 %v1947
  %v2106 = vpop.f32.mrb[0].mxu0
  %v2107 = vadd.f32 0.0, %v2106
  %v2108 = vpop.f32.mrb[0].mxu0
  %2109 = vmatprep.mubr.f32.mxu0 0.0
  %2110 = vmatmul.mubr.f32.gmra.mrb[0].mxu0 %v1950
  %v2111 = vpop.f32.mrb[0].mxu0
  %v2112 = vadd.f32 0.0, %v2111
  %v2113 = vpop.f32.mrb[0].mxu0
  %2114 = vmatprep.mubr.f32.mxu0 0.0
  %2115 = vmatmul.mubr.f32.gmra.mrb[0].mxu0 %v1953
  %v2116 = vpop.f32.mrb[0].mxu0
  %v2117 = vadd.f32 0.0, %v2116
  %v2118 = vpop.f32.mrb[0].mxu0
  %2119 = vmatprep.mubr.f32.mxu0 0.0
  %2120 = vmatmul.mubr.f32.gmra.mrb[0].mxu0 %v1956
  %v2121 = vpop.f32.mrb[0].mxu0
  %v2122 = vadd.f32 0.0, %v2121
  %v2123 = vpop.f32.mrb[0].mxu0
  %2124 = vmatprep.mubr.f32.mxu0 0.0
  %2125 = vmatmul.mubr.f32.gmra.mrb[0].mxu0 %v1959
  %v2126 = vpop.f32.mrb[0].mxu0
  %v2127 = vadd.f32 0.0, %v2126
  %v2128 = vpop.f32.mrb[0].mxu0
  %2129 = vmatprep.mubr.f32.mxu0 0.0
  %2130 = vmatmul.mubr.f32.gmra.mrb[0].mxu0 %v1962
  %v2131 = vpop.f32.mrb[0].mxu0
  %v2132 = vadd.f32 0.0, %v2131
  %v2133 = vpop.f32.mrb[0].mxu0
  %2134 = vmatprep.mubr.f32.mxu0 0.0
  %2135 = vmatmul.mubr.f32.gmra.mrb[0].mxu0 %v1965
  %v2136 = vpop.f32.mrb[0].mxu0
  %v2137 = vadd.f32 0.0, %v2136
  %v2138 = vpop.f32.mrb[0].mxu0
  %2139 = vmatprep.mubr.f32.mxu0 0.0
  %2140 = vmatmul.mubr.f32.gmra.mrb[0].mxu0 %v1968
  %v2141 = vpop.f32.mrb[0].mxu0
  %v2142 = vadd.f32 0.0, %v2141
  %v2143 = vpop.f32.mrb[0].mxu0
  %2144 = vdwg.mxu0
  %v2145 = vadd.f32 %v1858, %v2037
  %v2146 = vadd.f32 %v1859, %v2042
  %v2147 = vadd.f32 %v1860, %v2047
  %v2148 = vadd.f32 %v1861, %v2052
  %v2149 = vadd.f32 %v1862, %v2057
  %v2150 = vadd.f32 %v1863, %v2062
  %v2151 = vadd.f32 %v1864, %v2067
  %v2152 = vadd.f32 %v1865, %v2072
  %v2153 = vadd.f32 %v1866, %v2077
  %v2154 = vadd.f32 %v1867, %v2082
  %v2155 = vadd.f32 %v1868, %v2087
  %v2156 = vadd.f32 %v1869, %v2092
  %v2157 = vadd.f32 %v1870, %v2097
  %v2158 = vadd.f32 %v1871, %v2102
  %v2159 = vadd.f32 %v1872, %v2107
  %v2160 = vadd.f32 %v1873, %v2112
  %v2161 = vadd.f32 %v1874, %v2117
  %v2162 = vadd.f32 %v1875, %v2122
  %v2163 = vadd.f32 %v1876, %v2127
  %v2164 = vadd.f32 %v1877, %v2132
  %v2165 = vadd.f32 %v1878, %v2137
  %v2166 = vadd.f32 %v1879, %v2142
  %v2167 = vld [vmem:[#allocation2 + $0x1e] sm:$0xff]
  %v2168 = vld [vmem:[#allocation2 + $0x26] sm:$0xff]
  %v2169 = vld [vmem:[#allocation2 + $0x2e] sm:$0xff]
  %v2170 = vld [vmem:[#allocation2 + $0x36] sm:$0xff]
  %v2171 = vld [vmem:[#allocation2 + $0x3e] sm:$0xff]
  %v2172 = vld [vmem:[#allocation2 + $0x46] sm:$0xff]
  %v2173 = vld [vmem:[#allocation2 + $0x4e] sm:$0xff]
  %v2174 = vld [vmem:[#allocation2 + $0x56] sm:$0xff]
  %v2175 = vld [vmem:[#allocation2 + $0x5e] sm:$0xff]
  %v2176 = vld [vmem:[#allocation2 + $0x66] sm:$0xff]
  %v2177 = vld [vmem:[#allocation2 + $0x6e] sm:$0xff]
  %v2178 = vld [vmem:[#allocation2 + $0x76] sm:$0xff]
  %v2179 = vld [vmem:[#allocation2 + $0x7e] sm:$0xff]
  %v2180 = vld [vmem:[#allocation2 + $0x86] sm:$0xff]
  %v2181 = vld [vmem:[#allocation2 + $0x8e] sm:$0xff]
  %v2182 = vld [vmem:[#allocation2 + $0x96] sm:$0xff]
  %v2183 = vld [vmem:[#allocation2 + $0x9e] sm:$0xff]
  %v2184 = vld [vmem:[#allocation2 + $0xa6] sm:$0xff]
  %v2185 = vld [vmem:[#allocation2 + $0xae] sm:$0xff]
  %v2186 = vld [vmem:[#allocation2 + $0xb6] sm:$0xff]
  %v2187 = vld [vmem:[#allocation2 + $0xbe] sm:$0xff]
  %v2188 = vld [vmem:[#allocation2 + $0xc6] sm:$0xff]
  %v2189 = vld [vmem:[%s3 + $0x60] sm:$0xff]
  %v2190 = vld [vmem:[%s3 + $0x68] sm:$0xff]
  %v2192 = vsel %vm455, %v2167, 0
  %v2195 = vsel %vm455, %v2168, 0
  %v2198 = vsel %vm455, %v2169, 0
  %v2201 = vsel %vm455, %v2170, 0
  %v2204 = vsel %vm455, %v2171, 0
  %v2207 = vsel %vm455, %v2172, 0
  %v2210 = vsel %vm455, %v2173, 0
  %v2213 = vsel %vm455, %v2174, 0
  %v2216 = vsel %vm455, %v2175, 0
  %v2219 = vsel %vm455, %v2176, 0
  %v2222 = vsel %vm455, %v2177, 0
  %v2225 = vsel %vm455, %v2178, 0
  %v2228 = vsel %vm455, %v2179, 0
  %v2231 = vsel %vm455, %v2180, 0
  %v2234 = vsel %vm455, %v2181, 0
  %v2237 = vsel %vm455, %v2182, 0
  %v2240 = vsel %vm455, %v2183, 0
  %v2243 = vsel %vm455, %v2184, 0
  %v2246 = vsel %vm455, %v2185, 0
  %v2249 = vsel %vm455, %v2186, 0
  %v2252 = vsel %vm455, %v2187, 0
  %v2255 = vsel %vm455, %v2188, 0
  %2257 = vmatprep.subr.mxu0 0.0
  %2258 = vmatpush1.msra.mxu0 %v2189
  %2259 = vmatprep.subr.mxu0 0.0
  %2260 = vmatpush1.msra.mxu0 %v2190
  %2261 = vmatprep.subr.mxu0 0.0
  %2262 = vmatpush1.msra.mxu0 0.0
  %2263 = vmatprep.subr.mxu0 0.0
  %2264 = vmatpush1.msra.mxu0 0.0
  %2265 = vmatprep.subr.mxu0 0.0
  %2266 = vmatpush1.msra.mxu0 0.0
  %2267 = vmatprep.subr.mxu0 0.0
  %2268 = vmatpush1.msra.mxu0 0.0
  %2269 = vmatprep.subr.mxu0 0.0
  %2270 = vmatpush1.msra.mxu0 0.0
  %2271 = vmatprep.subr.mxu0 0.0
  %2272 = vmatpush1.msra.mxu0 0.0
  %2273 = vmatprep.subr.mxu0 0.0
  %2274 = vmatpush1.msra.mxu0 0.0
  %2275 = vmatprep.subr.mxu0 0.0
  %2276 = vmatpush1.msra.mxu0 0.0
  %2277 = vmatprep.subr.mxu0 0.0
  %2278 = vmatpush1.msra.mxu0 0.0
  %2279 = vmatprep.subr.mxu0 0.0
  %2280 = vmatpush1.msra.mxu0 0.0
  %2281 = vmatprep.subr.mxu0 0.0
  %2282 = vmatpush1.msra.mxu0 0.0
  %2283 = vmatprep.subr.mxu0 0.0
  %2284 = vmatpush1.msra.mxu0 0.0
  %2285 = vmatprep.subr.mxu0 0.0
  %2286 = vmatpush1.msra.mxu0 0.0
  %2287 = vmatprep.subr.mxu0 0.0
  %2288 = vmatpush1.msra.mxu0 0.0
  %2289 = vmatprep.subr.mxu0 0.0
  %2290 = vmatpush1.msra.mxu0 0.0
  %2291 = vmatprep.subr.mxu0 0.0
  %2292 = vmatpush1.msra.mxu0 0.0
  %2293 = vmatprep.subr.mxu0 0.0
  %2294 = vmatpush1.msra.mxu0 0.0
  %2295 = vmatprep.subr.mxu0 0.0
  %2296 = vmatpush1.msra.mxu0 0.0
  %2297 = vmatprep.subr.mxu0 0.0
  %2298 = vmatpush1.msra.mxu0 0.0
  %2299 = vmatprep.subr.mxu0 0.0
  %2300 = vmatpush1.msra.mxu0 0.0
  %2301 = vmatprep.subr.mxu0 0.0
  %2302 = vmatpush1.msra.mxu0 0.0
  %2303 = vmatprep.subr.mxu0 0.0
  %2304 = vmatpush1.msra.mxu0 0.0
  %2305 = vmatprep.subr.mxu0 0.0
  %2306 = vmatpush1.msra.mxu0 0.0
  %2307 = vmatprep.subr.mxu0 0.0
  %2308 = vmatpush1.msra.mxu0 0.0
  %2309 = vmatprep.subr.mxu0 0.0
  %2310 = vmatpush1.msra.mxu0 0.0
  %2311 = vmatprep.subr.mxu0 0.0
  %2312 = vmatpush1.msra.mxu0 0.0
  %2313 = vmatprep.subr.mxu0 0.0
  %2314 = vmatpush1.msra.mxu0 0.0
  %2315 = vmatprep.subr.mxu0 0.0
  %2316 = vmatpush1.msra.mxu0 0.0
  %2317 = vmatprep.subr.mxu0 0.0
  %2318 = vmatpush1.msra.mxu0 0.0
  %2319 = vmatprep.subr.mxu0 0.0
  %2320 = vmatpush1.msra.mxu0 0.0
  %2321 = vmatprep.mubr.f32.mxu0 0.0
  %2322 = vmatmul.mubr.f32.gmra.mrb[0].mxu0 %v2192
  %v2323 = vpop.f32.mrb[0].mxu0
  %v2324 = vadd.f32 0.0, %v2323
  %v2325 = vpop.f32.mrb[0].mxu0
  %2326 = vmatprep.mubr.f32.mxu0 0.0
  %2327 = vmatmul.mubr.f32.gmra.mrb[0].mxu0 %v2195
  %v2328 = vpop.f32.mrb[0].mxu0
  %v2329 = vadd.f32 0.0, %v2328
  %v2330 = vpop.f32.mrb[0].mxu0
  %2331 = vmatprep.mubr.f32.mxu0 0.0
  %2332 = vmatmul.mubr.f32.gmra.mrb[0].mxu0 %v2198
  %v2333 = vpop.f32.mrb[0].mxu0
  %v2334 = vadd.f32 0.0, %v2333
  %v2335 = vpop.f32.mrb[0].mxu0
  %2336 = vmatprep.mubr.f32.mxu0 0.0
  %2337 = vmatmul.mubr.f32.gmra.mrb[0].mxu0 %v2201
  %v2338 = vpop.f32.mrb[0].mxu0
  %v2339 = vadd.f32 0.0, %v2338
  %v2340 = vpop.f32.mrb[0].mxu0
  %2341 = vmatprep.mubr.f32.mxu0 0.0
  %2342 = vmatmul.mubr.f32.gmra.mrb[0].mxu0 %v2204
  %v2343 = vpop.f32.mrb[0].mxu0
  %v2344 = vadd.f32 0.0, %v2343
  %v2345 = vpop.f32.mrb[0].mxu0
  %2346 = vmatprep.mubr.f32.mxu0 0.0
  %2347 = vmatmul.mubr.f32.gmra.mrb[0].mxu0 %v2207
  %v2348 = vpop.f32.mrb[0].mxu0
  %v2349 = vadd.f32 0.0, %v2348
  %v2350 = vpop.f32.mrb[0].mxu0
  %2351 = vmatprep.mubr.f32.mxu0 0.0
  %2352 = vmatmul.mubr.f32.gmra.mrb[0].mxu0 %v2210
  %v2353 = vpop.f32.mrb[0].mxu0
  %v2354 = vadd.f32 0.0, %v2353
  %v2355 = vpop.f32.mrb[0].mxu0
  %2356 = vmatprep.mubr.f32.mxu0 0.0
  %2357 = vmatmul.mubr.f32.gmra.mrb[0].mxu0 %v2213
  %v2358 = vpop.f32.mrb[0].mxu0
  %v2359 = vadd.f32 0.0, %v2358
  %v2360 = vpop.f32.mrb[0].mxu0
  %2361 = vmatprep.mubr.f32.mxu0 0.0
  %2362 = vmatmul.mubr.f32.gmra.mrb[0].mxu0 %v2216
  %v2363 = vpop.f32.mrb[0].mxu0
  %v2364 = vadd.f32 0.0, %v2363
  %v2365 = vpop.f32.mrb[0].mxu0
  %2366 = vmatprep.mubr.f32.mxu0 0.0
  %2367 = vmatmul.mubr.f32.gmra.mrb[0].mxu0 %v2219
  %v2368 = vpop.f32.mrb[0].mxu0
  %v2369 = vadd.f32 0.0, %v2368
  %v2370 = vpop.f32.mrb[0].mxu0
  %2371 = vmatprep.mubr.f32.mxu0 0.0
  %2372 = vmatmul.mubr.f32.gmra.mrb[0].mxu0 %v2222
  %v2373 = vpop.f32.mrb[0].mxu0
  %v2374 = vadd.f32 0.0, %v2373
  %v2375 = vpop.f32.mrb[0].mxu0
  %2376 = vmatprep.mubr.f32.mxu0 0.0
  %2377 = vmatmul.mubr.f32.gmra.mrb[0].mxu0 %v2225
  %v2378 = vpop.f32.mrb[0].mxu0
  %v2379 = vadd.f32 0.0, %v2378
  %v2380 = vpop.f32.mrb[0].mxu0
  %2381 = vmatprep.mubr.f32.mxu0 0.0
  %2382 = vmatmul.mubr.f32.gmra.mrb[0].mxu0 %v2228
  %v2383 = vpop.f32.mrb[0].mxu0
  %v2384 = vadd.f32 0.0, %v2383
  %v2385 = vpop.f32.mrb[0].mxu0
  %2386 = vmatprep.mubr.f32.mxu0 0.0
  %2387 = vmatmul.mubr.f32.gmra.mrb[0].mxu0 %v2231
  %v2388 = vpop.f32.mrb[0].mxu0
  %v2389 = vadd.f32 0.0, %v2388
  %v2390 = vpop.f32.mrb[0].mxu0
  %2391 = vmatprep.mubr.f32.mxu0 0.0
  %2392 = vmatmul.mubr.f32.gmra.mrb[0].mxu0 %v2234
  %v2393 = vpop.f32.mrb[0].mxu0
  %v2394 = vadd.f32 0.0, %v2393
  %v2395 = vpop.f32.mrb[0].mxu0
  %2396 = vmatprep.mubr.f32.mxu0 0.0
  %2397 = vmatmul.mubr.f32.gmra.mrb[0].mxu0 %v2237
  %v2398 = vpop.f32.mrb[0].mxu0
  %v2399 = vadd.f32 0.0, %v2398
  %v2400 = vpop.f32.mrb[0].mxu0
  %2401 = vmatprep.mubr.f32.mxu0 0.0
  %2402 = vmatmul.mubr.f32.gmra.mrb[0].mxu0 %v2240
  %v2403 = vpop.f32.mrb[0].mxu0
  %v2404 = vadd.f32 0.0, %v2403
  %v2405 = vpop.f32.mrb[0].mxu0
  %2406 = vmatprep.mubr.f32.mxu0 0.0
  %2407 = vmatmul.mubr.f32.gmra.mrb[0].mxu0 %v2243
  %v2408 = vpop.f32.mrb[0].mxu0
  %v2409 = vadd.f32 0.0, %v2408
  %v2410 = vpop.f32.mrb[0].mxu0
  %2411 = vmatprep.mubr.f32.mxu0 0.0
  %2412 = vmatmul.mubr.f32.gmra.mrb[0].mxu0 %v2246
  %v2413 = vpop.f32.mrb[0].mxu0
  %v2414 = vadd.f32 0.0, %v2413
  %v2415 = vpop.f32.mrb[0].mxu0
  %2416 = vmatprep.mubr.f32.mxu0 0.0
  %2417 = vmatmul.mubr.f32.gmra.mrb[0].mxu0 %v2249
  %v2418 = vpop.f32.mrb[0].mxu0
  %v2419 = vadd.f32 0.0, %v2418
  %v2420 = vpop.f32.mrb[0].mxu0
  %2421 = vmatprep.mubr.f32.mxu0 0.0
  %2422 = vmatmul.mubr.f32.gmra.mrb[0].mxu0 %v2252
  %v2423 = vpop.f32.mrb[0].mxu0
  %v2424 = vadd.f32 0.0, %v2423
  %v2425 = vpop.f32.mrb[0].mxu0
  %2426 = vmatprep.mubr.f32.mxu0 0.0
  %2427 = vmatmul.mubr.f32.gmra.mrb[0].mxu0 %v2255
  %v2428 = vpop.f32.mrb[0].mxu0
  %v2429 = vadd.f32 0.0, %v2428
  %v2430 = vpop.f32.mrb[0].mxu0
  %2431 = vdwg.mxu0
  %v2432 = vadd.f32 %v2145, %v2324
  %v2433 = vadd.f32 %v2146, %v2329
  %v2434 = vadd.f32 %v2147, %v2334
  %v2435 = vadd.f32 %v2148, %v2339
  %v2436 = vadd.f32 %v2149, %v2344
  %v2437 = vadd.f32 %v2150, %v2349
  %v2438 = vadd.f32 %v2151, %v2354
  %v2439 = vadd.f32 %v2152, %v2359
  %v2440 = vadd.f32 %v2153, %v2364
  %v2441 = vadd.f32 %v2154, %v2369
  %v2442 = vadd.f32 %v2155, %v2374
  %v2443 = vadd.f32 %v2156, %v2379
  %v2444 = vadd.f32 %v2157, %v2384
  %v2445 = vadd.f32 %v2158, %v2389
  %v2446 = vadd.f32 %v2159, %v2394
  %v2447 = vadd.f32 %v2160, %v2399
  %v2448 = vadd.f32 %v2161, %v2404
  %v2449 = vadd.f32 %v2162, %v2409
  %v2450 = vadd.f32 %v2163, %v2414
  %v2451 = vadd.f32 %v2164, %v2419
  %v2452 = vadd.f32 %v2165, %v2424
  %v2453 = vadd.f32 %v2166, %v2429
  %v2454 = vld [vmem:[#allocation2 + $0x20] sm:$0xff]
  %v2455 = vld [vmem:[#allocation2 + $0x28] sm:$0xff]
  %v2456 = vld [vmem:[#allocation2 + $0x30] sm:$0xff]
  %v2457 = vld [vmem:[#allocation2 + $0x38] sm:$0xff]
  %v2458 = vld [vmem:[#allocation2 + $0x40] sm:$0xff]
  %v2459 = vld [vmem:[#allocation2 + $0x48] sm:$0xff]
  %v2460 = vld [vmem:[#allocation2 + $0x50] sm:$0xff]
  %v2461 = vld [vmem:[#allocation2 + $0x58] sm:$0xff]
  %v2462 = vld [vmem:[#allocation2 + $0x60] sm:$0xff]
  %v2463 = vld [vmem:[#allocation2 + $0x68] sm:$0xff]
  %v2464 = vld [vmem:[#allocation2 + $0x70] sm:$0xff]
  %v2465 = vld [vmem:[#allocation2 + $0x78] sm:$0xff]
  %v2466 = vld [vmem:[#allocation2 + $0x80] sm:$0xff]
  %v2467 = vld [vmem:[#allocation2 + $0x88] sm:$0xff]
  %v2468 = vld [vmem:[#allocation2 + $0x90] sm:$0xff]
  %v2469 = vld [vmem:[#allocation2 + $0x98] sm:$0xff]
  %v2470 = vld [vmem:[#allocation2 + $0xa0] sm:$0xff]
  %v2471 = vld [vmem:[#allocation2 + $0xa8] sm:$0xff]
  %v2472 = vld [vmem:[#allocation2 + $0xb0] sm:$0xff]
  %v2473 = vld [vmem:[#allocation2 + $0xb8] sm:$0xff]
  %v2474 = vld [vmem:[#allocation2 + $0xc0] sm:$0xff]
  %v2475 = vld [vmem:[#allocation2 + $0xc8] sm:$0xff]
  %v2476 = vld [vmem:[%s3 + $0x70] sm:$0xff]
  %v2477 = vld [vmem:[%s3 + $0x78] sm:$0xff]
  %v2479 = vsel %vm455, %v2454, 0
  %v2482 = vsel %vm455, %v2455, 0
  %v2485 = vsel %vm455, %v2456, 0
  %v2488 = vsel %vm455, %v2457, 0
  %v2491 = vsel %vm455, %v2458, 0
  %v2494 = vsel %vm455, %v2459, 0
  %v2497 = vsel %vm455, %v2460, 0
  %v2500 = vsel %vm455, %v2461, 0
  %v2503 = vsel %vm455, %v2462, 0
  %v2506 = vsel %vm455, %v2463, 0
  %v2509 = vsel %vm455, %v2464, 0
  %v2512 = vsel %vm455, %v2465, 0
  %v2515 = vsel %vm455, %v2466, 0
  %v2518 = vsel %vm455, %v2467, 0
  %v2521 = vsel %vm455, %v2468, 0
  %v2524 = vsel %vm455, %v2469, 0
  %v2527 = vsel %vm455, %v2470, 0
  %v2530 = vsel %vm455, %v2471, 0
  %v2533 = vsel %vm455, %v2472, 0
  %v2536 = vsel %vm455, %v2473, 0
  %v2539 = vsel %vm455, %v2474, 0
  %v2542 = vsel %vm455, %v2475, 0
  %2544 = vmatprep.subr.mxu0 0.0
  %2545 = vmatpush1.msra.mxu0 %v2476
  %2546 = vmatprep.subr.mxu0 0.0
  %2547 = vmatpush1.msra.mxu0 %v2477
  %2548 = vmatprep.subr.mxu0 0.0
  %2549 = vmatpush1.msra.mxu0 0.0
  %2550 = vmatprep.subr.mxu0 0.0
  %2551 = vmatpush1.msra.mxu0 0.0
  %2552 = vmatprep.subr.mxu0 0.0
  %2553 = vmatpush1.msra.mxu0 0.0
  %2554 = vmatprep.subr.mxu0 0.0
  %2555 = vmatpush1.msra.mxu0 0.0
  %2556 = vmatprep.subr.mxu0 0.0
  %2557 = vmatpush1.msra.mxu0 0.0
  %2558 = vmatprep.subr.mxu0 0.0
  %2559 = vmatpush1.msra.mxu0 0.0
  %2560 = vmatprep.subr.mxu0 0.0
  %2561 = vmatpush1.msra.mxu0 0.0
  %2562 = vmatprep.subr.mxu0 0.0
  %2563 = vmatpush1.msra.mxu0 0.0
  %2564 = vmatprep.subr.mxu0 0.0
  %2565 = vmatpush1.msra.mxu0 0.0
  %2566 = vmatprep.subr.mxu0 0.0
  %2567 = vmatpush1.msra.mxu0 0.0
  %2568 = vmatprep.subr.mxu0 0.0
  %2569 = vmatpush1.msra.mxu0 0.0
  %2570 = vmatprep.subr.mxu0 0.0
  %2571 = vmatpush1.msra.mxu0 0.0
  %2572 = vmatprep.subr.mxu0 0.0
  %2573 = vmatpush1.msra.mxu0 0.0
  %2574 = vmatprep.subr.mxu0 0.0
  %2575 = vmatpush1.msra.mxu0 0.0
  %2576 = vmatprep.subr.mxu0 0.0
  %2577 = vmatpush1.msra.mxu0 0.0
  %2578 = vmatprep.subr.mxu0 0.0
  %2579 = vmatpush1.msra.mxu0 0.0
  %2580 = vmatprep.subr.mxu0 0.0
  %2581 = vmatpush1.msra.mxu0 0.0
  %2582 = vmatprep.subr.mxu0 0.0
  %2583 = vmatpush1.msra.mxu0 0.0
  %2584 = vmatprep.subr.mxu0 0.0
  %2585 = vmatpush1.msra.mxu0 0.0
  %2586 = vmatprep.subr.mxu0 0.0
  %2587 = vmatpush1.msra.mxu0 0.0
  %2588 = vmatprep.subr.mxu0 0.0
  %2589 = vmatpush1.msra.mxu0 0.0
  %2590 = vmatprep.subr.mxu0 0.0
  %2591 = vmatpush1.msra.mxu0 0.0
  %2592 = vmatprep.subr.mxu0 0.0
  %2593 = vmatpush1.msra.mxu0 0.0
  %2594 = vmatprep.subr.mxu0 0.0
  %2595 = vmatpush1.msra.mxu0 0.0
  %2596 = vmatprep.subr.mxu0 0.0
  %2597 = vmatpush1.msra.mxu0 0.0
  %2598 = vmatprep.subr.mxu0 0.0
  %2599 = vmatpush1.msra.mxu0 0.0
  %2600 = vmatprep.subr.mxu0 0.0
  %2601 = vmatpush1.msra.mxu0 0.0
  %2602 = vmatprep.subr.mxu0 0.0
  %2603 = vmatpush1.msra.mxu0 0.0
  %2604 = vmatprep.subr.mxu0 0.0
  %2605 = vmatpush1.msra.mxu0 0.0
  %2606 = vmatprep.subr.mxu0 0.0
  %2607 = vmatpush1.msra.mxu0 0.0
  %2608 = vmatprep.mubr.f32.mxu0 0.0
  %2609 = vmatmul.mubr.f32.gmra.mrb[0].mxu0 %v2479
  %v2610 = vpop.f32.mrb[0].mxu0
  %v2611 = vadd.f32 0.0, %v2610
  %v2612 = vpop.f32.mrb[0].mxu0
  %2613 = vmatprep.mubr.f32.mxu0 0.0
  %2614 = vmatmul.mubr.f32.gmra.mrb[0].mxu0 %v2482
  %v2615 = vpop.f32.mrb[0].mxu0
  %v2616 = vadd.f32 0.0, %v2615
  %v2617 = vpop.f32.mrb[0].mxu0
  %2618 = vmatprep.mubr.f32.mxu0 0.0
  %2619 = vmatmul.mubr.f32.gmra.mrb[0].mxu0 %v2485
  %v2620 = vpop.f32.mrb[0].mxu0
  %v2621 = vadd.f32 0.0, %v2620
  %v2622 = vpop.f32.mrb[0].mxu0
  %2623 = vmatprep.mubr.f32.mxu0 0.0
  %2624 = vmatmul.mubr.f32.gmra.mrb[0].mxu0 %v2488
  %v2625 = vpop.f32.mrb[0].mxu0
  %v2626 = vadd.f32 0.0, %v2625
  %v2627 = vpop.f32.mrb[0].mxu0
  %2628 = vmatprep.mubr.f32.mxu0 0.0
  %2629 = vmatmul.mubr.f32.gmra.mrb[0].mxu0 %v2491
  %v2630 = vpop.f32.mrb[0].mxu0
  %v2631 = vadd.f32 0.0, %v2630
  %v2632 = vpop.f32.mrb[0].mxu0
  %2633 = vmatprep.mubr.f32.mxu0 0.0
  %2634 = vmatmul.mubr.f32.gmra.mrb[0].mxu0 %v2494
  %v2635 = vpop.f32.mrb[0].mxu0
  %v2636 = vadd.f32 0.0, %v2635
  %v2637 = vpop.f32.mrb[0].mxu0
  %2638 = vmatprep.mubr.f32.mxu0 0.0
  %2639 = vmatmul.mubr.f32.gmra.mrb[0].mxu0 %v2497
  %v2640 = vpop.f32.mrb[0].mxu0
  %v2641 = vadd.f32 0.0, %v2640
  %v2642 = vpop.f32.mrb[0].mxu0
  %2643 = vmatprep.mubr.f32.mxu0 0.0
  %2644 = vmatmul.mubr.f32.gmra.mrb[0].mxu0 %v2500
  %v2645 = vpop.f32.mrb[0].mxu0
  %v2646 = vadd.f32 0.0, %v2645
  %v2647 = vpop.f32.mrb[0].mxu0
  %2648 = vmatprep.mubr.f32.mxu0 0.0
  %2649 = vmatmul.mubr.f32.gmra.mrb[0].mxu0 %v2503
  %v2650 = vpop.f32.mrb[0].mxu0
  %v2651 = vadd.f32 0.0, %v2650
  %v2652 = vpop.f32.mrb[0].mxu0
  %2653 = vmatprep.mubr.f32.mxu0 0.0
  %2654 = vmatmul.mubr.f32.gmra.mrb[0].mxu0 %v2506
  %v2655 = vpop.f32.mrb[0].mxu0
  %v2656 = vadd.f32 0.0, %v2655
  %v2657 = vpop.f32.mrb[0].mxu0
  %2658 = vmatprep.mubr.f32.mxu0 0.0
  %2659 = vmatmul.mubr.f32.gmra.mrb[0].mxu0 %v2509
  %v2660 = vpop.f32.mrb[0].mxu0
  %v2661 = vadd.f32 0.0, %v2660
  %v2662 = vpop.f32.mrb[0].mxu0
  %2663 = vmatprep.mubr.f32.mxu0 0.0
  %2664 = vmatmul.mubr.f32.gmra.mrb[0].mxu0 %v2512
  %v2665 = vpop.f32.mrb[0].mxu0
  %v2666 = vadd.f32 0.0, %v2665
  %v2667 = vpop.f32.mrb[0].mxu0
  %2668 = vmatprep.mubr.f32.mxu0 0.0
  %2669 = vmatmul.mubr.f32.gmra.mrb[0].mxu0 %v2515
  %v2670 = vpop.f32.mrb[0].mxu0
  %v2671 = vadd.f32 0.0, %v2670
  %v2672 = vpop.f32.mrb[0].mxu0
  %2673 = vmatprep.mubr.f32.mxu0 0.0
  %2674 = vmatmul.mubr.f32.gmra.mrb[0].mxu0 %v2518
  %v2675 = vpop.f32.mrb[0].mxu0
  %v2676 = vadd.f32 0.0, %v2675
  %v2677 = vpop.f32.mrb[0].mxu0
  %2678 = vmatprep.mubr.f32.mxu0 0.0
  %2679 = vmatmul.mubr.f32.gmra.mrb[0].mxu0 %v2521
  %v2680 = vpop.f32.mrb[0].mxu0
  %v2681 = vadd.f32 0.0, %v2680
  %v2682 = vpop.f32.mrb[0].mxu0
  %2683 = vmatprep.mubr.f32.mxu0 0.0
  %2684 = vmatmul.mubr.f32.gmra.mrb[0].mxu0 %v2524
  %v2685 = vpop.f32.mrb[0].mxu0
  %v2686 = vadd.f32 0.0, %v2685
  %v2687 = vpop.f32.mrb[0].mxu0
  %2688 = vmatprep.mubr.f32.mxu0 0.0
  %2689 = vmatmul.mubr.f32.gmra.mrb[0].mxu0 %v2527
  %v2690 = vpop.f32.mrb[0].mxu0
  %v2691 = vadd.f32 0.0, %v2690
  %v2692 = vpop.f32.mrb[0].mxu0
  %2693 = vmatprep.mubr.f32.mxu0 0.0
  %2694 = vmatmul.mubr.f32.gmra.mrb[0].mxu0 %v2530
  %v2695 = vpop.f32.mrb[0].mxu0
  %v2696 = vadd.f32 0.0, %v2695
  %v2697 = vpop.f32.mrb[0].mxu0
  %2698 = vmatprep.mubr.f32.mxu0 0.0
  %2699 = vmatmul.mubr.f32.gmra.mrb[0].mxu0 %v2533
  %v2700 = vpop.f32.mrb[0].mxu0
  %v2701 = vadd.f32 0.0, %v2700
  %v2702 = vpop.f32.mrb[0].mxu0
  %2703 = vmatprep.mubr.f32.mxu0 0.0
  %2704 = vmatmul.mubr.f32.gmra.mrb[0].mxu0 %v2536
  %v2705 = vpop.f32.mrb[0].mxu0
  %v2706 = vadd.f32 0.0, %v2705
  %v2707 = vpop.f32.mrb[0].mxu0
  %2708 = vmatprep.mubr.f32.mxu0 0.0
  %2709 = vmatmul.mubr.f32.gmra.mrb[0].mxu0 %v2539
  %v2710 = vpop.f32.mrb[0].mxu0
  %v2711 = vadd.f32 0.0, %v2710
  %v2712 = vpop.f32.mrb[0].mxu0
  %2713 = vmatprep.mubr.f32.mxu0 0.0
  %2714 = vmatmul.mubr.f32.gmra.mrb[0].mxu0 %v2542
  %v2715 = vpop.f32.mrb[0].mxu0
  %v2716 = vadd.f32 0.0, %v2715
  %v2717 = vpop.f32.mrb[0].mxu0
  %2718 = vdwg.mxu0
  %v2719 = vadd.f32 %v2432, %v2611
  %v2720 = vadd.f32 %v2433, %v2616
  %v2721 = vadd.f32 %v2434, %v2621
  %v2722 = vadd.f32 %v2435, %v2626
  %v2723 = vadd.f32 %v2436, %v2631
  %v2724 = vadd.f32 %v2437, %v2636
  %v2725 = vadd.f32 %v2438, %v2641
  %v2726 = vadd.f32 %v2439, %v2646
  %v2727 = vadd.f32 %v2440, %v2651
  %v2728 = vadd.f32 %v2441, %v2656
  %v2729 = vadd.f32 %v2442, %v2661
  %v2730 = vadd.f32 %v2443, %v2666
  %v2731 = vadd.f32 %v2444, %v2671
  %v2732 = vadd.f32 %v2445, %v2676
  %v2733 = vadd.f32 %v2446, %v2681
  %v2734 = vadd.f32 %v2447, %v2686
  %v2735 = vadd.f32 %v2448, %v2691
  %v2736 = vadd.f32 %v2449, %v2696
  %v2737 = vadd.f32 %v2450, %v2701
  %v2738 = vadd.f32 %v2451, %v2706
  %v2739 = vadd.f32 %v2452, %v2711
  %v2740 = vadd.f32 %v2453, %v2716
  %v2741 = vld [vmem:[#allocation2 + $0x34] sm:$0xff]
  %v2742 = vld [vmem:[#allocation2 + $0x3c] sm:$0xff]
  %v2743 = vld [vmem:[#allocation2 + $0x44] sm:$0xff]
  %v2744 = vld [vmem:[#allocation2 + $0x4c] sm:$0xff]
  %v2745 = vld [vmem:[#allocation2 + $0x54] sm:$0xff]
  %v2746 = vld [vmem:[#allocation2 + $0x5c] sm:$0xff]
  %v2747 = vld [vmem:[#allocation2 + $0x64] sm:$0xff]
  %v2748 = vld [vmem:[#allocation2 + $0x6c] sm:$0xff]
  %v2749 = vld [vmem:[#allocation2 + $0x74] sm:$0xff]
  %v2750 = vld [vmem:[#allocation2 + $0x7c] sm:$0xff]
  %v2751 = vld [vmem:[#allocation2 + $0x84] sm:$0xff]
  %v2752 = vld [vmem:[#allocation2 + $0x8c] sm:$0xff]
  %v2753 = vld [vmem:[#allocation2 + $0x94] sm:$0xff]
  %v2754 = vld [vmem:[#allocation2 + $0x9c] sm:$0xff]
  %v2755 = vld [vmem:[#allocation2 + $0xa4] sm:$0xff]
  %v2756 = vld [vmem:[#allocation2 + $0xac] sm:$0xff]
  %v2757 = vld [vmem:[#allocation2 + $0xb4] sm:$0xff]
  %v2758 = vld [vmem:[#allocation2 + $0xbc] sm:$0xff]
  %v2759 = vld [vmem:[#allocation2 + $0xc4] sm:$0xff]
  %v2760 = vld [vmem:[#allocation2 + $0xcc] sm:$0xff]
  %v2761 = vld [vmem:[#allocation2 + $0xd4] sm:$0xff]
  %v2762 = vld [vmem:[#allocation2 + $0xdc] sm:$0xff]
  %v2763 = vld [vmem:[%s3 + $0x80] sm:$0xff]
  %v2764 = vld [vmem:[%s3 + $0x88] sm:$0xff]
  %v2766 = vsel %vm455, %v2741, 0
  %v2769 = vsel %vm455, %v2742, 0
  %v2772 = vsel %vm455, %v2743, 0
  %v2775 = vsel %vm455, %v2744, 0
  %v2778 = vsel %vm455, %v2745, 0
  %v2781 = vsel %vm455, %v2746, 0
  %v2784 = vsel %vm455, %v2747, 0
  %v2787 = vsel %vm455, %v2748, 0
  %v2790 = vsel %vm455, %v2749, 0
  %v2793 = vsel %vm455, %v2750, 0
  %v2796 = vsel %vm455, %v2751, 0
  %v2799 = vsel %vm455, %v2752, 0
  %v2802 = vsel %vm455, %v2753, 0
  %v2805 = vsel %vm455, %v2754, 0
  %v2808 = vsel %vm455, %v2755, 0
  %v2811 = vsel %vm455, %v2756, 0
  %v2814 = vsel %vm455, %v2757, 0
  %v2817 = vsel %vm455, %v2758, 0
  %v2820 = vsel %vm455, %v2759, 0
  %v2823 = vsel %vm455, %v2760, 0
  %v2826 = vsel %vm455, %v2761, 0
  %v2829 = vsel %vm455, %v2762, 0
  %2831 = vmatprep.subr.mxu0 0.0
  %2832 = vmatpush1.msra.mxu0 %v2763
  %2833 = vmatprep.subr.mxu0 0.0
  %2834 = vmatpush1.msra.mxu0 %v2764
  %2835 = vmatprep.subr.mxu0 0.0
  %2836 = vmatpush1.msra.mxu0 0.0
  %2837 = vmatprep.subr.mxu0 0.0
  %2838 = vmatpush1.msra.mxu0 0.0
  %2839 = vmatprep.subr.mxu0 0.0
  %2840 = vmatpush1.msra.mxu0 0.0
  %2841 = vmatprep.subr.mxu0 0.0
  %2842 = vmatpush1.msra.mxu0 0.0
  %2843 = vmatprep.subr.mxu0 0.0
  %2844 = vmatpush1.msra.mxu0 0.0
  %2845 = vmatprep.subr.mxu0 0.0
  %2846 = vmatpush1.msra.mxu0 0.0
  %2847 = vmatprep.subr.mxu0 0.0
  %2848 = vmatpush1.msra.mxu0 0.0
  %2849 = vmatprep.subr.mxu0 0.0
  %2850 = vmatpush1.msra.mxu0 0.0
  %2851 = vmatprep.subr.mxu0 0.0
  %2852 = vmatpush1.msra.mxu0 0.0
  %2853 = vmatprep.subr.mxu0 0.0
  %2854 = vmatpush1.msra.mxu0 0.0
  %2855 = vmatprep.subr.mxu0 0.0
  %2856 = vmatpush1.msra.mxu0 0.0
  %2857 = vmatprep.subr.mxu0 0.0
  %2858 = vmatpush1.msra.mxu0 0.0
  %2859 = vmatprep.subr.mxu0 0.0
  %2860 = vmatpush1.msra.mxu0 0.0
  %2861 = vmatprep.subr.mxu0 0.0
  %2862 = vmatpush1.msra.mxu0 0.0
  %2863 = vmatprep.subr.mxu0 0.0
  %2864 = vmatpush1.msra.mxu0 0.0
  %2865 = vmatprep.subr.mxu0 0.0
  %2866 = vmatpush1.msra.mxu0 0.0
  %2867 = vmatprep.subr.mxu0 0.0
  %2868 = vmatpush1.msra.mxu0 0.0
  %2869 = vmatprep.subr.mxu0 0.0
  %2870 = vmatpush1.msra.mxu0 0.0
  %2871 = vmatprep.subr.mxu0 0.0
  %2872 = vmatpush1.msra.mxu0 0.0
  %2873 = vmatprep.subr.mxu0 0.0
  %2874 = vmatpush1.msra.mxu0 0.0
  %2875 = vmatprep.subr.mxu0 0.0
  %2876 = vmatpush1.msra.mxu0 0.0
  %2877 = vmatprep.subr.mxu0 0.0
  %2878 = vmatpush1.msra.mxu0 0.0
  %2879 = vmatprep.subr.mxu0 0.0
  %2880 = vmatpush1.msra.mxu0 0.0
  %2881 = vmatprep.subr.mxu0 0.0
  %2882 = vmatpush1.msra.mxu0 0.0
  %2883 = vmatprep.subr.mxu0 0.0
  %2884 = vmatpush1.msra.mxu0 0.0
  %2885 = vmatprep.subr.mxu0 0.0
  %2886 = vmatpush1.msra.mxu0 0.0
  %2887 = vmatprep.subr.mxu0 0.0
  %2888 = vmatpush1.msra.mxu0 0.0
  %2889 = vmatprep.subr.mxu0 0.0
  %2890 = vmatpush1.msra.mxu0 0.0
  %2891 = vmatprep.subr.mxu0 0.0
  %2892 = vmatpush1.msra.mxu0 0.0
  %2893 = vmatprep.subr.mxu0 0.0
  %2894 = vmatpush1.msra.mxu0 0.0
  %2895 = vmatprep.mubr.f32.mxu0 0.0
  %2896 = vmatmul.mubr.f32.gmra.mrb[0].mxu0 %v2766
  %v2897 = vpop.f32.mrb[0].mxu0
  %v2898 = vadd.f32 0.0, %v2897
  %v2899 = vpop.f32.mrb[0].mxu0
  %2900 = vmatprep.mubr.f32.mxu0 0.0
  %2901 = vmatmul.mubr.f32.gmra.mrb[0].mxu0 %v2769
  %v2902 = vpop.f32.mrb[0].mxu0
  %v2903 = vadd.f32 0.0, %v2902
  %v2904 = vpop.f32.mrb[0].mxu0
  %2905 = vmatprep.mubr.f32.mxu0 0.0
  %2906 = vmatmul.mubr.f32.gmra.mrb[0].mxu0 %v2772
  %v2907 = vpop.f32.mrb[0].mxu0
  %v2908 = vadd.f32 0.0, %v2907
  %v2909 = vpop.f32.mrb[0].mxu0
  %2910 = vmatprep.mubr.f32.mxu0 0.0
  %2911 = vmatmul.mubr.f32.gmra.mrb[0].mxu0 %v2775
  %v2912 = vpop.f32.mrb[0].mxu0
  %v2913 = vadd.f32 0.0, %v2912
  %v2914 = vpop.f32.mrb[0].mxu0
  %2915 = vmatprep.mubr.f32.mxu0 0.0
  %2916 = vmatmul.mubr.f32.gmra.mrb[0].mxu0 %v2778
  %v2917 = vpop.f32.mrb[0].mxu0
  %v2918 = vadd.f32 0.0, %v2917
  %v2919 = vpop.f32.mrb[0].mxu0
  %2920 = vmatprep.mubr.f32.mxu0 0.0
  %2921 = vmatmul.mubr.f32.gmra.mrb[0].mxu0 %v2781
  %v2922 = vpop.f32.mrb[0].mxu0
  %v2923 = vadd.f32 0.0, %v2922
  %v2924 = vpop.f32.mrb[0].mxu0
  %2925 = vmatprep.mubr.f32.mxu0 0.0
  %2926 = vmatmul.mubr.f32.gmra.mrb[0].mxu0 %v2784
  %v2927 = vpop.f32.mrb[0].mxu0
  %v2928 = vadd.f32 0.0, %v2927
  %v2929 = vpop.f32.mrb[0].mxu0
  %2930 = vmatprep.mubr.f32.mxu0 0.0
  %2931 = vmatmul.mubr.f32.gmra.mrb[0].mxu0 %v2787
  %v2932 = vpop.f32.mrb[0].mxu0
  %v2933 = vadd.f32 0.0, %v2932
  %v2934 = vpop.f32.mrb[0].mxu0
  %2935 = vmatprep.mubr.f32.mxu0 0.0
  %2936 = vmatmul.mubr.f32.gmra.mrb[0].mxu0 %v2790
  %v2937 = vpop.f32.mrb[0].mxu0
  %v2938 = vadd.f32 0.0, %v2937
  %v2939 = vpop.f32.mrb[0].mxu0
  %2940 = vmatprep.mubr.f32.mxu0 0.0
  %2941 = vmatmul.mubr.f32.gmra.mrb[0].mxu0 %v2793
  %v2942 = vpop.f32.mrb[0].mxu0
  %v2943 = vadd.f32 0.0, %v2942
  %v2944 = vpop.f32.mrb[0].mxu0
  %2945 = vmatprep.mubr.f32.mxu0 0.0
  %2946 = vmatmul.mubr.f32.gmra.mrb[0].mxu0 %v2796
  %v2947 = vpop.f32.mrb[0].mxu0
  %v2948 = vadd.f32 0.0, %v2947
  %v2949 = vpop.f32.mrb[0].mxu0
  %2950 = vmatprep.mubr.f32.mxu0 0.0
  %2951 = vmatmul.mubr.f32.gmra.mrb[0].mxu0 %v2799
  %v2952 = vpop.f32.mrb[0].mxu0
  %v2953 = vadd.f32 0.0, %v2952
  %v2954 = vpop.f32.mrb[0].mxu0
  %2955 = vmatprep.mubr.f32.mxu0 0.0
  %2956 = vmatmul.mubr.f32.gmra.mrb[0].mxu0 %v2802
  %v2957 = vpop.f32.mrb[0].mxu0
  %v2958 = vadd.f32 0.0, %v2957
  %v2959 = vpop.f32.mrb[0].mxu0
  %2960 = vmatprep.mubr.f32.mxu0 0.0
  %2961 = vmatmul.mubr.f32.gmra.mrb[0].mxu0 %v2805
  %v2962 = vpop.f32.mrb[0].mxu0
  %v2963 = vadd.f32 0.0, %v2962
  %v2964 = vpop.f32.mrb[0].mxu0
  %2965 = vmatprep.mubr.f32.mxu0 0.0
  %2966 = vmatmul.mubr.f32.gmra.mrb[0].mxu0 %v2808
  %v2967 = vpop.f32.mrb[0].mxu0
  %v2968 = vadd.f32 0.0, %v2967
  %v2969 = vpop.f32.mrb[0].mxu0
  %2970 = vmatprep.mubr.f32.mxu0 0.0
  %2971 = vmatmul.mubr.f32.gmra.mrb[0].mxu0 %v2811
  %v2972 = vpop.f32.mrb[0].mxu0
  %v2973 = vadd.f32 0.0, %v2972
  %v2974 = vpop.f32.mrb[0].mxu0
  %2975 = vmatprep.mubr.f32.mxu0 0.0
  %2976 = vmatmul.mubr.f32.gmra.mrb[0].mxu0 %v2814
  %v2977 = vpop.f32.mrb[0].mxu0
  %v2978 = vadd.f32 0.0, %v2977
  %v2979 = vpop.f32.mrb[0].mxu0
  %2980 = vmatprep.mubr.f32.mxu0 0.0
  %2981 = vmatmul.mubr.f32.gmra.mrb[0].mxu0 %v2817
  %v2982 = vpop.f32.mrb[0].mxu0
  %v2983 = vadd.f32 0.0, %v2982
  %v2984 = vpop.f32.mrb[0].mxu0
  %2985 = vmatprep.mubr.f32.mxu0 0.0
  %2986 = vmatmul.mubr.f32.gmra.mrb[0].mxu0 %v2820
  %v2987 = vpop.f32.mrb[0].mxu0
  %v2988 = vadd.f32 0.0, %v2987
  %v2989 = vpop.f32.mrb[0].mxu0
  %2990 = vmatprep.mubr.f32.mxu0 0.0
  %2991 = vmatmul.mubr.f32.gmra.mrb[0].mxu0 %v2823
  %v2992 = vpop.f32.mrb[0].mxu0
  %v2993 = vadd.f32 0.0, %v2992
  %v2994 = vpop.f32.mrb[0].mxu0
  %2995 = vmatprep.mubr.f32.mxu0 0.0
  %2996 = vmatmul.mubr.f32.gmra.mrb[0].mxu0 %v2826
  %v2997 = vpop.f32.mrb[0].mxu0
  %v2998 = vadd.f32 0.0, %v2997
  %v2999 = vpop.f32.mrb[0].mxu0
  %3000 = vmatprep.mubr.f32.mxu0 0.0
  %3001 = vmatmul.mubr.f32.gmra.mrb[0].mxu0 %v2829
  %v3002 = vpop.f32.mrb[0].mxu0
  %v3003 = vadd.f32 0.0, %v3002
  %v3004 = vpop.f32.mrb[0].mxu0
  %3005 = vdwg.mxu0
  %v3006 = vadd.f32 %v2719, %v2898
  %v3007 = vadd.f32 %v2720, %v2903
  %v3008 = vadd.f32 %v2721, %v2908
  %v3009 = vadd.f32 %v2722, %v2913
  %v3010 = vadd.f32 %v2723, %v2918
  %v3011 = vadd.f32 %v2724, %v2923
  %v3012 = vadd.f32 %v2725, %v2928
  %v3013 = vadd.f32 %v2726, %v2933
  %v3014 = vadd.f32 %v2727, %v2938
  %v3015 = vadd.f32 %v2728, %v2943
  %v3016 = vadd.f32 %v2729, %v2948
  %v3017 = vadd.f32 %v2730, %v2953
  %v3018 = vadd.f32 %v2731, %v2958
  %v3019 = vadd.f32 %v2732, %v2963
  %v3020 = vadd.f32 %v2733, %v2968
  %v3021 = vadd.f32 %v2734, %v2973
  %v3022 = vadd.f32 %v2735, %v2978
  %v3023 = vadd.f32 %v2736, %v2983
  %v3024 = vadd.f32 %v2737, %v2988
  %v3025 = vadd.f32 %v2738, %v2993
  %v3026 = vadd.f32 %v2739, %v2998
  %v3027 = vadd.f32 %v2740, %v3003
  %v3028 = vld [vmem:[#allocation2 + $0x36] sm:$0xff]
  %v3029 = vld [vmem:[#allocation2 + $0x3e] sm:$0xff]
  %v3030 = vld [vmem:[#allocation2 + $0x46] sm:$0xff]
  %v3031 = vld [vmem:[#allocation2 + $0x4e] sm:$0xff]
  %v3032 = vld [vmem:[#allocation2 + $0x56] sm:$0xff]
  %v3033 = vld [vmem:[#allocation2 + $0x5e] sm:$0xff]
  %v3034 = vld [vmem:[#allocation2 + $0x66] sm:$0xff]
  %v3035 = vld [vmem:[#allocation2 + $0x6e] sm:$0xff]
  %v3036 = vld [vmem:[#allocation2 + $0x76] sm:$0xff]
  %v3037 = vld [vmem:[#allocation2 + $0x7e] sm:$0xff]
  %v3038 = vld [vmem:[#allocation2 + $0x86] sm:$0xff]
  %v3039 = vld [vmem:[#allocation2 + $0x8e] sm:$0xff]
  %v3040 = vld [vmem:[#allocation2 + $0x96] sm:$0xff]
  %v3041 = vld [vmem:[#allocation2 + $0x9e] sm:$0xff]
  %v3042 = vld [vmem:[#allocation2 + $0xa6] sm:$0xff]
  %v3043 = vld [vmem:[#allocation2 + $0xae] sm:$0xff]
  %v3044 = vld [vmem:[#allocation2 + $0xb6] sm:$0xff]
  %v3045 = vld [vmem:[#allocation2 + $0xbe] sm:$0xff]
  %v3046 = vld [vmem:[#allocation2 + $0xc6] sm:$0xff]
  %v3047 = vld [vmem:[#allocation2 + $0xce] sm:$0xff]
  %v3048 = vld [vmem:[#allocation2 + $0xd6] sm:$0xff]
  %v3049 = vld [vmem:[#allocation2 + $0xde] sm:$0xff]
  %v3050 = vld [vmem:[%s3 + $0x90] sm:$0xff]
  %v3051 = vld [vmem:[%s3 + $0x98] sm:$0xff]
  %v3053 = vsel %vm455, %v3028, 0
  %v3056 = vsel %vm455, %v3029, 0
  %v3059 = vsel %vm455, %v3030, 0
  %v3062 = vsel %vm455, %v3031, 0
  %v3065 = vsel %vm455, %v3032, 0
  %v3068 = vsel %vm455, %v3033, 0
  %v3071 = vsel %vm455, %v3034, 0
  %v3074 = vsel %vm455, %v3035, 0
  %v3077 = vsel %vm455, %v3036, 0
  %v3080 = vsel %vm455, %v3037, 0
  %v3083 = vsel %vm455, %v3038, 0
  %v3086 = vsel %vm455, %v3039, 0
  %v3089 = vsel %vm455, %v3040, 0
  %v3092 = vsel %vm455, %v3041, 0
  %v3095 = vsel %vm455, %v3042, 0
  %v3098 = vsel %vm455, %v3043, 0
  %v3101 = vsel %vm455, %v3044, 0
  %v3104 = vsel %vm455, %v3045, 0
  %v3107 = vsel %vm455, %v3046, 0
  %v3110 = vsel %vm455, %v3047, 0
  %v3113 = vsel %vm455, %v3048, 0
  %v3116 = vsel %vm455, %v3049, 0
  %3118 = vmatprep.subr.mxu0 0.0
  %3119 = vmatpush1.msra.mxu0 %v3050
  %3120 = vmatprep.subr.mxu0 0.0
  %3121 = vmatpush1.msra.mxu0 %v3051
  %3122 = vmatprep.subr.mxu0 0.0
  %3123 = vmatpush1.msra.mxu0 0.0
  %3124 = vmatprep.subr.mxu0 0.0
  %3125 = vmatpush1.msra.mxu0 0.0
  %3126 = vmatprep.subr.mxu0 0.0
  %3127 = vmatpush1.msra.mxu0 0.0
  %3128 = vmatprep.subr.mxu0 0.0
  %3129 = vmatpush1.msra.mxu0 0.0
  %3130 = vmatprep.subr.mxu0 0.0
  %3131 = vmatpush1.msra.mxu0 0.0
  %3132 = vmatprep.subr.mxu0 0.0
  %3133 = vmatpush1.msra.mxu0 0.0
  %3134 = vmatprep.subr.mxu0 0.0
  %3135 = vmatpush1.msra.mxu0 0.0
  %3136 = vmatprep.subr.mxu0 0.0
  %3137 = vmatpush1.msra.mxu0 0.0
  %3138 = vmatprep.subr.mxu0 0.0
  %3139 = vmatpush1.msra.mxu0 0.0
  %3140 = vmatprep.subr.mxu0 0.0
  %3141 = vmatpush1.msra.mxu0 0.0
  %3142 = vmatprep.subr.mxu0 0.0
  %3143 = vmatpush1.msra.mxu0 0.0
  %3144 = vmatprep.subr.mxu0 0.0
  %3145 = vmatpush1.msra.mxu0 0.0
  %3146 = vmatprep.subr.mxu0 0.0
  %3147 = vmatpush1.msra.mxu0 0.0
  %3148 = vmatprep.subr.mxu0 0.0
  %3149 = vmatpush1.msra.mxu0 0.0
  %3150 = vmatprep.subr.mxu0 0.0
  %3151 = vmatpush1.msra.mxu0 0.0
  %3152 = vmatprep.subr.mxu0 0.0
  %3153 = vmatpush1.msra.mxu0 0.0
  %3154 = vmatprep.subr.mxu0 0.0
  %3155 = vmatpush1.msra.mxu0 0.0
  %3156 = vmatprep.subr.mxu0 0.0
  %3157 = vmatpush1.msra.mxu0 0.0
  %3158 = vmatprep.subr.mxu0 0.0
  %3159 = vmatpush1.msra.mxu0 0.0
  %3160 = vmatprep.subr.mxu0 0.0
  %3161 = vmatpush1.msra.mxu0 0.0
  %3162 = vmatprep.subr.mxu0 0.0
  %3163 = vmatpush1.msra.mxu0 0.0
  %3164 = vmatprep.subr.mxu0 0.0
  %3165 = vmatpush1.msra.mxu0 0.0
  %3166 = vmatprep.subr.mxu0 0.0
  %3167 = vmatpush1.msra.mxu0 0.0
  %3168 = vmatprep.subr.mxu0 0.0
  %3169 = vmatpush1.msra.mxu0 0.0
  %3170 = vmatprep.subr.mxu0 0.0
  %3171 = vmatpush1.msra.mxu0 0.0
  %3172 = vmatprep.subr.mxu0 0.0
  %3173 = vmatpush1.msra.mxu0 0.0
  %3174 = vmatprep.subr.mxu0 0.0
  %3175 = vmatpush1.msra.mxu0 0.0
  %3176 = vmatprep.subr.mxu0 0.0
  %3177 = vmatpush1.msra.mxu0 0.0
  %3178 = vmatprep.subr.mxu0 0.0
  %3179 = vmatpush1.msra.mxu0 0.0
  %3180 = vmatprep.subr.mxu0 0.0
  %3181 = vmatpush1.msra.mxu0 0.0
  %3182 = vmatprep.mubr.f32.mxu0 0.0
  %3183 = vmatmul.mubr.f32.gmra.mrb[0].mxu0 %v3053
  %v3184 = vpop.f32.mrb[0].mxu0
  %v3185 = vadd.f32 0.0, %v3184
  %v3186 = vpop.f32.mrb[0].mxu0
  %3187 = vmatprep.mubr.f32.mxu0 0.0
  %3188 = vmatmul.mubr.f32.gmra.mrb[0].mxu0 %v3056
  %v3189 = vpop.f32.mrb[0].mxu0
  %v3190 = vadd.f32 0.0, %v3189
  %v3191 = vpop.f32.mrb[0].mxu0
  %3192 = vmatprep.mubr.f32.mxu0 0.0
  %3193 = vmatmul.mubr.f32.gmra.mrb[0].mxu0 %v3059
  %v3194 = vpop.f32.mrb[0].mxu0
  %v3195 = vadd.f32 0.0, %v3194
  %v3196 = vpop.f32.mrb[0].mxu0
  %3197 = vmatprep.mubr.f32.mxu0 0.0
  %3198 = vmatmul.mubr.f32.gmra.mrb[0].mxu0 %v3062
  %v3199 = vpop.f32.mrb[0].mxu0
  %v3200 = vadd.f32 0.0, %v3199
  %v3201 = vpop.f32.mrb[0].mxu0
  %3202 = vmatprep.mubr.f32.mxu0 0.0
  %3203 = vmatmul.mubr.f32.gmra.mrb[0].mxu0 %v3065
  %v3204 = vpop.f32.mrb[0].mxu0
  %v3205 = vadd.f32 0.0, %v3204
  %v3206 = vpop.f32.mrb[0].mxu0
  %3207 = vmatprep.mubr.f32.mxu0 0.0
  %3208 = vmatmul.mubr.f32.gmra.mrb[0].mxu0 %v3068
  %v3209 = vpop.f32.mrb[0].mxu0
  %v3210 = vadd.f32 0.0, %v3209
  %v3211 = vpop.f32.mrb[0].mxu0
  %3212 = vmatprep.mubr.f32.mxu0 0.0
  %3213 = vmatmul.mubr.f32.gmra.mrb[0].mxu0 %v3071
  %v3214 = vpop.f32.mrb[0].mxu0
  %v3215 = vadd.f32 0.0, %v3214
  %v3216 = vpop.f32.mrb[0].mxu0
  %3217 = vmatprep.mubr.f32.mxu0 0.0
  %3218 = vmatmul.mubr.f32.gmra.mrb[0].mxu0 %v3074
  %v3219 = vpop.f32.mrb[0].mxu0
  %v3220 = vadd.f32 0.0, %v3219
  %v3221 = vpop.f32.mrb[0].mxu0
  %3222 = vmatprep.mubr.f32.mxu0 0.0
  %3223 = vmatmul.mubr.f32.gmra.mrb[0].mxu0 %v3077
  %v3224 = vpop.f32.mrb[0].mxu0
  %v3225 = vadd.f32 0.0, %v3224
  %v3226 = vpop.f32.mrb[0].mxu0
  %3227 = vmatprep.mubr.f32.mxu0 0.0
  %3228 = vmatmul.mubr.f32.gmra.mrb[0].mxu0 %v3080
  %v3229 = vpop.f32.mrb[0].mxu0
  %v3230 = vadd.f32 0.0, %v3229
  %v3231 = vpop.f32.mrb[0].mxu0
  %3232 = vmatprep.mubr.f32.mxu0 0.0
  %3233 = vmatmul.mubr.f32.gmra.mrb[0].mxu0 %v3083
  %v3234 = vpop.f32.mrb[0].mxu0
  %v3235 = vadd.f32 0.0, %v3234
  %v3236 = vpop.f32.mrb[0].mxu0
  %3237 = vmatprep.mubr.f32.mxu0 0.0
  %3238 = vmatmul.mubr.f32.gmra.mrb[0].mxu0 %v3086
  %v3239 = vpop.f32.mrb[0].mxu0
  %v3240 = vadd.f32 0.0, %v3239
  %v3241 = vpop.f32.mrb[0].mxu0
  %3242 = vmatprep.mubr.f32.mxu0 0.0
  %3243 = vmatmul.mubr.f32.gmra.mrb[0].mxu0 %v3089
  %v3244 = vpop.f32.mrb[0].mxu0
  %v3245 = vadd.f32 0.0, %v3244
  %v3246 = vpop.f32.mrb[0].mxu0
  %3247 = vmatprep.mubr.f32.mxu0 0.0
  %3248 = vmatmul.mubr.f32.gmra.mrb[0].mxu0 %v3092
  %v3249 = vpop.f32.mrb[0].mxu0
  %v3250 = vadd.f32 0.0, %v3249
  %v3251 = vpop.f32.mrb[0].mxu0
  %3252 = vmatprep.mubr.f32.mxu0 0.0
  %3253 = vmatmul.mubr.f32.gmra.mrb[0].mxu0 %v3095
  %v3254 = vpop.f32.mrb[0].mxu0
  %v3255 = vadd.f32 0.0, %v3254
  %v3256 = vpop.f32.mrb[0].mxu0
  %3257 = vmatprep.mubr.f32.mxu0 0.0
  %3258 = vmatmul.mubr.f32.gmra.mrb[0].mxu0 %v3098
  %v3259 = vpop.f32.mrb[0].mxu0
  %v3260 = vadd.f32 0.0, %v3259
  %v3261 = vpop.f32.mrb[0].mxu0
  %3262 = vmatprep.mubr.f32.mxu0 0.0
  %3263 = vmatmul.mubr.f32.gmra.mrb[0].mxu0 %v3101
  %v3264 = vpop.f32.mrb[0].mxu0
  %v3265 = vadd.f32 0.0, %v3264
  %v3266 = vpop.f32.mrb[0].mxu0
  %3267 = vmatprep.mubr.f32.mxu0 0.0
  %3268 = vmatmul.mubr.f32.gmra.mrb[0].mxu0 %v3104
  %v3269 = vpop.f32.mrb[0].mxu0
  %v3270 = vadd.f32 0.0, %v3269
  %v3271 = vpop.f32.mrb[0].mxu0
  %3272 = vmatprep.mubr.f32.mxu0 0.0
  %3273 = vmatmul.mubr.f32.gmra.mrb[0].mxu0 %v3107
  %v3274 = vpop.f32.mrb[0].mxu0
  %v3275 = vadd.f32 0.0, %v3274
  %v3276 = vpop.f32.mrb[0].mxu0
  %3277 = vmatprep.mubr.f32.mxu0 0.0
  %3278 = vmatmul.mubr.f32.gmra.mrb[0].mxu0 %v3110
  %v3279 = vpop.f32.mrb[0].mxu0
  %v3280 = vadd.f32 0.0, %v3279
  %v3281 = vpop.f32.mrb[0].mxu0
  %3282 = vmatprep.mubr.f32.mxu0 0.0
  %3283 = vmatmul.mubr.f32.gmra.mrb[0].mxu0 %v3113
  %v3284 = vpop.f32.mrb[0].mxu0
  %v3285 = vadd.f32 0.0, %v3284
  %v3286 = vpop.f32.mrb[0].mxu0
  %3287 = vmatprep.mubr.f32.mxu0 0.0
  %3288 = vmatmul.mubr.f32.gmra.mrb[0].mxu0 %v3116
  %v3289 = vpop.f32.mrb[0].mxu0
  %v3290 = vadd.f32 0.0, %v3289
  %v3291 = vpop.f32.mrb[0].mxu0
  %3292 = vdwg.mxu0
  %v3293 = vadd.f32 %v3006, %v3185
  %v3294 = vadd.f32 %v3007, %v3190
  %v3295 = vadd.f32 %v3008, %v3195
  %v3296 = vadd.f32 %v3009, %v3200
  %v3297 = vadd.f32 %v3010, %v3205
  %v3298 = vadd.f32 %v3011, %v3210
  %v3299 = vadd.f32 %v3012, %v3215
  %v3300 = vadd.f32 %v3013, %v3220
  %v3301 = vadd.f32 %v3014, %v3225
  %v3302 = vadd.f32 %v3015, %v3230
  %v3303 = vadd.f32 %v3016, %v3235
  %v3304 = vadd.f32 %v3017, %v3240
  %v3305 = vadd.f32 %v3018, %v3245
  %v3306 = vadd.f32 %v3019, %v3250
  %v3307 = vadd.f32 %v3020, %v3255
  %v3308 = vadd.f32 %v3021, %v3260
  %v3309 = vadd.f32 %v3022, %v3265
  %v3310 = vadd.f32 %v3023, %v3270
  %v3311 = vadd.f32 %v3024, %v3275
  %v3312 = vadd.f32 %v3025, %v3280
  %v3313 = vadd.f32 %v3026, %v3285
  %v3314 = vadd.f32 %v3027, %v3290
  %v3315 = vld [vmem:[#allocation2 + $0x38] sm:$0xff]
  %v3316 = vld [vmem:[#allocation2 + $0x40] sm:$0xff]
  %v3317 = vld [vmem:[#allocation2 + $0x48] sm:$0xff]
  %v3318 = vld [vmem:[#allocation2 + $0x50] sm:$0xff]
  %v3319 = vld [vmem:[#allocation2 + $0x58] sm:$0xff]
  %v3320 = vld [vmem:[#allocation2 + $0x60] sm:$0xff]
  %v3321 = vld [vmem:[#allocation2 + $0x68] sm:$0xff]
  %v3322 = vld [vmem:[#allocation2 + $0x70] sm:$0xff]
  %v3323 = vld [vmem:[#allocation2 + $0x78] sm:$0xff]
  %v3324 = vld [vmem:[#allocation2 + $0x80] sm:$0xff]
  %v3325 = vld [vmem:[#allocation2 + $0x88] sm:$0xff]
  %v3326 = vld [vmem:[#allocation2 + $0x90] sm:$0xff]
  %v3327 = vld [vmem:[#allocation2 + $0x98] sm:$0xff]
  %v3328 = vld [vmem:[#allocation2 + $0xa0] sm:$0xff]
  %v3329 = vld [vmem:[#allocation2 + $0xa8] sm:$0xff]
  %v3330 = vld [vmem:[#allocation2 + $0xb0] sm:$0xff]
  %v3331 = vld [vmem:[#allocation2 + $0xb8] sm:$0xff]
  %v3332 = vld [vmem:[#allocation2 + $0xc0] sm:$0xff]
  %v3333 = vld [vmem:[#allocation2 + $0xc8] sm:$0xff]
  %v3334 = vld [vmem:[#allocation2 + $0xd0] sm:$0xff]
  %v3335 = vld [vmem:[#allocation2 + $0xd8] sm:$0xff]
  %v3336 = vld [vmem:[#allocation2 + $0xe0] sm:$0xff]
  %v3337 = vld [vmem:[%s3 + $0xa0] sm:$0xff]
  %v3338 = vld [vmem:[%s3 + $0xa8] sm:$0xff]
  %v3340 = vsel %vm455, %v3315, 0
  %v3343 = vsel %vm455, %v3316, 0
  %v3346 = vsel %vm455, %v3317, 0
  %v3349 = vsel %vm455, %v3318, 0
  %v3352 = vsel %vm455, %v3319, 0
  %v3355 = vsel %vm455, %v3320, 0
  %v3358 = vsel %vm455, %v3321, 0
  %v3361 = vsel %vm455, %v3322, 0
  %v3364 = vsel %vm455, %v3323, 0
  %v3367 = vsel %vm455, %v3324, 0
  %v3370 = vsel %vm455, %v3325, 0
  %v3373 = vsel %vm455, %v3326, 0
  %v3376 = vsel %vm455, %v3327, 0
  %v3379 = vsel %vm455, %v3328, 0
  %v3382 = vsel %vm455, %v3329, 0
  %v3385 = vsel %vm455, %v3330, 0
  %v3388 = vsel %vm455, %v3331, 0
  %v3391 = vsel %vm455, %v3332, 0
  %v3394 = vsel %vm455, %v3333, 0
  %v3397 = vsel %vm455, %v3334, 0
  %v3400 = vsel %vm455, %v3335, 0
  %v3403 = vsel %vm455, %v3336, 0
  %3405 = vmatprep.subr.mxu0 0.0
  %3406 = vmatpush1.msra.mxu0 %v3337
  %3407 = vmatprep.subr.mxu0 0.0
  %3408 = vmatpush1.msra.mxu0 %v3338
  %3409 = vmatprep.subr.mxu0 0.0
  %3410 = vmatpush1.msra.mxu0 0.0
  %3411 = vmatprep.subr.mxu0 0.0
  %3412 = vmatpush1.msra.mxu0 0.0
  %3413 = vmatprep.subr.mxu0 0.0
  %3414 = vmatpush1.msra.mxu0 0.0
  %3415 = vmatprep.subr.mxu0 0.0
  %3416 = vmatpush1.msra.mxu0 0.0
  %3417 = vmatprep.subr.mxu0 0.0
  %3418 = vmatpush1.msra.mxu0 0.0
  %3419 = vmatprep.subr.mxu0 0.0
  %3420 = vmatpush1.msra.mxu0 0.0
  %3421 = vmatprep.subr.mxu0 0.0
  %3422 = vmatpush1.msra.mxu0 0.0
  %3423 = vmatprep.subr.mxu0 0.0
  %3424 = vmatpush1.msra.mxu0 0.0
  %3425 = vmatprep.subr.mxu0 0.0
  %3426 = vmatpush1.msra.mxu0 0.0
  %3427 = vmatprep.subr.mxu0 0.0
  %3428 = vmatpush1.msra.mxu0 0.0
  %3429 = vmatprep.subr.mxu0 0.0
  %3430 = vmatpush1.msra.mxu0 0.0
  %3431 = vmatprep.subr.mxu0 0.0
  %3432 = vmatpush1.msra.mxu0 0.0
  %3433 = vmatprep.subr.mxu0 0.0
  %3434 = vmatpush1.msra.mxu0 0.0
  %3435 = vmatprep.subr.mxu0 0.0
  %3436 = vmatpush1.msra.mxu0 0.0
  %3437 = vmatprep.subr.mxu0 0.0
  %3438 = vmatpush1.msra.mxu0 0.0
  %3439 = vmatprep.subr.mxu0 0.0
  %3440 = vmatpush1.msra.mxu0 0.0
  %3441 = vmatprep.subr.mxu0 0.0
  %3442 = vmatpush1.msra.mxu0 0.0
  %3443 = vmatprep.subr.mxu0 0.0
  %3444 = vmatpush1.msra.mxu0 0.0
  %3445 = vmatprep.subr.mxu0 0.0
  %3446 = vmatpush1.msra.mxu0 0.0
  %3447 = vmatprep.subr.mxu0 0.0
  %3448 = vmatpush1.msra.mxu0 0.0
  %3449 = vmatprep.subr.mxu0 0.0
  %3450 = vmatpush1.msra.mxu0 0.0
  %3451 = vmatprep.subr.mxu0 0.0
  %3452 = vmatpush1.msra.mxu0 0.0
  %3453 = vmatprep.subr.mxu0 0.0
  %3454 = vmatpush1.msra.mxu0 0.0
  %3455 = vmatprep.subr.mxu0 0.0
  %3456 = vmatpush1.msra.mxu0 0.0
  %3457 = vmatprep.subr.mxu0 0.0
  %3458 = vmatpush1.msra.mxu0 0.0
  %3459 = vmatprep.subr.mxu0 0.0
  %3460 = vmatpush1.msra.mxu0 0.0
  %3461 = vmatprep.subr.mxu0 0.0
  %3462 = vmatpush1.msra.mxu0 0.0
  %3463 = vmatprep.subr.mxu0 0.0
  %3464 = vmatpush1.msra.mxu0 0.0
  %3465 = vmatprep.subr.mxu0 0.0
  %3466 = vmatpush1.msra.mxu0 0.0
  %3467 = vmatprep.subr.mxu0 0.0
  %3468 = vmatpush1.msra.mxu0 0.0
  %3469 = vmatprep.mubr.f32.mxu0 0.0
  %3470 = vmatmul.mubr.f32.gmra.mrb[0].mxu0 %v3340
  %v3471 = vpop.f32.mrb[0].mxu0
  %v3472 = vadd.f32 0.0, %v3471
  %v3473 = vpop.f32.mrb[0].mxu0
  %3474 = vmatprep.mubr.f32.mxu0 0.0
  %3475 = vmatmul.mubr.f32.gmra.mrb[0].mxu0 %v3343
  %v3476 = vpop.f32.mrb[0].mxu0
  %v3477 = vadd.f32 0.0, %v3476
  %v3478 = vpop.f32.mrb[0].mxu0
  %3479 = vmatprep.mubr.f32.mxu0 0.0
  %3480 = vmatmul.mubr.f32.gmra.mrb[0].mxu0 %v3346
  %v3481 = vpop.f32.mrb[0].mxu0
  %v3482 = vadd.f32 0.0, %v3481
  %v3483 = vpop.f32.mrb[0].mxu0
  %3484 = vmatprep.mubr.f32.mxu0 0.0
  %3485 = vmatmul.mubr.f32.gmra.mrb[0].mxu0 %v3349
  %v3486 = vpop.f32.mrb[0].mxu0
  %v3487 = vadd.f32 0.0, %v3486
  %v3488 = vpop.f32.mrb[0].mxu0
  %3489 = vmatprep.mubr.f32.mxu0 0.0
  %3490 = vmatmul.mubr.f32.gmra.mrb[0].mxu0 %v3352
  %v3491 = vpop.f32.mrb[0].mxu0
  %v3492 = vadd.f32 0.0, %v3491
  %v3493 = vpop.f32.mrb[0].mxu0
  %3494 = vmatprep.mubr.f32.mxu0 0.0
  %3495 = vmatmul.mubr.f32.gmra.mrb[0].mxu0 %v3355
  %v3496 = vpop.f32.mrb[0].mxu0
  %v3497 = vadd.f32 0.0, %v3496
  %v3498 = vpop.f32.mrb[0].mxu0
  %3499 = vmatprep.mubr.f32.mxu0 0.0
  %3500 = vmatmul.mubr.f32.gmra.mrb[0].mxu0 %v3358
  %v3501 = vpop.f32.mrb[0].mxu0
  %v3502 = vadd.f32 0.0, %v3501
  %v3503 = vpop.f32.mrb[0].mxu0
  %3504 = vmatprep.mubr.f32.mxu0 0.0
  %3505 = vmatmul.mubr.f32.gmra.mrb[0].mxu0 %v3361
  %v3506 = vpop.f32.mrb[0].mxu0
  %v3507 = vadd.f32 0.0, %v3506
  %v3508 = vpop.f32.mrb[0].mxu0
  %3509 = vmatprep.mubr.f32.mxu0 0.0
  %3510 = vmatmul.mubr.f32.gmra.mrb[0].mxu0 %v3364
  %v3511 = vpop.f32.mrb[0].mxu0
  %v3512 = vadd.f32 0.0, %v3511
  %v3513 = vpop.f32.mrb[0].mxu0
  %3514 = vmatprep.mubr.f32.mxu0 0.0
  %3515 = vmatmul.mubr.f32.gmra.mrb[0].mxu0 %v3367
  %v3516 = vpop.f32.mrb[0].mxu0
  %v3517 = vadd.f32 0.0, %v3516
  %v3518 = vpop.f32.mrb[0].mxu0
  %3519 = vmatprep.mubr.f32.mxu0 0.0
  %3520 = vmatmul.mubr.f32.gmra.mrb[0].mxu0 %v3370
  %v3521 = vpop.f32.mrb[0].mxu0
  %v3522 = vadd.f32 0.0, %v3521
  %v3523 = vpop.f32.mrb[0].mxu0
  %3524 = vmatprep.mubr.f32.mxu0 0.0
  %3525 = vmatmul.mubr.f32.gmra.mrb[0].mxu0 %v3373
  %v3526 = vpop.f32.mrb[0].mxu0
  %v3527 = vadd.f32 0.0, %v3526
  %v3528 = vpop.f32.mrb[0].mxu0
  %3529 = vmatprep.mubr.f32.mxu0 0.0
  %3530 = vmatmul.mubr.f32.gmra.mrb[0].mxu0 %v3376
  %v3531 = vpop.f32.mrb[0].mxu0
  %v3532 = vadd.f32 0.0, %v3531
  %v3533 = vpop.f32.mrb[0].mxu0
  %3534 = vmatprep.mubr.f32.mxu0 0.0
  %3535 = vmatmul.mubr.f32.gmra.mrb[0].mxu0 %v3379
  %v3536 = vpop.f32.mrb[0].mxu0
  %v3537 = vadd.f32 0.0, %v3536
  %v3538 = vpop.f32.mrb[0].mxu0
  %3539 = vmatprep.mubr.f32.mxu0 0.0
  %3540 = vmatmul.mubr.f32.gmra.mrb[0].mxu0 %v3382
  %v3541 = vpop.f32.mrb[0].mxu0
  %v3542 = vadd.f32 0.0, %v3541
  %v3543 = vpop.f32.mrb[0].mxu0
  %3544 = vmatprep.mubr.f32.mxu0 0.0
  %3545 = vmatmul.mubr.f32.gmra.mrb[0].mxu0 %v3385
  %v3546 = vpop.f32.mrb[0].mxu0
  %v3547 = vadd.f32 0.0, %v3546
  %v3548 = vpop.f32.mrb[0].mxu0
  %3549 = vmatprep.mubr.f32.mxu0 0.0
  %3550 = vmatmul.mubr.f32.gmra.mrb[0].mxu0 %v3388
  %v3551 = vpop.f32.mrb[0].mxu0
  %v3552 = vadd.f32 0.0, %v3551
  %v3553 = vpop.f32.mrb[0].mxu0
  %3554 = vmatprep.mubr.f32.mxu0 0.0
  %3555 = vmatmul.mubr.f32.gmra.mrb[0].mxu0 %v3391
  %v3556 = vpop.f32.mrb[0].mxu0
  %v3557 = vadd.f32 0.0, %v3556
  %v3558 = vpop.f32.mrb[0].mxu0
  %3559 = vmatprep.mubr.f32.mxu0 0.0
  %3560 = vmatmul.mubr.f32.gmra.mrb[0].mxu0 %v3394
  %v3561 = vpop.f32.mrb[0].mxu0
  %v3562 = vadd.f32 0.0, %v3561
  %v3563 = vpop.f32.mrb[0].mxu0
  %3564 = vmatprep.mubr.f32.mxu0 0.0
  %3565 = vmatmul.mubr.f32.gmra.mrb[0].mxu0 %v3397
  %v3566 = vpop.f32.mrb[0].mxu0
  %v3567 = vadd.f32 0.0, %v3566
  %v3568 = vpop.f32.mrb[0].mxu0
  %3569 = vmatprep.mubr.f32.mxu0 0.0
  %3570 = vmatmul.mubr.f32.gmra.mrb[0].mxu0 %v3400
  %v3571 = vpop.f32.mrb[0].mxu0
  %v3572 = vadd.f32 0.0, %v3571
  %v3573 = vpop.f32.mrb[0].mxu0
  %3574 = vmatprep.mubr.f32.mxu0 0.0
  %3575 = vmatmul.mubr.f32.gmra.mrb[0].mxu0 %v3403
  %v3576 = vpop.f32.mrb[0].mxu0
  %v3577 = vadd.f32 0.0, %v3576
  %v3578 = vpop.f32.mrb[0].mxu0
  %3579 = vdwg.mxu0
  %v3580 = vadd.f32 %v3293, %v3472
  %v3581 = vadd.f32 %v3294, %v3477
  %v3582 = vadd.f32 %v3295, %v3482
  %v3583 = vadd.f32 %v3296, %v3487
  %v3584 = vadd.f32 %v3297, %v3492
  %v3585 = vadd.f32 %v3298, %v3497
  %v3586 = vadd.f32 %v3299, %v3502
  %v3587 = vadd.f32 %v3300, %v3507
  %v3588 = vadd.f32 %v3301, %v3512
  %v3589 = vadd.f32 %v3302, %v3517
  %v3590 = vadd.f32 %v3303, %v3522
  %v3591 = vadd.f32 %v3304, %v3527
  %v3592 = vadd.f32 %v3305, %v3532
  %v3593 = vadd.f32 %v3306, %v3537
  %v3594 = vadd.f32 %v3307, %v3542
  %v3595 = vadd.f32 %v3308, %v3547
  %v3596 = vadd.f32 %v3309, %v3552
  %v3597 = vadd.f32 %v3310, %v3557
  %v3598 = vadd.f32 %v3311, %v3562
  %v3599 = vadd.f32 %v3312, %v3567
  %v3600 = vadd.f32 %v3313, %v3572
  %v3601 = vadd.f32 %v3314, %v3577
  %v3602 = vld [vmem:[#allocation2 + $0x3a] sm:$0xff]
  %v3603 = vld [vmem:[#allocation2 + $0x42] sm:$0xff]
  %v3604 = vld [vmem:[#allocation2 + $0x4a] sm:$0xff]
  %v3605 = vld [vmem:[#allocation2 + $0x52] sm:$0xff]
  %v3606 = vld [vmem:[#allocation2 + $0x5a] sm:$0xff]
  %v3607 = vld [vmem:[#allocation2 + $0x62] sm:$0xff]
  %v3608 = vld [vmem:[#allocation2 + $0x6a] sm:$0xff]
  %v3609 = vld [vmem:[#allocation2 + $0x72] sm:$0xff]
  %v3610 = vld [vmem:[#allocation2 + $0x7a] sm:$0xff]
  %v3611 = vld [vmem:[#allocation2 + $0x82] sm:$0xff]
  %v3612 = vld [vmem:[#allocation2 + $0x8a] sm:$0xff]
  %v3613 = vld [vmem:[#allocation2 + $0x92] sm:$0xff]
  %v3614 = vld [vmem:[#allocation2 + $0x9a] sm:$0xff]
  %v3615 = vld [vmem:[#allocation2 + $0xa2] sm:$0xff]
  %v3616 = vld [vmem:[#allocation2 + $0xaa] sm:$0xff]
  %v3617 = vld [vmem:[#allocation2 + $0xb2] sm:$0xff]
  %v3618 = vld [vmem:[#allocation2 + $0xba] sm:$0xff]
  %v3619 = vld [vmem:[#allocation2 + $0xc2] sm:$0xff]
  %v3620 = vld [vmem:[#allocation2 + $0xca] sm:$0xff]
  %v3621 = vld [vmem:[#allocation2 + $0xd2] sm:$0xff]
  %v3622 = vld [vmem:[#allocation2 + $0xda] sm:$0xff]
  %v3623 = vld [vmem:[#allocation2 + $0xe2] sm:$0xff]
  %v3624 = vld [vmem:[%s3 + $0xb0] sm:$0xff]
  %v3625 = vld [vmem:[%s3 + $0xb8] sm:$0xff]
  %v3627 = vsel %vm455, %v3602, 0
  %v3630 = vsel %vm455, %v3603, 0
  %v3633 = vsel %vm455, %v3604, 0
  %v3636 = vsel %vm455, %v3605, 0
  %v3639 = vsel %vm455, %v3606, 0
  %v3642 = vsel %vm455, %v3607, 0
  %v3645 = vsel %vm455, %v3608, 0
  %v3648 = vsel %vm455, %v3609, 0
  %v3651 = vsel %vm455, %v3610, 0
  %v3654 = vsel %vm455, %v3611, 0
  %v3657 = vsel %vm455, %v3612, 0
  %v3660 = vsel %vm455, %v3613, 0
  %v3663 = vsel %vm455, %v3614, 0
  %v3666 = vsel %vm455, %v3615, 0
  %v3669 = vsel %vm455, %v3616, 0
  %v3672 = vsel %vm455, %v3617, 0
  %v3675 = vsel %vm455, %v3618, 0
  %v3678 = vsel %vm455, %v3619, 0
  %v3681 = vsel %vm455, %v3620, 0
  %v3684 = vsel %vm455, %v3621, 0
  %v3687 = vsel %vm455, %v3622, 0
  %v3690 = vsel %vm455, %v3623, 0
  %3692 = vmatprep.subr.mxu0 0.0
  %3693 = vmatpush1.msra.mxu0 %v3624
  %3694 = vmatprep.subr.mxu0 0.0
  %3695 = vmatpush1.msra.mxu0 %v3625
  %3696 = vmatprep.subr.mxu0 0.0
  %3697 = vmatpush1.msra.mxu0 0.0
  %3698 = vmatprep.subr.mxu0 0.0
  %3699 = vmatpush1.msra.mxu0 0.0
  %3700 = vmatprep.subr.mxu0 0.0
  %3701 = vmatpush1.msra.mxu0 0.0
  %3702 = vmatprep.subr.mxu0 0.0
  %3703 = vmatpush1.msra.mxu0 0.0
  %3704 = vmatprep.subr.mxu0 0.0
  %3705 = vmatpush1.msra.mxu0 0.0
  %3706 = vmatprep.subr.mxu0 0.0
  %3707 = vmatpush1.msra.mxu0 0.0
  %3708 = vmatprep.subr.mxu0 0.0
  %3709 = vmatpush1.msra.mxu0 0.0
  %3710 = vmatprep.subr.mxu0 0.0
  %3711 = vmatpush1.msra.mxu0 0.0
  %3712 = vmatprep.subr.mxu0 0.0
  %3713 = vmatpush1.msra.mxu0 0.0
  %3714 = vmatprep.subr.mxu0 0.0
  %3715 = vmatpush1.msra.mxu0 0.0
  %3716 = vmatprep.subr.mxu0 0.0
  %3717 = vmatpush1.msra.mxu0 0.0
  %3718 = vmatprep.subr.mxu0 0.0
  %3719 = vmatpush1.msra.mxu0 0.0
  %3720 = vmatprep.subr.mxu0 0.0
  %3721 = vmatpush1.msra.mxu0 0.0
  %3722 = vmatprep.subr.mxu0 0.0
  %3723 = vmatpush1.msra.mxu0 0.0
  %3724 = vmatprep.subr.mxu0 0.0
  %3725 = vmatpush1.msra.mxu0 0.0
  %3726 = vmatprep.subr.mxu0 0.0
  %3727 = vmatpush1.msra.mxu0 0.0
  %3728 = vmatprep.subr.mxu0 0.0
  %3729 = vmatpush1.msra.mxu0 0.0
  %3730 = vmatprep.subr.mxu0 0.0
  %3731 = vmatpush1.msra.mxu0 0.0
  %3732 = vmatprep.subr.mxu0 0.0
  %3733 = vmatpush1.msra.mxu0 0.0
  %3734 = vmatprep.subr.mxu0 0.0
  %3735 = vmatpush1.msra.mxu0 0.0
  %3736 = vmatprep.subr.mxu0 0.0
  %3737 = vmatpush1.msra.mxu0 0.0
  %3738 = vmatprep.subr.mxu0 0.0
  %3739 = vmatpush1.msra.mxu0 0.0
  %3740 = vmatprep.subr.mxu0 0.0
  %3741 = vmatpush1.msra.mxu0 0.0
  %3742 = vmatprep.subr.mxu0 0.0
  %3743 = vmatpush1.msra.mxu0 0.0
  %3744 = vmatprep.subr.mxu0 0.0
  %3745 = vmatpush1.msra.mxu0 0.0
  %3746 = vmatprep.subr.mxu0 0.0
  %3747 = vmatpush1.msra.mxu0 0.0
  %3748 = vmatprep.subr.mxu0 0.0
  %3749 = vmatpush1.msra.mxu0 0.0
  %3750 = vmatprep.subr.mxu0 0.0
  %3751 = vmatpush1.msra.mxu0 0.0
  %3752 = vmatprep.subr.mxu0 0.0
  %3753 = vmatpush1.msra.mxu0 0.0
  %3754 = vmatprep.subr.mxu0 0.0
  %3755 = vmatpush1.msra.mxu0 0.0
  %3756 = vmatprep.mubr.f32.mxu0 0.0
  %3757 = vmatmul.mubr.f32.gmra.mrb[0].mxu0 %v3627
  %v3758 = vpop.f32.mrb[0].mxu0
  %v3759 = vadd.f32 0.0, %v3758
  %v3760 = vpop.f32.mrb[0].mxu0
  %3761 = vmatprep.mubr.f32.mxu0 0.0
  %3762 = vmatmul.mubr.f32.gmra.mrb[0].mxu0 %v3630
  %v3763 = vpop.f32.mrb[0].mxu0
  %v3764 = vadd.f32 0.0, %v3763
  %v3765 = vpop.f32.mrb[0].mxu0
  %3766 = vmatprep.mubr.f32.mxu0 0.0
  %3767 = vmatmul.mubr.f32.gmra.mrb[0].mxu0 %v3633
  %v3768 = vpop.f32.mrb[0].mxu0
  %v3769 = vadd.f32 0.0, %v3768
  %v3770 = vpop.f32.mrb[0].mxu0
  %3771 = vmatprep.mubr.f32.mxu0 0.0
  %3772 = vmatmul.mubr.f32.gmra.mrb[0].mxu0 %v3636
  %v3773 = vpop.f32.mrb[0].mxu0
  %v3774 = vadd.f32 0.0, %v3773
  %v3775 = vpop.f32.mrb[0].mxu0
  %3776 = vmatprep.mubr.f32.mxu0 0.0
  %3777 = vmatmul.mubr.f32.gmra.mrb[0].mxu0 %v3639
  %v3778 = vpop.f32.mrb[0].mxu0
  %v3779 = vadd.f32 0.0, %v3778
  %v3780 = vpop.f32.mrb[0].mxu0
  %3781 = vmatprep.mubr.f32.mxu0 0.0
  %3782 = vmatmul.mubr.f32.gmra.mrb[0].mxu0 %v3642
  %v3783 = vpop.f32.mrb[0].mxu0
  %v3784 = vadd.f32 0.0, %v3783
  %v3785 = vpop.f32.mrb[0].mxu0
  %3786 = vmatprep.mubr.f32.mxu0 0.0
  %3787 = vmatmul.mubr.f32.gmra.mrb[0].mxu0 %v3645
  %v3788 = vpop.f32.mrb[0].mxu0
  %v3789 = vadd.f32 0.0, %v3788
  %v3790 = vpop.f32.mrb[0].mxu0
  %3791 = vmatprep.mubr.f32.mxu0 0.0
  %3792 = vmatmul.mubr.f32.gmra.mrb[0].mxu0 %v3648
  %v3793 = vpop.f32.mrb[0].mxu0
  %v3794 = vadd.f32 0.0, %v3793
  %v3795 = vpop.f32.mrb[0].mxu0
  %3796 = vmatprep.mubr.f32.mxu0 0.0
  %3797 = vmatmul.mubr.f32.gmra.mrb[0].mxu0 %v3651
  %v3798 = vpop.f32.mrb[0].mxu0
  %v3799 = vadd.f32 0.0, %v3798
  %v3800 = vpop.f32.mrb[0].mxu0
  %3801 = vmatprep.mubr.f32.mxu0 0.0
  %3802 = vmatmul.mubr.f32.gmra.mrb[0].mxu0 %v3654
  %v3803 = vpop.f32.mrb[0].mxu0
  %v3804 = vadd.f32 0.0, %v3803
  %v3805 = vpop.f32.mrb[0].mxu0
  %3806 = vmatprep.mubr.f32.mxu0 0.0
  %3807 = vmatmul.mubr.f32.gmra.mrb[0].mxu0 %v3657
  %v3808 = vpop.f32.mrb[0].mxu0
  %v3809 = vadd.f32 0.0, %v3808
  %v3810 = vpop.f32.mrb[0].mxu0
  %3811 = vmatprep.mubr.f32.mxu0 0.0
  %3812 = vmatmul.mubr.f32.gmra.mrb[0].mxu0 %v3660
  %v3813 = vpop.f32.mrb[0].mxu0
  %v3814 = vadd.f32 0.0, %v3813
  %v3815 = vpop.f32.mrb[0].mxu0
  %3816 = vmatprep.mubr.f32.mxu0 0.0
  %3817 = vmatmul.mubr.f32.gmra.mrb[0].mxu0 %v3663
  %v3818 = vpop.f32.mrb[0].mxu0
  %v3819 = vadd.f32 0.0, %v3818
  %v3820 = vpop.f32.mrb[0].mxu0
  %3821 = vmatprep.mubr.f32.mxu0 0.0
  %3822 = vmatmul.mubr.f32.gmra.mrb[0].mxu0 %v3666
  %v3823 = vpop.f32.mrb[0].mxu0
  %v3824 = vadd.f32 0.0, %v3823
  %v3825 = vpop.f32.mrb[0].mxu0
  %3826 = vmatprep.mubr.f32.mxu0 0.0
  %3827 = vmatmul.mubr.f32.gmra.mrb[0].mxu0 %v3669
  %v3828 = vpop.f32.mrb[0].mxu0
  %v3829 = vadd.f32 0.0, %v3828
  %v3830 = vpop.f32.mrb[0].mxu0
  %3831 = vmatprep.mubr.f32.mxu0 0.0
  %3832 = vmatmul.mubr.f32.gmra.mrb[0].mxu0 %v3672
  %v3833 = vpop.f32.mrb[0].mxu0
  %v3834 = vadd.f32 0.0, %v3833
  %v3835 = vpop.f32.mrb[0].mxu0
  %3836 = vmatprep.mubr.f32.mxu0 0.0
  %3837 = vmatmul.mubr.f32.gmra.mrb[0].mxu0 %v3675
  %v3838 = vpop.f32.mrb[0].mxu0
  %v3839 = vadd.f32 0.0, %v3838
  %v3840 = vpop.f32.mrb[0].mxu0
  %3841 = vmatprep.mubr.f32.mxu0 0.0
  %3842 = vmatmul.mubr.f32.gmra.mrb[0].mxu0 %v3678
  %v3843 = vpop.f32.mrb[0].mxu0
  %v3844 = vadd.f32 0.0, %v3843
  %v3845 = vpop.f32.mrb[0].mxu0
  %3846 = vmatprep.mubr.f32.mxu0 0.0
  %3847 = vmatmul.mubr.f32.gmra.mrb[0].mxu0 %v3681
  %v3848 = vpop.f32.mrb[0].mxu0
  %v3849 = vadd.f32 0.0, %v3848
  %v3850 = vpop.f32.mrb[0].mxu0
  %3851 = vmatprep.mubr.f32.mxu0 0.0
  %3852 = vmatmul.mubr.f32.gmra.mrb[0].mxu0 %v3684
  %v3853 = vpop.f32.mrb[0].mxu0
  %v3854 = vadd.f32 0.0, %v3853
  %v3855 = vpop.f32.mrb[0].mxu0
  %3856 = vmatprep.mubr.f32.mxu0 0.0
  %3857 = vmatmul.mubr.f32.gmra.mrb[0].mxu0 %v3687
  %v3858 = vpop.f32.mrb[0].mxu0
  %v3859 = vadd.f32 0.0, %v3858
  %v3860 = vpop.f32.mrb[0].mxu0
  %3861 = vmatprep.mubr.f32.mxu0 0.0
  %3862 = vmatmul.mubr.f32.gmra.mrb[0].mxu0 %v3690
  %v3863 = vpop.f32.mrb[0].mxu0
  %v3864 = vadd.f32 0.0, %v3863
  %v3865 = vpop.f32.mrb[0].mxu0
  %3866 = vdwg.mxu0
  %v3867 = vadd.f32 %v3580, %v3759
  %v3868 = vadd.f32 %v3581, %v3764
  %v3869 = vadd.f32 %v3582, %v3769
  %v3870 = vadd.f32 %v3583, %v3774
  %v3871 = vadd.f32 %v3584, %v3779
  %v3872 = vadd.f32 %v3585, %v3784
  %v3873 = vadd.f32 %v3586, %v3789
  %v3874 = vadd.f32 %v3587, %v3794
  %v3875 = vadd.f32 %v3588, %v3799
  %v3876 = vadd.f32 %v3589, %v3804
  %v3877 = vadd.f32 %v3590, %v3809
  %v3878 = vadd.f32 %v3591, %v3814
  %v3879 = vadd.f32 %v3592, %v3819
  %v3880 = vadd.f32 %v3593, %v3824
  %v3881 = vadd.f32 %v3594, %v3829
  %v3882 = vadd.f32 %v3595, %v3834
  %v3883 = vadd.f32 %v3596, %v3839
  %v3884 = vadd.f32 %v3597, %v3844
  %v3885 = vadd.f32 %v3598, %v3849
  %v3886 = vadd.f32 %v3599, %v3854
  %v3887 = vadd.f32 %v3600, %v3859
  %v3888 = vadd.f32 %v3601, %v3864
  %v3889 = vld [vmem:[#allocation2 + $0x4e] sm:$0xff]
  %v3890 = vld [vmem:[#allocation2 + $0x56] sm:$0xff]
  %v3891 = vld [vmem:[#allocation2 + $0x5e] sm:$0xff]
  %v3892 = vld [vmem:[#allocation2 + $0x66] sm:$0xff]
  %v3893 = vld [vmem:[#allocation2 + $0x6e] sm:$0xff]
  %v3894 = vld [vmem:[#allocation2 + $0x76] sm:$0xff]
  %v3895 = vld [vmem:[#allocation2 + $0x7e] sm:$0xff]
  %v3896 = vld [vmem:[#allocation2 + $0x86] sm:$0xff]
  %v3897 = vld [vmem:[#allocation2 + $0x8e] sm:$0xff]
  %v3898 = vld [vmem:[#allocation2 + $0x96] sm:$0xff]
  %v3899 = vld [vmem:[#allocation2 + $0x9e] sm:$0xff]
  %v3900 = vld [vmem:[#allocation2 + $0xa6] sm:$0xff]
  %v3901 = vld [vmem:[#allocation2 + $0xae] sm:$0xff]
  %v3902 = vld [vmem:[#allocation2 + $0xb6] sm:$0xff]
  %v3903 = vld [vmem:[#allocation2 + $0xbe] sm:$0xff]
  %v3904 = vld [vmem:[#allocation2 + $0xc6] sm:$0xff]
  %v3905 = vld [vmem:[#allocation2 + $0xce] sm:$0xff]
  %v3906 = vld [vmem:[#allocation2 + $0xd6] sm:$0xff]
  %v3907 = vld [vmem:[#allocation2 + $0xde] sm:$0xff]
  %v3908 = vld [vmem:[#allocation2 + $0xe6] sm:$0xff]
  %v3909 = vld [vmem:[#allocation2 + $0xee] sm:$0xff]
  %v3910 = vld [vmem:[#allocation2 + $0xf6] sm:$0xff]
  %v3911 = vld [vmem:[%s3 + $0xc0] sm:$0xff]
  %v3912 = vld [vmem:[%s3 + $0xc8] sm:$0xff]
  %v3914 = vsel %vm455, %v3889, 0
  %v3917 = vsel %vm455, %v3890, 0
  %v3920 = vsel %vm455, %v3891, 0
  %v3923 = vsel %vm455, %v3892, 0
  %v3926 = vsel %vm455, %v3893, 0
  %v3929 = vsel %vm455, %v3894, 0
  %v3932 = vsel %vm455, %v3895, 0
  %v3935 = vsel %vm455, %v3896, 0
  %v3938 = vsel %vm455, %v3897, 0
  %v3941 = vsel %vm455, %v3898, 0
  %v3944 = vsel %vm455, %v3899, 0
  %v3947 = vsel %vm455, %v3900, 0
  %v3950 = vsel %vm455, %v3901, 0
  %v3953 = vsel %vm455, %v3902, 0
  %v3956 = vsel %vm455, %v3903, 0
  %v3959 = vsel %vm455, %v3904, 0
  %v3962 = vsel %vm455, %v3905, 0
  %v3965 = vsel %vm455, %v3906, 0
  %v3968 = vsel %vm455, %v3907, 0
  %v3971 = vsel %vm455, %v3908, 0
  %v3974 = vsel %vm455, %v3909, 0
  %v3977 = vsel %vm455, %v3910, 0
  %3979 = vmatprep.subr.mxu0 0.0
  %3980 = vmatpush1.msra.mxu0 %v3911
  %3981 = vmatprep.subr.mxu0 0.0
  %3982 = vmatpush1.msra.mxu0 %v3912
  %3983 = vmatprep.subr.mxu0 0.0
  %3984 = vmatpush1.msra.mxu0 0.0
  %3985 = vmatprep.subr.mxu0 0.0
  %3986 = vmatpush1.msra.mxu0 0.0
  %3987 = vmatprep.subr.mxu0 0.0
  %3988 = vmatpush1.msra.mxu0 0.0
  %3989 = vmatprep.subr.mxu0 0.0
  %3990 = vmatpush1.msra.mxu0 0.0
  %3991 = vmatprep.subr.mxu0 0.0
  %3992 = vmatpush1.msra.mxu0 0.0
  %3993 = vmatprep.subr.mxu0 0.0
  %3994 = vmatpush1.msra.mxu0 0.0
  %3995 = vmatprep.subr.mxu0 0.0
  %3996 = vmatpush1.msra.mxu0 0.0
  %3997 = vmatprep.subr.mxu0 0.0
  %3998 = vmatpush1.msra.mxu0 0.0
  %3999 = vmatprep.subr.mxu0 0.0
  %4000 = vmatpush1.msra.mxu0 0.0
  %4001 = vmatprep.subr.mxu0 0.0
  %4002 = vmatpush1.msra.mxu0 0.0
  %4003 = vmatprep.subr.mxu0 0.0
  %4004 = vmatpush1.msra.mxu0 0.0
  %4005 = vmatprep.subr.mxu0 0.0
  %4006 = vmatpush1.msra.mxu0 0.0
  %4007 = vmatprep.subr.mxu0 0.0
  %4008 = vmatpush1.msra.mxu0 0.0
  %4009 = vmatprep.subr.mxu0 0.0
  %4010 = vmatpush1.msra.mxu0 0.0
  %4011 = vmatprep.subr.mxu0 0.0
  %4012 = vmatpush1.msra.mxu0 0.0
  %4013 = vmatprep.subr.mxu0 0.0
  %4014 = vmatpush1.msra.mxu0 0.0
  %4015 = vmatprep.subr.mxu0 0.0
  %4016 = vmatpush1.msra.mxu0 0.0
  %4017 = vmatprep.subr.mxu0 0.0
  %4018 = vmatpush1.msra.mxu0 0.0
  %4019 = vmatprep.subr.mxu0 0.0
  %4020 = vmatpush1.msra.mxu0 0.0
  %4021 = vmatprep.subr.mxu0 0.0
  %4022 = vmatpush1.msra.mxu0 0.0
  %4023 = vmatprep.subr.mxu0 0.0
  %4024 = vmatpush1.msra.mxu0 0.0
  %4025 = vmatprep.subr.mxu0 0.0
  %4026 = vmatpush1.msra.mxu0 0.0
  %4027 = vmatprep.subr.mxu0 0.0
  %4028 = vmatpush1.msra.mxu0 0.0
  %4029 = vmatprep.subr.mxu0 0.0
  %4030 = vmatpush1.msra.mxu0 0.0
  %4031 = vmatprep.subr.mxu0 0.0
  %4032 = vmatpush1.msra.mxu0 0.0
  %4033 = vmatprep.subr.mxu0 0.0
  %4034 = vmatpush1.msra.mxu0 0.0
  %4035 = vmatprep.subr.mxu0 0.0
  %4036 = vmatpush1.msra.mxu0 0.0
  %4037 = vmatprep.subr.mxu0 0.0
  %4038 = vmatpush1.msra.mxu0 0.0
  %4039 = vmatprep.subr.mxu0 0.0
  %4040 = vmatpush1.msra.mxu0 0.0
  %4041 = vmatprep.subr.mxu0 0.0
  %4042 = vmatpush1.msra.mxu0 0.0
  %4043 = vmatprep.mubr.f32.mxu0 0.0
  %4044 = vmatmul.mubr.f32.gmra.mrb[0].mxu0 %v3914
  %v4045 = vpop.f32.mrb[0].mxu0
  %v4046 = vadd.f32 0.0, %v4045
  %v4047 = vpop.f32.mrb[0].mxu0
  %4048 = vmatprep.mubr.f32.mxu0 0.0
  %4049 = vmatmul.mubr.f32.gmra.mrb[0].mxu0 %v3917
  %v4050 = vpop.f32.mrb[0].mxu0
  %v4051 = vadd.f32 0.0, %v4050
  %v4052 = vpop.f32.mrb[0].mxu0
  %4053 = vmatprep.mubr.f32.mxu0 0.0
  %4054 = vmatmul.mubr.f32.gmra.mrb[0].mxu0 %v3920
  %v4055 = vpop.f32.mrb[0].mxu0
  %v4056 = vadd.f32 0.0, %v4055
  %v4057 = vpop.f32.mrb[0].mxu0
  %4058 = vmatprep.mubr.f32.mxu0 0.0
  %4059 = vmatmul.mubr.f32.gmra.mrb[0].mxu0 %v3923
  %v4060 = vpop.f32.mrb[0].mxu0
  %v4061 = vadd.f32 0.0, %v4060
  %v4062 = vpop.f32.mrb[0].mxu0
  %4063 = vmatprep.mubr.f32.mxu0 0.0
  %4064 = vmatmul.mubr.f32.gmra.mrb[0].mxu0 %v3926
  %v4065 = vpop.f32.mrb[0].mxu0
  %v4066 = vadd.f32 0.0, %v4065
  %v4067 = vpop.f32.mrb[0].mxu0
  %4068 = vmatprep.mubr.f32.mxu0 0.0
  %4069 = vmatmul.mubr.f32.gmra.mrb[0].mxu0 %v3929
  %v4070 = vpop.f32.mrb[0].mxu0
  %v4071 = vadd.f32 0.0, %v4070
  %v4072 = vpop.f32.mrb[0].mxu0
  %4073 = vmatprep.mubr.f32.mxu0 0.0
  %4074 = vmatmul.mubr.f32.gmra.mrb[0].mxu0 %v3932
  %v4075 = vpop.f32.mrb[0].mxu0
  %v4076 = vadd.f32 0.0, %v4075
  %v4077 = vpop.f32.mrb[0].mxu0
  %4078 = vmatprep.mubr.f32.mxu0 0.0
  %4079 = vmatmul.mubr.f32.gmra.mrb[0].mxu0 %v3935
  %v4080 = vpop.f32.mrb[0].mxu0
  %v4081 = vadd.f32 0.0, %v4080
  %v4082 = vpop.f32.mrb[0].mxu0
  %4083 = vmatprep.mubr.f32.mxu0 0.0
  %4084 = vmatmul.mubr.f32.gmra.mrb[0].mxu0 %v3938
  %v4085 = vpop.f32.mrb[0].mxu0
  %v4086 = vadd.f32 0.0, %v4085
  %v4087 = vpop.f32.mrb[0].mxu0
  %4088 = vmatprep.mubr.f32.mxu0 0.0
  %4089 = vmatmul.mubr.f32.gmra.mrb[0].mxu0 %v3941
  %v4090 = vpop.f32.mrb[0].mxu0
  %v4091 = vadd.f32 0.0, %v4090
  %v4092 = vpop.f32.mrb[0].mxu0
  %4093 = vmatprep.mubr.f32.mxu0 0.0
  %4094 = vmatmul.mubr.f32.gmra.mrb[0].mxu0 %v3944
  %v4095 = vpop.f32.mrb[0].mxu0
  %v4096 = vadd.f32 0.0, %v4095
  %v4097 = vpop.f32.mrb[0].mxu0
  %4098 = vmatprep.mubr.f32.mxu0 0.0
  %4099 = vmatmul.mubr.f32.gmra.mrb[0].mxu0 %v3947
  %v4100 = vpop.f32.mrb[0].mxu0
  %v4101 = vadd.f32 0.0, %v4100
  %v4102 = vpop.f32.mrb[0].mxu0
  %4103 = vmatprep.mubr.f32.mxu0 0.0
  %4104 = vmatmul.mubr.f32.gmra.mrb[0].mxu0 %v3950
  %v4105 = vpop.f32.mrb[0].mxu0
  %v4106 = vadd.f32 0.0, %v4105
  %v4107 = vpop.f32.mrb[0].mxu0
  %4108 = vmatprep.mubr.f32.mxu0 0.0
  %4109 = vmatmul.mubr.f32.gmra.mrb[0].mxu0 %v3953
  %v4110 = vpop.f32.mrb[0].mxu0
  %v4111 = vadd.f32 0.0, %v4110
  %v4112 = vpop.f32.mrb[0].mxu0
  %4113 = vmatprep.mubr.f32.mxu0 0.0
  %4114 = vmatmul.mubr.f32.gmra.mrb[0].mxu0 %v3956
  %v4115 = vpop.f32.mrb[0].mxu0
  %v4116 = vadd.f32 0.0, %v4115
  %v4117 = vpop.f32.mrb[0].mxu0
  %4118 = vmatprep.mubr.f32.mxu0 0.0
  %4119 = vmatmul.mubr.f32.gmra.mrb[0].mxu0 %v3959
  %v4120 = vpop.f32.mrb[0].mxu0
  %v4121 = vadd.f32 0.0, %v4120
  %v4122 = vpop.f32.mrb[0].mxu0
  %4123 = vmatprep.mubr.f32.mxu0 0.0
  %4124 = vmatmul.mubr.f32.gmra.mrb[0].mxu0 %v3962
  %v4125 = vpop.f32.mrb[0].mxu0
  %v4126 = vadd.f32 0.0, %v4125
  %v4127 = vpop.f32.mrb[0].mxu0
  %4128 = vmatprep.mubr.f32.mxu0 0.0
  %4129 = vmatmul.mubr.f32.gmra.mrb[0].mxu0 %v3965
  %v4130 = vpop.f32.mrb[0].mxu0
  %v4131 = vadd.f32 0.0, %v4130
  %v4132 = vpop.f32.mrb[0].mxu0
  %4133 = vmatprep.mubr.f32.mxu0 0.0
  %4134 = vmatmul.mubr.f32.gmra.mrb[0].mxu0 %v3968
  %v4135 = vpop.f32.mrb[0].mxu0
  %v4136 = vadd.f32 0.0, %v4135
  %v4137 = vpop.f32.mrb[0].mxu0
  %4138 = vmatprep.mubr.f32.mxu0 0.0
  %4139 = vmatmul.mubr.f32.gmra.mrb[0].mxu0 %v3971
  %v4140 = vpop.f32.mrb[0].mxu0
  %v4141 = vadd.f32 0.0, %v4140
  %v4142 = vpop.f32.mrb[0].mxu0
  %4143 = vmatprep.mubr.f32.mxu0 0.0
  %4144 = vmatmul.mubr.f32.gmra.mrb[0].mxu0 %v3974
  %v4145 = vpop.f32.mrb[0].mxu0
  %v4146 = vadd.f32 0.0, %v4145
  %v4147 = vpop.f32.mrb[0].mxu0
  %4148 = vmatprep.mubr.f32.mxu0 0.0
  %4149 = vmatmul.mubr.f32.gmra.mrb[0].mxu0 %v3977
  %v4150 = vpop.f32.mrb[0].mxu0
  %v4151 = vadd.f32 0.0, %v4150
  %v4152 = vpop.f32.mrb[0].mxu0
  %4153 = vdwg.mxu0
  %v4154 = vadd.f32 %v3867, %v4046
  %v4155 = vadd.f32 %v3868, %v4051
  %v4156 = vadd.f32 %v3869, %v4056
  %v4157 = vadd.f32 %v3870, %v4061
  %v4158 = vadd.f32 %v3871, %v4066
  %v4159 = vadd.f32 %v3872, %v4071
  %v4160 = vadd.f32 %v3873, %v4076
  %v4161 = vadd.f32 %v3874, %v4081
  %v4162 = vadd.f32 %v3875, %v4086
  %v4163 = vadd.f32 %v3876, %v4091
  %v4164 = vadd.f32 %v3877, %v4096
  %v4165 = vadd.f32 %v3878, %v4101
  %v4166 = vadd.f32 %v3879, %v4106
  %v4167 = vadd.f32 %v3880, %v4111
  %v4168 = vadd.f32 %v3881, %v4116
  %v4169 = vadd.f32 %v3882, %v4121
  %v4170 = vadd.f32 %v3883, %v4126
  %v4171 = vadd.f32 %v3884, %v4131
  %v4172 = vadd.f32 %v3885, %v4136
  %v4173 = vadd.f32 %v3886, %v4141
  %v4174 = vadd.f32 %v3887, %v4146
  %v4175 = vadd.f32 %v3888, %v4151
  %v4176 = vld [vmem:[#allocation2 + $0x50] sm:$0xff]
  %v4177 = vld [vmem:[#allocation2 + $0x58] sm:$0xff]
  %v4178 = vld [vmem:[#allocation2 + $0x60] sm:$0xff]
  %v4179 = vld [vmem:[#allocation2 + $0x68] sm:$0xff]
  %v4180 = vld [vmem:[#allocation2 + $0x70] sm:$0xff]
  %v4181 = vld [vmem:[#allocation2 + $0x78] sm:$0xff]
  %v4182 = vld [vmem:[#allocation2 + $0x80] sm:$0xff]
  %v4183 = vld [vmem:[#allocation2 + $0x88] sm:$0xff]
  %v4184 = vld [vmem:[#allocation2 + $0x90] sm:$0xff]
  %v4185 = vld [vmem:[#allocation2 + $0x98] sm:$0xff]
  %v4186 = vld [vmem:[#allocation2 + $0xa0] sm:$0xff]
  %v4187 = vld [vmem:[#allocation2 + $0xa8] sm:$0xff]
  %v4188 = vld [vmem:[#allocation2 + $0xb0] sm:$0xff]
  %v4189 = vld [vmem:[#allocation2 + $0xb8] sm:$0xff]
  %v4190 = vld [vmem:[#allocation2 + $0xc0] sm:$0xff]
  %v4191 = vld [vmem:[#allocation2 + $0xc8] sm:$0xff]
  %v4192 = vld [vmem:[#allocation2 + $0xd0] sm:$0xff]
  %v4193 = vld [vmem:[#allocation2 + $0xd8] sm:$0xff]
  %v4194 = vld [vmem:[#allocation2 + $0xe0] sm:$0xff]
  %v4195 = vld [vmem:[#allocation2 + $0xe8] sm:$0xff]
  %v4196 = vld [vmem:[#allocation2 + $0xf0] sm:$0xff]
  %v4197 = vld [vmem:[#allocation2 + $0xf8] sm:$0xff]
  %v4198 = vld [vmem:[%s3 + $0xd0] sm:$0xff]
  %v4199 = vld [vmem:[%s3 + $0xd8] sm:$0xff]
  %v4201 = vsel %vm455, %v4176, 0
  %v4204 = vsel %vm455, %v4177, 0
  %v4207 = vsel %vm455, %v4178, 0
  %v4210 = vsel %vm455, %v4179, 0
  %v4213 = vsel %vm455, %v4180, 0
  %v4216 = vsel %vm455, %v4181, 0
  %v4219 = vsel %vm455, %v4182, 0
  %v4222 = vsel %vm455, %v4183, 0
  %v4225 = vsel %vm455, %v4184, 0
  %v4228 = vsel %vm455, %v4185, 0
  %v4231 = vsel %vm455, %v4186, 0
  %v4234 = vsel %vm455, %v4187, 0
  %v4237 = vsel %vm455, %v4188, 0
  %v4240 = vsel %vm455, %v4189, 0
  %v4243 = vsel %vm455, %v4190, 0
  %v4246 = vsel %vm455, %v4191, 0
  %v4249 = vsel %vm455, %v4192, 0
  %v4252 = vsel %vm455, %v4193, 0
  %v4255 = vsel %vm455, %v4194, 0
  %v4258 = vsel %vm455, %v4195, 0
  %v4261 = vsel %vm455, %v4196, 0
  %v4264 = vsel %vm455, %v4197, 0
  %4266 = vmatprep.subr.mxu0 0.0
  %4267 = vmatpush1.msra.mxu0 %v4198
  %4268 = vmatprep.subr.mxu0 0.0
  %4269 = vmatpush1.msra.mxu0 %v4199
  %4270 = vmatprep.subr.mxu0 0.0
  %4271 = vmatpush1.msra.mxu0 0.0
  %4272 = vmatprep.subr.mxu0 0.0
  %4273 = vmatpush1.msra.mxu0 0.0
  %4274 = vmatprep.subr.mxu0 0.0
  %4275 = vmatpush1.msra.mxu0 0.0
  %4276 = vmatprep.subr.mxu0 0.0
  %4277 = vmatpush1.msra.mxu0 0.0
  %4278 = vmatprep.subr.mxu0 0.0
  %4279 = vmatpush1.msra.mxu0 0.0
  %4280 = vmatprep.subr.mxu0 0.0
  %4281 = vmatpush1.msra.mxu0 0.0
  %4282 = vmatprep.subr.mxu0 0.0
  %4283 = vmatpush1.msra.mxu0 0.0
  %4284 = vmatprep.subr.mxu0 0.0
  %4285 = vmatpush1.msra.mxu0 0.0
  %4286 = vmatprep.subr.mxu0 0.0
  %4287 = vmatpush1.msra.mxu0 0.0
  %4288 = vmatprep.subr.mxu0 0.0
  %4289 = vmatpush1.msra.mxu0 0.0
  %4290 = vmatprep.subr.mxu0 0.0
  %4291 = vmatpush1.msra.mxu0 0.0
  %4292 = vmatprep.subr.mxu0 0.0
  %4293 = vmatpush1.msra.mxu0 0.0
  %4294 = vmatprep.subr.mxu0 0.0
  %4295 = vmatpush1.msra.mxu0 0.0
  %4296 = vmatprep.subr.mxu0 0.0
  %4297 = vmatpush1.msra.mxu0 0.0
  %4298 = vmatprep.subr.mxu0 0.0
  %4299 = vmatpush1.msra.mxu0 0.0
  %4300 = vmatprep.subr.mxu0 0.0
  %4301 = vmatpush1.msra.mxu0 0.0
  %4302 = vmatprep.subr.mxu0 0.0
  %4303 = vmatpush1.msra.mxu0 0.0
  %4304 = vmatprep.subr.mxu0 0.0
  %4305 = vmatpush1.msra.mxu0 0.0
  %4306 = vmatprep.subr.mxu0 0.0
  %4307 = vmatpush1.msra.mxu0 0.0
  %4308 = vmatprep.subr.mxu0 0.0
  %4309 = vmatpush1.msra.mxu0 0.0
  %4310 = vmatprep.subr.mxu0 0.0
  %4311 = vmatpush1.msra.mxu0 0.0
  %4312 = vmatprep.subr.mxu0 0.0
  %4313 = vmatpush1.msra.mxu0 0.0
  %4314 = vmatprep.subr.mxu0 0.0
  %4315 = vmatpush1.msra.mxu0 0.0
  %4316 = vmatprep.subr.mxu0 0.0
  %4317 = vmatpush1.msra.mxu0 0.0
  %4318 = vmatprep.subr.mxu0 0.0
  %4319 = vmatpush1.msra.mxu0 0.0
  %4320 = vmatprep.subr.mxu0 0.0
  %4321 = vmatpush1.msra.mxu0 0.0
  %4322 = vmatprep.subr.mxu0 0.0
  %4323 = vmatpush1.msra.mxu0 0.0
  %4324 = vmatprep.subr.mxu0 0.0
  %4325 = vmatpush1.msra.mxu0 0.0
  %4326 = vmatprep.subr.mxu0 0.0
  %4327 = vmatpush1.msra.mxu0 0.0
  %4328 = vmatprep.subr.mxu0 0.0
  %4329 = vmatpush1.msra.mxu0 0.0
  %4330 = vmatprep.mubr.f32.mxu0 0.0
  %4331 = vmatmul.mubr.f32.gmra.mrb[0].mxu0 %v4201
  %v4332 = vpop.f32.mrb[0].mxu0
  %v4333 = vadd.f32 0.0, %v4332
  %v4334 = vpop.f32.mrb[0].mxu0
  %4335 = vmatprep.mubr.f32.mxu0 0.0
  %4336 = vmatmul.mubr.f32.gmra.mrb[0].mxu0 %v4204
  %v4337 = vpop.f32.mrb[0].mxu0
  %v4338 = vadd.f32 0.0, %v4337
  %v4339 = vpop.f32.mrb[0].mxu0
  %4340 = vmatprep.mubr.f32.mxu0 0.0
  %4341 = vmatmul.mubr.f32.gmra.mrb[0].mxu0 %v4207
  %v4342 = vpop.f32.mrb[0].mxu0
  %v4343 = vadd.f32 0.0, %v4342
  %v4344 = vpop.f32.mrb[0].mxu0
  %4345 = vmatprep.mubr.f32.mxu0 0.0
  %4346 = vmatmul.mubr.f32.gmra.mrb[0].mxu0 %v4210
  %v4347 = vpop.f32.mrb[0].mxu0
  %v4348 = vadd.f32 0.0, %v4347
  %v4349 = vpop.f32.mrb[0].mxu0
  %4350 = vmatprep.mubr.f32.mxu0 0.0
  %4351 = vmatmul.mubr.f32.gmra.mrb[0].mxu0 %v4213
  %v4352 = vpop.f32.mrb[0].mxu0
  %v4353 = vadd.f32 0.0, %v4352
  %v4354 = vpop.f32.mrb[0].mxu0
  %4355 = vmatprep.mubr.f32.mxu0 0.0
  %4356 = vmatmul.mubr.f32.gmra.mrb[0].mxu0 %v4216
  %v4357 = vpop.f32.mrb[0].mxu0
  %v4358 = vadd.f32 0.0, %v4357
  %v4359 = vpop.f32.mrb[0].mxu0
  %4360 = vmatprep.mubr.f32.mxu0 0.0
  %4361 = vmatmul.mubr.f32.gmra.mrb[0].mxu0 %v4219
  %v4362 = vpop.f32.mrb[0].mxu0
  %v4363 = vadd.f32 0.0, %v4362
  %v4364 = vpop.f32.mrb[0].mxu0
  %4365 = vmatprep.mubr.f32.mxu0 0.0
  %4366 = vmatmul.mubr.f32.gmra.mrb[0].mxu0 %v4222
  %v4367 = vpop.f32.mrb[0].mxu0
  %v4368 = vadd.f32 0.0, %v4367
  %v4369 = vpop.f32.mrb[0].mxu0
  %4370 = vmatprep.mubr.f32.mxu0 0.0
  %4371 = vmatmul.mubr.f32.gmra.mrb[0].mxu0 %v4225
  %v4372 = vpop.f32.mrb[0].mxu0
  %v4373 = vadd.f32 0.0, %v4372
  %v4374 = vpop.f32.mrb[0].mxu0
  %4375 = vmatprep.mubr.f32.mxu0 0.0
  %4376 = vmatmul.mubr.f32.gmra.mrb[0].mxu0 %v4228
  %v4377 = vpop.f32.mrb[0].mxu0
  %v4378 = vadd.f32 0.0, %v4377
  %v4379 = vpop.f32.mrb[0].mxu0
  %4380 = vmatprep.mubr.f32.mxu0 0.0
  %4381 = vmatmul.mubr.f32.gmra.mrb[0].mxu0 %v4231
  %v4382 = vpop.f32.mrb[0].mxu0
  %v4383 = vadd.f32 0.0, %v4382
  %v4384 = vpop.f32.mrb[0].mxu0
  %4385 = vmatprep.mubr.f32.mxu0 0.0
  %4386 = vmatmul.mubr.f32.gmra.mrb[0].mxu0 %v4234
  %v4387 = vpop.f32.mrb[0].mxu0
  %v4388 = vadd.f32 0.0, %v4387
  %v4389 = vpop.f32.mrb[0].mxu0
  %4390 = vmatprep.mubr.f32.mxu0 0.0
  %4391 = vmatmul.mubr.f32.gmra.mrb[0].mxu0 %v4237
  %v4392 = vpop.f32.mrb[0].mxu0
  %v4393 = vadd.f32 0.0, %v4392
  %v4394 = vpop.f32.mrb[0].mxu0
  %4395 = vmatprep.mubr.f32.mxu0 0.0
  %4396 = vmatmul.mubr.f32.gmra.mrb[0].mxu0 %v4240
  %v4397 = vpop.f32.mrb[0].mxu0
  %v4398 = vadd.f32 0.0, %v4397
  %v4399 = vpop.f32.mrb[0].mxu0
  %4400 = vmatprep.mubr.f32.mxu0 0.0
  %4401 = vmatmul.mubr.f32.gmra.mrb[0].mxu0 %v4243
  %v4402 = vpop.f32.mrb[0].mxu0
  %v4403 = vadd.f32 0.0, %v4402
  %v4404 = vpop.f32.mrb[0].mxu0
  %4405 = vmatprep.mubr.f32.mxu0 0.0
  %4406 = vmatmul.mubr.f32.gmra.mrb[0].mxu0 %v4246
  %v4407 = vpop.f32.mrb[0].mxu0
  %v4408 = vadd.f32 0.0, %v4407
  %v4409 = vpop.f32.mrb[0].mxu0
  %4410 = vmatprep.mubr.f32.mxu0 0.0
  %4411 = vmatmul.mubr.f32.gmra.mrb[0].mxu0 %v4249
  %v4412 = vpop.f32.mrb[0].mxu0
  %v4413 = vadd.f32 0.0, %v4412
  %v4414 = vpop.f32.mrb[0].mxu0
  %4415 = vmatprep.mubr.f32.mxu0 0.0
  %4416 = vmatmul.mubr.f32.gmra.mrb[0].mxu0 %v4252
  %v4417 = vpop.f32.mrb[0].mxu0
  %v4418 = vadd.f32 0.0, %v4417
  %v4419 = vpop.f32.mrb[0].mxu0
  %4420 = vmatprep.mubr.f32.mxu0 0.0
  %4421 = vmatmul.mubr.f32.gmra.mrb[0].mxu0 %v4255
  %v4422 = vpop.f32.mrb[0].mxu0
  %v4423 = vadd.f32 0.0, %v4422
  %v4424 = vpop.f32.mrb[0].mxu0
  %4425 = vmatprep.mubr.f32.mxu0 0.0
  %4426 = vmatmul.mubr.f32.gmra.mrb[0].mxu0 %v4258
  %v4427 = vpop.f32.mrb[0].mxu0
  %v4428 = vadd.f32 0.0, %v4427
  %v4429 = vpop.f32.mrb[0].mxu0
  %4430 = vmatprep.mubr.f32.mxu0 0.0
  %4431 = vmatmul.mubr.f32.gmra.mrb[0].mxu0 %v4261
  %v4432 = vpop.f32.mrb[0].mxu0
  %v4433 = vadd.f32 0.0, %v4432
  %v4434 = vpop.f32.mrb[0].mxu0
  %4435 = vmatprep.mubr.f32.mxu0 0.0
  %4436 = vmatmul.mubr.f32.gmra.mrb[0].mxu0 %v4264
  %v4437 = vpop.f32.mrb[0].mxu0
  %v4438 = vadd.f32 0.0, %v4437
  %v4439 = vpop.f32.mrb[0].mxu0
  %4440 = vdwg.mxu0
  %v4441 = vadd.f32 %v4154, %v4333
  %v4442 = vadd.f32 %v4155, %v4338
  %v4443 = vadd.f32 %v4156, %v4343
  %v4444 = vadd.f32 %v4157, %v4348
  %v4445 = vadd.f32 %v4158, %v4353
  %v4446 = vadd.f32 %v4159, %v4358
  %v4447 = vadd.f32 %v4160, %v4363
  %v4448 = vadd.f32 %v4161, %v4368
  %v4449 = vadd.f32 %v4162, %v4373
  %v4450 = vadd.f32 %v4163, %v4378
  %v4451 = vadd.f32 %v4164, %v4383
  %v4452 = vadd.f32 %v4165, %v4388
  %v4453 = vadd.f32 %v4166, %v4393
  %v4454 = vadd.f32 %v4167, %v4398
  %v4455 = vadd.f32 %v4168, %v4403
  %v4456 = vadd.f32 %v4169, %v4408
  %v4457 = vadd.f32 %v4170, %v4413
  %v4458 = vadd.f32 %v4171, %v4418
  %v4459 = vadd.f32 %v4172, %v4423
  %v4460 = vadd.f32 %v4173, %v4428
  %v4461 = vadd.f32 %v4174, %v4433
  %v4462 = vadd.f32 %v4175, %v4438
  %v4463 = vld [vmem:[#allocation2 + $0x52] sm:$0xff]
  %v4464 = vld [vmem:[#allocation2 + $0x5a] sm:$0xff]
  %v4465 = vld [vmem:[#allocation2 + $0x62] sm:$0xff]
  %v4466 = vld [vmem:[#allocation2 + $0x6a] sm:$0xff]
  %v4467 = vld [vmem:[#allocation2 + $0x72] sm:$0xff]
  %v4468 = vld [vmem:[#allocation2 + $0x7a] sm:$0xff]
  %v4469 = vld [vmem:[#allocation2 + $0x82] sm:$0xff]
  %v4470 = vld [vmem:[#allocation2 + $0x8a] sm:$0xff]
  %v4471 = vld [vmem:[#allocation2 + $0x92] sm:$0xff]
  %v4472 = vld [vmem:[#allocation2 + $0x9a] sm:$0xff]
  %v4473 = vld [vmem:[#allocation2 + $0xa2] sm:$0xff]
  %v4474 = vld [vmem:[#allocation2 + $0xaa] sm:$0xff]
  %v4475 = vld [vmem:[#allocation2 + $0xb2] sm:$0xff]
  %v4476 = vld [vmem:[#allocation2 + $0xba] sm:$0xff]
  %v4477 = vld [vmem:[#allocation2 + $0xc2] sm:$0xff]
  %v4478 = vld [vmem:[#allocation2 + $0xca] sm:$0xff]
  %v4479 = vld [vmem:[#allocation2 + $0xd2] sm:$0xff]
  %v4480 = vld [vmem:[#allocation2 + $0xda] sm:$0xff]
  %v4481 = vld [vmem:[#allocation2 + $0xe2] sm:$0xff]
  %v4482 = vld [vmem:[#allocation2 + $0xea] sm:$0xff]
  %v4483 = vld [vmem:[#allocation2 + $0xf2] sm:$0xff]
  %v4484 = vld [vmem:[#allocation2 + $0xfa] sm:$0xff]
  %v4485 = vld [vmem:[%s3 + $0xe0] sm:$0xff]
  %v4486 = vld [vmem:[%s3 + $0xe8] sm:$0xff]
  %v4488 = vsel %vm455, %v4463, 0
  %v4491 = vsel %vm455, %v4464, 0
  %v4494 = vsel %vm455, %v4465, 0
  %v4497 = vsel %vm455, %v4466, 0
  %v4500 = vsel %vm455, %v4467, 0
  %v4503 = vsel %vm455, %v4468, 0
  %v4506 = vsel %vm455, %v4469, 0
  %v4509 = vsel %vm455, %v4470, 0
  %v4512 = vsel %vm455, %v4471, 0
  %v4515 = vsel %vm455, %v4472, 0
  %v4518 = vsel %vm455, %v4473, 0
  %v4521 = vsel %vm455, %v4474, 0
  %v4524 = vsel %vm455, %v4475, 0
  %v4527 = vsel %vm455, %v4476, 0
  %v4530 = vsel %vm455, %v4477, 0
  %v4533 = vsel %vm455, %v4478, 0
  %v4536 = vsel %vm455, %v4479, 0
  %v4539 = vsel %vm455, %v4480, 0
  %v4542 = vsel %vm455, %v4481, 0
  %v4545 = vsel %vm455, %v4482, 0
  %v4548 = vsel %vm455, %v4483, 0
  %v4551 = vsel %vm455, %v4484, 0
  %4553 = vmatprep.subr.mxu0 0.0
  %4554 = vmatpush1.msra.mxu0 %v4485
  %4555 = vmatprep.subr.mxu0 0.0
  %4556 = vmatpush1.msra.mxu0 %v4486
  %4557 = vmatprep.subr.mxu0 0.0
  %4558 = vmatpush1.msra.mxu0 0.0
  %4559 = vmatprep.subr.mxu0 0.0
  %4560 = vmatpush1.msra.mxu0 0.0
  %4561 = vmatprep.subr.mxu0 0.0
  %4562 = vmatpush1.msra.mxu0 0.0
  %4563 = vmatprep.subr.mxu0 0.0
  %4564 = vmatpush1.msra.mxu0 0.0
  %4565 = vmatprep.subr.mxu0 0.0
  %4566 = vmatpush1.msra.mxu0 0.0
  %4567 = vmatprep.subr.mxu0 0.0
  %4568 = vmatpush1.msra.mxu0 0.0
  %4569 = vmatprep.subr.mxu0 0.0
  %4570 = vmatpush1.msra.mxu0 0.0
  %4571 = vmatprep.subr.mxu0 0.0
  %4572 = vmatpush1.msra.mxu0 0.0
  %4573 = vmatprep.subr.mxu0 0.0
  %4574 = vmatpush1.msra.mxu0 0.0
  %4575 = vmatprep.subr.mxu0 0.0
  %4576 = vmatpush1.msra.mxu0 0.0
  %4577 = vmatprep.subr.mxu0 0.0
  %4578 = vmatpush1.msra.mxu0 0.0
  %4579 = vmatprep.subr.mxu0 0.0
  %4580 = vmatpush1.msra.mxu0 0.0
  %4581 = vmatprep.subr.mxu0 0.0
  %4582 = vmatpush1.msra.mxu0 0.0
  %4583 = vmatprep.subr.mxu0 0.0
  %4584 = vmatpush1.msra.mxu0 0.0
  %4585 = vmatprep.subr.mxu0 0.0
  %4586 = vmatpush1.msra.mxu0 0.0
  %4587 = vmatprep.subr.mxu0 0.0
  %4588 = vmatpush1.msra.mxu0 0.0
  %4589 = vmatprep.subr.mxu0 0.0
  %4590 = vmatpush1.msra.mxu0 0.0
  %4591 = vmatprep.subr.mxu0 0.0
  %4592 = vmatpush1.msra.mxu0 0.0
  %4593 = vmatprep.subr.mxu0 0.0
  %4594 = vmatpush1.msra.mxu0 0.0
  %4595 = vmatprep.subr.mxu0 0.0
  %4596 = vmatpush1.msra.mxu0 0.0
  %4597 = vmatprep.subr.mxu0 0.0
  %4598 = vmatpush1.msra.mxu0 0.0
  %4599 = vmatprep.subr.mxu0 0.0
  %4600 = vmatpush1.msra.mxu0 0.0
  %4601 = vmatprep.subr.mxu0 0.0
  %4602 = vmatpush1.msra.mxu0 0.0
  %4603 = vmatprep.subr.mxu0 0.0
  %4604 = vmatpush1.msra.mxu0 0.0
  %4605 = vmatprep.subr.mxu0 0.0
  %4606 = vmatpush1.msra.mxu0 0.0
  %4607 = vmatprep.subr.mxu0 0.0
  %4608 = vmatpush1.msra.mxu0 0.0
  %4609 = vmatprep.subr.mxu0 0.0
  %4610 = vmatpush1.msra.mxu0 0.0
  %4611 = vmatprep.subr.mxu0 0.0
  %4612 = vmatpush1.msra.mxu0 0.0
  %4613 = vmatprep.subr.mxu0 0.0
  %4614 = vmatpush1.msra.mxu0 0.0
  %4615 = vmatprep.subr.mxu0 0.0
  %4616 = vmatpush1.msra.mxu0 0.0
  %4617 = vmatprep.mubr.f32.mxu0 0.0
  %4618 = vmatmul.mubr.f32.gmra.mrb[0].mxu0 %v4488
  %v4619 = vpop.f32.mrb[0].mxu0
  %v4620 = vadd.f32 0.0, %v4619
  %v4621 = vpop.f32.mrb[0].mxu0
  %4622 = vmatprep.mubr.f32.mxu0 0.0
  %4623 = vmatmul.mubr.f32.gmra.mrb[0].mxu0 %v4491
  %v4624 = vpop.f32.mrb[0].mxu0
  %v4625 = vadd.f32 0.0, %v4624
  %v4626 = vpop.f32.mrb[0].mxu0
  %4627 = vmatprep.mubr.f32.mxu0 0.0
  %4628 = vmatmul.mubr.f32.gmra.mrb[0].mxu0 %v4494
  %v4629 = vpop.f32.mrb[0].mxu0
  %v4630 = vadd.f32 0.0, %v4629
  %v4631 = vpop.f32.mrb[0].mxu0
  %4632 = vmatprep.mubr.f32.mxu0 0.0
  %4633 = vmatmul.mubr.f32.gmra.mrb[0].mxu0 %v4497
  %v4634 = vpop.f32.mrb[0].mxu0
  %v4635 = vadd.f32 0.0, %v4634
  %v4636 = vpop.f32.mrb[0].mxu0
  %4637 = vmatprep.mubr.f32.mxu0 0.0
  %4638 = vmatmul.mubr.f32.gmra.mrb[0].mxu0 %v4500
  %v4639 = vpop.f32.mrb[0].mxu0
  %v4640 = vadd.f32 0.0, %v4639
  %v4641 = vpop.f32.mrb[0].mxu0
  %4642 = vmatprep.mubr.f32.mxu0 0.0
  %4643 = vmatmul.mubr.f32.gmra.mrb[0].mxu0 %v4503
  %v4644 = vpop.f32.mrb[0].mxu0
  %v4645 = vadd.f32 0.0, %v4644
  %v4646 = vpop.f32.mrb[0].mxu0
  %4647 = vmatprep.mubr.f32.mxu0 0.0
  %4648 = vmatmul.mubr.f32.gmra.mrb[0].mxu0 %v4506
  %v4649 = vpop.f32.mrb[0].mxu0
  %v4650 = vadd.f32 0.0, %v4649
  %v4651 = vpop.f32.mrb[0].mxu0
  %4652 = vmatprep.mubr.f32.mxu0 0.0
  %4653 = vmatmul.mubr.f32.gmra.mrb[0].mxu0 %v4509
  %v4654 = vpop.f32.mrb[0].mxu0
  %v4655 = vadd.f32 0.0, %v4654
  %v4656 = vpop.f32.mrb[0].mxu0
  %4657 = vmatprep.mubr.f32.mxu0 0.0
  %4658 = vmatmul.mubr.f32.gmra.mrb[0].mxu0 %v4512
  %v4659 = vpop.f32.mrb[0].mxu0
  %v4660 = vadd.f32 0.0, %v4659
  %v4661 = vpop.f32.mrb[0].mxu0
  %4662 = vmatprep.mubr.f32.mxu0 0.0
  %4663 = vmatmul.mubr.f32.gmra.mrb[0].mxu0 %v4515
  %v4664 = vpop.f32.mrb[0].mxu0
  %v4665 = vadd.f32 0.0, %v4664
  %v4666 = vpop.f32.mrb[0].mxu0
  %4667 = vmatprep.mubr.f32.mxu0 0.0
  %4668 = vmatmul.mubr.f32.gmra.mrb[0].mxu0 %v4518
  %v4669 = vpop.f32.mrb[0].mxu0
  %v4670 = vadd.f32 0.0, %v4669
  %v4671 = vpop.f32.mrb[0].mxu0
  %4672 = vmatprep.mubr.f32.mxu0 0.0
  %4673 = vmatmul.mubr.f32.gmra.mrb[0].mxu0 %v4521
  %v4674 = vpop.f32.mrb[0].mxu0
  %v4675 = vadd.f32 0.0, %v4674
  %v4676 = vpop.f32.mrb[0].mxu0
  %4677 = vmatprep.mubr.f32.mxu0 0.0
  %4678 = vmatmul.mubr.f32.gmra.mrb[0].mxu0 %v4524
  %v4679 = vpop.f32.mrb[0].mxu0
  %v4680 = vadd.f32 0.0, %v4679
  %v4681 = vpop.f32.mrb[0].mxu0
  %4682 = vmatprep.mubr.f32.mxu0 0.0
  %4683 = vmatmul.mubr.f32.gmra.mrb[0].mxu0 %v4527
  %v4684 = vpop.f32.mrb[0].mxu0
  %v4685 = vadd.f32 0.0, %v4684
  %v4686 = vpop.f32.mrb[0].mxu0
  %4687 = vmatprep.mubr.f32.mxu0 0.0
  %4688 = vmatmul.mubr.f32.gmra.mrb[0].mxu0 %v4530
  %v4689 = vpop.f32.mrb[0].mxu0
  %v4690 = vadd.f32 0.0, %v4689
  %v4691 = vpop.f32.mrb[0].mxu0
  %4692 = vmatprep.mubr.f32.mxu0 0.0
  %4693 = vmatmul.mubr.f32.gmra.mrb[0].mxu0 %v4533
  %v4694 = vpop.f32.mrb[0].mxu0
  %v4695 = vadd.f32 0.0, %v4694
  %v4696 = vpop.f32.mrb[0].mxu0
  %4697 = vmatprep.mubr.f32.mxu0 0.0
  %4698 = vmatmul.mubr.f32.gmra.mrb[0].mxu0 %v4536
  %v4699 = vpop.f32.mrb[0].mxu0
  %v4700 = vadd.f32 0.0, %v4699
  %v4701 = vpop.f32.mrb[0].mxu0
  %4702 = vmatprep.mubr.f32.mxu0 0.0
  %4703 = vmatmul.mubr.f32.gmra.mrb[0].mxu0 %v4539
  %v4704 = vpop.f32.mrb[0].mxu0
  %v4705 = vadd.f32 0.0, %v4704
  %v4706 = vpop.f32.mrb[0].mxu0
  %4707 = vmatprep.mubr.f32.mxu0 0.0
  %4708 = vmatmul.mubr.f32.gmra.mrb[0].mxu0 %v4542
  %v4709 = vpop.f32.mrb[0].mxu0
  %v4710 = vadd.f32 0.0, %v4709
  %v4711 = vpop.f32.mrb[0].mxu0
  %4712 = vmatprep.mubr.f32.mxu0 0.0
  %4713 = vmatmul.mubr.f32.gmra.mrb[0].mxu0 %v4545
  %v4714 = vpop.f32.mrb[0].mxu0
  %v4715 = vadd.f32 0.0, %v4714
  %v4716 = vpop.f32.mrb[0].mxu0
  %4717 = vmatprep.mubr.f32.mxu0 0.0
  %4718 = vmatmul.mubr.f32.gmra.mrb[0].mxu0 %v4548
  %v4719 = vpop.f32.mrb[0].mxu0
  %v4720 = vadd.f32 0.0, %v4719
  %v4721 = vpop.f32.mrb[0].mxu0
  %4722 = vmatprep.mubr.f32.mxu0 0.0
  %4723 = vmatmul.mubr.f32.gmra.mrb[0].mxu0 %v4551
  %v4724 = vpop.f32.mrb[0].mxu0
  %v4725 = vadd.f32 0.0, %v4724
  %v4726 = vpop.f32.mrb[0].mxu0
  %4727 = vdwg.mxu0
  %v4728 = vadd.f32 %v4441, %v4620
  %v4729 = vadd.f32 %v4442, %v4625
  %v4730 = vadd.f32 %v4443, %v4630
  %v4731 = vadd.f32 %v4444, %v4635
  %v4732 = vadd.f32 %v4445, %v4640
  %v4733 = vadd.f32 %v4446, %v4645
  %v4734 = vadd.f32 %v4447, %v4650
  %v4735 = vadd.f32 %v4448, %v4655
  %v4736 = vadd.f32 %v4449, %v4660
  %v4737 = vadd.f32 %v4450, %v4665
  %v4738 = vadd.f32 %v4451, %v4670
  %v4739 = vadd.f32 %v4452, %v4675
  %v4740 = vadd.f32 %v4453, %v4680
  %v4741 = vadd.f32 %v4454, %v4685
  %v4742 = vadd.f32 %v4455, %v4690
  %v4743 = vadd.f32 %v4456, %v4695
  %v4744 = vadd.f32 %v4457, %v4700
  %v4745 = vadd.f32 %v4458, %v4705
  %v4746 = vadd.f32 %v4459, %v4710
  %v4747 = vadd.f32 %v4460, %v4715
  %v4748 = vadd.f32 %v4461, %v4720
  %v4749 = vadd.f32 %v4462, %v4725
  %v4750 = vld [vmem:[#allocation2 + $0x54] sm:$0xff]
  %v4751 = vld [vmem:[#allocation2 + $0x5c] sm:$0xff]
  %v4752 = vld [vmem:[#allocation2 + $0x64] sm:$0xff]
  %v4753 = vld [vmem:[#allocation2 + $0x6c] sm:$0xff]
  %v4754 = vld [vmem:[#allocation2 + $0x74] sm:$0xff]
  %v4755 = vld [vmem:[#allocation2 + $0x7c] sm:$0xff]
  %v4756 = vld [vmem:[#allocation2 + $0x84] sm:$0xff]
  %v4757 = vld [vmem:[#allocation2 + $0x8c] sm:$0xff]
  %v4758 = vld [vmem:[#allocation2 + $0x94] sm:$0xff]
  %v4759 = vld [vmem:[#allocation2 + $0x9c] sm:$0xff]
  %v4760 = vld [vmem:[#allocation2 + $0xa4] sm:$0xff]
  %v4761 = vld [vmem:[#allocation2 + $0xac] sm:$0xff]
  %v4762 = vld [vmem:[#allocation2 + $0xb4] sm:$0xff]
  %v4763 = vld [vmem:[#allocation2 + $0xbc] sm:$0xff]
  %v4764 = vld [vmem:[#allocation2 + $0xc4] sm:$0xff]
  %v4765 = vld [vmem:[#allocation2 + $0xcc] sm:$0xff]
  %v4766 = vld [vmem:[#allocation2 + $0xd4] sm:$0xff]
  %v4767 = vld [vmem:[#allocation2 + $0xdc] sm:$0xff]
  %v4768 = vld [vmem:[#allocation2 + $0xe4] sm:$0xff]
  %v4769 = vld [vmem:[#allocation2 + $0xec] sm:$0xff]
  %v4770 = vld [vmem:[#allocation2 + $0xf4] sm:$0xff]
  %v4771 = vld [vmem:[#allocation2 + $0xfc] sm:$0xff]
  %v4772 = vld [vmem:[%s3 + $0xf0] sm:$0xff]
  %v4773 = vld [vmem:[%s3 + $0xf8] sm:$0xff]
  %v4775 = vsel %vm455, %v4750, 0
  %v4778 = vsel %vm455, %v4751, 0
  %v4781 = vsel %vm455, %v4752, 0
  %v4784 = vsel %vm455, %v4753, 0
  %v4787 = vsel %vm455, %v4754, 0
  %v4790 = vsel %vm455, %v4755, 0
  %v4793 = vsel %vm455, %v4756, 0
  %v4796 = vsel %vm455, %v4757, 0
  %v4799 = vsel %vm455, %v4758, 0
  %v4802 = vsel %vm455, %v4759, 0
  %v4805 = vsel %vm455, %v4760, 0
  %v4808 = vsel %vm455, %v4761, 0
  %v4811 = vsel %vm455, %v4762, 0
  %v4814 = vsel %vm455, %v4763, 0
  %v4817 = vsel %vm455, %v4764, 0
  %v4820 = vsel %vm455, %v4765, 0
  %v4823 = vsel %vm455, %v4766, 0
  %v4826 = vsel %vm455, %v4767, 0
  %v4829 = vsel %vm455, %v4768, 0
  %v4832 = vsel %vm455, %v4769, 0
  %v4835 = vsel %vm455, %v4770, 0
  %v4838 = vsel %vm455, %v4771, 0
  %4840 = vmatprep.subr.mxu0 0.0
  %4841 = vmatpush1.msra.mxu0 %v4772
  %4842 = vmatprep.subr.mxu0 0.0
  %4843 = vmatpush1.msra.mxu0 %v4773
  %4844 = vmatprep.subr.mxu0 0.0
  %4845 = vmatpush1.msra.mxu0 0.0
  %4846 = vmatprep.subr.mxu0 0.0
  %4847 = vmatpush1.msra.mxu0 0.0
  %4848 = vmatprep.subr.mxu0 0.0
  %4849 = vmatpush1.msra.mxu0 0.0
  %4850 = vmatprep.subr.mxu0 0.0
  %4851 = vmatpush1.msra.mxu0 0.0
  %4852 = vmatprep.subr.mxu0 0.0
  %4853 = vmatpush1.msra.mxu0 0.0
  %4854 = vmatprep.subr.mxu0 0.0
  %4855 = vmatpush1.msra.mxu0 0.0
  %4856 = vmatprep.subr.mxu0 0.0
  %4857 = vmatpush1.msra.mxu0 0.0
  %4858 = vmatprep.subr.mxu0 0.0
  %4859 = vmatpush1.msra.mxu0 0.0
  %4860 = vmatprep.subr.mxu0 0.0
  %4861 = vmatpush1.msra.mxu0 0.0
  %4862 = vmatprep.subr.mxu0 0.0
  %4863 = vmatpush1.msra.mxu0 0.0
  %4864 = vmatprep.subr.mxu0 0.0
  %4865 = vmatpush1.msra.mxu0 0.0
  %4866 = vmatprep.subr.mxu0 0.0
  %4867 = vmatpush1.msra.mxu0 0.0
  %4868 = vmatprep.subr.mxu0 0.0
  %4869 = vmatpush1.msra.mxu0 0.0
  %4870 = vmatprep.subr.mxu0 0.0
  %4871 = vmatpush1.msra.mxu0 0.0
  %4872 = vmatprep.subr.mxu0 0.0
  %4873 = vmatpush1.msra.mxu0 0.0
  %4874 = vmatprep.subr.mxu0 0.0
  %4875 = vmatpush1.msra.mxu0 0.0
  %4876 = vmatprep.subr.mxu0 0.0
  %4877 = vmatpush1.msra.mxu0 0.0
  %4878 = vmatprep.subr.mxu0 0.0
  %4879 = vmatpush1.msra.mxu0 0.0
  %4880 = vmatprep.subr.mxu0 0.0
  %4881 = vmatpush1.msra.mxu0 0.0
  %4882 = vmatprep.subr.mxu0 0.0
  %4883 = vmatpush1.msra.mxu0 0.0
  %4884 = vmatprep.subr.mxu0 0.0
  %4885 = vmatpush1.msra.mxu0 0.0
  %4886 = vmatprep.subr.mxu0 0.0
  %4887 = vmatpush1.msra.mxu0 0.0
  %4888 = vmatprep.subr.mxu0 0.0
  %4889 = vmatpush1.msra.mxu0 0.0
  %4890 = vmatprep.subr.mxu0 0.0
  %4891 = vmatpush1.msra.mxu0 0.0
  %4892 = vmatprep.subr.mxu0 0.0
  %4893 = vmatpush1.msra.mxu0 0.0
  %4894 = vmatprep.subr.mxu0 0.0
  %4895 = vmatpush1.msra.mxu0 0.0
  %4896 = vmatprep.subr.mxu0 0.0
  %4897 = vmatpush1.msra.mxu0 0.0
  %4898 = vmatprep.subr.mxu0 0.0
  %4899 = vmatpush1.msra.mxu0 0.0
  %4900 = vmatprep.subr.mxu0 0.0
  %4901 = vmatpush1.msra.mxu0 0.0
  %4902 = vmatprep.subr.mxu0 0.0
  %4903 = vmatpush1.msra.mxu0 0.0
  %4904 = vmatprep.mubr.f32.mxu0 0.0
  %4905 = vmatmul.mubr.f32.gmra.mrb[0].mxu0 %v4775
  %v4906 = vpop.f32.mrb[0].mxu0
  %v4907 = vadd.f32 0.0, %v4906
  %v4908 = vpop.f32.mrb[0].mxu0
  %4909 = vmatprep.mubr.f32.mxu0 0.0
  %4910 = vmatmul.mubr.f32.gmra.mrb[0].mxu0 %v4778
  %v4911 = vpop.f32.mrb[0].mxu0
  %v4912 = vadd.f32 0.0, %v4911
  %v4913 = vpop.f32.mrb[0].mxu0
  %4914 = vmatprep.mubr.f32.mxu0 0.0
  %4915 = vmatmul.mubr.f32.gmra.mrb[0].mxu0 %v4781
  %v4916 = vpop.f32.mrb[0].mxu0
  %v4917 = vadd.f32 0.0, %v4916
  %v4918 = vpop.f32.mrb[0].mxu0
  %4919 = vmatprep.mubr.f32.mxu0 0.0
  %4920 = vmatmul.mubr.f32.gmra.mrb[0].mxu0 %v4784
  %v4921 = vpop.f32.mrb[0].mxu0
  %v4922 = vadd.f32 0.0, %v4921
  %v4923 = vpop.f32.mrb[0].mxu0
  %4924 = vmatprep.mubr.f32.mxu0 0.0
  %4925 = vmatmul.mubr.f32.gmra.mrb[0].mxu0 %v4787
  %v4926 = vpop.f32.mrb[0].mxu0
  %v4927 = vadd.f32 0.0, %v4926
  %v4928 = vpop.f32.mrb[0].mxu0
  %4929 = vmatprep.mubr.f32.mxu0 0.0
  %4930 = vmatmul.mubr.f32.gmra.mrb[0].mxu0 %v4790
  %v4931 = vpop.f32.mrb[0].mxu0
  %v4932 = vadd.f32 0.0, %v4931
  %v4933 = vpop.f32.mrb[0].mxu0
  %4934 = vmatprep.mubr.f32.mxu0 0.0
  %4935 = vmatmul.mubr.f32.gmra.mrb[0].mxu0 %v4793
  %v4936 = vpop.f32.mrb[0].mxu0
  %v4937 = vadd.f32 0.0, %v4936
  %v4938 = vpop.f32.mrb[0].mxu0
  %4939 = vmatprep.mubr.f32.mxu0 0.0
  %4940 = vmatmul.mubr.f32.gmra.mrb[0].mxu0 %v4796
  %v4941 = vpop.f32.mrb[0].mxu0
  %v4942 = vadd.f32 0.0, %v4941
  %v4943 = vpop.f32.mrb[0].mxu0
  %4944 = vmatprep.mubr.f32.mxu0 0.0
  %4945 = vmatmul.mubr.f32.gmra.mrb[0].mxu0 %v4799
  %v4946 = vpop.f32.mrb[0].mxu0
  %v4947 = vadd.f32 0.0, %v4946
  %v4948 = vpop.f32.mrb[0].mxu0
  %4949 = vmatprep.mubr.f32.mxu0 0.0
  %4950 = vmatmul.mubr.f32.gmra.mrb[0].mxu0 %v4802
  %v4951 = vpop.f32.mrb[0].mxu0
  %v4952 = vadd.f32 0.0, %v4951
  %v4953 = vpop.f32.mrb[0].mxu0
  %4954 = vmatprep.mubr.f32.mxu0 0.0
  %4955 = vmatmul.mubr.f32.gmra.mrb[0].mxu0 %v4805
  %v4956 = vpop.f32.mrb[0].mxu0
  %v4957 = vadd.f32 0.0, %v4956
  %v4958 = vpop.f32.mrb[0].mxu0
  %4959 = vmatprep.mubr.f32.mxu0 0.0
  %4960 = vmatmul.mubr.f32.gmra.mrb[0].mxu0 %v4808
  %v4961 = vpop.f32.mrb[0].mxu0
  %v4962 = vadd.f32 0.0, %v4961
  %v4963 = vpop.f32.mrb[0].mxu0
  %4964 = vmatprep.mubr.f32.mxu0 0.0
  %4965 = vmatmul.mubr.f32.gmra.mrb[0].mxu0 %v4811
  %v4966 = vpop.f32.mrb[0].mxu0
  %v4967 = vadd.f32 0.0, %v4966
  %v4968 = vpop.f32.mrb[0].mxu0
  %4969 = vmatprep.mubr.f32.mxu0 0.0
  %4970 = vmatmul.mubr.f32.gmra.mrb[0].mxu0 %v4814
  %v4971 = vpop.f32.mrb[0].mxu0
  %v4972 = vadd.f32 0.0, %v4971
  %v4973 = vpop.f32.mrb[0].mxu0
  %4974 = vmatprep.mubr.f32.mxu0 0.0
  %4975 = vmatmul.mubr.f32.gmra.mrb[0].mxu0 %v4817
  %v4976 = vpop.f32.mrb[0].mxu0
  %v4977 = vadd.f32 0.0, %v4976
  %v4978 = vpop.f32.mrb[0].mxu0
  %4979 = vmatprep.mubr.f32.mxu0 0.0
  %4980 = vmatmul.mubr.f32.gmra.mrb[0].mxu0 %v4820
  %v4981 = vpop.f32.mrb[0].mxu0
  %v4982 = vadd.f32 0.0, %v4981
  %v4983 = vpop.f32.mrb[0].mxu0
  %4984 = vmatprep.mubr.f32.mxu0 0.0
  %4985 = vmatmul.mubr.f32.gmra.mrb[0].mxu0 %v4823
  %v4986 = vpop.f32.mrb[0].mxu0
  %v4987 = vadd.f32 0.0, %v4986
  %v4988 = vpop.f32.mrb[0].mxu0
  %4989 = vmatprep.mubr.f32.mxu0 0.0
  %4990 = vmatmul.mubr.f32.gmra.mrb[0].mxu0 %v4826
  %v4991 = vpop.f32.mrb[0].mxu0
  %v4992 = vadd.f32 0.0, %v4991
  %v4993 = vpop.f32.mrb[0].mxu0
  %4994 = vmatprep.mubr.f32.mxu0 0.0
  %4995 = vmatmul.mubr.f32.gmra.mrb[0].mxu0 %v4829
  %v4996 = vpop.f32.mrb[0].mxu0
  %v4997 = vadd.f32 0.0, %v4996
  %v4998 = vpop.f32.mrb[0].mxu0
  %4999 = vmatprep.mubr.f32.mxu0 0.0
  %5000 = vmatmul.mubr.f32.gmra.mrb[0].mxu0 %v4832
  %v5001 = vpop.f32.mrb[0].mxu0
  %v5002 = vadd.f32 0.0, %v5001
  %v5003 = vpop.f32.mrb[0].mxu0
  %5004 = vmatprep.mubr.f32.mxu0 0.0
  %5005 = vmatmul.mubr.f32.gmra.mrb[0].mxu0 %v4835
  %v5006 = vpop.f32.mrb[0].mxu0
  %v5007 = vadd.f32 0.0, %v5006
  %v5008 = vpop.f32.mrb[0].mxu0
  %5009 = vmatprep.mubr.f32.mxu0 0.0
  %5010 = vmatmul.mubr.f32.gmra.mrb[0].mxu0 %v4838
  %v5011 = vpop.f32.mrb[0].mxu0
  %v5012 = vadd.f32 0.0, %v5011
  %v5013 = vpop.f32.mrb[0].mxu0
  %5014 = vdwg.mxu0
  %v5015 = vadd.f32 %v4728, %v4907
  %v5016 = vadd.f32 %v4729, %v4912
  %v5017 = vadd.f32 %v4730, %v4917
  %v5018 = vadd.f32 %v4731, %v4922
  %v5019 = vadd.f32 %v4732, %v4927
  %v5020 = vadd.f32 %v4733, %v4932
  %v5021 = vadd.f32 %v4734, %v4937
  %v5022 = vadd.f32 %v4735, %v4942
  %v5023 = vadd.f32 %v4736, %v4947
  %v5024 = vadd.f32 %v4737, %v4952
  %v5025 = vadd.f32 %v4738, %v4957
  %v5026 = vadd.f32 %v4739, %v4962
  %v5027 = vadd.f32 %v4740, %v4967
  %v5028 = vadd.f32 %v4741, %v4972
  %v5029 = vadd.f32 %v4742, %v4977
  %v5030 = vadd.f32 %v4743, %v4982
  %v5031 = vadd.f32 %v4744, %v4987
  %v5032 = vadd.f32 %v4745, %v4992
  %v5033 = vadd.f32 %v4746, %v4997
  %v5034 = vadd.f32 %v4747, %v5002
  %v5035 = vadd.f32 %v4748, %v5007
  %v5036 = vadd.f32 %v4749, %v5012
  %v5037 = vld [vmem:[%s4] sm:$0x1]
  %v5039 = vlaneseq
  %v5040 = vshrl.u32 %v5039, 7
  %v5041 = vsub.s32 0, %v5040
  %v5042 = vrot.slane %v5037, %v5041
  %v5044 = vadd.f32 %v5015, %v5042
  %v5045 = vadd.f32 %v5016, %v5042
  %v5046 = vadd.f32 %v5017, %v5042
  %v5047 = vadd.f32 %v5018, %v5042
  %v5048 = vadd.f32 %v5019, %v5042
  %v5049 = vadd.f32 %v5020, %v5042
  %v5050 = vadd.f32 %v5021, %v5042
  %v5051 = vadd.f32 %v5022, %v5042
  %v5052 = vadd.f32 %v5023, %v5042
  %v5053 = vadd.f32 %v5024, %v5042
  %v5054 = vadd.f32 %v5025, %v5042
  %v5055 = vadd.f32 %v5026, %v5042
  %v5056 = vadd.f32 %v5027, %v5042
  %v5057 = vadd.f32 %v5028, %v5042
  %v5058 = vadd.f32 %v5029, %v5042
  %v5059 = vadd.f32 %v5030, %v5042
  %v5060 = vadd.f32 %v5031, %v5042
  %v5061 = vadd.f32 %v5032, %v5042
  %v5062 = vadd.f32 %v5033, %v5042
  %v5063 = vadd.f32 %v5034, %v5042
  %v5064 = vadd.f32 %v5035, %v5042
  %v5065 = vadd.f32 %v5036, %v5042
  %v5066 = vmax.f32 %v5044, 0.0
  %v5067 = vmax.f32 %v5045, 0.0
  %v5068 = vmax.f32 %v5046, 0.0
  %v5069 = vmax.f32 %v5047, 0.0
  %v5070 = vmax.f32 %v5048, 0.0
  %v5071 = vmax.f32 %v5049, 0.0
  %v5072 = vmax.f32 %v5050, 0.0
  %v5073 = vmax.f32 %v5051, 0.0
  %v5074 = vmax.f32 %v5052, 0.0
  %v5075 = vmax.f32 %v5053, 0.0
  %v5076 = vmax.f32 %v5054, 0.0
  %v5077 = vmax.f32 %v5055, 0.0
  %v5078 = vmax.f32 %v5056, 0.0
  %v5079 = vmax.f32 %v5057, 0.0
  %v5080 = vmax.f32 %v5058, 0.0
  %v5081 = vmax.f32 %v5059, 0.0
  %v5082 = vmax.f32 %v5060, 0.0
  %v5083 = vmax.f32 %v5061, 0.0
  %v5084 = vmax.f32 %v5062, 0.0
  %v5085 = vmax.f32 %v5063, 0.0
  %v5086 = vmax.f32 %v5064, 0.0
  %v5087 = vmax.f32 %v5065, 0.0
  %vm5088 = vcmask 261120
  %5089 = vst.msk [vmem:[#allocation3] sm:$0xff] %vm5088, %v5066
  %5090 = vst.msk [vmem:[#allocation3 + $0x8] sm:$0xff] %vm5088, %v5067
  %5091 = vst.msk [vmem:[#allocation3 + $0x10] sm:$0xff] %vm5088, %v5068
  %5092 = vst.msk [vmem:[#allocation3 + $0x18] sm:$0xff] %vm5088, %v5069
  %5093 = vst.msk [vmem:[#allocation3 + $0x20] sm:$0xff] %vm5088, %v5070
  %5094 = vst.msk [vmem:[#allocation3 + $0x28] sm:$0xff] %vm5088, %v5071
  %5095 = vst.msk [vmem:[#allocation3 + $0x30] sm:$0xff] %vm5088, %v5072
  %5096 = vst.msk [vmem:[#allocation3 + $0x38] sm:$0xff] %vm5088, %v5073
  %5097 = vst.msk [vmem:[#allocation3 + $0x40] sm:$0xff] %vm5088, %v5074
  %5098 = vst.msk [vmem:[#allocation3 + $0x48] sm:$0xff] %vm5088, %v5075
  %5099 = vst.msk [vmem:[#allocation3 + $0x50] sm:$0xff] %vm5088, %v5076
  %5100 = vst.msk [vmem:[#allocation3 + $0x58] sm:$0xff] %vm5088, %v5077
  %5101 = vst.msk [vmem:[#allocation3 + $0x60] sm:$0xff] %vm5088, %v5078
  %5102 = vst.msk [vmem:[#allocation3 + $0x68] sm:$0xff] %vm5088, %v5079
  %5103 = vst.msk [vmem:[#allocation3 + $0x70] sm:$0xff] %vm5088, %v5080
  %5104 = vst.msk [vmem:[#allocation3 + $0x78] sm:$0xff] %vm5088, %v5081
  %5105 = vst.msk [vmem:[#allocation3 + $0x80] sm:$0xff] %vm5088, %v5082
  %5106 = vst.msk [vmem:[#allocation3 + $0x88] sm:$0xff] %vm5088, %v5083
  %5107 = vst.msk [vmem:[#allocation3 + $0x90] sm:$0xff] %vm5088, %v5084
  %5108 = vst.msk [vmem:[#allocation3 + $0x98] sm:$0xff] %vm5088, %v5085
  %5109 = vst.msk [vmem:[#allocation3 + $0xa0] sm:$0xff] %vm5088, %v5086
  %5110 = vst.msk [vmem:[#allocation3 + $0xa8] sm:$0xff] %vm5088, %v5087
  %v5111 = vld [vmem:[#allocation3] sm:$0xff]
  %v5112 = vld [vmem:[%s5] sm:$0xff]
  %v5113 = vld [vmem:[%s5 + $0x8] sm:$0xff]
  %v5114 = vld [vmem:[%s5 + $0x10] sm:$0xff]
  %v5115 = vld [vmem:[%s5 + $0x18] sm:$0xff]
  %v5116 = vld [vmem:[#allocation3 + $0x4] sm:$0xff]
  %v5117 = vld [vmem:[%s5 + $0x20] sm:$0xff]
  %v5118 = vld [vmem:[%s5 + $0x28] sm:$0xff]
  %v5119 = vld [vmem:[%s5 + $0x30] sm:$0xff]
  %v5120 = vld [vmem:[%s5 + $0x38] sm:$0xff]
  %v5122 = vsel %vm5088, %v5116, 0
  %5124 = vmatprep.subr.mxu0 0.0
  %5125 = vmatpush1.msra.mxu0 %v5117
  %5126 = vmatprep.subr.mxu0 0.0
  %5127 = vmatpush1.msra.mxu0 %v5118
  %5128 = vmatprep.subr.mxu0 0.0
  %5129 = vmatpush1.msra.mxu0 %v5119
  %5130 = vmatprep.subr.mxu0 0.0
  %5131 = vmatpush1.msra.mxu0 %v5120
  %5132 = vmatprep.subr.mxu0 0.0
  %5133 = vmatpush1.msra.mxu0 0.0
  %5134 = vmatprep.subr.mxu0 0.0
  %5135 = vmatpush1.msra.mxu0 0.0
  %5136 = vmatprep.subr.mxu0 0.0
  %5137 = vmatpush1.msra.mxu0 0.0
  %5138 = vmatprep.subr.mxu0 0.0
  %5139 = vmatpush1.msra.mxu0 0.0
  %5140 = vmatprep.subr.mxu0 0.0
  %5141 = vmatpush1.msra.mxu0 0.0
  %5142 = vmatprep.subr.mxu0 0.0
  %5143 = vmatpush1.msra.mxu0 0.0
  %5144 = vmatprep.subr.mxu0 0.0
  %5145 = vmatpush1.msra.mxu0 0.0
  %5146 = vmatprep.subr.mxu0 0.0
  %5147 = vmatpush1.msra.mxu0 0.0
  %5148 = vmatprep.subr.mxu0 0.0
  %5149 = vmatpush1.msra.mxu0 0.0
  %5150 = vmatprep.subr.mxu0 0.0
  %5151 = vmatpush1.msra.mxu0 0.0
  %5152 = vmatprep.subr.mxu0 0.0
  %5153 = vmatpush1.msra.mxu0 0.0
  %5154 = vmatprep.subr.mxu0 0.0
  %5155 = vmatpush1.msra.mxu0 0.0
  %5156 = vmatprep.subr.mxu0 0.0
  %5157 = vmatpush1.msra.mxu0 0.0
  %5158 = vmatprep.subr.mxu0 0.0
  %5159 = vmatpush1.msra.mxu0 0.0
  %5160 = vmatprep.subr.mxu0 0.0
  %5161 = vmatpush1.msra.mxu0 0.0
  %5162 = vmatprep.subr.mxu0 0.0
  %5163 = vmatpush1.msra.mxu0 0.0
  %5164 = vmatprep.subr.mxu0 0.0
  %5165 = vmatpush1.msra.mxu0 0.0
  %5166 = vmatprep.subr.mxu0 0.0
  %5167 = vmatpush1.msra.mxu0 0.0
  %5168 = vmatprep.subr.mxu0 0.0
  %5169 = vmatpush1.msra.mxu0 0.0
  %5170 = vmatprep.subr.mxu0 0.0
  %5171 = vmatpush1.msra.mxu0 0.0
  %5172 = vmatprep.subr.mxu0 0.0
  %5173 = vmatpush1.msra.mxu0 0.0
  %5174 = vmatprep.subr.mxu0 0.0
  %5175 = vmatpush1.msra.mxu0 0.0
  %5176 = vmatprep.subr.mxu0 0.0
  %5177 = vmatpush1.msra.mxu0 0.0
  %5178 = vmatprep.subr.mxu0 0.0
  %5179 = vmatpush1.msra.mxu0 0.0
  %5180 = vmatprep.subr.mxu0 0.0
  %5181 = vmatpush1.msra.mxu0 0.0
  %5182 = vmatprep.subr.mxu0 0.0
  %5183 = vmatpush1.msra.mxu0 0.0
  %5184 = vmatprep.subr.mxu0 0.0
  %5185 = vmatpush1.msra.mxu0 0.0
  %5186 = vmatprep.subr.mxu0 0.0
  %5187 = vmatpush1.msra.mxu0 0.0
  %5188 = vmatprep.mubr.f32.mxu0 0.0
  %5189 = vmatmul.mubr.f32.gmra.mrb[0].mxu0 %v5122
  %v5190 = vpop.f32.mrb[0].mxu0
  %v5191 = vadd.f32 0.0, %v5190
  %v5192 = vpop.f32.mrb[0].mxu0
  %5193 = vdwg.mxu0
  %v5195 = vsel %vm5088, %v5111, 0
  %5197 = vmatprep.subr.mxu0 0.0
  %5198 = vmatpush1.msra.mxu0 %v5112
  %5199 = vmatprep.subr.mxu0 0.0
  %5200 = vmatpush1.msra.mxu0 %v5113
  %5201 = vmatprep.subr.mxu0 0.0
  %5202 = vmatpush1.msra.mxu0 %v5114
  %5203 = vmatprep.subr.mxu0 0.0
  %5204 = vmatpush1.msra.mxu0 %v5115
  %5205 = vmatprep.subr.mxu0 0.0
  %5206 = vmatpush1.msra.mxu0 0.0
  %5207 = vmatprep.subr.mxu0 0.0
  %5208 = vmatpush1.msra.mxu0 0.0
  %5209 = vmatprep.subr.mxu0 0.0
  %5210 = vmatpush1.msra.mxu0 0.0
  %5211 = vmatprep.subr.mxu0 0.0
  %5212 = vmatpush1.msra.mxu0 0.0
  %5213 = vmatprep.subr.mxu0 0.0
  %5214 = vmatpush1.msra.mxu0 0.0
  %5215 = vmatprep.subr.mxu0 0.0
  %5216 = vmatpush1.msra.mxu0 0.0
  %5217 = vmatprep.subr.mxu0 0.0
  %5218 = vmatpush1.msra.mxu0 0.0
  %5219 = vmatprep.subr.mxu0 0.0
  %5220 = vmatpush1.msra.mxu0 0.0
  %5221 = vmatprep.subr.mxu0 0.0
  %5222 = vmatpush1.msra.mxu0 0.0
  %5223 = vmatprep.subr.mxu0 0.0
  %5224 = vmatpush1.msra.mxu0 0.0
  %5225 = vmatprep.subr.mxu0 0.0
  %5226 = vmatpush1.msra.mxu0 0.0
  %5227 = vmatprep.subr.mxu0 0.0
  %5228 = vmatpush1.msra.mxu0 0.0
  %5229 = vmatprep.subr.mxu0 0.0
  %5230 = vmatpush1.msra.mxu0 0.0
  %5231 = vmatprep.subr.mxu0 0.0
  %5232 = vmatpush1.msra.mxu0 0.0
  %5233 = vmatprep.subr.mxu0 0.0
  %5234 = vmatpush1.msra.mxu0 0.0
  %5235 = vmatprep.subr.mxu0 0.0
  %5236 = vmatpush1.msra.mxu0 0.0
  %5237 = vmatprep.subr.mxu0 0.0
  %5238 = vmatpush1.msra.mxu0 0.0
  %5239 = vmatprep.subr.mxu0 0.0
  %5240 = vmatpush1.msra.mxu0 0.0
  %5241 = vmatprep.subr.mxu0 0.0
  %5242 = vmatpush1.msra.mxu0 0.0
  %5243 = vmatprep.subr.mxu0 0.0
  %5244 = vmatpush1.msra.mxu0 0.0
  %5245 = vmatprep.subr.mxu0 0.0
  %5246 = vmatpush1.msra.mxu0 0.0
  %5247 = vmatprep.subr.mxu0 0.0
  %5248 = vmatpush1.msra.mxu0 0.0
  %5249 = vmatprep.subr.mxu0 0.0
  %5250 = vmatpush1.msra.mxu0 0.0
  %5251 = vmatprep.subr.mxu0 0.0
  %5252 = vmatpush1.msra.mxu0 0.0
  %5253 = vmatprep.subr.mxu0 0.0
  %5254 = vmatpush1.msra.mxu0 0.0
  %5255 = vmatprep.subr.mxu0 0.0
  %5256 = vmatpush1.msra.mxu0 0.0
  %5257 = vmatprep.subr.mxu0 0.0
  %5258 = vmatpush1.msra.mxu0 0.0
  %5259 = vmatprep.subr.mxu0 0.0
  %5260 = vmatpush1.msra.mxu0 0.0
  %5261 = vmatprep.mubr.f32.mxu0 0.0
  %5262 = vmatmul.mubr.f32.gmra.mrb[0].mxu0 %v5195
  %v5263 = vpop.f32.mrb[0].mxu0
  %v5264 = vadd.f32 %v5191, %v5263
  %v5265 = vpop.f32.mrb[0].mxu0
  %5266 = vdwg.mxu0
  %v5267 = vld [vmem:[#allocation3 + $0x8] sm:$0xff]
  %v5268 = vld [vmem:[%s5 + $0x40] sm:$0xff]
  %v5269 = vld [vmem:[%s5 + $0x48] sm:$0xff]
  %v5270 = vld [vmem:[%s5 + $0x50] sm:$0xff]
  %v5271 = vld [vmem:[%s5 + $0x58] sm:$0xff]
  %v5273 = vsel %vm5088, %v5267, 0
  %5275 = vmatprep.subr.mxu0 0.0
  %5276 = vmatpush1.msra.mxu0 %v5268
  %5277 = vmatprep.subr.mxu0 0.0
  %5278 = vmatpush1.msra.mxu0 %v5269
  %5279 = vmatprep.subr.mxu0 0.0
  %5280 = vmatpush1.msra.mxu0 %v5270
  %5281 = vmatprep.subr.mxu0 0.0
  %5282 = vmatpush1.msra.mxu0 %v5271
  %5283 = vmatprep.subr.mxu0 0.0
  %5284 = vmatpush1.msra.mxu0 0.0
  %5285 = vmatprep.subr.mxu0 0.0
  %5286 = vmatpush1.msra.mxu0 0.0
  %5287 = vmatprep.subr.mxu0 0.0
  %5288 = vmatpush1.msra.mxu0 0.0
  %5289 = vmatprep.subr.mxu0 0.0
  %5290 = vmatpush1.msra.mxu0 0.0
  %5291 = vmatprep.subr.mxu0 0.0
  %5292 = vmatpush1.msra.mxu0 0.0
  %5293 = vmatprep.subr.mxu0 0.0
  %5294 = vmatpush1.msra.mxu0 0.0
  %5295 = vmatprep.subr.mxu0 0.0
  %5296 = vmatpush1.msra.mxu0 0.0
  %5297 = vmatprep.subr.mxu0 0.0
  %5298 = vmatpush1.msra.mxu0 0.0
  %5299 = vmatprep.subr.mxu0 0.0
  %5300 = vmatpush1.msra.mxu0 0.0
  %5301 = vmatprep.subr.mxu0 0.0
  %5302 = vmatpush1.msra.mxu0 0.0
  %5303 = vmatprep.subr.mxu0 0.0
  %5304 = vmatpush1.msra.mxu0 0.0
  %5305 = vmatprep.subr.mxu0 0.0
  %5306 = vmatpush1.msra.mxu0 0.0
  %5307 = vmatprep.subr.mxu0 0.0
  %5308 = vmatpush1.msra.mxu0 0.0
  %5309 = vmatprep.subr.mxu0 0.0
  %5310 = vmatpush1.msra.mxu0 0.0
  %5311 = vmatprep.subr.mxu0 0.0
  %5312 = vmatpush1.msra.mxu0 0.0
  %5313 = vmatprep.subr.mxu0 0.0
  %5314 = vmatpush1.msra.mxu0 0.0
  %5315 = vmatprep.subr.mxu0 0.0
  %5316 = vmatpush1.msra.mxu0 0.0
  %5317 = vmatprep.subr.mxu0 0.0
  %5318 = vmatpush1.msra.mxu0 0.0
  %5319 = vmatprep.subr.mxu0 0.0
  %5320 = vmatpush1.msra.mxu0 0.0
  %5321 = vmatprep.subr.mxu0 0.0
  %5322 = vmatpush1.msra.mxu0 0.0
  %5323 = vmatprep.subr.mxu0 0.0
  %5324 = vmatpush1.msra.mxu0 0.0
  %5325 = vmatprep.subr.mxu0 0.0
  %5326 = vmatpush1.msra.mxu0 0.0
  %5327 = vmatprep.subr.mxu0 0.0
  %5328 = vmatpush1.msra.mxu0 0.0
  %5329 = vmatprep.subr.mxu0 0.0
  %5330 = vmatpush1.msra.mxu0 0.0
  %5331 = vmatprep.subr.mxu0 0.0
  %5332 = vmatpush1.msra.mxu0 0.0
  %5333 = vmatprep.subr.mxu0 0.0
  %5334 = vmatpush1.msra.mxu0 0.0
  %5335 = vmatprep.subr.mxu0 0.0
  %5336 = vmatpush1.msra.mxu0 0.0
  %5337 = vmatprep.subr.mxu0 0.0
  %5338 = vmatpush1.msra.mxu0 0.0
  %5339 = vmatprep.mubr.f32.mxu0 0.0
  %5340 = vmatmul.mubr.f32.gmra.mrb[0].mxu0 %v5273
  %v5341 = vpop.f32.mrb[0].mxu0
  %v5342 = vadd.f32 0.0, %v5341
  %v5343 = vpop.f32.mrb[0].mxu0
  %5344 = vdwg.mxu0
  %v5345 = vadd.f32 %v5264, %v5342
  %v5346 = vld [vmem:[#allocation3 + $0xc] sm:$0xff]
  %v5347 = vld [vmem:[%s5 + $0x60] sm:$0xff]
  %v5348 = vld [vmem:[%s5 + $0x68] sm:$0xff]
  %v5349 = vld [vmem:[%s5 + $0x70] sm:$0xff]
  %v5350 = vld [vmem:[%s5 + $0x78] sm:$0xff]
  %v5352 = vsel %vm5088, %v5346, 0
  %5354 = vmatprep.subr.mxu0 0.0
  %5355 = vmatpush1.msra.mxu0 %v5347
  %5356 = vmatprep.subr.mxu0 0.0
  %5357 = vmatpush1.msra.mxu0 %v5348
  %5358 = vmatprep.subr.mxu0 0.0
  %5359 = vmatpush1.msra.mxu0 %v5349
  %5360 = vmatprep.subr.mxu0 0.0
  %5361 = vmatpush1.msra.mxu0 %v5350
  %5362 = vmatprep.subr.mxu0 0.0
  %5363 = vmatpush1.msra.mxu0 0.0
  %5364 = vmatprep.subr.mxu0 0.0
  %5365 = vmatpush1.msra.mxu0 0.0
  %5366 = vmatprep.subr.mxu0 0.0
  %5367 = vmatpush1.msra.mxu0 0.0
  %5368 = vmatprep.subr.mxu0 0.0
  %5369 = vmatpush1.msra.mxu0 0.0
  %5370 = vmatprep.subr.mxu0 0.0
  %5371 = vmatpush1.msra.mxu0 0.0
  %5372 = vmatprep.subr.mxu0 0.0
  %5373 = vmatpush1.msra.mxu0 0.0
  %5374 = vmatprep.subr.mxu0 0.0
  %5375 = vmatpush1.msra.mxu0 0.0
  %5376 = vmatprep.subr.mxu0 0.0
  %5377 = vmatpush1.msra.mxu0 0.0
  %5378 = vmatprep.subr.mxu0 0.0
  %5379 = vmatpush1.msra.mxu0 0.0
  %5380 = vmatprep.subr.mxu0 0.0
  %5381 = vmatpush1.msra.mxu0 0.0
  %5382 = vmatprep.subr.mxu0 0.0
  %5383 = vmatpush1.msra.mxu0 0.0
  %5384 = vmatprep.subr.mxu0 0.0
  %5385 = vmatpush1.msra.mxu0 0.0
  %5386 = vmatprep.subr.mxu0 0.0
  %5387 = vmatpush1.msra.mxu0 0.0
  %5388 = vmatprep.subr.mxu0 0.0
  %5389 = vmatpush1.msra.mxu0 0.0
  %5390 = vmatprep.subr.mxu0 0.0
  %5391 = vmatpush1.msra.mxu0 0.0
  %5392 = vmatprep.subr.mxu0 0.0
  %5393 = vmatpush1.msra.mxu0 0.0
  %5394 = vmatprep.subr.mxu0 0.0
  %5395 = vmatpush1.msra.mxu0 0.0
  %5396 = vmatprep.subr.mxu0 0.0
  %5397 = vmatpush1.msra.mxu0 0.0
  %5398 = vmatprep.subr.mxu0 0.0
  %5399 = vmatpush1.msra.mxu0 0.0
  %5400 = vmatprep.subr.mxu0 0.0
  %5401 = vmatpush1.msra.mxu0 0.0
  %5402 = vmatprep.subr.mxu0 0.0
  %5403 = vmatpush1.msra.mxu0 0.0
  %5404 = vmatprep.subr.mxu0 0.0
  %5405 = vmatpush1.msra.mxu0 0.0
  %5406 = vmatprep.subr.mxu0 0.0
  %5407 = vmatpush1.msra.mxu0 0.0
  %5408 = vmatprep.subr.mxu0 0.0
  %5409 = vmatpush1.msra.mxu0 0.0
  %5410 = vmatprep.subr.mxu0 0.0
  %5411 = vmatpush1.msra.mxu0 0.0
  %5412 = vmatprep.subr.mxu0 0.0
  %5413 = vmatpush1.msra.mxu0 0.0
  %5414 = vmatprep.subr.mxu0 0.0
  %5415 = vmatpush1.msra.mxu0 0.0
  %5416 = vmatprep.subr.mxu0 0.0
  %5417 = vmatpush1.msra.mxu0 0.0
  %5418 = vmatprep.mubr.f32.mxu0 0.0
  %5419 = vmatmul.mubr.f32.gmra.mrb[0].mxu0 %v5352
  %v5420 = vpop.f32.mrb[0].mxu0
  %v5421 = vadd.f32 0.0, %v5420
  %v5422 = vpop.f32.mrb[0].mxu0
  %5423 = vdwg.mxu0
  %v5424 = vadd.f32 %v5345, %v5421
  %v5425 = vld [vmem:[#allocation3 + $0x34] sm:$0xff]
  %v5426 = vld [vmem:[%s5 + $0x80] sm:$0xff]
  %v5427 = vld [vmem:[%s5 + $0x88] sm:$0xff]
  %v5428 = vld [vmem:[%s5 + $0x90] sm:$0xff]
  %v5429 = vld [vmem:[%s5 + $0x98] sm:$0xff]
  %v5431 = vsel %vm5088, %v5425, 0
  %5433 = vmatprep.subr.mxu0 0.0
  %5434 = vmatpush1.msra.mxu0 %v5426
  %5435 = vmatprep.subr.mxu0 0.0
  %5436 = vmatpush1.msra.mxu0 %v5427
  %5437 = vmatprep.subr.mxu0 0.0
  %5438 = vmatpush1.msra.mxu0 %v5428
  %5439 = vmatprep.subr.mxu0 0.0
  %5440 = vmatpush1.msra.mxu0 %v5429
  %5441 = vmatprep.subr.mxu0 0.0
  %5442 = vmatpush1.msra.mxu0 0.0
  %5443 = vmatprep.subr.mxu0 0.0
  %5444 = vmatpush1.msra.mxu0 0.0
  %5445 = vmatprep.subr.mxu0 0.0
  %5446 = vmatpush1.msra.mxu0 0.0
  %5447 = vmatprep.subr.mxu0 0.0
  %5448 = vmatpush1.msra.mxu0 0.0
  %5449 = vmatprep.subr.mxu0 0.0
  %5450 = vmatpush1.msra.mxu0 0.0
  %5451 = vmatprep.subr.mxu0 0.0
  %5452 = vmatpush1.msra.mxu0 0.0
  %5453 = vmatprep.subr.mxu0 0.0
  %5454 = vmatpush1.msra.mxu0 0.0
  %5455 = vmatprep.subr.mxu0 0.0
  %5456 = vmatpush1.msra.mxu0 0.0
  %5457 = vmatprep.subr.mxu0 0.0
  %5458 = vmatpush1.msra.mxu0 0.0
  %5459 = vmatprep.subr.mxu0 0.0
  %5460 = vmatpush1.msra.mxu0 0.0
  %5461 = vmatprep.subr.mxu0 0.0
  %5462 = vmatpush1.msra.mxu0 0.0
  %5463 = vmatprep.subr.mxu0 0.0
  %5464 = vmatpush1.msra.mxu0 0.0
  %5465 = vmatprep.subr.mxu0 0.0
  %5466 = vmatpush1.msra.mxu0 0.0
  %5467 = vmatprep.subr.mxu0 0.0
  %5468 = vmatpush1.msra.mxu0 0.0
  %5469 = vmatprep.subr.mxu0 0.0
  %5470 = vmatpush1.msra.mxu0 0.0
  %5471 = vmatprep.subr.mxu0 0.0
  %5472 = vmatpush1.msra.mxu0 0.0
  %5473 = vmatprep.subr.mxu0 0.0
  %5474 = vmatpush1.msra.mxu0 0.0
  %5475 = vmatprep.subr.mxu0 0.0
  %5476 = vmatpush1.msra.mxu0 0.0
  %5477 = vmatprep.subr.mxu0 0.0
  %5478 = vmatpush1.msra.mxu0 0.0
  %5479 = vmatprep.subr.mxu0 0.0
  %5480 = vmatpush1.msra.mxu0 0.0
  %5481 = vmatprep.subr.mxu0 0.0
  %5482 = vmatpush1.msra.mxu0 0.0
  %5483 = vmatprep.subr.mxu0 0.0
  %5484 = vmatpush1.msra.mxu0 0.0
  %5485 = vmatprep.subr.mxu0 0.0
  %5486 = vmatpush1.msra.mxu0 0.0
  %5487 = vmatprep.subr.mxu0 0.0
  %5488 = vmatpush1.msra.mxu0 0.0
  %5489 = vmatprep.subr.mxu0 0.0
  %5490 = vmatpush1.msra.mxu0 0.0
  %5491 = vmatprep.subr.mxu0 0.0
  %5492 = vmatpush1.msra.mxu0 0.0
  %5493 = vmatprep.subr.mxu0 0.0
  %5494 = vmatpush1.msra.mxu0 0.0
  %5495 = vmatprep.subr.mxu0 0.0
  %5496 = vmatpush1.msra.mxu0 0.0
  %5497 = vmatprep.mubr.f32.mxu0 0.0
  %5498 = vmatmul.mubr.f32.gmra.mrb[0].mxu0 %v5431
  %v5499 = vpop.f32.mrb[0].mxu0
  %v5500 = vadd.f32 0.0, %v5499
  %v5501 = vpop.f32.mrb[0].mxu0
  %5502 = vdwg.mxu0
  %v5503 = vadd.f32 %v5424, %v5500
  %v5504 = vld [vmem:[#allocation3 + $0x38] sm:$0xff]
  %v5505 = vld [vmem:[%s5 + $0xa0] sm:$0xff]
  %v5506 = vld [vmem:[%s5 + $0xa8] sm:$0xff]
  %v5507 = vld [vmem:[%s5 + $0xb0] sm:$0xff]
  %v5508 = vld [vmem:[%s5 + $0xb8] sm:$0xff]
  %v5510 = vsel %vm5088, %v5504, 0
  %5512 = vmatprep.subr.mxu0 0.0
  %5513 = vmatpush1.msra.mxu0 %v5505
  %5514 = vmatprep.subr.mxu0 0.0
  %5515 = vmatpush1.msra.mxu0 %v5506
  %5516 = vmatprep.subr.mxu0 0.0
  %5517 = vmatpush1.msra.mxu0 %v5507
  %5518 = vmatprep.subr.mxu0 0.0
  %5519 = vmatpush1.msra.mxu0 %v5508
  %5520 = vmatprep.subr.mxu0 0.0
  %5521 = vmatpush1.msra.mxu0 0.0
  %5522 = vmatprep.subr.mxu0 0.0
  %5523 = vmatpush1.msra.mxu0 0.0
  %5524 = vmatprep.subr.mxu0 0.0
  %5525 = vmatpush1.msra.mxu0 0.0
  %5526 = vmatprep.subr.mxu0 0.0
  %5527 = vmatpush1.msra.mxu0 0.0
  %5528 = vmatprep.subr.mxu0 0.0
  %5529 = vmatpush1.msra.mxu0 0.0
  %5530 = vmatprep.subr.mxu0 0.0
  %5531 = vmatpush1.msra.mxu0 0.0
  %5532 = vmatprep.subr.mxu0 0.0
  %5533 = vmatpush1.msra.mxu0 0.0
  %5534 = vmatprep.subr.mxu0 0.0
  %5535 = vmatpush1.msra.mxu0 0.0
  %5536 = vmatprep.subr.mxu0 0.0
  %5537 = vmatpush1.msra.mxu0 0.0
  %5538 = vmatprep.subr.mxu0 0.0
  %5539 = vmatpush1.msra.mxu0 0.0
  %5540 = vmatprep.subr.mxu0 0.0
  %5541 = vmatpush1.msra.mxu0 0.0
  %5542 = vmatprep.subr.mxu0 0.0
  %5543 = vmatpush1.msra.mxu0 0.0
  %5544 = vmatprep.subr.mxu0 0.0
  %5545 = vmatpush1.msra.mxu0 0.0
  %5546 = vmatprep.subr.mxu0 0.0
  %5547 = vmatpush1.msra.mxu0 0.0
  %5548 = vmatprep.subr.mxu0 0.0
  %5549 = vmatpush1.msra.mxu0 0.0
  %5550 = vmatprep.subr.mxu0 0.0
  %5551 = vmatpush1.msra.mxu0 0.0
  %5552 = vmatprep.subr.mxu0 0.0
  %5553 = vmatpush1.msra.mxu0 0.0
  %5554 = vmatprep.subr.mxu0 0.0
  %5555 = vmatpush1.msra.mxu0 0.0
  %5556 = vmatprep.subr.mxu0 0.0
  %5557 = vmatpush1.msra.mxu0 0.0
  %5558 = vmatprep.subr.mxu0 0.0
  %5559 = vmatpush1.msra.mxu0 0.0
  %5560 = vmatprep.subr.mxu0 0.0
  %5561 = vmatpush1.msra.mxu0 0.0
  %5562 = vmatprep.subr.mxu0 0.0
  %5563 = vmatpush1.msra.mxu0 0.0
  %5564 = vmatprep.subr.mxu0 0.0
  %5565 = vmatpush1.msra.mxu0 0.0
  %5566 = vmatprep.subr.mxu0 0.0
  %5567 = vmatpush1.msra.mxu0 0.0
  %5568 = vmatprep.subr.mxu0 0.0
  %5569 = vmatpush1.msra.mxu0 0.0
  %5570 = vmatprep.subr.mxu0 0.0
  %5571 = vmatpush1.msra.mxu0 0.0
  %5572 = vmatprep.subr.mxu0 0.0
  %5573 = vmatpush1.msra.mxu0 0.0
  %5574 = vmatprep.subr.mxu0 0.0
  %5575 = vmatpush1.msra.mxu0 0.0
  %5576 = vmatprep.mubr.f32.mxu0 0.0
  %5577 = vmatmul.mubr.f32.gmra.mrb[0].mxu0 %v5510
  %v5578 = vpop.f32.mrb[0].mxu0
  %v5579 = vadd.f32 0.0, %v5578
  %v5580 = vpop.f32.mrb[0].mxu0
  %5581 = vdwg.mxu0
  %v5582 = vadd.f32 %v5503, %v5579
  %v5583 = vld [vmem:[#allocation3 + $0x3c] sm:$0xff]
  %v5584 = vld [vmem:[%s5 + $0xc0] sm:$0xff]
  %v5585 = vld [vmem:[%s5 + $0xc8] sm:$0xff]
  %v5586 = vld [vmem:[%s5 + $0xd0] sm:$0xff]
  %v5587 = vld [vmem:[%s5 + $0xd8] sm:$0xff]
  %v5589 = vsel %vm5088, %v5583, 0
  %5591 = vmatprep.subr.mxu0 0.0
  %5592 = vmatpush1.msra.mxu0 %v5584
  %5593 = vmatprep.subr.mxu0 0.0
  %5594 = vmatpush1.msra.mxu0 %v5585
  %5595 = vmatprep.subr.mxu0 0.0
  %5596 = vmatpush1.msra.mxu0 %v5586
  %5597 = vmatprep.subr.mxu0 0.0
  %5598 = vmatpush1.msra.mxu0 %v5587
  %5599 = vmatprep.subr.mxu0 0.0
  %5600 = vmatpush1.msra.mxu0 0.0
  %5601 = vmatprep.subr.mxu0 0.0
  %5602 = vmatpush1.msra.mxu0 0.0
  %5603 = vmatprep.subr.mxu0 0.0
  %5604 = vmatpush1.msra.mxu0 0.0
  %5605 = vmatprep.subr.mxu0 0.0
  %5606 = vmatpush1.msra.mxu0 0.0
  %5607 = vmatprep.subr.mxu0 0.0
  %5608 = vmatpush1.msra.mxu0 0.0
  %5609 = vmatprep.subr.mxu0 0.0
  %5610 = vmatpush1.msra.mxu0 0.0
  %5611 = vmatprep.subr.mxu0 0.0
  %5612 = vmatpush1.msra.mxu0 0.0
  %5613 = vmatprep.subr.mxu0 0.0
  %5614 = vmatpush1.msra.mxu0 0.0
  %5615 = vmatprep.subr.mxu0 0.0
  %5616 = vmatpush1.msra.mxu0 0.0
  %5617 = vmatprep.subr.mxu0 0.0
  %5618 = vmatpush1.msra.mxu0 0.0
  %5619 = vmatprep.subr.mxu0 0.0
  %5620 = vmatpush1.msra.mxu0 0.0
  %5621 = vmatprep.subr.mxu0 0.0
  %5622 = vmatpush1.msra.mxu0 0.0
  %5623 = vmatprep.subr.mxu0 0.0
  %5624 = vmatpush1.msra.mxu0 0.0
  %5625 = vmatprep.subr.mxu0 0.0
  %5626 = vmatpush1.msra.mxu0 0.0
  %5627 = vmatprep.subr.mxu0 0.0
  %5628 = vmatpush1.msra.mxu0 0.0
  %5629 = vmatprep.subr.mxu0 0.0
  %5630 = vmatpush1.msra.mxu0 0.0
  %5631 = vmatprep.subr.mxu0 0.0
  %5632 = vmatpush1.msra.mxu0 0.0
  %5633 = vmatprep.subr.mxu0 0.0
  %5634 = vmatpush1.msra.mxu0 0.0
  %5635 = vmatprep.subr.mxu0 0.0
  %5636 = vmatpush1.msra.mxu0 0.0
  %5637 = vmatprep.subr.mxu0 0.0
  %5638 = vmatpush1.msra.mxu0 0.0
  %5639 = vmatprep.subr.mxu0 0.0
  %5640 = vmatpush1.msra.mxu0 0.0
  %5641 = vmatprep.subr.mxu0 0.0
  %5642 = vmatpush1.msra.mxu0 0.0
  %5643 = vmatprep.subr.mxu0 0.0
  %5644 = vmatpush1.msra.mxu0 0.0
  %5645 = vmatprep.subr.mxu0 0.0
  %5646 = vmatpush1.msra.mxu0 0.0
  %5647 = vmatprep.subr.mxu0 0.0
  %5648 = vmatpush1.msra.mxu0 0.0
  %5649 = vmatprep.subr.mxu0 0.0
  %5650 = vmatpush1.msra.mxu0 0.0
  %5651 = vmatprep.subr.mxu0 0.0
  %5652 = vmatpush1.msra.mxu0 0.0
  %5653 = vmatprep.subr.mxu0 0.0
  %5654 = vmatpush1.msra.mxu0 0.0
  %5655 = vmatprep.mubr.f32.mxu0 0.0
  %5656 = vmatmul.mubr.f32.gmra.mrb[0].mxu0 %v5589
  %v5657 = vpop.f32.mrb[0].mxu0
  %v5658 = vadd.f32 0.0, %v5657
  %v5659 = vpop.f32.mrb[0].mxu0
  %5660 = vdwg.mxu0
  %v5661 = vadd.f32 %v5582, %v5658
  %v5662 = vld [vmem:[#allocation3 + $0x40] sm:$0xff]
  %v5663 = vld [vmem:[%s5 + $0xe0] sm:$0xff]
  %v5664 = vld [vmem:[%s5 + $0xe8] sm:$0xff]
  %v5665 = vld [vmem:[%s5 + $0xf0] sm:$0xff]
  %v5666 = vld [vmem:[%s5 + $0xf8] sm:$0xff]
  %v5668 = vsel %vm5088, %v5662, 0
  %5670 = vmatprep.subr.mxu0 0.0
  %5671 = vmatpush1.msra.mxu0 %v5663
  %5672 = vmatprep.subr.mxu0 0.0
  %5673 = vmatpush1.msra.mxu0 %v5664
  %5674 = vmatprep.subr.mxu0 0.0
  %5675 = vmatpush1.msra.mxu0 %v5665
  %5676 = vmatprep.subr.mxu0 0.0
  %5677 = vmatpush1.msra.mxu0 %v5666
  %5678 = vmatprep.subr.mxu0 0.0
  %5679 = vmatpush1.msra.mxu0 0.0
  %5680 = vmatprep.subr.mxu0 0.0
  %5681 = vmatpush1.msra.mxu0 0.0
  %5682 = vmatprep.subr.mxu0 0.0
  %5683 = vmatpush1.msra.mxu0 0.0
  %5684 = vmatprep.subr.mxu0 0.0
  %5685 = vmatpush1.msra.mxu0 0.0
  %5686 = vmatprep.subr.mxu0 0.0
  %5687 = vmatpush1.msra.mxu0 0.0
  %5688 = vmatprep.subr.mxu0 0.0
  %5689 = vmatpush1.msra.mxu0 0.0
  %5690 = vmatprep.subr.mxu0 0.0
  %5691 = vmatpush1.msra.mxu0 0.0
  %5692 = vmatprep.subr.mxu0 0.0
  %5693 = vmatpush1.msra.mxu0 0.0
  %5694 = vmatprep.subr.mxu0 0.0
  %5695 = vmatpush1.msra.mxu0 0.0
  %5696 = vmatprep.subr.mxu0 0.0
  %5697 = vmatpush1.msra.mxu0 0.0
  %5698 = vmatprep.subr.mxu0 0.0
  %5699 = vmatpush1.msra.mxu0 0.0
  %5700 = vmatprep.subr.mxu0 0.0
  %5701 = vmatpush1.msra.mxu0 0.0
  %5702 = vmatprep.subr.mxu0 0.0
  %5703 = vmatpush1.msra.mxu0 0.0
  %5704 = vmatprep.subr.mxu0 0.0
  %5705 = vmatpush1.msra.mxu0 0.0
  %5706 = vmatprep.subr.mxu0 0.0
  %5707 = vmatpush1.msra.mxu0 0.0
  %5708 = vmatprep.subr.mxu0 0.0
  %5709 = vmatpush1.msra.mxu0 0.0
  %5710 = vmatprep.subr.mxu0 0.0
  %5711 = vmatpush1.msra.mxu0 0.0
  %5712 = vmatprep.subr.mxu0 0.0
  %5713 = vmatpush1.msra.mxu0 0.0
  %5714 = vmatprep.subr.mxu0 0.0
  %5715 = vmatpush1.msra.mxu0 0.0
  %5716 = vmatprep.subr.mxu0 0.0
  %5717 = vmatpush1.msra.mxu0 0.0
  %5718 = vmatprep.subr.mxu0 0.0
  %5719 = vmatpush1.msra.mxu0 0.0
  %5720 = vmatprep.subr.mxu0 0.0
  %5721 = vmatpush1.msra.mxu0 0.0
  %5722 = vmatprep.subr.mxu0 0.0
  %5723 = vmatpush1.msra.mxu0 0.0
  %5724 = vmatprep.subr.mxu0 0.0
  %5725 = vmatpush1.msra.mxu0 0.0
  %5726 = vmatprep.subr.mxu0 0.0
  %5727 = vmatpush1.msra.mxu0 0.0
  %5728 = vmatprep.subr.mxu0 0.0
  %5729 = vmatpush1.msra.mxu0 0.0
  %5730 = vmatprep.subr.mxu0 0.0
  %5731 = vmatpush1.msra.mxu0 0.0
  %5732 = vmatprep.subr.mxu0 0.0
  %5733 = vmatpush1.msra.mxu0 0.0
  %5734 = vmatprep.mubr.f32.mxu0 0.0
  %5735 = vmatmul.mubr.f32.gmra.mrb[0].mxu0 %v5668
  %v5736 = vpop.f32.mrb[0].mxu0
  %v5737 = vadd.f32 0.0, %v5736
  %v5738 = vpop.f32.mrb[0].mxu0
  %5739 = vdwg.mxu0
  %v5740 = vadd.f32 %v5661, %v5737
  %v5741 = vld [vmem:[#allocation3 + $0x68] sm:$0xff]
  %v5742 = vld [vmem:[%s5 + $0x100] sm:$0xff]
  %v5743 = vld [vmem:[%s5 + $0x108] sm:$0xff]
  %v5744 = vld [vmem:[%s5 + $0x110] sm:$0xff]
  %v5745 = vld [vmem:[%s5 + $0x118] sm:$0xff]
  %v5747 = vsel %vm5088, %v5741, 0
  %5749 = vmatprep.subr.mxu0 0.0
  %5750 = vmatpush1.msra.mxu0 %v5742
  %5751 = vmatprep.subr.mxu0 0.0
  %5752 = vmatpush1.msra.mxu0 %v5743
  %5753 = vmatprep.subr.mxu0 0.0
  %5754 = vmatpush1.msra.mxu0 %v5744
  %5755 = vmatprep.subr.mxu0 0.0
  %5756 = vmatpush1.msra.mxu0 %v5745
  %5757 = vmatprep.subr.mxu0 0.0
  %5758 = vmatpush1.msra.mxu0 0.0
  %5759 = vmatprep.subr.mxu0 0.0
  %5760 = vmatpush1.msra.mxu0 0.0
  %5761 = vmatprep.subr.mxu0 0.0
  %5762 = vmatpush1.msra.mxu0 0.0
  %5763 = vmatprep.subr.mxu0 0.0
  %5764 = vmatpush1.msra.mxu0 0.0
  %5765 = vmatprep.subr.mxu0 0.0
  %5766 = vmatpush1.msra.mxu0 0.0
  %5767 = vmatprep.subr.mxu0 0.0
  %5768 = vmatpush1.msra.mxu0 0.0
  %5769 = vmatprep.subr.mxu0 0.0
  %5770 = vmatpush1.msra.mxu0 0.0
  %5771 = vmatprep.subr.mxu0 0.0
  %5772 = vmatpush1.msra.mxu0 0.0
  %5773 = vmatprep.subr.mxu0 0.0
  %5774 = vmatpush1.msra.mxu0 0.0
  %5775 = vmatprep.subr.mxu0 0.0
  %5776 = vmatpush1.msra.mxu0 0.0
  %5777 = vmatprep.subr.mxu0 0.0
  %5778 = vmatpush1.msra.mxu0 0.0
  %5779 = vmatprep.subr.mxu0 0.0
  %5780 = vmatpush1.msra.mxu0 0.0
  %5781 = vmatprep.subr.mxu0 0.0
  %5782 = vmatpush1.msra.mxu0 0.0
  %5783 = vmatprep.subr.mxu0 0.0
  %5784 = vmatpush1.msra.mxu0 0.0
  %5785 = vmatprep.subr.mxu0 0.0
  %5786 = vmatpush1.msra.mxu0 0.0
  %5787 = vmatprep.subr.mxu0 0.0
  %5788 = vmatpush1.msra.mxu0 0.0
  %5789 = vmatprep.subr.mxu0 0.0
  %5790 = vmatpush1.msra.mxu0 0.0
  %5791 = vmatprep.subr.mxu0 0.0
  %5792 = vmatpush1.msra.mxu0 0.0
  %5793 = vmatprep.subr.mxu0 0.0
  %5794 = vmatpush1.msra.mxu0 0.0
  %5795 = vmatprep.subr.mxu0 0.0
  %5796 = vmatpush1.msra.mxu0 0.0
  %5797 = vmatprep.subr.mxu0 0.0
  %5798 = vmatpush1.msra.mxu0 0.0
  %5799 = vmatprep.subr.mxu0 0.0
  %5800 = vmatpush1.msra.mxu0 0.0
  %5801 = vmatprep.subr.mxu0 0.0
  %5802 = vmatpush1.msra.mxu0 0.0
  %5803 = vmatprep.subr.mxu0 0.0
  %5804 = vmatpush1.msra.mxu0 0.0
  %5805 = vmatprep.subr.mxu0 0.0
  %5806 = vmatpush1.msra.mxu0 0.0
  %5807 = vmatprep.subr.mxu0 0.0
  %5808 = vmatpush1.msra.mxu0 0.0
  %5809 = vmatprep.subr.mxu0 0.0
  %5810 = vmatpush1.msra.mxu0 0.0
  %5811 = vmatprep.subr.mxu0 0.0
  %5812 = vmatpush1.msra.mxu0 0.0
  %5813 = vmatprep.mubr.f32.mxu0 0.0
  %5814 = vmatmul.mubr.f32.gmra.mrb[0].mxu0 %v5747
  %v5815 = vpop.f32.mrb[0].mxu0
  %v5816 = vadd.f32 0.0, %v5815
  %v5817 = vpop.f32.mrb[0].mxu0
  %5818 = vdwg.mxu0
  %v5819 = vadd.f32 %v5740, %v5816
  %v5820 = vld [vmem:[#allocation3 + $0x6c] sm:$0xff]
  %v5821 = vld [vmem:[%s5 + $0x120] sm:$0xff]
  %v5822 = vld [vmem:[%s5 + $0x128] sm:$0xff]
  %v5823 = vld [vmem:[%s5 + $0x130] sm:$0xff]
  %v5824 = vld [vmem:[%s5 + $0x138] sm:$0xff]
  %v5826 = vsel %vm5088, %v5820, 0
  %5828 = vmatprep.subr.mxu0 0.0
  %5829 = vmatpush1.msra.mxu0 %v5821
  %5830 = vmatprep.subr.mxu0 0.0
  %5831 = vmatpush1.msra.mxu0 %v5822
  %5832 = vmatprep.subr.mxu0 0.0
  %5833 = vmatpush1.msra.mxu0 %v5823
  %5834 = vmatprep.subr.mxu0 0.0
  %5835 = vmatpush1.msra.mxu0 %v5824
  %5836 = vmatprep.subr.mxu0 0.0
  %5837 = vmatpush1.msra.mxu0 0.0
  %5838 = vmatprep.subr.mxu0 0.0
  %5839 = vmatpush1.msra.mxu0 0.0
  %5840 = vmatprep.subr.mxu0 0.0
  %5841 = vmatpush1.msra.mxu0 0.0
  %5842 = vmatprep.subr.mxu0 0.0
  %5843 = vmatpush1.msra.mxu0 0.0
  %5844 = vmatprep.subr.mxu0 0.0
  %5845 = vmatpush1.msra.mxu0 0.0
  %5846 = vmatprep.subr.mxu0 0.0
  %5847 = vmatpush1.msra.mxu0 0.0
  %5848 = vmatprep.subr.mxu0 0.0
  %5849 = vmatpush1.msra.mxu0 0.0
  %5850 = vmatprep.subr.mxu0 0.0
  %5851 = vmatpush1.msra.mxu0 0.0
  %5852 = vmatprep.subr.mxu0 0.0
  %5853 = vmatpush1.msra.mxu0 0.0
  %5854 = vmatprep.subr.mxu0 0.0
  %5855 = vmatpush1.msra.mxu0 0.0
  %5856 = vmatprep.subr.mxu0 0.0
  %5857 = vmatpush1.msra.mxu0 0.0
  %5858 = vmatprep.subr.mxu0 0.0
  %5859 = vmatpush1.msra.mxu0 0.0
  %5860 = vmatprep.subr.mxu0 0.0
  %5861 = vmatpush1.msra.mxu0 0.0
  %5862 = vmatprep.subr.mxu0 0.0
  %5863 = vmatpush1.msra.mxu0 0.0
  %5864 = vmatprep.subr.mxu0 0.0
  %5865 = vmatpush1.msra.mxu0 0.0
  %5866 = vmatprep.subr.mxu0 0.0
  %5867 = vmatpush1.msra.mxu0 0.0
  %5868 = vmatprep.subr.mxu0 0.0
  %5869 = vmatpush1.msra.mxu0 0.0
  %5870 = vmatprep.subr.mxu0 0.0
  %5871 = vmatpush1.msra.mxu0 0.0
  %5872 = vmatprep.subr.mxu0 0.0
  %5873 = vmatpush1.msra.mxu0 0.0
  %5874 = vmatprep.subr.mxu0 0.0
  %5875 = vmatpush1.msra.mxu0 0.0
  %5876 = vmatprep.subr.mxu0 0.0
  %5877 = vmatpush1.msra.mxu0 0.0
  %5878 = vmatprep.subr.mxu0 0.0
  %5879 = vmatpush1.msra.mxu0 0.0
  %5880 = vmatprep.subr.mxu0 0.0
  %5881 = vmatpush1.msra.mxu0 0.0
  %5882 = vmatprep.subr.mxu0 0.0
  %5883 = vmatpush1.msra.mxu0 0.0
  %5884 = vmatprep.subr.mxu0 0.0
  %5885 = vmatpush1.msra.mxu0 0.0
  %5886 = vmatprep.subr.mxu0 0.0
  %5887 = vmatpush1.msra.mxu0 0.0
  %5888 = vmatprep.subr.mxu0 0.0
  %5889 = vmatpush1.msra.mxu0 0.0
  %5890 = vmatprep.subr.mxu0 0.0
  %5891 = vmatpush1.msra.mxu0 0.0
  %5892 = vmatprep.mubr.f32.mxu0 0.0
  %5893 = vmatmul.mubr.f32.gmra.mrb[0].mxu0 %v5826
  %v5894 = vpop.f32.mrb[0].mxu0
  %v5895 = vadd.f32 0.0, %v5894
  %v5896 = vpop.f32.mrb[0].mxu0
  %5897 = vdwg.mxu0
  %v5898 = vadd.f32 %v5819, %v5895
  %v5899 = vld [vmem:[#allocation3 + $0x70] sm:$0xff]
  %v5900 = vld [vmem:[%s5 + $0x140] sm:$0xff]
  %v5901 = vld [vmem:[%s5 + $0x148] sm:$0xff]
  %v5902 = vld [vmem:[%s5 + $0x150] sm:$0xff]
  %v5903 = vld [vmem:[%s5 + $0x158] sm:$0xff]
  %v5905 = vsel %vm5088, %v5899, 0
  %5907 = vmatprep.subr.mxu0 0.0
  %5908 = vmatpush1.msra.mxu0 %v5900
  %5909 = vmatprep.subr.mxu0 0.0
  %5910 = vmatpush1.msra.mxu0 %v5901
  %5911 = vmatprep.subr.mxu0 0.0
  %5912 = vmatpush1.msra.mxu0 %v5902
  %5913 = vmatprep.subr.mxu0 0.0
  %5914 = vmatpush1.msra.mxu0 %v5903
  %5915 = vmatprep.subr.mxu0 0.0
  %5916 = vmatpush1.msra.mxu0 0.0
  %5917 = vmatprep.subr.mxu0 0.0
  %5918 = vmatpush1.msra.mxu0 0.0
  %5919 = vmatprep.subr.mxu0 0.0
  %5920 = vmatpush1.msra.mxu0 0.0
  %5921 = vmatprep.subr.mxu0 0.0
  %5922 = vmatpush1.msra.mxu0 0.0
  %5923 = vmatprep.subr.mxu0 0.0
  %5924 = vmatpush1.msra.mxu0 0.0
  %5925 = vmatprep.subr.mxu0 0.0
  %5926 = vmatpush1.msra.mxu0 0.0
  %5927 = vmatprep.subr.mxu0 0.0
  %5928 = vmatpush1.msra.mxu0 0.0
  %5929 = vmatprep.subr.mxu0 0.0
  %5930 = vmatpush1.msra.mxu0 0.0
  %5931 = vmatprep.subr.mxu0 0.0
  %5932 = vmatpush1.msra.mxu0 0.0
  %5933 = vmatprep.subr.mxu0 0.0
  %5934 = vmatpush1.msra.mxu0 0.0
  %5935 = vmatprep.subr.mxu0 0.0
  %5936 = vmatpush1.msra.mxu0 0.0
  %5937 = vmatprep.subr.mxu0 0.0
  %5938 = vmatpush1.msra.mxu0 0.0
  %5939 = vmatprep.subr.mxu0 0.0
  %5940 = vmatpush1.msra.mxu0 0.0
  %5941 = vmatprep.subr.mxu0 0.0
  %5942 = vmatpush1.msra.mxu0 0.0
  %5943 = vmatprep.subr.mxu0 0.0
  %5944 = vmatpush1.msra.mxu0 0.0
  %5945 = vmatprep.subr.mxu0 0.0
  %5946 = vmatpush1.msra.mxu0 0.0
  %5947 = vmatprep.subr.mxu0 0.0
  %5948 = vmatpush1.msra.mxu0 0.0
  %5949 = vmatprep.subr.mxu0 0.0
  %5950 = vmatpush1.msra.mxu0 0.0
  %5951 = vmatprep.subr.mxu0 0.0
  %5952 = vmatpush1.msra.mxu0 0.0
  %5953 = vmatprep.subr.mxu0 0.0
  %5954 = vmatpush1.msra.mxu0 0.0
  %5955 = vmatprep.subr.mxu0 0.0
  %5956 = vmatpush1.msra.mxu0 0.0
  %5957 = vmatprep.subr.mxu0 0.0
  %5958 = vmatpush1.msra.mxu0 0.0
  %5959 = vmatprep.subr.mxu0 0.0
  %5960 = vmatpush1.msra.mxu0 0.0
  %5961 = vmatprep.subr.mxu0 0.0
  %5962 = vmatpush1.msra.mxu0 0.0
  %5963 = vmatprep.subr.mxu0 0.0
  %5964 = vmatpush1.msra.mxu0 0.0
  %5965 = vmatprep.subr.mxu0 0.0
  %5966 = vmatpush1.msra.mxu0 0.0
  %5967 = vmatprep.subr.mxu0 0.0
  %5968 = vmatpush1.msra.mxu0 0.0
  %5969 = vmatprep.subr.mxu0 0.0
  %5970 = vmatpush1.msra.mxu0 0.0
  %5971 = vmatprep.mubr.f32.mxu0 0.0
  %5972 = vmatmul.mubr.f32.gmra.mrb[0].mxu0 %v5905
  %v5973 = vpop.f32.mrb[0].mxu0
  %v5974 = vadd.f32 0.0, %v5973
  %v5975 = vpop.f32.mrb[0].mxu0
  %5976 = vdwg.mxu0
  %v5977 = vadd.f32 %v5898, %v5974
  %v5978 = vld [vmem:[#allocation3 + $0x74] sm:$0xff]
  %v5979 = vld [vmem:[%s5 + $0x160] sm:$0xff]
  %v5980 = vld [vmem:[%s5 + $0x168] sm:$0xff]
  %v5981 = vld [vmem:[%s5 + $0x170] sm:$0xff]
  %v5982 = vld [vmem:[%s5 + $0x178] sm:$0xff]
  %v5984 = vsel %vm5088, %v5978, 0
  %5986 = vmatprep.subr.mxu0 0.0
  %5987 = vmatpush1.msra.mxu0 %v5979
  %5988 = vmatprep.subr.mxu0 0.0
  %5989 = vmatpush1.msra.mxu0 %v5980
  %5990 = vmatprep.subr.mxu0 0.0
  %5991 = vmatpush1.msra.mxu0 %v5981
  %5992 = vmatprep.subr.mxu0 0.0
  %5993 = vmatpush1.msra.mxu0 %v5982
  %5994 = vmatprep.subr.mxu0 0.0
  %5995 = vmatpush1.msra.mxu0 0.0
  %5996 = vmatprep.subr.mxu0 0.0
  %5997 = vmatpush1.msra.mxu0 0.0
  %5998 = vmatprep.subr.mxu0 0.0
  %5999 = vmatpush1.msra.mxu0 0.0
  %6000 = vmatprep.subr.mxu0 0.0
  %6001 = vmatpush1.msra.mxu0 0.0
  %6002 = vmatprep.subr.mxu0 0.0
  %6003 = vmatpush1.msra.mxu0 0.0
  %6004 = vmatprep.subr.mxu0 0.0
  %6005 = vmatpush1.msra.mxu0 0.0
  %6006 = vmatprep.subr.mxu0 0.0
  %6007 = vmatpush1.msra.mxu0 0.0
  %6008 = vmatprep.subr.mxu0 0.0
  %6009 = vmatpush1.msra.mxu0 0.0
  %6010 = vmatprep.subr.mxu0 0.0
  %6011 = vmatpush1.msra.mxu0 0.0
  %6012 = vmatprep.subr.mxu0 0.0
  %6013 = vmatpush1.msra.mxu0 0.0
  %6014 = vmatprep.subr.mxu0 0.0
  %6015 = vmatpush1.msra.mxu0 0.0
  %6016 = vmatprep.subr.mxu0 0.0
  %6017 = vmatpush1.msra.mxu0 0.0
  %6018 = vmatprep.subr.mxu0 0.0
  %6019 = vmatpush1.msra.mxu0 0.0
  %6020 = vmatprep.subr.mxu0 0.0
  %6021 = vmatpush1.msra.mxu0 0.0
  %6022 = vmatprep.subr.mxu0 0.0
  %6023 = vmatpush1.msra.mxu0 0.0
  %6024 = vmatprep.subr.mxu0 0.0
  %6025 = vmatpush1.msra.mxu0 0.0
  %6026 = vmatprep.subr.mxu0 0.0
  %6027 = vmatpush1.msra.mxu0 0.0
  %6028 = vmatprep.subr.mxu0 0.0
  %6029 = vmatpush1.msra.mxu0 0.0
  %6030 = vmatprep.subr.mxu0 0.0
  %6031 = vmatpush1.msra.mxu0 0.0
  %6032 = vmatprep.subr.mxu0 0.0
  %6033 = vmatpush1.msra.mxu0 0.0
  %6034 = vmatprep.subr.mxu0 0.0
  %6035 = vmatpush1.msra.mxu0 0.0
  %6036 = vmatprep.subr.mxu0 0.0
  %6037 = vmatpush1.msra.mxu0 0.0
  %6038 = vmatprep.subr.mxu0 0.0
  %6039 = vmatpush1.msra.mxu0 0.0
  %6040 = vmatprep.subr.mxu0 0.0
  %6041 = vmatpush1.msra.mxu0 0.0
  %6042 = vmatprep.subr.mxu0 0.0
  %6043 = vmatpush1.msra.mxu0 0.0
  %6044 = vmatprep.subr.mxu0 0.0
  %6045 = vmatpush1.msra.mxu0 0.0
  %6046 = vmatprep.subr.mxu0 0.0
  %6047 = vmatpush1.msra.mxu0 0.0
  %6048 = vmatprep.subr.mxu0 0.0
  %6049 = vmatpush1.msra.mxu0 0.0
  %6050 = vmatprep.mubr.f32.mxu0 0.0
  %6051 = vmatmul.mubr.f32.gmra.mrb[0].mxu0 %v5984
  %v6052 = vpop.f32.mrb[0].mxu0
  %v6053 = vadd.f32 0.0, %v6052
  %v6054 = vpop.f32.mrb[0].mxu0
  %6055 = vdwg.mxu0
  %v6056 = vadd.f32 %v5977, %v6053
  %v6057 = vld [vmem:[#allocation3 + $0x9c] sm:$0xff]
  %v6058 = vld [vmem:[%s5 + $0x180] sm:$0xff]
  %v6059 = vld [vmem:[%s5 + $0x188] sm:$0xff]
  %v6060 = vld [vmem:[%s5 + $0x190] sm:$0xff]
  %v6061 = vld [vmem:[%s5 + $0x198] sm:$0xff]
  %v6063 = vsel %vm5088, %v6057, 0
  %6065 = vmatprep.subr.mxu0 0.0
  %6066 = vmatpush1.msra.mxu0 %v6058
  %6067 = vmatprep.subr.mxu0 0.0
  %6068 = vmatpush1.msra.mxu0 %v6059
  %6069 = vmatprep.subr.mxu0 0.0
  %6070 = vmatpush1.msra.mxu0 %v6060
  %6071 = vmatprep.subr.mxu0 0.0
  %6072 = vmatpush1.msra.mxu0 %v6061
  %6073 = vmatprep.subr.mxu0 0.0
  %6074 = vmatpush1.msra.mxu0 0.0
  %6075 = vmatprep.subr.mxu0 0.0
  %6076 = vmatpush1.msra.mxu0 0.0
  %6077 = vmatprep.subr.mxu0 0.0
  %6078 = vmatpush1.msra.mxu0 0.0
  %6079 = vmatprep.subr.mxu0 0.0
  %6080 = vmatpush1.msra.mxu0 0.0
  %6081 = vmatprep.subr.mxu0 0.0
  %6082 = vmatpush1.msra.mxu0 0.0
  %6083 = vmatprep.subr.mxu0 0.0
  %6084 = vmatpush1.msra.mxu0 0.0
  %6085 = vmatprep.subr.mxu0 0.0
  %6086 = vmatpush1.msra.mxu0 0.0
  %6087 = vmatprep.subr.mxu0 0.0
  %6088 = vmatpush1.msra.mxu0 0.0
  %6089 = vmatprep.subr.mxu0 0.0
  %6090 = vmatpush1.msra.mxu0 0.0
  %6091 = vmatprep.subr.mxu0 0.0
  %6092 = vmatpush1.msra.mxu0 0.0
  %6093 = vmatprep.subr.mxu0 0.0
  %6094 = vmatpush1.msra.mxu0 0.0
  %6095 = vmatprep.subr.mxu0 0.0
  %6096 = vmatpush1.msra.mxu0 0.0
  %6097 = vmatprep.subr.mxu0 0.0
  %6098 = vmatpush1.msra.mxu0 0.0
  %6099 = vmatprep.subr.mxu0 0.0
  %6100 = vmatpush1.msra.mxu0 0.0
  %6101 = vmatprep.subr.mxu0 0.0
  %6102 = vmatpush1.msra.mxu0 0.0
  %6103 = vmatprep.subr.mxu0 0.0
  %6104 = vmatpush1.msra.mxu0 0.0
  %6105 = vmatprep.subr.mxu0 0.0
  %6106 = vmatpush1.msra.mxu0 0.0
  %6107 = vmatprep.subr.mxu0 0.0
  %6108 = vmatpush1.msra.mxu0 0.0
  %6109 = vmatprep.subr.mxu0 0.0
  %6110 = vmatpush1.msra.mxu0 0.0
  %6111 = vmatprep.subr.mxu0 0.0
  %6112 = vmatpush1.msra.mxu0 0.0
  %6113 = vmatprep.subr.mxu0 0.0
  %6114 = vmatpush1.msra.mxu0 0.0
  %6115 = vmatprep.subr.mxu0 0.0
  %6116 = vmatpush1.msra.mxu0 0.0
  %6117 = vmatprep.subr.mxu0 0.0
  %6118 = vmatpush1.msra.mxu0 0.0
  %6119 = vmatprep.subr.mxu0 0.0
  %6120 = vmatpush1.msra.mxu0 0.0
  %6121 = vmatprep.subr.mxu0 0.0
  %6122 = vmatpush1.msra.mxu0 0.0
  %6123 = vmatprep.subr.mxu0 0.0
  %6124 = vmatpush1.msra.mxu0 0.0
  %6125 = vmatprep.subr.mxu0 0.0
  %6126 = vmatpush1.msra.mxu0 0.0
  %6127 = vmatprep.subr.mxu0 0.0
  %6128 = vmatpush1.msra.mxu0 0.0
  %6129 = vmatprep.mubr.f32.mxu0 0.0
  %6130 = vmatmul.mubr.f32.gmra.mrb[0].mxu0 %v6063
  %v6131 = vpop.f32.mrb[0].mxu0
  %v6132 = vadd.f32 0.0, %v6131
  %v6133 = vpop.f32.mrb[0].mxu0
  %6134 = vdwg.mxu0
  %v6135 = vadd.f32 %v6056, %v6132
  %v6136 = vld [vmem:[#allocation3 + $0xa0] sm:$0xff]
  %v6137 = vld [vmem:[%s5 + $0x1a0] sm:$0xff]
  %v6138 = vld [vmem:[%s5 + $0x1a8] sm:$0xff]
  %v6139 = vld [vmem:[%s5 + $0x1b0] sm:$0xff]
  %v6140 = vld [vmem:[%s5 + $0x1b8] sm:$0xff]
  %v6142 = vsel %vm5088, %v6136, 0
  %6144 = vmatprep.subr.mxu0 0.0
  %6145 = vmatpush1.msra.mxu0 %v6137
  %6146 = vmatprep.subr.mxu0 0.0
  %6147 = vmatpush1.msra.mxu0 %v6138
  %6148 = vmatprep.subr.mxu0 0.0
  %6149 = vmatpush1.msra.mxu0 %v6139
  %6150 = vmatprep.subr.mxu0 0.0
  %6151 = vmatpush1.msra.mxu0 %v6140
  %6152 = vmatprep.subr.mxu0 0.0
  %6153 = vmatpush1.msra.mxu0 0.0
  %6154 = vmatprep.subr.mxu0 0.0
  %6155 = vmatpush1.msra.mxu0 0.0
  %6156 = vmatprep.subr.mxu0 0.0
  %6157 = vmatpush1.msra.mxu0 0.0
  %6158 = vmatprep.subr.mxu0 0.0
  %6159 = vmatpush1.msra.mxu0 0.0
  %6160 = vmatprep.subr.mxu0 0.0
  %6161 = vmatpush1.msra.mxu0 0.0
  %6162 = vmatprep.subr.mxu0 0.0
  %6163 = vmatpush1.msra.mxu0 0.0
  %6164 = vmatprep.subr.mxu0 0.0
  %6165 = vmatpush1.msra.mxu0 0.0
  %6166 = vmatprep.subr.mxu0 0.0
  %6167 = vmatpush1.msra.mxu0 0.0
  %6168 = vmatprep.subr.mxu0 0.0
  %6169 = vmatpush1.msra.mxu0 0.0
  %6170 = vmatprep.subr.mxu0 0.0
  %6171 = vmatpush1.msra.mxu0 0.0
  %6172 = vmatprep.subr.mxu0 0.0
  %6173 = vmatpush1.msra.mxu0 0.0
  %6174 = vmatprep.subr.mxu0 0.0
  %6175 = vmatpush1.msra.mxu0 0.0
  %6176 = vmatprep.subr.mxu0 0.0
  %6177 = vmatpush1.msra.mxu0 0.0
  %6178 = vmatprep.subr.mxu0 0.0
  %6179 = vmatpush1.msra.mxu0 0.0
  %6180 = vmatprep.subr.mxu0 0.0
  %6181 = vmatpush1.msra.mxu0 0.0
  %6182 = vmatprep.subr.mxu0 0.0
  %6183 = vmatpush1.msra.mxu0 0.0
  %6184 = vmatprep.subr.mxu0 0.0
  %6185 = vmatpush1.msra.mxu0 0.0
  %6186 = vmatprep.subr.mxu0 0.0
  %6187 = vmatpush1.msra.mxu0 0.0
  %6188 = vmatprep.subr.mxu0 0.0
  %6189 = vmatpush1.msra.mxu0 0.0
  %6190 = vmatprep.subr.mxu0 0.0
  %6191 = vmatpush1.msra.mxu0 0.0
  %6192 = vmatprep.subr.mxu0 0.0
  %6193 = vmatpush1.msra.mxu0 0.0
  %6194 = vmatprep.subr.mxu0 0.0
  %6195 = vmatpush1.msra.mxu0 0.0
  %6196 = vmatprep.subr.mxu0 0.0
  %6197 = vmatpush1.msra.mxu0 0.0
  %6198 = vmatprep.subr.mxu0 0.0
  %6199 = vmatpush1.msra.mxu0 0.0
  %6200 = vmatprep.subr.mxu0 0.0
  %6201 = vmatpush1.msra.mxu0 0.0
  %6202 = vmatprep.subr.mxu0 0.0
  %6203 = vmatpush1.msra.mxu0 0.0
  %6204 = vmatprep.subr.mxu0 0.0
  %6205 = vmatpush1.msra.mxu0 0.0
  %6206 = vmatprep.subr.mxu0 0.0
  %6207 = vmatpush1.msra.mxu0 0.0
  %6208 = vmatprep.mubr.f32.mxu0 0.0
  %6209 = vmatmul.mubr.f32.gmra.mrb[0].mxu0 %v6142
  %v6210 = vpop.f32.mrb[0].mxu0
  %v6211 = vadd.f32 0.0, %v6210
  %v6212 = vpop.f32.mrb[0].mxu0
  %6213 = vdwg.mxu0
  %v6214 = vadd.f32 %v6135, %v6211
  %v6215 = vld [vmem:[#allocation3 + $0xa4] sm:$0xff]
  %v6216 = vld [vmem:[%s5 + $0x1c0] sm:$0xff]
  %v6217 = vld [vmem:[%s5 + $0x1c8] sm:$0xff]
  %v6218 = vld [vmem:[%s5 + $0x1d0] sm:$0xff]
  %v6219 = vld [vmem:[%s5 + $0x1d8] sm:$0xff]
  %v6221 = vsel %vm5088, %v6215, 0
  %6223 = vmatprep.subr.mxu0 0.0
  %6224 = vmatpush1.msra.mxu0 %v6216
  %6225 = vmatprep.subr.mxu0 0.0
  %6226 = vmatpush1.msra.mxu0 %v6217
  %6227 = vmatprep.subr.mxu0 0.0
  %6228 = vmatpush1.msra.mxu0 %v6218
  %6229 = vmatprep.subr.mxu0 0.0
  %6230 = vmatpush1.msra.mxu0 %v6219
  %6231 = vmatprep.subr.mxu0 0.0
  %6232 = vmatpush1.msra.mxu0 0.0
  %6233 = vmatprep.subr.mxu0 0.0
  %6234 = vmatpush1.msra.mxu0 0.0
  %6235 = vmatprep.subr.mxu0 0.0
  %6236 = vmatpush1.msra.mxu0 0.0
  %6237 = vmatprep.subr.mxu0 0.0
  %6238 = vmatpush1.msra.mxu0 0.0
  %6239 = vmatprep.subr.mxu0 0.0
  %6240 = vmatpush1.msra.mxu0 0.0
  %6241 = vmatprep.subr.mxu0 0.0
  %6242 = vmatpush1.msra.mxu0 0.0
  %6243 = vmatprep.subr.mxu0 0.0
  %6244 = vmatpush1.msra.mxu0 0.0
  %6245 = vmatprep.subr.mxu0 0.0
  %6246 = vmatpush1.msra.mxu0 0.0
  %6247 = vmatprep.subr.mxu0 0.0
  %6248 = vmatpush1.msra.mxu0 0.0
  %6249 = vmatprep.subr.mxu0 0.0
  %6250 = vmatpush1.msra.mxu0 0.0
  %6251 = vmatprep.subr.mxu0 0.0
  %6252 = vmatpush1.msra.mxu0 0.0
  %6253 = vmatprep.subr.mxu0 0.0
  %6254 = vmatpush1.msra.mxu0 0.0
  %6255 = vmatprep.subr.mxu0 0.0
  %6256 = vmatpush1.msra.mxu0 0.0
  %6257 = vmatprep.subr.mxu0 0.0
  %6258 = vmatpush1.msra.mxu0 0.0
  %6259 = vmatprep.subr.mxu0 0.0
  %6260 = vmatpush1.msra.mxu0 0.0
  %6261 = vmatprep.subr.mxu0 0.0
  %6262 = vmatpush1.msra.mxu0 0.0
  %6263 = vmatprep.subr.mxu0 0.0
  %6264 = vmatpush1.msra.mxu0 0.0
  %6265 = vmatprep.subr.mxu0 0.0
  %6266 = vmatpush1.msra.mxu0 0.0
  %6267 = vmatprep.subr.mxu0 0.0
  %6268 = vmatpush1.msra.mxu0 0.0
  %6269 = vmatprep.subr.mxu0 0.0
  %6270 = vmatpush1.msra.mxu0 0.0
  %6271 = vmatprep.subr.mxu0 0.0
  %6272 = vmatpush1.msra.mxu0 0.0
  %6273 = vmatprep.subr.mxu0 0.0
  %6274 = vmatpush1.msra.mxu0 0.0
  %6275 = vmatprep.subr.mxu0 0.0
  %6276 = vmatpush1.msra.mxu0 0.0
  %6277 = vmatprep.subr.mxu0 0.0
  %6278 = vmatpush1.msra.mxu0 0.0
  %6279 = vmatprep.subr.mxu0 0.0
  %6280 = vmatpush1.msra.mxu0 0.0
  %6281 = vmatprep.subr.mxu0 0.0
  %6282 = vmatpush1.msra.mxu0 0.0
  %6283 = vmatprep.subr.mxu0 0.0
  %6284 = vmatpush1.msra.mxu0 0.0
  %6285 = vmatprep.subr.mxu0 0.0
  %6286 = vmatpush1.msra.mxu0 0.0
  %6287 = vmatprep.mubr.f32.mxu0 0.0
  %6288 = vmatmul.mubr.f32.gmra.mrb[0].mxu0 %v6221
  %v6289 = vpop.f32.mrb[0].mxu0
  %v6290 = vadd.f32 0.0, %v6289
  %v6291 = vpop.f32.mrb[0].mxu0
  %6292 = vdwg.mxu0
  %v6293 = vadd.f32 %v6214, %v6290
  %v6294 = vld [vmem:[#allocation3 + $0xa8] sm:$0xff]
  %v6295 = vld [vmem:[%s5 + $0x1e0] sm:$0xff]
  %v6296 = vld [vmem:[%s5 + $0x1e8] sm:$0xff]
  %v6297 = vld [vmem:[%s5 + $0x1f0] sm:$0xff]
  %v6298 = vld [vmem:[%s5 + $0x1f8] sm:$0xff]
  %v6300 = vsel %vm5088, %v6294, 0
  %6302 = vmatprep.subr.mxu0 0.0
  %6303 = vmatpush1.msra.mxu0 %v6295
  %6304 = vmatprep.subr.mxu0 0.0
  %6305 = vmatpush1.msra.mxu0 %v6296
  %6306 = vmatprep.subr.mxu0 0.0
  %6307 = vmatpush1.msra.mxu0 %v6297
  %6308 = vmatprep.subr.mxu0 0.0
  %6309 = vmatpush1.msra.mxu0 %v6298
  %6310 = vmatprep.subr.mxu0 0.0
  %6311 = vmatpush1.msra.mxu0 0.0
  %6312 = vmatprep.subr.mxu0 0.0
  %6313 = vmatpush1.msra.mxu0 0.0
  %6314 = vmatprep.subr.mxu0 0.0
  %6315 = vmatpush1.msra.mxu0 0.0
  %6316 = vmatprep.subr.mxu0 0.0
  %6317 = vmatpush1.msra.mxu0 0.0
  %6318 = vmatprep.subr.mxu0 0.0
  %6319 = vmatpush1.msra.mxu0 0.0
  %6320 = vmatprep.subr.mxu0 0.0
  %6321 = vmatpush1.msra.mxu0 0.0
  %6322 = vmatprep.subr.mxu0 0.0
  %6323 = vmatpush1.msra.mxu0 0.0
  %6324 = vmatprep.subr.mxu0 0.0
  %6325 = vmatpush1.msra.mxu0 0.0
  %6326 = vmatprep.subr.mxu0 0.0
  %6327 = vmatpush1.msra.mxu0 0.0
  %6328 = vmatprep.subr.mxu0 0.0
  %6329 = vmatpush1.msra.mxu0 0.0
  %6330 = vmatprep.subr.mxu0 0.0
  %6331 = vmatpush1.msra.mxu0 0.0
  %6332 = vmatprep.subr.mxu0 0.0
  %6333 = vmatpush1.msra.mxu0 0.0
  %6334 = vmatprep.subr.mxu0 0.0
  %6335 = vmatpush1.msra.mxu0 0.0
  %6336 = vmatprep.subr.mxu0 0.0
  %6337 = vmatpush1.msra.mxu0 0.0
  %6338 = vmatprep.subr.mxu0 0.0
  %6339 = vmatpush1.msra.mxu0 0.0
  %6340 = vmatprep.subr.mxu0 0.0
  %6341 = vmatpush1.msra.mxu0 0.0
  %6342 = vmatprep.subr.mxu0 0.0
  %6343 = vmatpush1.msra.mxu0 0.0
  %6344 = vmatprep.subr.mxu0 0.0
  %6345 = vmatpush1.msra.mxu0 0.0
  %6346 = vmatprep.subr.mxu0 0.0
  %6347 = vmatpush1.msra.mxu0 0.0
  %6348 = vmatprep.subr.mxu0 0.0
  %6349 = vmatpush1.msra.mxu0 0.0
  %6350 = vmatprep.subr.mxu0 0.0
  %6351 = vmatpush1.msra.mxu0 0.0
  %6352 = vmatprep.subr.mxu0 0.0
  %6353 = vmatpush1.msra.mxu0 0.0
  %6354 = vmatprep.subr.mxu0 0.0
  %6355 = vmatpush1.msra.mxu0 0.0
  %6356 = vmatprep.subr.mxu0 0.0
  %6357 = vmatpush1.msra.mxu0 0.0
  %6358 = vmatprep.subr.mxu0 0.0
  %6359 = vmatpush1.msra.mxu0 0.0
  %6360 = vmatprep.subr.mxu0 0.0
  %6361 = vmatpush1.msra.mxu0 0.0
  %6362 = vmatprep.subr.mxu0 0.0
  %6363 = vmatpush1.msra.mxu0 0.0
  %6364 = vmatprep.subr.mxu0 0.0
  %6365 = vmatpush1.msra.mxu0 0.0
  %6366 = vmatprep.mubr.f32.mxu0 0.0
  %6367 = vmatmul.mubr.f32.gmra.mrb[0].mxu0 %v6300
  %v6368 = vpop.f32.mrb[0].mxu0
  %v6369 = vadd.f32 0.0, %v6368
  %v6370 = vpop.f32.mrb[0].mxu0
  %6371 = vdwg.mxu0
  %v6372 = vadd.f32 %v6293, %v6369
  %v6373 = vld [vmem:[%s6] sm:$0x1]
  %v6375 = vlaneseq
  %v6376 = vshrl.u32 %v6375, 7
  %v6377 = vsub.s32 0, %v6376
  %v6378 = vrot.slane %v6373, %v6377
  %v6380 = vadd.f32 %v6372, %v6378
  %v6381 = vmax.f32 %v6380, 0.0
  %6382 = vst.msk [vmem:[#allocation4] sm:$0xff] %vm92, %v6381
  %v6383 = vld [vmem:[#allocation4] sm:$0xff]
  %v6384 = vld [vmem:[%s7] sm:$0xff]
  %v6385 = vld [vmem:[%s7 + $0x8] sm:$0xff]
  %v6386 = vld [vmem:[%s7 + $0x10] sm:$0xff]
  %v6387 = vld [vmem:[%s7 + $0x18] sm:$0xff]
  %v6388 = vld [vmem:[%s7 + $0x20] sm:$0xff]
  %v6389 = vld [vmem:[%s7 + $0x28] sm:$0xff]
  %v6390 = vld [vmem:[%s7 + $0x30] sm:$0xff]
  %v6391 = vld [vmem:[%s7 + $0x38] sm:$0xff]
  %v6392 = vld [vmem:[%s8] sm:$0x1]
  %v6394 = vlaneseq
  %v6395 = vshrl.u32 %v6394, 7
  %v6396 = vsub.s32 0, %v6395
  %v6397 = vrot.slane %v6392, %v6396
  %v6400 = vsel %vm92, %v6383, 0
  %6402 = vmatprep.subr.mxu0 0.0
  %6403 = vmatpush1.msra.mxu0 %v6384
  %6404 = vmatprep.subr.mxu0 0.0
  %6405 = vmatpush1.msra.mxu0 %v6385
  %6406 = vmatprep.subr.mxu0 0.0
  %6407 = vmatpush1.msra.mxu0 %v6386
  %6408 = vmatprep.subr.mxu0 0.0
  %6409 = vmatpush1.msra.mxu0 %v6387
  %6410 = vmatprep.subr.mxu0 0.0
  %6411 = vmatpush1.msra.mxu0 %v6388
  %6412 = vmatprep.subr.mxu0 0.0
  %6413 = vmatpush1.msra.mxu0 %v6389
  %6414 = vmatprep.subr.mxu0 0.0
  %6415 = vmatpush1.msra.mxu0 %v6390
  %6416 = vmatprep.subr.mxu0 0.0
  %6417 = vmatpush1.msra.mxu0 %v6391
  %6418 = vmatprep.subr.mxu0 0.0
  %6419 = vmatpush1.msra.mxu0 0.0
  %6420 = vmatprep.subr.mxu0 0.0
  %6421 = vmatpush1.msra.mxu0 0.0
  %6422 = vmatprep.subr.mxu0 0.0
  %6423 = vmatpush1.msra.mxu0 0.0
  %6424 = vmatprep.subr.mxu0 0.0
  %6425 = vmatpush1.msra.mxu0 0.0
  %6426 = vmatprep.subr.mxu0 0.0
  %6427 = vmatpush1.msra.mxu0 0.0
  %6428 = vmatprep.subr.mxu0 0.0
  %6429 = vmatpush1.msra.mxu0 0.0
  %6430 = vmatprep.subr.mxu0 0.0
  %6431 = vmatpush1.msra.mxu0 0.0
  %6432 = vmatprep.subr.mxu0 0.0
  %6433 = vmatpush1.msra.mxu0 0.0
  %6434 = vmatprep.subr.mxu0 0.0
  %6435 = vmatpush1.msra.mxu0 0.0
  %6436 = vmatprep.subr.mxu0 0.0
  %6437 = vmatpush1.msra.mxu0 0.0
  %6438 = vmatprep.subr.mxu0 0.0
  %6439 = vmatpush1.msra.mxu0 0.0
  %6440 = vmatprep.subr.mxu0 0.0
  %6441 = vmatpush1.msra.mxu0 0.0
  %6442 = vmatprep.subr.mxu0 0.0
  %6443 = vmatpush1.msra.mxu0 0.0
  %6444 = vmatprep.subr.mxu0 0.0
  %6445 = vmatpush1.msra.mxu0 0.0
  %6446 = vmatprep.subr.mxu0 0.0
  %6447 = vmatpush1.msra.mxu0 0.0
  %6448 = vmatprep.subr.mxu0 0.0
  %6449 = vmatpush1.msra.mxu0 0.0
  %6450 = vmatprep.subr.mxu0 0.0
  %6451 = vmatpush1.msra.mxu0 0.0
  %6452 = vmatprep.subr.mxu0 0.0
  %6453 = vmatpush1.msra.mxu0 0.0
  %6454 = vmatprep.subr.mxu0 0.0
  %6455 = vmatpush1.msra.mxu0 0.0
  %6456 = vmatprep.subr.mxu0 0.0
  %6457 = vmatpush1.msra.mxu0 0.0
  %6458 = vmatprep.subr.mxu0 0.0
  %6459 = vmatpush1.msra.mxu0 0.0
  %6460 = vmatprep.subr.mxu0 0.0
  %6461 = vmatpush1.msra.mxu0 0.0
  %6462 = vmatprep.subr.mxu0 0.0
  %6463 = vmatpush1.msra.mxu0 0.0
  %6464 = vmatprep.subr.mxu0 0.0
  %6465 = vmatpush1.msra.mxu0 0.0
  %6466 = vmatprep.mubr.f32.mxu0 0.0
  %6467 = vmatmul.mubr.f32.gmra.mrb[0].mxu0 %v6400
  %v6468 = vpop.f32.mrb[0].mxu0
  %v6469 = vadd.f32 %v6397, %v6468
  %v6470 = vpop.f32.mrb[0].mxu0
  %6471 = vdwg.mxu0
  %v6472 = vmax.f32 %v6469, 0.0
  %vm6473 = vcmask 64512
  %6474 = vst.msk [vmem:[#allocation5] sm:$0xff] %vm6473, %v6472
  %v6475 = vld [vmem:[#allocation5] sm:$0xff]
  %v6476 = vld [vmem:[%s9] sm:$0xff]
  %v6477 = vld [vmem:[%s9 + $0x8] sm:$0xff]
  %v6478 = vld [vmem:[%s9 + $0x10] sm:$0xff]
  %v6479 = vld [vmem:[%s9 + $0x18] sm:$0xff]
  %v6480 = vld [vmem:[%s10] sm:$0xf]
  %v6482 = vlaneseq
  %v6483 = vshrl.u32 %v6482, 7
  %v6484 = vsub.s32 0, %v6483
  %v6485 = vrot.slane %v6480, %v6484
  %v6486 = vlaneseq
  %v6487 = vshrl.u32 %v6486, 7
  %v6488 = vsub.s32 1, %v6487
  %v6489 = vrot.slane %v6480, %v6488
  %v6490 = vlaneseq
  %v6491 = vshrl.u32 %v6490, 7
  %v6492 = vsub.s32 2, %v6491
  %v6493 = vrot.slane %v6480, %v6492
  %v6494 = vlaneseq
  %v6495 = vshrl.u32 %v6494, 7
  %v6496 = vsub.s32 3, %v6495
  %v6497 = vrot.slane %v6480, %v6496
  %v6503 = vsel %vm6473, %v6475, 0
  %6505 = vmatprep.subr.mxu0 %v6477
  %6506 = vmatpush1.msra.mxu0 %v6476
  %6507 = vmatprep.subr.mxu0 0.0
  %6508 = vmatpush1.msra.mxu0 0.0
  %6509 = vmatprep.subr.mxu0 0.0
  %6510 = vmatpush1.msra.mxu0 0.0
  %6511 = vmatprep.subr.mxu0 0.0
  %6512 = vmatpush1.msra.mxu0 0.0
  %6513 = vmatprep.subr.mxu0 0.0
  %6514 = vmatpush1.msra.mxu0 0.0
  %6515 = vmatprep.subr.mxu0 0.0
  %6516 = vmatpush1.msra.mxu0 0.0
  %6517 = vmatprep.subr.mxu0 0.0
  %6518 = vmatpush1.msra.mxu0 0.0
  %6519 = vmatprep.subr.mxu0 0.0
  %6520 = vmatpush1.msra.mxu0 0.0
  %6521 = vmatprep.subr.mxu0 0.0
  %6522 = vmatpush1.msra.mxu0 0.0
  %6523 = vmatprep.subr.mxu0 0.0
  %6524 = vmatpush1.msra.mxu0 0.0
  %6525 = vmatprep.subr.mxu0 0.0
  %6526 = vmatpush1.msra.mxu0 0.0
  %6527 = vmatprep.subr.mxu0 0.0
  %6528 = vmatpush1.msra.mxu0 0.0
  %6529 = vmatprep.subr.mxu0 0.0
  %6530 = vmatpush1.msra.mxu0 0.0
  %6531 = vmatprep.subr.mxu0 0.0
  %6532 = vmatpush1.msra.mxu0 0.0
  %6533 = vmatprep.subr.mxu0 0.0
  %6534 = vmatpush1.msra.mxu0 0.0
  %6535 = vmatprep.subr.mxu0 0.0
  %6536 = vmatpush1.msra.mxu0 0.0
  %6537 = vmatprep.subr.mxu0 0.0
  %6538 = vmatpush1.msra.mxu0 0.0
  %6539 = vmatprep.subr.mxu0 0.0
  %6540 = vmatpush1.msra.mxu0 0.0
  %6541 = vmatprep.subr.mxu0 0.0
  %6542 = vmatpush1.msra.mxu0 0.0
  %6543 = vmatprep.subr.mxu0 0.0
  %6544 = vmatpush1.msra.mxu0 0.0
  %6545 = vmatprep.subr.mxu0 0.0
  %6546 = vmatpush1.msra.mxu0 0.0
  %6547 = vmatprep.subr.mxu0 0.0
  %6548 = vmatpush1.msra.mxu0 0.0
  %6549 = vmatprep.subr.mxu0 0.0
  %6550 = vmatpush1.msra.mxu0 0.0
  %6551 = vmatprep.subr.mxu0 0.0
  %6552 = vmatpush1.msra.mxu0 0.0
  %6553 = vmatprep.subr.mxu0 0.0
  %6554 = vmatpush1.msra.mxu0 0.0
  %6555 = vmatprep.subr.mxu0 0.0
  %6556 = vmatpush1.msra.mxu0 0.0
  %6557 = vmatprep.subr.mxu0 0.0
  %6558 = vmatpush1.msra.mxu0 0.0
  %6559 = vmatprep.subr.mxu0 0.0
  %6560 = vmatpush1.msra.mxu0 0.0
  %6561 = vmatprep.subr.mxu0 0.0
  %6562 = vmatpush1.msra.mxu0 0.0
  %6563 = vmatprep.subr.mxu0 0.0
  %6564 = vmatpush1.msra.mxu0 0.0
  %6565 = vmatprep.subr.mxu0 0.0
  %6566 = vmatpush1.msra.mxu0 0.0
  %6567 = vmatprep.subr.mxu0 0.0
  %6568 = vmatpush1.msra.mxu0 0.0
  %6569 = vmatprep.mubr.f32.mxu0 0.0
  %6570 = vmatmul.mubr.f32.gmra.mrb[0].mxu0 %v6503
  %v6571 = vpop.f32.mrb[0].mxu0
  %v6572 = vadd.f32 %v6485, %v6571
  %v6573 = vpop.f32.mrb[0].mxu0
  %v6574 = vadd.f32 %v6489, %v6573
  %6575 = vdwg.mxu0
  %6576 = vmatprep.subr.mxu0 %v6479
  %6577 = vmatpush1.msra.mxu0 %v6478
  %6578 = vmatprep.subr.mxu0 0.0
  %6579 = vmatpush1.msra.mxu0 0.0
  %6580 = vmatprep.subr.mxu0 0.0
  %6581 = vmatpush1.msra.mxu0 0.0
  %6582 = vmatprep.subr.mxu0 0.0
  %6583 = vmatpush1.msra.mxu0 0.0
  %6584 = vmatprep.subr.mxu0 0.0
  %6585 = vmatpush1.msra.mxu0 0.0
  %6586 = vmatprep.subr.mxu0 0.0
  %6587 = vmatpush1.msra.mxu0 0.0
  %6588 = vmatprep.subr.mxu0 0.0
  %6589 = vmatpush1.msra.mxu0 0.0
  %6590 = vmatprep.subr.mxu0 0.0
  %6591 = vmatpush1.msra.mxu0 0.0
  %6592 = vmatprep.subr.mxu0 0.0
  %6593 = vmatpush1.msra.mxu0 0.0
  %6594 = vmatprep.subr.mxu0 0.0
  %6595 = vmatpush1.msra.mxu0 0.0
  %6596 = vmatprep.subr.mxu0 0.0
  %6597 = vmatpush1.msra.mxu0 0.0
  %6598 = vmatprep.subr.mxu0 0.0
  %6599 = vmatpush1.msra.mxu0 0.0
  %6600 = vmatprep.subr.mxu0 0.0
  %6601 = vmatpush1.msra.mxu0 0.0
  %6602 = vmatprep.subr.mxu0 0.0
  %6603 = vmatpush1.msra.mxu0 0.0
  %6604 = vmatprep.subr.mxu0 0.0
  %6605 = vmatpush1.msra.mxu0 0.0
  %6606 = vmatprep.subr.mxu0 0.0
  %6607 = vmatpush1.msra.mxu0 0.0
  %6608 = vmatprep.subr.mxu0 0.0
  %6609 = vmatpush1.msra.mxu0 0.0
  %6610 = vmatprep.subr.mxu0 0.0
  %6611 = vmatpush1.msra.mxu0 0.0
  %6612 = vmatprep.subr.mxu0 0.0
  %6613 = vmatpush1.msra.mxu0 0.0
  %6614 = vmatprep.subr.mxu0 0.0
  %6615 = vmatpush1.msra.mxu0 0.0
  %6616 = vmatprep.subr.mxu0 0.0
  %6617 = vmatpush1.msra.mxu0 0.0
  %6618 = vmatprep.subr.mxu0 0.0
  %6619 = vmatpush1.msra.mxu0 0.0
  %6620 = vmatprep.subr.mxu0 0.0
  %6621 = vmatpush1.msra.mxu0 0.0
  %6622 = vmatprep.subr.mxu0 0.0
  %6623 = vmatpush1.msra.mxu0 0.0
  %6624 = vmatprep.subr.mxu0 0.0
  %6625 = vmatpush1.msra.mxu0 0.0
  %6626 = vmatprep.subr.mxu0 0.0
  %6627 = vmatpush1.msra.mxu0 0.0
  %6628 = vmatprep.subr.mxu0 0.0
  %6629 = vmatpush1.msra.mxu0 0.0
  %6630 = vmatprep.subr.mxu0 0.0
  %6631 = vmatpush1.msra.mxu0 0.0
  %6632 = vmatprep.subr.mxu0 0.0
  %6633 = vmatpush1.msra.mxu0 0.0
  %6634 = vmatprep.subr.mxu0 0.0
  %6635 = vmatpush1.msra.mxu0 0.0
  %6636 = vmatprep.subr.mxu0 0.0
  %6637 = vmatpush1.msra.mxu0 0.0
  %6638 = vmatprep.subr.mxu0 0.0
  %6639 = vmatpush1.msra.mxu0 0.0
  %6640 = vmatprep.mubr.f32.mxu0 0.0
  %6641 = vmatmul.mubr.f32.gmra.mrb[0].mxu0 %v6503
  %v6642 = vpop.f32.mrb[0].mxu0
  %v6643 = vadd.f32 %v6493, %v6642
  %v6644 = vpop.f32.mrb[0].mxu0
  %v6645 = vadd.f32 %v6497, %v6644
  %6646 = vdwg.mxu0
  %v6647 = vmax.f32 %v6572, 0.0
  %v6648 = vmax.f32 %v6574, 0.0
  %v6649 = vmax.f32 %v6643, 0.0
  %v6650 = vmax.f32 %v6645, 0.0
  %v6651 = vld [vmem:[%s11] sm:$0xff]
  %v6652 = vld [vmem:[%s11 + $0x8] sm:$0xff]
  %v6653 = vld [vmem:[%s11 + $0x10] sm:$0xff]
  %v6654 = vld [vmem:[%s11 + $0x18] sm:$0xff]
  %v6655 = vld [vmem:[%s11 + $0x20] sm:$0xff]
  %v6656 = vld [vmem:[%s11 + $0x28] sm:$0xff]
  %v6657 = vld [vmem:[%s11 + $0x30] sm:$0xff]
  %v6658 = vld [vmem:[%s11 + $0x38] sm:$0xff]
  %v6659 = vld [vmem:[%s11 + $0x40] sm:$0xff]
  %v6660 = vld [vmem:[%s11 + $0x48] sm:$0xff]
  %v6661 = vld [vmem:[%s11 + $0x50] sm:$0xff]
  %v6662 = vld [vmem:[%s11 + $0x58] sm:$0xff]
  %v6663 = vld [vmem:[%s11 + $0x60] sm:$0xff]
  %v6664 = vld [vmem:[%s11 + $0x68] sm:$0xff]
  %v6665 = vld [vmem:[%s11 + $0x70] sm:$0xff]
  %v6666 = vld [vmem:[%s11 + $0x78] sm:$0xff]
  %v6667 = vld [vmem:[%s11 + $0x80] sm:$0xff]
  %v6668 = vld [vmem:[%s11 + $0x88] sm:$0xff]
  %v6669 = vld [vmem:[%s11 + $0x90] sm:$0xff]
  %v6670 = vld [vmem:[%s11 + $0x98] sm:$0xff]
  %v6671 = vld [vmem:[%s11 + $0xa0] sm:$0xff]
  %v6672 = vld [vmem:[%s11 + $0xa8] sm:$0xff]
  %v6673 = vld [vmem:[%s11 + $0xb0] sm:$0xff]
  %v6674 = vld [vmem:[%s11 + $0xb8] sm:$0xff]
  %v6675 = vld [vmem:[%s11 + $0xc0] sm:$0xff]
  %v6676 = vld [vmem:[%s11 + $0xc8] sm:$0xff]
  %v6677 = vld [vmem:[%s11 + $0xd0] sm:$0xff]
  %v6678 = vld [vmem:[%s11 + $0xd8] sm:$0xff]
  %v6679 = vld [vmem:[%s11 + $0xe0] sm:$0xff]
  %v6680 = vld [vmem:[%s11 + $0xe8] sm:$0xff]
  %v6681 = vld [vmem:[%s11 + $0xf0] sm:$0xff]
  %v6682 = vld [vmem:[%s11 + $0xf8] sm:$0xff]
  %v6683 = vld [vmem:[%s11 + $0x100] sm:$0xff]
  %v6684 = vld [vmem:[%s11 + $0x108] sm:$0xff]
  %v6685 = vld [vmem:[%s11 + $0x110] sm:$0xff]
  %v6686 = vld [vmem:[%s11 + $0x118] sm:$0xff]
  %v6687 = vld [vmem:[%s11 + $0x120] sm:$0xff]
  %v6688 = vld [vmem:[%s11 + $0x128] sm:$0xff]
  %v6689 = vld [vmem:[%s11 + $0x130] sm:$0xff]
  %v6690 = vld [vmem:[%s11 + $0x138] sm:$0xff]
  %v6691 = vld [vmem:[%s11 + $0x140] sm:$0xff]
  %v6692 = vld [vmem:[%s11 + $0x148] sm:$0xff]
  %v6693 = vld [vmem:[%s11 + $0x150] sm:$0xff]
  %v6694 = vld [vmem:[%s11 + $0x158] sm:$0xff]
  %v6695 = vld [vmem:[%s11 + $0x160] sm:$0xff]
  %v6696 = vld [vmem:[%s11 + $0x168] sm:$0xff]
  %v6697 = vld [vmem:[%s11 + $0x170] sm:$0xff]
  %v6698 = vld [vmem:[%s11 + $0x178] sm:$0xff]
  %v6699 = vld [vmem:[%s11 + $0x180] sm:$0xff]
  %v6700 = vld [vmem:[%s11 + $0x188] sm:$0xff]
  %v6701 = vld [vmem:[%s11 + $0x190] sm:$0xff]
  %v6702 = vld [vmem:[%s11 + $0x198] sm:$0xff]
  %v6703 = vld [vmem:[%s11 + $0x1a0] sm:$0xff]
  %v6704 = vld [vmem:[%s11 + $0x1a8] sm:$0xff]
  %v6705 = vld [vmem:[%s11 + $0x1b0] sm:$0xff]
  %v6706 = vld [vmem:[%s11 + $0x1b8] sm:$0xff]
  %v6707 = vld [vmem:[%s11 + $0x1c0] sm:$0xff]
  %v6708 = vld [vmem:[%s11 + $0x1c8] sm:$0xff]
  %v6709 = vld [vmem:[%s11 + $0x1d0] sm:$0xff]
  %v6710 = vld [vmem:[%s11 + $0x1d8] sm:$0xff]
  %v6711 = vld [vmem:[%s11 + $0x1e0] sm:$0xff]
  %v6712 = vld [vmem:[%s11 + $0x1e8] sm:$0xff]
  %v6713 = vld [vmem:[%s11 + $0x1f0] sm:$0xff]
  %v6714 = vld [vmem:[%s11 + $0x1f8] sm:$0xff]
  %v6715 = vld [vmem:[%s12] sm:$0x1]
  %v6717 = vlaneseq
  %v6718 = vshrl.u32 %v6717, 7
  %v6719 = vsub.s32 0, %v6718
  %v6720 = vrot.slane %v6715, %v6719
  %6722 = vmatprep.subr.mxu0 0.0
  %6723 = vmatpush1.msra.mxu0 %v6651
  %6724 = vmatprep.subr.mxu0 0.0
  %6725 = vmatpush1.msra.mxu0 %v6652
  %6726 = vmatprep.subr.mxu0 0.0
  %6727 = vmatpush1.msra.mxu0 %v6653
  %6728 = vmatprep.subr.mxu0 0.0
  %6729 = vmatpush1.msra.mxu0 %v6654
  %6730 = vmatprep.subr.mxu0 0.0
  %6731 = vmatpush1.msra.mxu0 %v6655
  %6732 = vmatprep.subr.mxu0 0.0
  %6733 = vmatpush1.msra.mxu0 %v6656
  %6734 = vmatprep.subr.mxu0 0.0
  %6735 = vmatpush1.msra.mxu0 %v6657
  %6736 = vmatprep.subr.mxu0 0.0
  %6737 = vmatpush1.msra.mxu0 %v6658
  %6738 = vmatprep.subr.mxu0 0.0
  %6739 = vmatpush1.msra.mxu0 %v6659
  %6740 = vmatprep.subr.mxu0 0.0
  %6741 = vmatpush1.msra.mxu0 %v6660
  %6742 = vmatprep.subr.mxu0 0.0
  %6743 = vmatpush1.msra.mxu0 %v6661
  %6744 = vmatprep.subr.mxu0 0.0
  %6745 = vmatpush1.msra.mxu0 %v6662
  %6746 = vmatprep.subr.mxu0 0.0
  %6747 = vmatpush1.msra.mxu0 %v6663
  %6748 = vmatprep.subr.mxu0 0.0
  %6749 = vmatpush1.msra.mxu0 %v6664
  %6750 = vmatprep.subr.mxu0 0.0
  %6751 = vmatpush1.msra.mxu0 %v6665
  %6752 = vmatprep.subr.mxu0 0.0
  %6753 = vmatpush1.msra.mxu0 %v6666
  %6754 = vmatprep.subr.mxu0 0.0
  %6755 = vmatpush1.msra.mxu0 %v6667
  %6756 = vmatprep.subr.mxu0 0.0
  %6757 = vmatpush1.msra.mxu0 %v6668
  %6758 = vmatprep.subr.mxu0 0.0
  %6759 = vmatpush1.msra.mxu0 %v6669
  %6760 = vmatprep.subr.mxu0 0.0
  %6761 = vmatpush1.msra.mxu0 %v6670
  %6762 = vmatprep.subr.mxu0 0.0
  %6763 = vmatpush1.msra.mxu0 %v6671
  %6764 = vmatprep.subr.mxu0 0.0
  %6765 = vmatpush1.msra.mxu0 %v6672
  %6766 = vmatprep.subr.mxu0 0.0
  %6767 = vmatpush1.msra.mxu0 %v6673
  %6768 = vmatprep.subr.mxu0 0.0
  %6769 = vmatpush1.msra.mxu0 %v6674
  %6770 = vmatprep.subr.mxu0 0.0
  %6771 = vmatpush1.msra.mxu0 %v6675
  %6772 = vmatprep.subr.mxu0 0.0
  %6773 = vmatpush1.msra.mxu0 %v6676
  %6774 = vmatprep.subr.mxu0 0.0
  %6775 = vmatpush1.msra.mxu0 %v6677
  %6776 = vmatprep.subr.mxu0 0.0
  %6777 = vmatpush1.msra.mxu0 %v6678
  %6778 = vmatprep.subr.mxu0 0.0
  %6779 = vmatpush1.msra.mxu0 %v6679
  %6780 = vmatprep.subr.mxu0 0.0
  %6781 = vmatpush1.msra.mxu0 %v6680
  %6782 = vmatprep.subr.mxu0 0.0
  %6783 = vmatpush1.msra.mxu0 %v6681
  %6784 = vmatprep.subr.mxu0 0.0
  %6785 = vmatpush1.msra.mxu0 %v6682
  %6786 = vmatprep.mubr.f32.mxu0 %v6648
  %6787 = vmatmul.mubr.f32.gmra.mrb[0].mxu0 %v6647
  %v6788 = vpop.f32.mrb[0].mxu0
  %v6789 = vadd.f32 %v6720, %v6788
  %v6790 = vpop.f32.mrb[0].mxu0
  %6791 = vdwg.mxu0
  %6792 = vmatprep.subr.mxu0 0.0
  %6793 = vmatpush1.msra.mxu0 %v6683
  %6794 = vmatprep.subr.mxu0 0.0
  %6795 = vmatpush1.msra.mxu0 %v6684
  %6796 = vmatprep.subr.mxu0 0.0
  %6797 = vmatpush1.msra.mxu0 %v6685
  %6798 = vmatprep.subr.mxu0 0.0
  %6799 = vmatpush1.msra.mxu0 %v6686
  %6800 = vmatprep.subr.mxu0 0.0
  %6801 = vmatpush1.msra.mxu0 %v6687
  %6802 = vmatprep.subr.mxu0 0.0
  %6803 = vmatpush1.msra.mxu0 %v6688
  %6804 = vmatprep.subr.mxu0 0.0
  %6805 = vmatpush1.msra.mxu0 %v6689
  %6806 = vmatprep.subr.mxu0 0.0
  %6807 = vmatpush1.msra.mxu0 %v6690
  %6808 = vmatprep.subr.mxu0 0.0
  %6809 = vmatpush1.msra.mxu0 %v6691
  %6810 = vmatprep.subr.mxu0 0.0
  %6811 = vmatpush1.msra.mxu0 %v6692
  %6812 = vmatprep.subr.mxu0 0.0
  %6813 = vmatpush1.msra.mxu0 %v6693
  %6814 = vmatprep.subr.mxu0 0.0
  %6815 = vmatpush1.msra.mxu0 %v6694
  %6816 = vmatprep.subr.mxu0 0.0
  %6817 = vmatpush1.msra.mxu0 %v6695
  %6818 = vmatprep.subr.mxu0 0.0
  %6819 = vmatpush1.msra.mxu0 %v6696
  %6820 = vmatprep.subr.mxu0 0.0
  %6821 = vmatpush1.msra.mxu0 %v6697
  %6822 = vmatprep.subr.mxu0 0.0
  %6823 = vmatpush1.msra.mxu0 %v6698
  %6824 = vmatprep.subr.mxu0 0.0
  %6825 = vmatpush1.msra.mxu0 %v6699
  %6826 = vmatprep.subr.mxu0 0.0
  %6827 = vmatpush1.msra.mxu0 %v6700
  %6828 = vmatprep.subr.mxu0 0.0
  %6829 = vmatpush1.msra.mxu0 %v6701
  %6830 = vmatprep.subr.mxu0 0.0
  %6831 = vmatpush1.msra.mxu0 %v6702
  %6832 = vmatprep.subr.mxu0 0.0
  %6833 = vmatpush1.msra.mxu0 %v6703
  %6834 = vmatprep.subr.mxu0 0.0
  %6835 = vmatpush1.msra.mxu0 %v6704
  %6836 = vmatprep.subr.mxu0 0.0
  %6837 = vmatpush1.msra.mxu0 %v6705
  %6838 = vmatprep.subr.mxu0 0.0
  %6839 = vmatpush1.msra.mxu0 %v6706
  %6840 = vmatprep.subr.mxu0 0.0
  %6841 = vmatpush1.msra.mxu0 %v6707
  %6842 = vmatprep.subr.mxu0 0.0
  %6843 = vmatpush1.msra.mxu0 %v6708
  %6844 = vmatprep.subr.mxu0 0.0
  %6845 = vmatpush1.msra.mxu0 %v6709
  %6846 = vmatprep.subr.mxu0 0.0
  %6847 = vmatpush1.msra.mxu0 %v6710
  %6848 = vmatprep.subr.mxu0 0.0
  %6849 = vmatpush1.msra.mxu0 %v6711
  %6850 = vmatprep.subr.mxu0 0.0
  %6851 = vmatpush1.msra.mxu0 %v6712
  %6852 = vmatprep.subr.mxu0 0.0
  %6853 = vmatpush1.msra.mxu0 %v6713
  %6854 = vmatprep.subr.mxu0 0.0
  %6855 = vmatpush1.msra.mxu0 %v6714
  %6856 = vmatprep.mubr.f32.mxu0 %v6650
  %6857 = vmatmul.mubr.f32.gmra.mrb[0].mxu0 %v6649
  %v6858 = vpop.f32.mrb[0].mxu0
  %v6859 = vadd.f32 %v6789, %v6858
  %v6860 = vpop.f32.mrb[0].mxu0
  %6861 = vdwg.mxu0
  %6862 = vst [vmem:[%s13] sm:$0xff] %v6859
  // Predicated region
  $region54: #{_ddqn_apply.1} parent=0 // pred_check
    _
  $region55: #{_ddqn_apply.1} parent=0 // pred_check_branch
    %6864 = sbr.rel (0) target = $region57
  $region56: #{_ddqn_apply.1} parent=0 // pred_region
    _
  $region57: #{_ddqn_apply.1} parent=0 // pred_fallthru
    _
  // Predicated region
  $region58: #{_ddqn_apply.1} parent=0 // pred_check
    _
  $region59: #{_ddqn_apply.1} parent=0 // pred_check_branch
    %6866 = sbr.rel (0) target = $region61
  $region60: #{_ddqn_apply.1} parent=0 // pred_region
    _
  $region61: #{_ddqn_apply.1} parent=0 // pred_fallthru
    _

</llo_original>
